<compile_context>
chip_gen: v7x
topology: tpu7x:2x2x1
jax: 0.10.0
libtpu: 0.0.40
codegen_flags: <defaults>
</compile_context>

<pallas_src>
from functools import partial

import jax
import jax.numpy as jnp
from jax.experimental import pallas as pl
from jax.experimental.pallas import tpu as pltpu

BATCH = 32          # fixed by X = input.view(32, 512) in the module
DIM = 512           # num_inputs == num_hiddens == num_outputs == 512
NUM_LINEARS = 11    # self.linear, linear1..linear10


# ---------------------------------------------------------------------------
# Kernel 1: parallel input projection  Xproj = X @ [Wxi|Wxf|Wxo|Wxc] + b_gates
# (hoisted out of the recurrence; gate bias folded in here)
# ---------------------------------------------------------------------------
def _xproj_kernel(x_ref, wxg_ref, bg_ref, out_ref):
    x = x_ref[...].astype(jnp.bfloat16)                         # (TB*32, 512)
    y = jnp.dot(x, wxg_ref[...], preferred_element_type=jnp.float32) + bg_ref[...]
    out_ref[...] = y.astype(jnp.bfloat16)                       # (TB*32, 2048) bf16


# ---------------------------------------------------------------------------
# Kernel 2: the recurrence.  One grid step == TB timesteps.
# ---------------------------------------------------------------------------
def _lstm_seq_kernel(sel_ref, flag_ref,          # scalar prefetch (SMEM), shape (T_pad,)
                     gx_ref,                     # (TB, 32, 2048) bf16  pre-projected gates (streamed)
                     h0_ref, c0_ref,             # (32, 512) f32        initial state (read at block 0)
                     whh_ref,                    # (512, 2048) bf16     fused hidden weights (resident)
                     wconv_ref, bconv_ref,       # (512, 512) bf16, (1, 512) f32 (resident)
                     wlin_ref, blin_ref,         # (11, 512, 512) bf16, (11, 1, 512) f32 (resident)
                     ch_ref,                     # (TB, 32, 512) f32    per-step CH output
                     h_ref, c_ref):              # (32, 512) f32        H/C carry (constant-index outputs)
    b = pl.program_id(0)
    tb = gx_ref.shape[0]

    # Initialize the recurrent carry from the HBM inputs on the first block.
    # h_ref / c_ref have a constant block index, so they stay VMEM-resident
    # across the whole grid and act as the H/C carry.
    @pl.when(b == 0)
    def _():
        h_ref[...] = h0_ref[...]
        c_ref[...] = c0_ref[...]

    h = h_ref[...]
    c = c_ref[...]

    # Static unroll over the TB timesteps of this block (tb is a Python int).
    for j in range(tb):
        t = b * tb + j                       # global timestep index (traced)
        flag = flag_ref[t]                   # -1: padded step, 0: no final linear, 1: final linear
        valid = flag >= 0
        apply_final = flag > 0

        # Serially-dependent matmul: only h @ Wh_fused (K=512), f32 accumulate.
        gates = gx_ref[j].astype(jnp.float32) + jnp.dot(
            h.astype(jnp.bfloat16), whh_ref[...],
            preferred_element_type=jnp.float32)

        # sigmoid(x) == 0.5 * tanh(0.5 * x) + 0.5  (single EUP op per gate)
        i_g = 0.5 * jnp.tanh(0.5 * gates[:, 0 * DIM:1 * DIM]) + 0.5
        f_g = 0.5 * jnp.tanh(0.5 * gates[:, 1 * DIM:2 * DIM]) + 0.5
        o_g = 0.5 * jnp.tanh(0.5 * gates[:, 2 * DIM:3 * DIM]) + 0.5
        c_tilda = jnp.tanh(gates[:, 3 * DIM:4 * DIM])

        c_new = f_g * c + i_g * c_tilda
        h_new = o_g * jnp.tanh(c_new)

        # CH = tanh(H + C); CH = tanh(CH + convd(CH))
        ch = jnp.tanh(h_new + c_new)
        conv = jnp.dot(ch.astype(jnp.bfloat16), wconv_ref[...],
                       preferred_element_type=jnp.float32) + bconv_ref[...]
        ch = jnp.tanh(ch + conv)

        # Final linear: all 11 weights are VMEM-resident; pick the active one with a
        # dynamic first-axis index (no re-DMA when sel changes).
        @pl.when(apply_final)
        def _():
            s = sel_ref[t]
            ch_ref[j] = (jnp.dot(ch.astype(jnp.bfloat16), wlin_ref[s],
                                 preferred_element_type=jnp.float32)
                         + blin_ref[s])

        @pl.when(jnp.logical_not(apply_final))
        def _():
            ch_ref[j] = ch

        # Padded (flag == -1) tail steps must not advance the recurrent state.
        h = jnp.where(valid, h_new, h)
        c = jnp.where(valid, c_new, c)

    h_ref[...] = h
    c_ref[...] = c


# ---------------------------------------------------------------------------
# Wrapper: projection pallas_call + recurrence pallas_call
# ---------------------------------------------------------------------------
@partial(jax.jit, static_argnums=(0,))
def _run_kernel(tb, sel, flag, x2d, h0, c0, wxg, bg, whh, wconv, bconv, wlin, blin):
    t_pad = sel.shape[0]
    n_blocks = t_pad // tb

    # 1) Parallel input projection for all timesteps (M = tb*32 per block).
    xproj2d = pl.pallas_call(
        _xproj_kernel,
        out_shape=jax.ShapeDtypeStruct((t_pad * BATCH, 4 * DIM), jnp.bfloat16),
        grid=(n_blocks,),
        in_specs=[
            pl.BlockSpec((tb * BATCH, DIM), lambda b: (b, 0)),      # X slab (streamed)
            pl.BlockSpec((DIM, 4 * DIM), lambda b: (0, 0)),         # fused Wx (resident)
            pl.BlockSpec((1, 4 * DIM), lambda b: (0, 0)),           # fused gate bias (resident)
        ],
        out_specs=pl.BlockSpec((tb * BATCH, 4 * DIM), lambda b: (b, 0)),
        compiler_params=pltpu.CompilerParams(
            dimension_semantics=("parallel",),
            vmem_limit_bytes=32 * 1024 * 1024),
    )(x2d, wxg, bg)
    xproj = xproj2d.reshape(t_pad, BATCH, 4 * DIM)

    # 2) Sequential recurrence, TB timesteps per grid step.
    out_shapes = (
        jax.ShapeDtypeStruct((t_pad, BATCH, DIM), jnp.float32),     # CH per step
        jax.ShapeDtypeStruct((BATCH, DIM), jnp.float32),            # final H
        jax.ShapeDtypeStruct((BATCH, DIM), jnp.float32),            # final C
    )
    grid_spec = pltpu.PrefetchScalarGridSpec(
        num_scalar_prefetch=2,
        grid=(n_blocks,),
        in_specs=[
            pl.BlockSpec((tb, BATCH, 4 * DIM), lambda b, sel, flag: (b, 0, 0)),        # Xproj (streamed)
            pl.BlockSpec((BATCH, DIM), lambda b, sel, flag: (0, 0)),                   # H0 (resident)
            pl.BlockSpec((BATCH, DIM), lambda b, sel, flag: (0, 0)),                   # C0 (resident)
            pl.BlockSpec((DIM, 4 * DIM), lambda b, sel, flag: (0, 0)),                 # fused Wh (resident)
            pl.BlockSpec((DIM, DIM), lambda b, sel, flag: (0, 0)),                     # convd W (resident)
            pl.BlockSpec((1, DIM), lambda b, sel, flag: (0, 0)),                       # convd b (resident)
            pl.BlockSpec((NUM_LINEARS, DIM, DIM), lambda b, sel, flag: (0, 0, 0)),     # all 11 linear W (resident)
            pl.BlockSpec((NUM_LINEARS, 1, DIM), lambda b, sel, flag: (0, 0, 0)),       # all 11 linear b (resident)
        ],
        out_specs=[
            pl.BlockSpec((tb, BATCH, DIM), lambda b, sel, flag: (b, 0, 0)),            # CH per step
            pl.BlockSpec((BATCH, DIM), lambda b, sel, flag: (0, 0)),                   # H carry / output
            pl.BlockSpec((BATCH, DIM), lambda b, sel, flag: (0, 0)),                   # C carry / output
        ],
    )
    ch_seq, h_new, c_new = pl.pallas_call(
        _lstm_seq_kernel,
        out_shape=out_shapes,
        grid_spec=grid_spec,
        compiler_params=pltpu.CompilerParams(
            dimension_semantics=("arbitrary",),          # sequential recurrence
            vmem_limit_bytes=32 * 1024 * 1024,           # ~20 MiB footprint; fits v5e/v6e/v7x
        ),
    )(sel, flag, xproj, h0, c0, whh, wconv, bconv, wlin, blin)
    return ch_seq, h_new, c_new


# ---------------------------------------------------------------------------
# Parameters
# ---------------------------------------------------------------------------
def init_params(key):
    """Deterministic re-implementation of get_params + the Linear layers.

    Gate/convd/linear weights are randn * 0.01 (same recipe as get_params); gate
    biases are zero, Linear biases randn * 0.01.  All (in, out) layout.  W_r*,
    W_hq, b_q exist in the module but are unused by forward; created only for
    shape fidelity.  linear8..linear10 are unreachable from forward but kept.
    """
    def normal(key, shape, scale=0.01):
        return jax.random.normal(key, shape, dtype=jnp.float32) * scale

    keys = iter(jax.random.split(key, 64))
    p = {}
    for g in ("i", "f", "o", "c"):
        p[f"W_x{g}"] = normal(next(keys), (DIM, DIM))
        p[f"W_r{g}"] = normal(next(keys), (DIM, DIM))   # unused by forward
        p[f"W_h{g}"] = normal(next(keys), (DIM, DIM))
        p[f"b_{g}"] = jnp.zeros((1, DIM), dtype=jnp.float32)
    p["W_hq"] = normal(next(keys), (DIM, DIM))          # unused by forward
    p["b_q"] = jnp.zeros((1, DIM), dtype=jnp.float32)   # unused by forward

    p["W_convd"] = normal(next(keys), (DIM, DIM))
    p["b_convd"] = normal(next(keys), (1, DIM))

    lin_w, lin_b = [], []
    for _ in range(NUM_LINEARS):        # 0 == self.linear, 1..10 == linear1..linear10
        lin_w.append(normal(next(keys), (DIM, DIM)))
        lin_b.append(normal(next(keys), (1, DIM)))
    p["linear_w"] = lin_w
    p["linear_b"] = lin_b
    return p


def pack_params(p):
    """One-time packing into the kernel layout (bf16 weights, fused gate W/b)."""
    wxg = jnp.concatenate([p["W_xi"], p["W_xf"], p["W_xo"], p["W_xc"]],
                          axis=1).astype(jnp.bfloat16)                          # (512, 2048)
    whh = jnp.concatenate([p["W_hi"], p["W_hf"], p["W_ho"], p["W_hc"]],
                          axis=1).astype(jnp.bfloat16)                          # (512, 2048)
    bg = jnp.concatenate([p["b_i"], p["b_f"], p["b_o"], p["b_c"]],
                         axis=1).astype(jnp.float32)                            # (1, 2048)
    wconv = p["W_convd"].astype(jnp.bfloat16)                                   # (512, 512)
    bconv = p["b_convd"].astype(jnp.float32)                                    # (1, 512)
    wlin = jnp.stack(p["linear_w"], axis=0).astype(jnp.bfloat16)                # (11, 512, 512)
    blin = jnp.stack(p["linear_b"], axis=0).astype(jnp.float32)                 # (11, 1, 512)
    return (wxg, bg, whh, wconv, bconv, wlin, blin)


# ---------------------------------------------------------------------------
# Module-faithful forward
# ---------------------------------------------------------------------------
def _select_linear(i):
    """Mirrors the module's true-division branch ladder exactly.

    Only i == -1, 0, 24, 48, ..., 144 pick a linear; everything else leaves CH
    untouched (and un-unsqueezed)."""
    if i == -1:
        return True, 0
    elif i / 24 == 0:
        return True, 1
    elif i / 24 == 1:
        return True, 2
    elif i / 24 == 2:
        return True, 3
    elif i / 24 == 3:
        return True, 4
    elif i / 24 == 4:
        return True, 5
    elif i / 24 == 5:
        return True, 6
    elif i / 24 == 6:
        return True, 7
    return False, 0


def lstm_model_scratch_forward(i, X, H, C, packed):
    """Mirrors LSTMModelScratch.forward(i, X, H, C); `i` is a static Python int.

    Returns (CH, (H, C)); CH is (1, 32, 512) when a linear branch matched
    (module does unsqueeze(0)), else (32, 512), exactly like the module.
    """
    apply_final, lin_idx = _select_linear(i)
    sel = jnp.asarray([lin_idx], dtype=jnp.int32)
    flag = jnp.asarray([1 if apply_final else 0], dtype=jnp.int32)
    x2d = jnp.reshape(X, (BATCH, DIM)).astype(jnp.float32)       # X = input.view(32, 512)

    ch_seq, h_new, c_new = _run_kernel(1, sel, flag, x2d, H, C, *packed)
    ch = ch_seq[0]
    if apply_final:
        ch = ch[None, ...]                                       # CH.unsqueeze(dim=0)
    return ch, (h_new, c_new)


def lstm_model_scratch_forward_sequence(i_values, X_seq, H, C, packed, tb=8):
    """Run T timesteps with TB steps per grid step (weights DMA'd once, VMEM-resident).

    Equivalent to looping lstm_model_scratch_forward over (i_values[t], X_seq[t]) and
    carrying (H, C), except CH is returned stacked as (T, 32, 512) (the per-step
    unsqueeze is a pure reshape).  The tail is padded to a multiple of tb; padded steps
    carry flag == -1 and do not advance the recurrent state.
    """
    T = len(i_values)
    tb = max(1, min(tb, T))
    t_pad = ((T + tb - 1) // tb) * tb

    sel_list, flag_list = [], []
    for i in i_values:
        af, idx = _select_linear(i)
        sel_list.append(idx)
        flag_list.append(1 if af else 0)
    sel_list += [0] * (t_pad - T)
    flag_list += [-1] * (t_pad - T)        # -1 == padded step (state frozen, CH ignored)
    sel = jnp.asarray(sel_list, dtype=jnp.int32)
    flag = jnp.asarray(flag_list, dtype=jnp.int32)

    x = jnp.reshape(X_seq, (T, BATCH, DIM)).astype(jnp.float32)
    if t_pad != T:
        x = jnp.concatenate(
            [x, jnp.zeros((t_pad - T, BATCH, DIM), jnp.float32)], axis=0)
    x2d = x.reshape(t_pad * BATCH, DIM)

    ch_seq, h_new, c_new = _run_kernel(tb, sel, flag, x2d, H, C, *packed)
    return ch_seq[:T], (h_new, c_new)


# ---------------------------------------------------------------------------
# Pure-JAX f32 reference (module-faithful) for numerics validation
# ---------------------------------------------------------------------------
def _reference_forward(i, X, H, C, p):
    X = jnp.reshape(X, (BATCH, DIM))
    I = jax.nn.sigmoid(X @ p["W_xi"] + H @ p["W_hi"] + p["b_i"])
    F = jax.nn.sigmoid(X @ p["W_xf"] + H @ p["W_hf"] + p["b_f"])
    O = jax.nn.sigmoid(X @ p["W_xo"] + H @ p["W_ho"] + p["b_o"])
    Ct = jnp.tanh(X @ p["W_xc"] + H @ p["W_hc"] + p["b_c"])
    C = F * C + I * Ct
    H = O * jnp.tanh(C)
    CH = jnp.tanh(H + C)
    CH = jnp.tanh(CH + CH @ p["W_convd"] + p["b_convd"])
    apply_final, idx = _select_linear(i)
    if apply_final:
        CH = CH @ p["linear_w"][idx] + p["linear_b"][idx]
        CH = CH[None, ...]
    return CH, (H, C)


# ---------------------------------------------------------------------------
if __name__ == "__main__":
    key = jax.random.PRNGKey(0)
    k_p, k_x, k_h, k_c = jax.random.split(key, 4)

    params = init_params(k_p)
    packed = pack_params(params)

    T = 12
    # The module hard-codes X.view(32, 512); batch/hidden are fixed at 32/512.
    X_seq = jax.random.normal(k_x, (T, BATCH, DIM), dtype=jnp.float32)
    H0 = jax.random.normal(k_h, (BATCH, DIM), dtype=jnp.float32) * 0.1
    C0 = jax.random.normal(k_c, (BATCH, DIM), dtype=jnp.float32) * 0.1

    # 1) Single step, i == -1 -> self.linear branch, CH unsqueezed to (1,32,512).
    CH, (H1, C1) = lstm_model_scratch_forward(-1, X_seq[0], H0, C0, packed)
    jax.block_until_ready((CH, H1, C1))
    assert CH.shape == (1, BATCH, DIM)
    assert H1.shape == (BATCH, DIM) and C1.shape == (BATCH, DIM)
    CH_r, (H_r, C_r) = _reference_forward(-1, X_seq[0], H0, C0, params)
    assert jnp.allclose(CH, CH_r, atol=1e-2)
    assert jnp.allclose(H1, H_r, atol=1e-2)
    assert jnp.allclose(C1, C_r, atol=1e-2)

    # 2) Single step, i == 5 -> no branch matched, CH stays (32, 512).
    CH5, _ = lstm_model_scratch_forward(5, X_seq[0], H0, C0, packed)
    jax.block_until_ready(CH5)
    assert CH5.shape == (BATCH, DIM)

    # 3) Blocked multi-step sequence (TB=8 per grid step; T=12 exercises tail padding).
    i_values = [-1, 0, 1, 24, 2, 3, 48, 5, -1, 7, 144, 9]
    CH_seq, (H_T, C_T) = lstm_model_scratch_forward_sequence(
        i_values, X_seq, H0, C0, packed, tb=8)
    jax.block_until_ready((CH_seq, H_T, C_T))
    assert CH_seq.shape == (T, BATCH, DIM)

    # 3a) matches the per-step kernel path (same bf16 weights).
    h, c = H0, C0
    for t, i in enumerate(i_values):
        ch_t, (h, c) = lstm_model_scratch_forward(i, X_seq[t], h, c, packed)
        ch_t = jnp.reshape(ch_t, (BATCH, DIM))
        assert jnp.allclose(ch_t, CH_seq[t], atol=5e-3)
    assert jnp.allclose(h, H_T, atol=5e-3)
    assert jnp.allclose(c, C_T, atol=5e-3)

    # 3b) matches the pure-f32 reference (bf16 weight/activation quantization tolerance).
    h, c = H0, C0
    for t, i in enumerate(i_values):
        ch_t, (h, c) = _reference_forward(i, X_seq[t], h, c, params)
        ch_t = jnp.reshape(ch_t, (BATCH, DIM))
        assert jnp.allclose(ch_t, CH_seq[t], atol=1e-2)
    assert jnp.allclose(h, H_T, atol=1e-2)
    assert jnp.allclose(c, C_T, atol=1e-2)

    print("KERNEL_OK")
</pallas_src>

<mosaic_0001>
module attributes {stable_mosaic.version = 11 : i64} {
  func.func @_xproj_kernel(%arg0: i32, %arg1: memref<32x512xf32, #tpu.memory_space<vmem>>, %arg2: memref<512x2048xbf16, #tpu.memory_space<vmem>>, %arg3: memref<1x2048xf32, #tpu.memory_space<vmem>>, %arg4: memref<32x2048xbf16, #tpu.memory_space<vmem>>) attributes {dimension_semantics = [#tpu.dimension_semantics<parallel>], iteration_bounds = array<i64: 1>, scalar_prefetch = 0 : i64, scratch_operands = 0 : i64, tpu.core_type = #tpu.core_type<tc>, window_params = [{transform_indices = @transform_0, window_bounds = array<i64: 32, 512>}, {pipeline_mode = #tpu.pipeline_mode<synchronous>, transform_indices = @transform_1, window_bounds = array<i64: 512, 2048>}, {pipeline_mode = #tpu.pipeline_mode<synchronous>, transform_indices = @transform_2, window_bounds = array<i64: 1, 2048>}, {transform_indices = @transform_3, window_bounds = array<i64: 32, 2048>}]} {
    %c0 = arith.constant 0 : index
    %c0_0 = arith.constant 0 : index
    %0 = vector.load %arg1[%c0, %c0_0] : memref<32x512xf32, #tpu.memory_space<vmem>>, vector<32x512xf32>
    %1 = arith.truncf %0 : vector<32x512xf32> to vector<32x512xbf16>
    %c0_1 = arith.constant 0 : index
    %c0_2 = arith.constant 0 : index
    %2 = vector.load %arg2[%c0_1, %c0_2] : memref<512x2048xbf16, #tpu.memory_space<vmem>>, vector<512x2048xbf16>
    %cst = arith.constant dense<0.000000e+00> : vector<32x2048xf32>
    %3 = tpu.matmul %1, %2, %cst {dimension_numbers = #tpu.dot_dimension_numbers<[1], [0], [0], [1], [0, 0, 1, 1], [], []>} : vector<32x512xbf16>, vector<512x2048xbf16>, vector<32x2048xf32> -> vector<32x2048xf32>
    %c0_3 = arith.constant 0 : index
    %c0_4 = arith.constant 0 : index
    %4 = vector.load %arg3[%c0_3, %c0_4] : memref<1x2048xf32, #tpu.memory_space<vmem>>, vector<1x2048xf32>
    %5 = vector.broadcast %4 : vector<1x2048xf32> to vector<32x2048xf32>
    %6 = arith.addf %3, %5 : vector<32x2048xf32>
    %7 = arith.truncf %6 : vector<32x2048xf32> to vector<32x2048xbf16>
    %c0_5 = arith.constant 0 : index
    %c0_6 = arith.constant 0 : index
    %8 = vector.load %arg4[%c0_5, %c0_6] : memref<32x2048xbf16, #tpu.memory_space<vmem>>, vector<32x2048xbf16>
    tpu.vector_store %arg4[%c0_5, %c0_6], %7 {strides = array<i32>} : memref<32x2048xbf16, #tpu.memory_space<vmem>>, vector<32x2048xbf16>,
    return
  }
  func.func @transform_0(%arg0: i32) -> (i32, i32) {
    %c0_i32 = arith.constant 0 : i32
    %c0_i32_0 = arith.constant 0 : i32
    return %arg0, %c0_i32 : i32, i32
  }
  func.func @transform_1(%arg0: i32) -> (i32, i32) {
    %c0_i32 = arith.constant 0 : i32
    %c0_i32_0 = arith.constant 0 : i32
    %c0_i32_1 = arith.constant 0 : i32
    return %c0_i32, %c0_i32_0 : i32, i32
  }
  func.func @transform_2(%arg0: i32) -> (i32, i32) {
    %c0_i32 = arith.constant 0 : i32
    %c0_i32_0 = arith.constant 0 : i32
    %c0_i32_1 = arith.constant 0 : i32
    return %c0_i32, %c0_i32_0 : i32, i32
  }
  func.func @transform_3(%arg0: i32) -> (i32, i32) {
    %c0_i32 = arith.constant 0 : i32
    %c0_i32_0 = arith.constant 0 : i32
    return %arg0, %c0_i32 : i32, i32
  }
}

module attributes {stable_mosaic.version = 11 : i64} {
  func.func @_lstm_seq_kernel(%arg0: i32, %arg1: memref<1xi32, #tpu.memory_space<smem>>, %arg2: memref<1xi32, #tpu.memory_space<smem>>, %arg3: memref<1x32x2048xbf16, #tpu.memory_space<vmem>>, %arg4: memref<32x512xf32, #tpu.memory_space<vmem>>, %arg5: memref<32x512xf32, #tpu.memory_space<vmem>>, %arg6: memref<512x2048xbf16, #tpu.memory_space<vmem>>, %arg7: memref<512x512xbf16, #tpu.memory_space<vmem>>, %arg8: memref<1x512xf32, #tpu.memory_space<vmem>>, %arg9: memref<11x512x512xbf16, #tpu.memory_space<vmem>>, %arg10: memref<11x1x512xf32, #tpu.memory_space<vmem>>, %arg11: memref<1x32x512xf32, #tpu.memory_space<vmem>>, %arg12: memref<32x512xf32, #tpu.memory_space<vmem>>, %arg13: memref<32x512xf32, #tpu.memory_space<vmem>>) attributes {dimension_semantics = [#tpu.dimension_semantics<arbitrary>], iteration_bounds = array<i64: 1>, scalar_prefetch = 2 : i64, scratch_operands = 0 : i64, tpu.core_type = #tpu.core_type<tc>, window_params = [{transform_indices = @transform_0, window_bounds = array<i64: 1, 32, 2048>}, {pipeline_mode = #tpu.pipeline_mode<synchronous>, transform_indices = @transform_1, window_bounds = array<i64: 32, 512>}, {pipeline_mode = #tpu.pipeline_mode<synchronous>, transform_indices = @transform_2, window_bounds = array<i64: 32, 512>}, {pipeline_mode = #tpu.pipeline_mode<synchronous>, transform_indices = @transform_3, window_bounds = array<i64: 512, 2048>}, {pipeline_mode = #tpu.pipeline_mode<synchronous>, transform_indices = @transform_4, window_bounds = array<i64: 512, 512>}, {pipeline_mode = #tpu.pipeline_mode<synchronous>, transform_indices = @transform_5, window_bounds = array<i64: 1, 512>}, {pipeline_mode = #tpu.pipeline_mode<synchronous>, transform_indices = @transform_6, window_bounds = array<i64: 11, 512, 512>}, {pipeline_mode = #tpu.pipeline_mode<synchronous>, transform_indices = @transform_7, window_bounds = array<i64: 11, 1, 512>}, {transform_indices = @transform_8, window_bounds = array<i64: 1, 32, 512>}, {pipeline_mode = #tpu.pipeline_mode<synchronous>, transform_indices = @transform_9, window_bounds = array<i64: 32, 512>}, {pipeline_mode = #tpu.pipeline_mode<synchronous>, transform_indices = @transform_10, window_bounds = array<i64: 32, 512>}]} {
    %c0_i32 = arith.constant 0 : i32
    %0 = arith.cmpi eq, %arg0, %c0_i32 : i32
    %1 = arith.extui %0 : i1 to i32
    %c0_i32_0 = arith.constant 0 : i32
    %2 = arith.cmpi ne, %1, %c0_i32_0 : i32
    scf.if %2 {
      %c0_32 = arith.constant 0 : index
      %c0_33 = arith.constant 0 : index
      %68 = vector.load %arg4[%c0_32, %c0_33] : memref<32x512xf32, #tpu.memory_space<vmem>>, vector<32x512xf32>
      %c0_34 = arith.constant 0 : index
      %c0_35 = arith.constant 0 : index
      %69 = vector.load %arg12[%c0_34, %c0_35] : memref<32x512xf32, #tpu.memory_space<vmem>>, vector<32x512xf32>
      tpu.vector_store %arg12[%c0_34, %c0_35], %68 {strides = array<i32>} : memref<32x512xf32, #tpu.memory_space<vmem>>, vector<32x512xf32>,
      %c0_36 = arith.constant 0 : index
      %c0_37 = arith.constant 0 : index
      %70 = vector.load %arg5[%c0_36, %c0_37] : memref<32x512xf32, #tpu.memory_space<vmem>>, vector<32x512xf32>
      %c0_38 = arith.constant 0 : index
      %c0_39 = arith.constant 0 : index
      %71 = vector.load %arg13[%c0_38, %c0_39] : memref<32x512xf32, #tpu.memory_space<vmem>>, vector<32x512xf32>
      tpu.vector_store %arg13[%c0_38, %c0_39], %70 {strides = array<i32>} : memref<32x512xf32, #tpu.memory_space<vmem>>, vector<32x512xf32>,
    } else {
    }
    %c0 = arith.constant 0 : index
    %c0_1 = arith.constant 0 : index
    %3 = vector.load %arg12[%c0, %c0_1] : memref<32x512xf32, #tpu.memory_space<vmem>>, vector<32x512xf32>
    %c0_2 = arith.constant 0 : index
    %c0_3 = arith.constant 0 : index
    %4 = vector.load %arg13[%c0_2, %c0_3] : memref<32x512xf32, #tpu.memory_space<vmem>>, vector<32x512xf32>
    %c1_i32 = arith.constant 1 : i32
    %5 = arith.muli %arg0, %c1_i32 : i32
    %c0_i32_4 = arith.constant 0 : i32
    %6 = arith.addi %5, %c0_i32_4 : i32
    %7 = arith.index_cast %6 : i32 to index
    %8 = memref.load %arg2[%7] : memref<1xi32, #tpu.memory_space<smem>>
    %c0_i32_5 = arith.constant 0 : i32
    %9 = arith.cmpi sge, %8, %c0_i32_5 : i32
    %c0_i32_6 = arith.constant 0 : i32
    %10 = arith.cmpi sgt, %8, %c0_i32_6 : i32
    %c0_7 = arith.constant 0 : index
    %c0_8 = arith.constant 0 : index
    %c0_9 = arith.constant 0 : index
    %11 = vector.load %arg3[%c0_7, %c0_8, %c0_9] : memref<1x32x2048xbf16, #tpu.memory_space<vmem>>, vector<1x32x2048xbf16>
    %12 = vector.shape_cast %11 : vector<1x32x2048xbf16> to vector<32x2048xbf16>
    %13 = arith.extf %12 : vector<32x2048xbf16> to vector<32x2048xf32>
    %14 = arith.truncf %3 : vector<32x512xf32> to vector<32x512xbf16>
    %c0_10 = arith.constant 0 : index
    %c0_11 = arith.constant 0 : index
    %15 = vector.load %arg6[%c0_10, %c0_11] : memref<512x2048xbf16, #tpu.memory_space<vmem>>, vector<512x2048xbf16>
    %cst = arith.constant dense<0.000000e+00> : vector<32x2048xf32>
    %16 = tpu.matmul %14, %15, %cst {dimension_numbers = #tpu.dot_dimension_numbers<[1], [0], [0], [1], [0, 0, 1, 1], [], []>} : vector<32x512xbf16>, vector<512x2048xbf16>, vector<32x2048xf32> -> vector<32x2048xf32>
    %17 = arith.addf %13, %16 : vector<32x2048xf32>
    %18 = vector.extract_strided_slice %17 {offsets = [0, 0], sizes = [32, 512], strides = [1, 1]} : vector<32x2048xf32> to vector<32x512xf32>
    %cst_12 = arith.constant 5.000000e-01 : f32
    %19 = vector.broadcast %cst_12 : f32 to vector<32x512xf32>
    %20 = arith.mulf %19, %18 : vector<32x512xf32>
    %21 = math.tanh %20 : vector<32x512xf32>
    %cst_13 = arith.constant 5.000000e-01 : f32
    %22 = vector.broadcast %cst_13 : f32 to vector<32x512xf32>
    %23 = arith.mulf %22, %21 : vector<32x512xf32>
    %cst_14 = arith.constant 5.000000e-01 : f32
    %24 = vector.broadcast %cst_14 : f32 to vector<32x512xf32>
    %25 = arith.addf %23, %24 : vector<32x512xf32>
    %26 = vector.extract_strided_slice %17 {offsets = [0, 512], sizes = [32, 512], strides = [1, 1]} : vector<32x2048xf32> to vector<32x512xf32>
    %cst_15 = arith.constant 5.000000e-01 : f32
    %27 = vector.broadcast %cst_15 : f32 to vector<32x512xf32>
    %28 = arith.mulf %27, %26 : vector<32x512xf32>
    %29 = math.tanh %28 : vector<32x512xf32>
    %cst_16 = arith.constant 5.000000e-01 : f32
    %30 = vector.broadcast %cst_16 : f32 to vector<32x512xf32>
    %31 = arith.mulf %30, %29 : vector<32x512xf32>
    %cst_17 = arith.constant 5.000000e-01 : f32
    %32 = vector.broadcast %cst_17 : f32 to vector<32x512xf32>
    %33 = arith.addf %31, %32 : vector<32x512xf32>
    %34 = vector.extract_strided_slice %17 {offsets = [0, 1024], sizes = [32, 512], strides = [1, 1]} : vector<32x2048xf32> to vector<32x512xf32>
    %cst_18 = arith.constant 5.000000e-01 : f32
    %35 = vector.broadcast %cst_18 : f32 to vector<32x512xf32>
    %36 = arith.mulf %35, %34 : vector<32x512xf32>
    %37 = math.tanh %36 : vector<32x512xf32>
    %cst_19 = arith.constant 5.000000e-01 : f32
    %38 = vector.broadcast %cst_19 : f32 to vector<32x512xf32>
    %39 = arith.mulf %38, %37 : vector<32x512xf32>
    %cst_20 = arith.constant 5.000000e-01 : f32
    %40 = vector.broadcast %cst_20 : f32 to vector<32x512xf32>
    %41 = arith.addf %39, %40 : vector<32x512xf32>
    %42 = vector.extract_strided_slice %17 {offsets = [0, 1536], sizes = [32, 512], strides = [1, 1]} : vector<32x2048xf32> to vector<32x512xf32>
    %43 = math.tanh %42 : vector<32x512xf32>
    %44 = arith.mulf %33, %4 : vector<32x512xf32>
    %45 = arith.mulf %25, %43 : vector<32x512xf32>
    %46 = arith.addf %44, %45 : vector<32x512xf32>
    %47 = math.tanh %46 : vector<32x512xf32>
    %48 = arith.mulf %41, %47 : vector<32x512xf32>
    %49 = arith.addf %48, %46 : vector<32x512xf32>
    %50 = math.tanh %49 : vector<32x512xf32>
    %51 = arith.truncf %50 : vector<32x512xf32> to vector<32x512xbf16>
    %c0_21 = arith.constant 0 : index
    %c0_22 = arith.constant 0 : index
    %52 = vector.load %arg7[%c0_21, %c0_22] : memref<512x512xbf16, #tpu.memory_space<vmem>>, vector<512x512xbf16>
    %cst_23 = arith.constant dense<0.000000e+00> : vector<32x512xf32>
    %53 = tpu.matmul %51, %52, %cst_23 {dimension_numbers = #tpu.dot_dimension_numbers<[1], [0], [0], [1], [0, 0, 1, 1], [], []>} : vector<32x512xbf16>, vector<512x512xbf16>, vector<32x512xf32> -> vector<32x512xf32>
    %c0_24 = arith.constant 0 : index
    %c0_25 = arith.constant 0 : index
    %54 = vector.load %arg8[%c0_24, %c0_25] : memref<1x512xf32, #tpu.memory_space<vmem>>, vector<1x512xf32>
    %55 = vector.broadcast %54 : vector<1x512xf32> to vector<32x512xf32>
    %56 = arith.addf %53, %55 : vector<32x512xf32>
    %57 = arith.addf %50, %56 : vector<32x512xf32>
    %58 = math.tanh %57 : vector<32x512xf32>
    %59 = arith.extui %10 : i1 to i32
    %c0_i32_26 = arith.constant 0 : i32
    %60 = arith.cmpi ne, %59, %c0_i32_26 : i32
    scf.if %60 {
      %68 = arith.index_cast %6 : i32 to index
      %69 = memref.load %arg1[%68] : memref<1xi32, #tpu.memory_space<smem>>
      %70 = arith.truncf %58 : vector<32x512xf32> to vector<32x512xbf16>
      %71 = arith.index_cast %69 : i32 to index
      %c0_32 = arith.constant 0 : index
      %c0_33 = arith.constant 0 : index
      %72 = vector.load %arg9[%71, %c0_32, %c0_33] : memref<11x512x512xbf16, #tpu.memory_space<vmem>>, vector<1x512x512xbf16>
      %73 = vector.shape_cast %72 : vector<1x512x512xbf16> to vector<512x512xbf16>
      %cst_34 = arith.constant dense<0.000000e+00> : vector<32x512xf32>
      %74 = tpu.matmul %70, %73, %cst_34 {dimension_numbers = #tpu.dot_dimension_numbers<[1], [0], [0], [1], [0, 0, 1, 1], [], []>} : vector<32x512xbf16>, vector<512x512xbf16>, vector<32x512xf32> -> vector<32x512xf32>
      %75 = arith.index_cast %69 : i32 to index
      %c0_35 = arith.constant 0 : index
      %c0_36 = arith.constant 0 : index
      %76 = vector.load %arg10[%75, %c0_35, %c0_36] : memref<11x1x512xf32, #tpu.memory_space<vmem>>, vector<1x1x512xf32>
      %77 = vector.shape_cast %76 : vector<1x1x512xf32> to vector<1x512xf32>
      %78 = vector.broadcast %77 : vector<1x512xf32> to vector<32x512xf32>
      %79 = arith.addf %74, %78 : vector<32x512xf32>
      %c0_37 = arith.constant 0 : index
      %c0_38 = arith.constant 0 : index
      %c0_39 = arith.constant 0 : index
      %80 = vector.load %arg11[%c0_37, %c0_38, %c0_39] : memref<1x32x512xf32, #tpu.memory_space<vmem>>, vector<1x32x512xf32>
      %81 = vector.shape_cast %80 : vector<1x32x512xf32> to vector<32x512xf32>
      %82 = vector.shape_cast %79 : vector<32x512xf32> to vector<1x32x512xf32>
      tpu.vector_store %arg11[%c0_37, %c0_38, %c0_39], %82 {strides = array<i32>} : memref<1x32x512xf32, #tpu.memory_space<vmem>>, vector<1x32x512xf32>,
    } else {
    }
    %true = arith.constant true
    %61 = arith.xori %10, %true : i1
    %62 = arith.extui %61 : i1 to i32
    %c0_i32_27 = arith.constant 0 : i32
    %63 = arith.cmpi ne, %62, %c0_i32_27 : i32
    scf.if %63 {
      %c0_32 = arith.constant 0 : index
      %c0_33 = arith.constant 0 : index
      %c0_34 = arith.constant 0 : index
      %68 = vector.load %arg11[%c0_32, %c0_33, %c0_34] : memref<1x32x512xf32, #tpu.memory_space<vmem>>, vector<1x32x512xf32>
      %69 = vector.shape_cast %68 : vector<1x32x512xf32> to vector<32x512xf32>
      %70 = vector.shape_cast %58 : vector<32x512xf32> to vector<1x32x512xf32>
      tpu.vector_store %arg11[%c0_32, %c0_33, %c0_34], %70 {strides = array<i32>} : memref<1x32x512xf32, #tpu.memory_space<vmem>>, vector<1x32x512xf32>,
    } else {
    }
    %64 = arith.select %9, %48, %3 : vector<32x512xf32>
    %65 = arith.select %9, %46, %4 : vector<32x512xf32>
    %c0_28 = arith.constant 0 : index
    %c0_29 = arith.constant 0 : index
    %66 = vector.load %arg12[%c0_28, %c0_29] : memref<32x512xf32, #tpu.memory_space<vmem>>, vector<32x512xf32>
    tpu.vector_store %arg12[%c0_28, %c0_29], %64 {strides = array<i32>} : memref<32x512xf32, #tpu.memory_space<vmem>>, vector<32x512xf32>,
    %c0_30 = arith.constant 0 : index
    %c0_31 = arith.constant 0 : index
    %67 = vector.load %arg13[%c0_30, %c0_31] : memref<32x512xf32, #tpu.memory_space<vmem>>, vector<32x512xf32>
    tpu.vector_store %arg13[%c0_30, %c0_31], %65 {strides = array<i32>} : memref<32x512xf32, #tpu.memory_space<vmem>>, vector<32x512xf32>,
    return
  }
  func.func @transform_0(%arg0: i32, %arg1: memref<1xi32, #tpu.memory_space<smem>>, %arg2: memref<1xi32, #tpu.memory_space<smem>>) -> (i32, i32, i32) {
    %c0_i32 = arith.constant 0 : i32
    %c0_i32_0 = arith.constant 0 : i32
    %c0_i32_1 = arith.constant 0 : i32
    return %arg0, %c0_i32, %c0_i32_0 : i32, i32, i32
  }
  func.func @transform_1(%arg0: i32, %arg1: memref<1xi32, #tpu.memory_space<smem>>, %arg2: memref<1xi32, #tpu.memory_space<smem>>) -> (i32, i32) {
    %c0_i32 = arith.constant 0 : i32
    %c0_i32_0 = arith.constant 0 : i32
    %c0_i32_1 = arith.constant 0 : i32
    return %c0_i32, %c0_i32_0 : i32, i32
  }
  func.func @transform_2(%arg0: i32, %arg1: memref<1xi32, #tpu.memory_space<smem>>, %arg2: memref<1xi32, #tpu.memory_space<smem>>) -> (i32, i32) {
    %c0_i32 = arith.constant 0 : i32
    %c0_i32_0 = arith.constant 0 : i32
    %c0_i32_1 = arith.constant 0 : i32
    return %c0_i32, %c0_i32_0 : i32, i32
  }
  func.func @transform_3(%arg0: i32, %arg1: memref<1xi32, #tpu.memory_space<smem>>, %arg2: memref<1xi32, #tpu.memory_space<smem>>) -> (i32, i32) {
    %c0_i32 = arith.constant 0 : i32
    %c0_i32_0 = arith.constant 0 : i32
    %c0_i32_1 = arith.constant 0 : i32
    return %c0_i32, %c0_i32_0 : i32, i32
  }
  func.func @transform_4(%arg0: i32, %arg1: memref<1xi32, #tpu.memory_space<smem>>, %arg2: memref<1xi32, #tpu.memory_space<smem>>) -> (i32, i32) {
    %c0_i32 = arith.constant 0 : i32
    %c0_i32_0 = arith.constant 0 : i32
    %c0_i32_1 = arith.constant 0 : i32
    return %c0_i32, %c0_i32_0 : i32, i32
  }
  func.func @transform_5(%arg0: i32, %arg1: memref<1xi32, #tpu.memory_space<smem>>, %arg2: memref<1xi32, #tpu.memory_space<smem>>) -> (i32, i32) {
    %c0_i32 = arith.constant 0 : i32
    %c0_i32_0 = arith.constant 0 : i32
    %c0_i32_1 = arith.constant 0 : i32
    return %c0_i32, %c0_i32_0 : i32, i32
  }
  func.func @transform_6(%arg0: i32, %arg1: memref<1xi32, #tpu.memory_space<smem>>, %arg2: memref<1xi32, #tpu.memory_space<smem>>) -> (i32, i32, i32) {
    %c0_i32 = arith.constant 0 : i32
    %c0_i32_0 = arith.constant 0 : i32
    %c0_i32_1 = arith.constant 0 : i32
    %c0_i32_2 = arith.constant 0 : i32
    return %c0_i32, %c0_i32_0, %c0_i32_1 : i32, i32, i32
  }
  func.func @transform_7(%arg0: i32, %arg1: memref<1xi32, #tpu.memory_space<smem>>, %arg2: memref<1xi32, #tpu.memory_space<smem>>) -> (i32, i32, i32) {
    %c0_i32 = arith.constant 0 : i32
    %c0_i32_0 = arith.constant 0 : i32
    %c0_i32_1 = arith.constant 0 : i32
    %c0_i32_2 = arith.constant 0 : i32
    return %c0_i32, %c0_i32_0, %c0_i32_1 : i32, i32, i32
  }
  func.func @transform_8(%arg0: i32, %arg1: memref<1xi32, #tpu.memory_space<smem>>, %arg2: memref<1xi32, #tpu.memory_space<smem>>) -> (i32, i32, i32) {
    %c0_i32 = arith.constant 0 : i32
    %c0_i32_0 = arith.constant 0 : i32
    %c0_i32_1 = arith.constant 0 : i32
    return %arg0, %c0_i32, %c0_i32_0 : i32, i32, i32
  }
  func.func @transform_9(%arg0: i32, %arg1: memref<1xi32, #tpu.memory_space<smem>>, %arg2: memref<1xi32, #tpu.memory_space<smem>>) -> (i32, i32) {
    %c0_i32 = arith.constant 0 : i32
    %c0_i32_0 = arith.constant 0 : i32
    %c0_i32_1 = arith.constant 0 : i32
    return %c0_i32, %c0_i32_0 : i32, i32
  }
  func.func @transform_10(%arg0: i32, %arg1: memref<1xi32, #tpu.memory_space<smem>>, %arg2: memref<1xi32, #tpu.memory_space<smem>>) -> (i32, i32) {
    %c0_i32 = arith.constant 0 : i32
    %c0_i32_0 = arith.constant 0 : i32
    %c0_i32_1 = arith.constant 0 : i32
    return %c0_i32, %c0_i32_0 : i32, i32
  }
}

</mosaic_0001>

<llo_original>
// kernel: _run_kernel.2
$region0: #{_run_kernel.2}
  #allocation0 [shape = 'u32[]', space=smem, size = 0x4, offset = 0x4, fixed_abs, tag = 'smem constant byte address 0x4 - core index']
  #allocation1 [shape = 'u32[144,128]{1,0:T(1,128)}', space=vmem, size = 0x12000, scoped, tag = 'internal scratch']
  %s0 = inlined_call_operand.hbm [shape: f32[32,512], index: 0, kind: input, shape index: {}]
  %s1 = inlined_call_operand.hbm [shape: bf16[512,2048], index: 1, kind: input, shape index: {}]
  %s2 = inlined_call_operand.hbm [shape: f32[1,2048], index: 2, kind: input, shape index: {}]
  %s3 = inlined_call_operand.vmem [shape: bf16[32,2048], index: 3, kind: output, shape index: {}]
  %s4 = sld [smem:[#allocation0]]
  $region34: #{_run_kernel.2} parent=0
    _
  %s6 = ssub.s32 1, %s4
  %s7 = scalar_select 0, %s6, %s4
  $region1: #{_run_kernel.2} parent=0
    #allocation2 [shape = 'u8[65536]{0}', space=vmem, size = 0x10000, scoped, tag = 'input window, operand 0, single buffered']
    #allocation3 [shape = 's32[1]{0}', space=sflag, size = 0x4, scoped, tag = 'scoped memory for _run_kernel.2']
    #allocation4 [shape = 'u8[2097152]{0}', space=vmem, size = 0x200000, scoped, tag = 'input window, operand 1, single buffered']
    #allocation5 [shape = 's32[1]{0}', space=sflag, size = 0x4, scoped, tag = 'scoped memory for _run_kernel.2']
    #allocation6 [shape = 'u8[8192]{0}', space=vmem, size = 0x2000, scoped, tag = 'input window, operand 2, single buffered']
    %8 = vsyncpa [#allocation3], 0
    %9 = vsyncpa [#allocation5], 0
    // Predicated region
    $region2: #{_run_kernel.2} parent=1 // pred_check
      _
    $region3: #{_run_kernel.2} parent=1 // pred_check_branch
      %11 = sbr.rel (0) target = $region5
    $region4: #{_run_kernel.2} parent=1 // pred_region
      %s13 = ssub.s32 2048, 2048
      %14 = vsyncadd [#allocation3], %s13
      %s15 = sshll.u32 [#allocation2], 4
      %s16 = int_to_ptr.vmem [resolvable:$true] %s15
      %21 = dma.hbm_to_vmem [thread:$0]  %s0, 2048, %s16, [#allocation3], 512, 512, 32
    $region5: #{_run_kernel.2} parent=1 // pred_fallthru
      _
    // Predicated region
    $region6: #{_run_kernel.2} parent=1 // pred_check
      _
    $region7: #{_run_kernel.2} parent=1 // pred_check_branch
      %23 = sbr.rel (0) target = $region9
    $region8: #{_run_kernel.2} parent=1 // pred_region
      %s25 = ssub.s32 65536, 65536
      %26 = vsyncadd [#allocation5], %s25
      %s27 = sshll.u32 [#allocation4], 4
      %s28 = int_to_ptr.vmem [resolvable:$true] %s27
      %33 = dma.hbm_to_vmem [thread:$0]  %s1, 65536, %s28, [#allocation5], 1024, 1024, 64
    $region9: #{_run_kernel.2} parent=1 // pred_fallthru
      _
    // Predicated region
    $region10: #{_run_kernel.2} parent=1 // pred_check
      _
    $region11: #{_run_kernel.2} parent=1 // pred_check_branch
      %35 = sbr.rel (0) target = $region13
    $region12: #{_run_kernel.2} parent=1 // pred_region
      %s37 = ssub.s32 256, 256
      %38 = vsyncadd [#allocation5], %s37
      %s40 = sshll.u32 [#allocation6], 4
      %s41 = int_to_ptr.vmem [resolvable:$true] %s40
      %43 = dma.hbm_to_vmem [thread:$0]  %s2, 256, %s41, [#allocation5]
    $region13: #{_run_kernel.2} parent=1 // pred_fallthru
      _
    // Predicated region
    $region14: #{_run_kernel.2} parent=1 // pred_check
      _
    $region15: #{_run_kernel.2} parent=1 // pred_check_branch
      %45 = sbr.rel (0) target = $region17
    $region16: #{_run_kernel.2} parent=1 // pred_region
      %46 = dma.done [#allocation3], 2048
    $region17: #{_run_kernel.2} parent=1 // pred_fallthru
      _
    // Predicated region
    $region18: #{_run_kernel.2} parent=1 // pred_check
      _
    $region19: #{_run_kernel.2} parent=1 // pred_check_branch
      %48 = sbr.rel (0) target = $region21
    $region20: #{_run_kernel.2} parent=1 // pred_region
      %49 = dma.done [#allocation5], 65536
    $region21: #{_run_kernel.2} parent=1 // pred_fallthru
      _
    // Predicated region
    $region22: #{_run_kernel.2} parent=1 // pred_check
      _
    $region23: #{_run_kernel.2} parent=1 // pred_check_branch
      %51 = sbr.rel (0) target = $region25
    $region24: #{_run_kernel.2} parent=1 // pred_region
      %52 = dma.done [#allocation5], 256
    $region25: #{_run_kernel.2} parent=1 // pred_fallthru
      _
    %v53 = vld [vmem:[#allocation2] sm:$0xff]
    %v54 = vld [vmem:[#allocation2 + $0x8] sm:$0xff]
    %v55 = vld [vmem:[#allocation2 + $0x10] sm:$0xff]
    %v56 = vld [vmem:[#allocation2 + $0x18] sm:$0xff]
    %v57 = vld [vmem:[#allocation2 + $0x20] sm:$0xff]
    %v58 = vld [vmem:[#allocation2 + $0x28] sm:$0xff]
    %v59 = vld [vmem:[#allocation2 + $0x30] sm:$0xff]
    %v60 = vld [vmem:[#allocation2 + $0x38] sm:$0xff]
    %v61 = vld [vmem:[#allocation2 + $0x40] sm:$0xff]
    %v62 = vld [vmem:[#allocation2 + $0x48] sm:$0xff]
    %v63 = vld [vmem:[#allocation2 + $0x50] sm:$0xff]
    %v64 = vld [vmem:[#allocation2 + $0x58] sm:$0xff]
    %v65 = vld [vmem:[#allocation2 + $0x60] sm:$0xff]
    %v66 = vld [vmem:[#allocation2 + $0x68] sm:$0xff]
    %v67 = vld [vmem:[#allocation2 + $0x70] sm:$0xff]
    %v68 = vld [vmem:[#allocation2 + $0x78] sm:$0xff]
    %v69 = vpack.c.bf16 %v57, %v53
    %v70 = vpack.c.bf16 %v58, %v54
    %v71 = vpack.c.bf16 %v59, %v55
    %v72 = vpack.c.bf16 %v60, %v56
    %v73 = vpack.c.bf16 %v65, %v61
    %v74 = vpack.c.bf16 %v66, %v62
    %v75 = vpack.c.bf16 %v67, %v63
    %v76 = vpack.c.bf16 %v68, %v64
    %v77 = vld [vmem:[#allocation4] sm:$0xff]
    %v78 = vld [vmem:[#allocation4 + $0x8] sm:$0xff]
    %v79 = vld [vmem:[#allocation4 + $0x10] sm:$0xff]
    %v80 = vld [vmem:[#allocation4 + $0x18] sm:$0xff]
    %v81 = vld [vmem:[#allocation4 + $0x20] sm:$0xff]
    %v82 = vld [vmem:[#allocation4 + $0x28] sm:$0xff]
    %v83 = vld [vmem:[#allocation4 + $0x30] sm:$0xff]
    %v84 = vld [vmem:[#allocation4 + $0x38] sm:$0xff]
    %v85 = vld [vmem:[#allocation4 + $0x40] sm:$0xff]
    %v86 = vld [vmem:[#allocation4 + $0x48] sm:$0xff]
    %v87 = vld [vmem:[#allocation4 + $0x50] sm:$0xff]
    %v88 = vld [vmem:[#allocation4 + $0x58] sm:$0xff]
    %v89 = vld [vmem:[#allocation4 + $0x60] sm:$0xff]
    %v90 = vld [vmem:[#allocation4 + $0x68] sm:$0xff]
    %v91 = vld [vmem:[#allocation4 + $0x70] sm:$0xff]
    %v92 = vld [vmem:[#allocation4 + $0x78] sm:$0xff]
    %v93 = vld [vmem:[#allocation4 + $0x80] sm:$0xff]
    %v94 = vld [vmem:[#allocation4 + $0x88] sm:$0xff]
    %v95 = vld [vmem:[#allocation4 + $0x90] sm:$0xff]
    %v96 = vld [vmem:[#allocation4 + $0x98] sm:$0xff]
    %v97 = vld [vmem:[#allocation4 + $0xa0] sm:$0xff]
    %v98 = vld [vmem:[#allocation4 + $0xa8] sm:$0xff]
    %v99 = vld [vmem:[#allocation4 + $0xb0] sm:$0xff]
    %v100 = vld [vmem:[#allocation4 + $0xb8] sm:$0xff]
    %v101 = vld [vmem:[#allocation4 + $0xc0] sm:$0xff]
    %v102 = vld [vmem:[#allocation4 + $0xc8] sm:$0xff]
    %v103 = vld [vmem:[#allocation4 + $0xd0] sm:$0xff]
    %v104 = vld [vmem:[#allocation4 + $0xd8] sm:$0xff]
    %v105 = vld [vmem:[#allocation4 + $0xe0] sm:$0xff]
    %v106 = vld [vmem:[#allocation4 + $0xe8] sm:$0xff]
    %v107 = vld [vmem:[#allocation4 + $0xf0] sm:$0xff]
    %v108 = vld [vmem:[#allocation4 + $0xf8] sm:$0xff]
    %v109 = vld [vmem:[#allocation4 + $0x100] sm:$0xff]
    %v110 = vld [vmem:[#allocation4 + $0x108] sm:$0xff]
    %v111 = vld [vmem:[#allocation4 + $0x110] sm:$0xff]
    %v112 = vld [vmem:[#allocation4 + $0x118] sm:$0xff]
    %v113 = vld [vmem:[#allocation4 + $0x120] sm:$0xff]
    %v114 = vld [vmem:[#allocation4 + $0x128] sm:$0xff]
    %v115 = vld [vmem:[#allocation4 + $0x130] sm:$0xff]
    %v116 = vld [vmem:[#allocation4 + $0x138] sm:$0xff]
    %v117 = vld [vmem:[#allocation4 + $0x140] sm:$0xff]
    %v118 = vld [vmem:[#allocation4 + $0x148] sm:$0xff]
    %v119 = vld [vmem:[#allocation4 + $0x150] sm:$0xff]
    %v120 = vld [vmem:[#allocation4 + $0x158] sm:$0xff]
    %v121 = vld [vmem:[#allocation4 + $0x160] sm:$0xff]
    %v122 = vld [vmem:[#allocation4 + $0x168] sm:$0xff]
    %v123 = vld [vmem:[#allocation4 + $0x170] sm:$0xff]
    %v124 = vld [vmem:[#allocation4 + $0x178] sm:$0xff]
    %v125 = vld [vmem:[#allocation4 + $0x180] sm:$0xff]
    %v126 = vld [vmem:[#allocation4 + $0x188] sm:$0xff]
    %v127 = vld [vmem:[#allocation4 + $0x190] sm:$0xff]
    %v128 = vld [vmem:[#allocation4 + $0x198] sm:$0xff]
    %v129 = vld [vmem:[#allocation4 + $0x1a0] sm:$0xff]
    %v130 = vld [vmem:[#allocation4 + $0x1a8] sm:$0xff]
    %v131 = vld [vmem:[#allocation4 + $0x1b0] sm:$0xff]
    %v132 = vld [vmem:[#allocation4 + $0x1b8] sm:$0xff]
    %v133 = vld [vmem:[#allocation4 + $0x1c0] sm:$0xff]
    %v134 = vld [vmem:[#allocation4 + $0x1c8] sm:$0xff]
    %v135 = vld [vmem:[#allocation4 + $0x1d0] sm:$0xff]
    %v136 = vld [vmem:[#allocation4 + $0x1d8] sm:$0xff]
    %v137 = vld [vmem:[#allocation4 + $0x1e0] sm:$0xff]
    %v138 = vld [vmem:[#allocation4 + $0x1e8] sm:$0xff]
    %v139 = vld [vmem:[#allocation4 + $0x1f0] sm:$0xff]
    %v140 = vld [vmem:[#allocation4 + $0x1f8] sm:$0xff]
    %v141 = vld [vmem:[#allocation4 + $0x200] sm:$0xff]
    %v142 = vld [vmem:[#allocation4 + $0x208] sm:$0xff]
    %v143 = vld [vmem:[#allocation4 + $0x210] sm:$0xff]
    %v144 = vld [vmem:[#allocation4 + $0x218] sm:$0xff]
    %v145 = vld [vmem:[#allocation4 + $0x220] sm:$0xff]
    %v146 = vld [vmem:[#allocation4 + $0x228] sm:$0xff]
    %v147 = vld [vmem:[#allocation4 + $0x230] sm:$0xff]
    %v148 = vld [vmem:[#allocation4 + $0x238] sm:$0xff]
    %v149 = vld [vmem:[#allocation4 + $0x240] sm:$0xff]
    %v150 = vld [vmem:[#allocation4 + $0x248] sm:$0xff]
    %v151 = vld [vmem:[#allocation4 + $0x250] sm:$0xff]
    %v152 = vld [vmem:[#allocation4 + $0x258] sm:$0xff]
    %v153 = vld [vmem:[#allocation4 + $0x260] sm:$0xff]
    %v154 = vld [vmem:[#allocation4 + $0x268] sm:$0xff]
    %v155 = vld [vmem:[#allocation4 + $0x270] sm:$0xff]
    %v156 = vld [vmem:[#allocation4 + $0x278] sm:$0xff]
    %v157 = vld [vmem:[#allocation4 + $0x280] sm:$0xff]
    %v158 = vld [vmem:[#allocation4 + $0x288] sm:$0xff]
    %v159 = vld [vmem:[#allocation4 + $0x290] sm:$0xff]
    %v160 = vld [vmem:[#allocation4 + $0x298] sm:$0xff]
    %v161 = vld [vmem:[#allocation4 + $0x2a0] sm:$0xff]
    %v162 = vld [vmem:[#allocation4 + $0x2a8] sm:$0xff]
    %v163 = vld [vmem:[#allocation4 + $0x2b0] sm:$0xff]
    %v164 = vld [vmem:[#allocation4 + $0x2b8] sm:$0xff]
    %v165 = vld [vmem:[#allocation4 + $0x2c0] sm:$0xff]
    %v166 = vld [vmem:[#allocation4 + $0x2c8] sm:$0xff]
    %v167 = vld [vmem:[#allocation4 + $0x2d0] sm:$0xff]
    %v168 = vld [vmem:[#allocation4 + $0x2d8] sm:$0xff]
    %v169 = vld [vmem:[#allocation4 + $0x2e0] sm:$0xff]
    %v170 = vld [vmem:[#allocation4 + $0x2e8] sm:$0xff]
    %v171 = vld [vmem:[#allocation4 + $0x2f0] sm:$0xff]
    %v172 = vld [vmem:[#allocation4 + $0x2f8] sm:$0xff]
    %v173 = vld [vmem:[#allocation4 + $0x300] sm:$0xff]
    %v174 = vld [vmem:[#allocation4 + $0x308] sm:$0xff]
    %v175 = vld [vmem:[#allocation4 + $0x310] sm:$0xff]
    %v176 = vld [vmem:[#allocation4 + $0x318] sm:$0xff]
    %v177 = vld [vmem:[#allocation4 + $0x320] sm:$0xff]
    %v178 = vld [vmem:[#allocation4 + $0x328] sm:$0xff]
    %v179 = vld [vmem:[#allocation4 + $0x330] sm:$0xff]
    %v180 = vld [vmem:[#allocation4 + $0x338] sm:$0xff]
    %v181 = vld [vmem:[#allocation4 + $0x340] sm:$0xff]
    %v182 = vld [vmem:[#allocation4 + $0x348] sm:$0xff]
    %v183 = vld [vmem:[#allocation4 + $0x350] sm:$0xff]
    %v184 = vld [vmem:[#allocation4 + $0x358] sm:$0xff]
    %v185 = vld [vmem:[#allocation4 + $0x360] sm:$0xff]
    %v186 = vld [vmem:[#allocation4 + $0x368] sm:$0xff]
    %v187 = vld [vmem:[#allocation4 + $0x370] sm:$0xff]
    %v188 = vld [vmem:[#allocation4 + $0x378] sm:$0xff]
    %v189 = vld [vmem:[#allocation4 + $0x380] sm:$0xff]
    %v190 = vld [vmem:[#allocation4 + $0x388] sm:$0xff]
    %v191 = vld [vmem:[#allocation4 + $0x390] sm:$0xff]
    %v192 = vld [vmem:[#allocation4 + $0x398] sm:$0xff]
    %v193 = vld [vmem:[#allocation4 + $0x3a0] sm:$0xff]
    %v194 = vld [vmem:[#allocation4 + $0x3a8] sm:$0xff]
    %v195 = vld [vmem:[#allocation4 + $0x3b0] sm:$0xff]
    %v196 = vld [vmem:[#allocation4 + $0x3b8] sm:$0xff]
    %v197 = vld [vmem:[#allocation4 + $0x3c0] sm:$0xff]
    %v198 = vld [vmem:[#allocation4 + $0x3c8] sm:$0xff]
    %v199 = vld [vmem:[#allocation4 + $0x3d0] sm:$0xff]
    %v200 = vld [vmem:[#allocation4 + $0x3d8] sm:$0xff]
    %v201 = vld [vmem:[#allocation4 + $0x3e0] sm:$0xff]
    %v202 = vld [vmem:[#allocation4 + $0x3e8] sm:$0xff]
    %v203 = vld [vmem:[#allocation4 + $0x3f0] sm:$0xff]
    %v204 = vld [vmem:[#allocation4 + $0x3f8] sm:$0xff]
    %v205 = vld [vmem:[#allocation4 + $0x400] sm:$0xff]
    %v206 = vld [vmem:[#allocation4 + $0x408] sm:$0xff]
    %v207 = vld [vmem:[#allocation4 + $0x410] sm:$0xff]
    %v208 = vld [vmem:[#allocation4 + $0x418] sm:$0xff]
    %v209 = vld [vmem:[#allocation4 + $0x420] sm:$0xff]
    %v210 = vld [vmem:[#allocation4 + $0x428] sm:$0xff]
    %v211 = vld [vmem:[#allocation4 + $0x430] sm:$0xff]
    %v212 = vld [vmem:[#allocation4 + $0x438] sm:$0xff]
    %v213 = vld [vmem:[#allocation4 + $0x440] sm:$0xff]
    %v214 = vld [vmem:[#allocation4 + $0x448] sm:$0xff]
    %v215 = vld [vmem:[#allocation4 + $0x450] sm:$0xff]
    %v216 = vld [vmem:[#allocation4 + $0x458] sm:$0xff]
    %v217 = vld [vmem:[#allocation4 + $0x460] sm:$0xff]
    %v218 = vld [vmem:[#allocation4 + $0x468] sm:$0xff]
    %v219 = vld [vmem:[#allocation4 + $0x470] sm:$0xff]
    %v220 = vld [vmem:[#allocation4 + $0x478] sm:$0xff]
    %v221 = vld [vmem:[#allocation4 + $0x480] sm:$0xff]
    %v222 = vld [vmem:[#allocation4 + $0x488] sm:$0xff]
    %v223 = vld [vmem:[#allocation4 + $0x490] sm:$0xff]
    %v224 = vld [vmem:[#allocation4 + $0x498] sm:$0xff]
    %v225 = vld [vmem:[#allocation4 + $0x4a0] sm:$0xff]
    %v226 = vld [vmem:[#allocation4 + $0x4a8] sm:$0xff]
    %v227 = vld [vmem:[#allocation4 + $0x4b0] sm:$0xff]
    %v228 = vld [vmem:[#allocation4 + $0x4b8] sm:$0xff]
    %v229 = vld [vmem:[#allocation4 + $0x4c0] sm:$0xff]
    %v230 = vld [vmem:[#allocation4 + $0x4c8] sm:$0xff]
    %v231 = vld [vmem:[#allocation4 + $0x4d0] sm:$0xff]
    %v232 = vld [vmem:[#allocation4 + $0x4d8] sm:$0xff]
    %v233 = vld [vmem:[#allocation4 + $0x4e0] sm:$0xff]
    %v234 = vld [vmem:[#allocation4 + $0x4e8] sm:$0xff]
    %v235 = vld [vmem:[#allocation4 + $0x4f0] sm:$0xff]
    %v236 = vld [vmem:[#allocation4 + $0x4f8] sm:$0xff]
    %v237 = vld [vmem:[#allocation4 + $0x500] sm:$0xff]
    %v238 = vld [vmem:[#allocation4 + $0x508] sm:$0xff]
    %v239 = vld [vmem:[#allocation4 + $0x510] sm:$0xff]
    %v240 = vld [vmem:[#allocation4 + $0x518] sm:$0xff]
    %v241 = vld [vmem:[#allocation4 + $0x520] sm:$0xff]
    %v242 = vld [vmem:[#allocation4 + $0x528] sm:$0xff]
    %v243 = vld [vmem:[#allocation4 + $0x530] sm:$0xff]
    %v244 = vld [vmem:[#allocation4 + $0x538] sm:$0xff]
    %v245 = vld [vmem:[#allocation4 + $0x540] sm:$0xff]
    %v246 = vld [vmem:[#allocation4 + $0x548] sm:$0xff]
    %v247 = vld [vmem:[#allocation4 + $0x550] sm:$0xff]
    %v248 = vld [vmem:[#allocation4 + $0x558] sm:$0xff]
    %v249 = vld [vmem:[#allocation4 + $0x560] sm:$0xff]
    %v250 = vld [vmem:[#allocation4 + $0x568] sm:$0xff]
    %v251 = vld [vmem:[#allocation4 + $0x570] sm:$0xff]
    %v252 = vld [vmem:[#allocation4 + $0x578] sm:$0xff]
    %v253 = vld [vmem:[#allocation4 + $0x580] sm:$0xff]
    %v254 = vld [vmem:[#allocation4 + $0x588] sm:$0xff]
    %v255 = vld [vmem:[#allocation4 + $0x590] sm:$0xff]
    %v256 = vld [vmem:[#allocation4 + $0x598] sm:$0xff]
    %v257 = vld [vmem:[#allocation4 + $0x5a0] sm:$0xff]
    %v258 = vld [vmem:[#allocation4 + $0x5a8] sm:$0xff]
    %v259 = vld [vmem:[#allocation4 + $0x5b0] sm:$0xff]
    %v260 = vld [vmem:[#allocation4 + $0x5b8] sm:$0xff]
    %v261 = vld [vmem:[#allocation4 + $0x5c0] sm:$0xff]
    %v262 = vld [vmem:[#allocation4 + $0x5c8] sm:$0xff]
    %v263 = vld [vmem:[#allocation4 + $0x5d0] sm:$0xff]
    %v264 = vld [vmem:[#allocation4 + $0x5d8] sm:$0xff]
    %v265 = vld [vmem:[#allocation4 + $0x5e0] sm:$0xff]
    %v266 = vld [vmem:[#allocation4 + $0x5e8] sm:$0xff]
    %v267 = vld [vmem:[#allocation4 + $0x5f0] sm:$0xff]
    %v268 = vld [vmem:[#allocation4 + $0x5f8] sm:$0xff]
    %v269 = vld [vmem:[#allocation4 + $0x600] sm:$0xff]
    %v270 = vld [vmem:[#allocation4 + $0x608] sm:$0xff]
    %v271 = vld [vmem:[#allocation4 + $0x610] sm:$0xff]
    %v272 = vld [vmem:[#allocation4 + $0x618] sm:$0xff]
    %v273 = vld [vmem:[#allocation4 + $0x620] sm:$0xff]
    %v274 = vld [vmem:[#allocation4 + $0x628] sm:$0xff]
    %v275 = vld [vmem:[#allocation4 + $0x630] sm:$0xff]
    %v276 = vld [vmem:[#allocation4 + $0x638] sm:$0xff]
    %v277 = vld [vmem:[#allocation4 + $0x640] sm:$0xff]
    %v278 = vld [vmem:[#allocation4 + $0x648] sm:$0xff]
    %v279 = vld [vmem:[#allocation4 + $0x650] sm:$0xff]
    %v280 = vld [vmem:[#allocation4 + $0x658] sm:$0xff]
    %v281 = vld [vmem:[#allocation4 + $0x660] sm:$0xff]
    %v282 = vld [vmem:[#allocation4 + $0x668] sm:$0xff]
    %v283 = vld [vmem:[#allocation4 + $0x670] sm:$0xff]
    %v284 = vld [vmem:[#allocation4 + $0x678] sm:$0xff]
    %v285 = vld [vmem:[#allocation4 + $0x680] sm:$0xff]
    %v286 = vld [vmem:[#allocation4 + $0x688] sm:$0xff]
    %v287 = vld [vmem:[#allocation4 + $0x690] sm:$0xff]
    %v288 = vld [vmem:[#allocation4 + $0x698] sm:$0xff]
    %v289 = vld [vmem:[#allocation4 + $0x6a0] sm:$0xff]
    %v290 = vld [vmem:[#allocation4 + $0x6a8] sm:$0xff]
    %v291 = vld [vmem:[#allocation4 + $0x6b0] sm:$0xff]
    %v292 = vld [vmem:[#allocation4 + $0x6b8] sm:$0xff]
    %v293 = vld [vmem:[#allocation4 + $0x6c0] sm:$0xff]
    %v294 = vld [vmem:[#allocation4 + $0x6c8] sm:$0xff]
    %v295 = vld [vmem:[#allocation4 + $0x6d0] sm:$0xff]
    %v296 = vld [vmem:[#allocation4 + $0x6d8] sm:$0xff]
    %v297 = vld [vmem:[#allocation4 + $0x6e0] sm:$0xff]
    %v298 = vld [vmem:[#allocation4 + $0x6e8] sm:$0xff]
    %v299 = vld [vmem:[#allocation4 + $0x6f0] sm:$0xff]
    %v300 = vld [vmem:[#allocation4 + $0x6f8] sm:$0xff]
    %v301 = vld [vmem:[#allocation4 + $0x700] sm:$0xff]
    %v302 = vld [vmem:[#allocation4 + $0x708] sm:$0xff]
    %v303 = vld [vmem:[#allocation4 + $0x710] sm:$0xff]
    %v304 = vld [vmem:[#allocation4 + $0x718] sm:$0xff]
    %v305 = vld [vmem:[#allocation4 + $0x720] sm:$0xff]
    %v306 = vld [vmem:[#allocation4 + $0x728] sm:$0xff]
    %v307 = vld [vmem:[#allocation4 + $0x730] sm:$0xff]
    %v308 = vld [vmem:[#allocation4 + $0x738] sm:$0xff]
    %v309 = vld [vmem:[#allocation4 + $0x740] sm:$0xff]
    %v310 = vld [vmem:[#allocation4 + $0x748] sm:$0xff]
    %v311 = vld [vmem:[#allocation4 + $0x750] sm:$0xff]
    %v312 = vld [vmem:[#allocation4 + $0x758] sm:$0xff]
    %v313 = vld [vmem:[#allocation4 + $0x760] sm:$0xff]
    %v314 = vld [vmem:[#allocation4 + $0x768] sm:$0xff]
    %v315 = vld [vmem:[#allocation4 + $0x770] sm:$0xff]
    %v316 = vld [vmem:[#allocation4 + $0x778] sm:$0xff]
    %v317 = vld [vmem:[#allocation4 + $0x780] sm:$0xff]
    %v318 = vld [vmem:[#allocation4 + $0x788] sm:$0xff]
    %v319 = vld [vmem:[#allocation4 + $0x790] sm:$0xff]
    %v320 = vld [vmem:[#allocation4 + $0x798] sm:$0xff]
    %v321 = vld [vmem:[#allocation4 + $0x7a0] sm:$0xff]
    %v322 = vld [vmem:[#allocation4 + $0x7a8] sm:$0xff]
    %v323 = vld [vmem:[#allocation4 + $0x7b0] sm:$0xff]
    %v324 = vld [vmem:[#allocation4 + $0x7b8] sm:$0xff]
    %v325 = vld [vmem:[#allocation4 + $0x7c0] sm:$0xff]
    %v326 = vld [vmem:[#allocation4 + $0x7c8] sm:$0xff]
    %v327 = vld [vmem:[#allocation4 + $0x7d0] sm:$0xff]
    %v328 = vld [vmem:[#allocation4 + $0x7d8] sm:$0xff]
    %v329 = vld [vmem:[#allocation4 + $0x7e0] sm:$0xff]
    %v330 = vld [vmem:[#allocation4 + $0x7e8] sm:$0xff]
    %v331 = vld [vmem:[#allocation4 + $0x7f0] sm:$0xff]
    %v332 = vld [vmem:[#allocation4 + $0x7f8] sm:$0xff]
    %v333 = vld [vmem:[#allocation4 + $0x800] sm:$0xff]
    %v334 = vld [vmem:[#allocation4 + $0x808] sm:$0xff]
    %v335 = vld [vmem:[#allocation4 + $0x810] sm:$0xff]
    %v336 = vld [vmem:[#allocation4 + $0x818] sm:$0xff]
    %v337 = vld [vmem:[#allocation4 + $0x820] sm:$0xff]
    %v338 = vld [vmem:[#allocation4 + $0x828] sm:$0xff]
    %v339 = vld [vmem:[#allocation4 + $0x830] sm:$0xff]
    %v340 = vld [vmem:[#allocation4 + $0x838] sm:$0xff]
    %v341 = vld [vmem:[#allocation4 + $0x840] sm:$0xff]
    %v342 = vld [vmem:[#allocation4 + $0x848] sm:$0xff]
    %v343 = vld [vmem:[#allocation4 + $0x850] sm:$0xff]
    %v344 = vld [vmem:[#allocation4 + $0x858] sm:$0xff]
    %v345 = vld [vmem:[#allocation4 + $0x860] sm:$0xff]
    %v346 = vld [vmem:[#allocation4 + $0x868] sm:$0xff]
    %v347 = vld [vmem:[#allocation4 + $0x870] sm:$0xff]
    %v348 = vld [vmem:[#allocation4 + $0x878] sm:$0xff]
    %v349 = vld [vmem:[#allocation4 + $0x880] sm:$0xff]
    %v350 = vld [vmem:[#allocation4 + $0x888] sm:$0xff]
    %v351 = vld [vmem:[#allocation4 + $0x890] sm:$0xff]
    %v352 = vld [vmem:[#allocation4 + $0x898] sm:$0xff]
    %v353 = vld [vmem:[#allocation4 + $0x8a0] sm:$0xff]
    %v354 = vld [vmem:[#allocation4 + $0x8a8] sm:$0xff]
    %v355 = vld [vmem:[#allocation4 + $0x8b0] sm:$0xff]
    %v356 = vld [vmem:[#allocation4 + $0x8b8] sm:$0xff]
    %v357 = vld [vmem:[#allocation4 + $0x8c0] sm:$0xff]
    %v358 = vld [vmem:[#allocation4 + $0x8c8] sm:$0xff]
    %v359 = vld [vmem:[#allocation4 + $0x8d0] sm:$0xff]
    %v360 = vld [vmem:[#allocation4 + $0x8d8] sm:$0xff]
    %v361 = vld [vmem:[#allocation4 + $0x8e0] sm:$0xff]
    %v362 = vld [vmem:[#allocation4 + $0x8e8] sm:$0xff]
    %v363 = vld [vmem:[#allocation4 + $0x8f0] sm:$0xff]
    %v364 = vld [vmem:[#allocation4 + $0x8f8] sm:$0xff]
    %v365 = vld [vmem:[#allocation4 + $0x900] sm:$0xff]
    %v366 = vld [vmem:[#allocation4 + $0x908] sm:$0xff]
    %v367 = vld [vmem:[#allocation4 + $0x910] sm:$0xff]
    %v368 = vld [vmem:[#allocation4 + $0x918] sm:$0xff]
    %v369 = vld [vmem:[#allocation4 + $0x920] sm:$0xff]
    %v370 = vld [vmem:[#allocation4 + $0x928] sm:$0xff]
    %v371 = vld [vmem:[#allocation4 + $0x930] sm:$0xff]
    %v372 = vld [vmem:[#allocation4 + $0x938] sm:$0xff]
    %v373 = vld [vmem:[#allocation4 + $0x940] sm:$0xff]
    %v374 = vld [vmem:[#allocation4 + $0x948] sm:$0xff]
    %v375 = vld [vmem:[#allocation4 + $0x950] sm:$0xff]
    %v376 = vld [vmem:[#allocation4 + $0x958] sm:$0xff]
    %v377 = vld [vmem:[#allocation4 + $0x960] sm:$0xff]
    %v378 = vld [vmem:[#allocation4 + $0x968] sm:$0xff]
    %v379 = vld [vmem:[#allocation4 + $0x970] sm:$0xff]
    %v380 = vld [vmem:[#allocation4 + $0x978] sm:$0xff]
    %v381 = vld [vmem:[#allocation4 + $0x980] sm:$0xff]
    %v382 = vld [vmem:[#allocation4 + $0x988] sm:$0xff]
    %v383 = vld [vmem:[#allocation4 + $0x990] sm:$0xff]
    %v384 = vld [vmem:[#allocation4 + $0x998] sm:$0xff]
    %v385 = vld [vmem:[#allocation4 + $0x9a0] sm:$0xff]
    %v386 = vld [vmem:[#allocation4 + $0x9a8] sm:$0xff]
    %v387 = vld [vmem:[#allocation4 + $0x9b0] sm:$0xff]
    %v388 = vld [vmem:[#allocation4 + $0x9b8] sm:$0xff]
    %v389 = vld [vmem:[#allocation4 + $0x9c0] sm:$0xff]
    %v390 = vld [vmem:[#allocation4 + $0x9c8] sm:$0xff]
    %v391 = vld [vmem:[#allocation4 + $0x9d0] sm:$0xff]
    %v392 = vld [vmem:[#allocation4 + $0x9d8] sm:$0xff]
    %v393 = vld [vmem:[#allocation4 + $0x9e0] sm:$0xff]
    %v394 = vld [vmem:[#allocation4 + $0x9e8] sm:$0xff]
    %v395 = vld [vmem:[#allocation4 + $0x9f0] sm:$0xff]
    %v396 = vld [vmem:[#allocation4 + $0x9f8] sm:$0xff]
    %v397 = vld [vmem:[#allocation4 + $0xa00] sm:$0xff]
    %v398 = vld [vmem:[#allocation4 + $0xa08] sm:$0xff]
    %v399 = vld [vmem:[#allocation4 + $0xa10] sm:$0xff]
    %v400 = vld [vmem:[#allocation4 + $0xa18] sm:$0xff]
    %v401 = vld [vmem:[#allocation4 + $0xa20] sm:$0xff]
    %v402 = vld [vmem:[#allocation4 + $0xa28] sm:$0xff]
    %v403 = vld [vmem:[#allocation4 + $0xa30] sm:$0xff]
    %v404 = vld [vmem:[#allocation4 + $0xa38] sm:$0xff]
    %v405 = vld [vmem:[#allocation4 + $0xa40] sm:$0xff]
    %v406 = vld [vmem:[#allocation4 + $0xa48] sm:$0xff]
    %v407 = vld [vmem:[#allocation4 + $0xa50] sm:$0xff]
    %v408 = vld [vmem:[#allocation4 + $0xa58] sm:$0xff]
    %v409 = vld [vmem:[#allocation4 + $0xa60] sm:$0xff]
    %v410 = vld [vmem:[#allocation4 + $0xa68] sm:$0xff]
    %v411 = vld [vmem:[#allocation4 + $0xa70] sm:$0xff]
    %v412 = vld [vmem:[#allocation4 + $0xa78] sm:$0xff]
    %v413 = vld [vmem:[#allocation4 + $0xa80] sm:$0xff]
    %v414 = vld [vmem:[#allocation4 + $0xa88] sm:$0xff]
    %v415 = vld [vmem:[#allocation4 + $0xa90] sm:$0xff]
    %v416 = vld [vmem:[#allocation4 + $0xa98] sm:$0xff]
    %v417 = vld [vmem:[#allocation4 + $0xaa0] sm:$0xff]
    %v418 = vld [vmem:[#allocation4 + $0xaa8] sm:$0xff]
    %v419 = vld [vmem:[#allocation4 + $0xab0] sm:$0xff]
    %v420 = vld [vmem:[#allocation4 + $0xab8] sm:$0xff]
    %v421 = vld [vmem:[#allocation4 + $0xac0] sm:$0xff]
    %v422 = vld [vmem:[#allocation4 + $0xac8] sm:$0xff]
    %v423 = vld [vmem:[#allocation4 + $0xad0] sm:$0xff]
    %v424 = vld [vmem:[#allocation4 + $0xad8] sm:$0xff]
    %v425 = vld [vmem:[#allocation4 + $0xae0] sm:$0xff]
    %v426 = vld [vmem:[#allocation4 + $0xae8] sm:$0xff]
    %v427 = vld [vmem:[#allocation4 + $0xaf0] sm:$0xff]
    %v428 = vld [vmem:[#allocation4 + $0xaf8] sm:$0xff]
    %v429 = vld [vmem:[#allocation4 + $0xb00] sm:$0xff]
    %v430 = vld [vmem:[#allocation4 + $0xb08] sm:$0xff]
    %v431 = vld [vmem:[#allocation4 + $0xb10] sm:$0xff]
    %v432 = vld [vmem:[#allocation4 + $0xb18] sm:$0xff]
    %v433 = vld [vmem:[#allocation4 + $0xb20] sm:$0xff]
    %v434 = vld [vmem:[#allocation4 + $0xb28] sm:$0xff]
    %v435 = vld [vmem:[#allocation4 + $0xb30] sm:$0xff]
    %v436 = vld [vmem:[#allocation4 + $0xb38] sm:$0xff]
    %v437 = vld [vmem:[#allocation4 + $0xb40] sm:$0xff]
    %v438 = vld [vmem:[#allocation4 + $0xb48] sm:$0xff]
    %v439 = vld [vmem:[#allocation4 + $0xb50] sm:$0xff]
    %v440 = vld [vmem:[#allocation4 + $0xb58] sm:$0xff]
    %v441 = vld [vmem:[#allocation4 + $0xb60] sm:$0xff]
    %v442 = vld [vmem:[#allocation4 + $0xb68] sm:$0xff]
    %v443 = vld [vmem:[#allocation4 + $0xb70] sm:$0xff]
    %v444 = vld [vmem:[#allocation4 + $0xb78] sm:$0xff]
    %v445 = vld [vmem:[#allocation4 + $0xb80] sm:$0xff]
    %v446 = vld [vmem:[#allocation4 + $0xb88] sm:$0xff]
    %v447 = vld [vmem:[#allocation4 + $0xb90] sm:$0xff]
    %v448 = vld [vmem:[#allocation4 + $0xb98] sm:$0xff]
    %v449 = vld [vmem:[#allocation4 + $0xba0] sm:$0xff]
    %v450 = vld [vmem:[#allocation4 + $0xba8] sm:$0xff]
    %v451 = vld [vmem:[#allocation4 + $0xbb0] sm:$0xff]
    %v452 = vld [vmem:[#allocation4 + $0xbb8] sm:$0xff]
    %v453 = vld [vmem:[#allocation4 + $0xbc0] sm:$0xff]
    %v454 = vld [vmem:[#allocation4 + $0xbc8] sm:$0xff]
    %v455 = vld [vmem:[#allocation4 + $0xbd0] sm:$0xff]
    %v456 = vld [vmem:[#allocation4 + $0xbd8] sm:$0xff]
    %v457 = vld [vmem:[#allocation4 + $0xbe0] sm:$0xff]
    %v458 = vld [vmem:[#allocation4 + $0xbe8] sm:$0xff]
    %v459 = vld [vmem:[#allocation4 + $0xbf0] sm:$0xff]
    %v460 = vld [vmem:[#allocation4 + $0xbf8] sm:$0xff]
    %v461 = vld [vmem:[#allocation4 + $0xc00] sm:$0xff]
    %v462 = vld [vmem:[#allocation4 + $0xc08] sm:$0xff]
    %v463 = vld [vmem:[#allocation4 + $0xc10] sm:$0xff]
    %v464 = vld [vmem:[#allocation4 + $0xc18] sm:$0xff]
    %v465 = vld [vmem:[#allocation4 + $0xc20] sm:$0xff]
    %v466 = vld [vmem:[#allocation4 + $0xc28] sm:$0xff]
    %v467 = vld [vmem:[#allocation4 + $0xc30] sm:$0xff]
    %v468 = vld [vmem:[#allocation4 + $0xc38] sm:$0xff]
    %v469 = vld [vmem:[#allocation4 + $0xc40] sm:$0xff]
    %v470 = vld [vmem:[#allocation4 + $0xc48] sm:$0xff]
    %v471 = vld [vmem:[#allocation4 + $0xc50] sm:$0xff]
    %v472 = vld [vmem:[#allocation4 + $0xc58] sm:$0xff]
    %v473 = vld [vmem:[#allocation4 + $0xc60] sm:$0xff]
    %v474 = vld [vmem:[#allocation4 + $0xc68] sm:$0xff]
    %v475 = vld [vmem:[#allocation4 + $0xc70] sm:$0xff]
    %v476 = vld [vmem:[#allocation4 + $0xc78] sm:$0xff]
    %v477 = vld [vmem:[#allocation4 + $0xc80] sm:$0xff]
    %v478 = vld [vmem:[#allocation4 + $0xc88] sm:$0xff]
    %v479 = vld [vmem:[#allocation4 + $0xc90] sm:$0xff]
    %v480 = vld [vmem:[#allocation4 + $0xc98] sm:$0xff]
    %v481 = vld [vmem:[#allocation4 + $0xca0] sm:$0xff]
    %v482 = vld [vmem:[#allocation4 + $0xca8] sm:$0xff]
    %v483 = vld [vmem:[#allocation4 + $0xcb0] sm:$0xff]
    %v484 = vld [vmem:[#allocation4 + $0xcb8] sm:$0xff]
    %v485 = vld [vmem:[#allocation4 + $0xcc0] sm:$0xff]
    %v486 = vld [vmem:[#allocation4 + $0xcc8] sm:$0xff]
    %v487 = vld [vmem:[#allocation4 + $0xcd0] sm:$0xff]
    %v488 = vld [vmem:[#allocation4 + $0xcd8] sm:$0xff]
    %v489 = vld [vmem:[#allocation4 + $0xce0] sm:$0xff]
    %v490 = vld [vmem:[#allocation4 + $0xce8] sm:$0xff]
    %v491 = vld [vmem:[#allocation4 + $0xcf0] sm:$0xff]
    %v492 = vld [vmem:[#allocation4 + $0xcf8] sm:$0xff]
    %v493 = vld [vmem:[#allocation4 + $0xd00] sm:$0xff]
    %v494 = vld [vmem:[#allocation4 + $0xd08] sm:$0xff]
    %v495 = vld [vmem:[#allocation4 + $0xd10] sm:$0xff]
    %v496 = vld [vmem:[#allocation4 + $0xd18] sm:$0xff]
    %v497 = vld [vmem:[#allocation4 + $0xd20] sm:$0xff]
    %v498 = vld [vmem:[#allocation4 + $0xd28] sm:$0xff]
    %v499 = vld [vmem:[#allocation4 + $0xd30] sm:$0xff]
    %v500 = vld [vmem:[#allocation4 + $0xd38] sm:$0xff]
    %v501 = vld [vmem:[#allocation4 + $0xd40] sm:$0xff]
    %v502 = vld [vmem:[#allocation4 + $0xd48] sm:$0xff]
    %v503 = vld [vmem:[#allocation4 + $0xd50] sm:$0xff]
    %v504 = vld [vmem:[#allocation4 + $0xd58] sm:$0xff]
    %v505 = vld [vmem:[#allocation4 + $0xd60] sm:$0xff]
    %v506 = vld [vmem:[#allocation4 + $0xd68] sm:$0xff]
    %v507 = vld [vmem:[#allocation4 + $0xd70] sm:$0xff]
    %v508 = vld [vmem:[#allocation4 + $0xd78] sm:$0xff]
    %v509 = vld [vmem:[#allocation4 + $0xd80] sm:$0xff]
    %v510 = vld [vmem:[#allocation4 + $0xd88] sm:$0xff]
    %v511 = vld [vmem:[#allocation4 + $0xd90] sm:$0xff]
    %v512 = vld [vmem:[#allocation4 + $0xd98] sm:$0xff]
    %v513 = vld [vmem:[#allocation4 + $0xda0] sm:$0xff]
    %v514 = vld [vmem:[#allocation4 + $0xda8] sm:$0xff]
    %v515 = vld [vmem:[#allocation4 + $0xdb0] sm:$0xff]
    %v516 = vld [vmem:[#allocation4 + $0xdb8] sm:$0xff]
    %v517 = vld [vmem:[#allocation4 + $0xdc0] sm:$0xff]
    %v518 = vld [vmem:[#allocation4 + $0xdc8] sm:$0xff]
    %v519 = vld [vmem:[#allocation4 + $0xdd0] sm:$0xff]
    %v520 = vld [vmem:[#allocation4 + $0xdd8] sm:$0xff]
    %v521 = vld [vmem:[#allocation4 + $0xde0] sm:$0xff]
    %v522 = vld [vmem:[#allocation4 + $0xde8] sm:$0xff]
    %v523 = vld [vmem:[#allocation4 + $0xdf0] sm:$0xff]
    %v524 = vld [vmem:[#allocation4 + $0xdf8] sm:$0xff]
    %v525 = vld [vmem:[#allocation4 + $0xe00] sm:$0xff]
    %v526 = vld [vmem:[#allocation4 + $0xe08] sm:$0xff]
    %v527 = vld [vmem:[#allocation4 + $0xe10] sm:$0xff]
    %v528 = vld [vmem:[#allocation4 + $0xe18] sm:$0xff]
    %v529 = vld [vmem:[#allocation4 + $0xe20] sm:$0xff]
    %v530 = vld [vmem:[#allocation4 + $0xe28] sm:$0xff]
    %v531 = vld [vmem:[#allocation4 + $0xe30] sm:$0xff]
    %v532 = vld [vmem:[#allocation4 + $0xe38] sm:$0xff]
    %v533 = vld [vmem:[#allocation4 + $0xe40] sm:$0xff]
    %v534 = vld [vmem:[#allocation4 + $0xe48] sm:$0xff]
    %v535 = vld [vmem:[#allocation4 + $0xe50] sm:$0xff]
    %v536 = vld [vmem:[#allocation4 + $0xe58] sm:$0xff]
    %v537 = vld [vmem:[#allocation4 + $0xe60] sm:$0xff]
    %v538 = vld [vmem:[#allocation4 + $0xe68] sm:$0xff]
    %v539 = vld [vmem:[#allocation4 + $0xe70] sm:$0xff]
    %v540 = vld [vmem:[#allocation4 + $0xe78] sm:$0xff]
    %v541 = vld [vmem:[#allocation4 + $0xe80] sm:$0xff]
    %v542 = vld [vmem:[#allocation4 + $0xe88] sm:$0xff]
    %v543 = vld [vmem:[#allocation4 + $0xe90] sm:$0xff]
    %v544 = vld [vmem:[#allocation4 + $0xe98] sm:$0xff]
    %v545 = vld [vmem:[#allocation4 + $0xea0] sm:$0xff]
    %v546 = vld [vmem:[#allocation4 + $0xea8] sm:$0xff]
    %v547 = vld [vmem:[#allocation4 + $0xeb0] sm:$0xff]
    %v548 = vld [vmem:[#allocation4 + $0xeb8] sm:$0xff]
    %v549 = vld [vmem:[#allocation4 + $0xec0] sm:$0xff]
    %v550 = vld [vmem:[#allocation4 + $0xec8] sm:$0xff]
    %v551 = vld [vmem:[#allocation4 + $0xed0] sm:$0xff]
    %v552 = vld [vmem:[#allocation4 + $0xed8] sm:$0xff]
    %v553 = vld [vmem:[#allocation4 + $0xee0] sm:$0xff]
    %v554 = vld [vmem:[#allocation4 + $0xee8] sm:$0xff]
    %v555 = vld [vmem:[#allocation4 + $0xef0] sm:$0xff]
    %v556 = vld [vmem:[#allocation4 + $0xef8] sm:$0xff]
    %v557 = vld [vmem:[#allocation4 + $0xf00] sm:$0xff]
    %v558 = vld [vmem:[#allocation4 + $0xf08] sm:$0xff]
    %v559 = vld [vmem:[#allocation4 + $0xf10] sm:$0xff]
    %v560 = vld [vmem:[#allocation4 + $0xf18] sm:$0xff]
    %v561 = vld [vmem:[#allocation4 + $0xf20] sm:$0xff]
    %v562 = vld [vmem:[#allocation4 + $0xf28] sm:$0xff]
    %v563 = vld [vmem:[#allocation4 + $0xf30] sm:$0xff]
    %v564 = vld [vmem:[#allocation4 + $0xf38] sm:$0xff]
    %v565 = vld [vmem:[#allocation4 + $0xf40] sm:$0xff]
    %v566 = vld [vmem:[#allocation4 + $0xf48] sm:$0xff]
    %v567 = vld [vmem:[#allocation4 + $0xf50] sm:$0xff]
    %v568 = vld [vmem:[#allocation4 + $0xf58] sm:$0xff]
    %v569 = vld [vmem:[#allocation4 + $0xf60] sm:$0xff]
    %v570 = vld [vmem:[#allocation4 + $0xf68] sm:$0xff]
    %v571 = vld [vmem:[#allocation4 + $0xf70] sm:$0xff]
    %v572 = vld [vmem:[#allocation4 + $0xf78] sm:$0xff]
    %v573 = vld [vmem:[#allocation4 + $0xf80] sm:$0xff]
    %v574 = vld [vmem:[#allocation4 + $0xf88] sm:$0xff]
    %v575 = vld [vmem:[#allocation4 + $0xf90] sm:$0xff]
    %v576 = vld [vmem:[#allocation4 + $0xf98] sm:$0xff]
    %v577 = vld [vmem:[#allocation4 + $0xfa0] sm:$0xff]
    %v578 = vld [vmem:[#allocation4 + $0xfa8] sm:$0xff]
    %v579 = vld [vmem:[#allocation4 + $0xfb0] sm:$0xff]
    %v580 = vld [vmem:[#allocation4 + $0xfb8] sm:$0xff]
    %v581 = vld [vmem:[#allocation4 + $0xfc0] sm:$0xff]
    %v582 = vld [vmem:[#allocation4 + $0xfc8] sm:$0xff]
    %v583 = vld [vmem:[#allocation4 + $0xfd0] sm:$0xff]
    %v584 = vld [vmem:[#allocation4 + $0xfd8] sm:$0xff]
    %v585 = vld [vmem:[#allocation4 + $0xfe0] sm:$0xff]
    %v586 = vld [vmem:[#allocation4 + $0xfe8] sm:$0xff]
    %v587 = vld [vmem:[#allocation4 + $0xff0] sm:$0xff]
    %v588 = vld [vmem:[#allocation4 + $0xff8] sm:$0xff]
    %v589 = vld [vmem:[#allocation6] sm:$0xff]
    %v590 = vld [vmem:[#allocation6 + $0x8] sm:$0xff]
    %v593 = vlaneseq
    %v594 = vshrl.u32 %v593, 7
    %v595 = vsub.s32 0, %v594
    %v596 = vrot.slane %v589, %v595
    %v597 = vlaneseq
    %v598 = vshrl.u32 %v597, 7
    %v599 = vsub.s32 1, %v598
    %v600 = vrot.slane %v589, %v599
    %v601 = vlaneseq
    %v602 = vshrl.u32 %v601, 7
    %v603 = vsub.s32 2, %v602
    %v604 = vrot.slane %v589, %v603
    %v605 = vlaneseq
    %v606 = vshrl.u32 %v605, 7
    %v607 = vsub.s32 3, %v606
    %v608 = vrot.slane %v589, %v607
    %v609 = vlaneseq
    %v610 = vshrl.u32 %v609, 7
    %v611 = vsub.s32 4, %v610
    %v612 = vrot.slane %v589, %v611
    %v613 = vlaneseq
    %v614 = vshrl.u32 %v613, 7
    %v615 = vsub.s32 5, %v614
    %v616 = vrot.slane %v589, %v615
    %v617 = vlaneseq
    %v618 = vshrl.u32 %v617, 7
    %v619 = vsub.s32 6, %v618
    %v620 = vrot.slane %v589, %v619
    %v621 = vlaneseq
    %v622 = vshrl.u32 %v621, 7
    %v623 = vsub.s32 7, %v622
    %v624 = vrot.slane %v589, %v623
    %v625 = vlaneseq
    %v626 = vshrl.u32 %v625, 7
    %v627 = vsub.s32 0, %v626
    %v628 = vrot.slane %v590, %v627
    %v629 = vlaneseq
    %v630 = vshrl.u32 %v629, 7
    %v631 = vsub.s32 1, %v630
    %v632 = vrot.slane %v590, %v631
    %v633 = vlaneseq
    %v634 = vshrl.u32 %v633, 7
    %v635 = vsub.s32 2, %v634
    %v636 = vrot.slane %v590, %v635
    %v637 = vlaneseq
    %v638 = vshrl.u32 %v637, 7
    %v639 = vsub.s32 3, %v638
    %v640 = vrot.slane %v590, %v639
    %v641 = vlaneseq
    %v642 = vshrl.u32 %v641, 7
    %v643 = vsub.s32 4, %v642
    %v644 = vrot.slane %v590, %v643
    %v645 = vlaneseq
    %v646 = vshrl.u32 %v645, 7
    %v647 = vsub.s32 5, %v646
    %v648 = vrot.slane %v590, %v647
    %v649 = vlaneseq
    %v650 = vshrl.u32 %v649, 7
    %v651 = vsub.s32 6, %v650
    %v652 = vrot.slane %v590, %v651
    %v653 = vlaneseq
    %v654 = vshrl.u32 %v653, 7
    %v655 = vsub.s32 7, %v654
    %v656 = vrot.slane %v590, %v655
    %v1185 = vunpack.c.l.b16 %v77
    %v1186 = vunpack.c.h.b16 %v77
    %v1187 = vunpack.c.l.b16 %v78
    %v1188 = vunpack.c.h.b16 %v78
    %v1189 = vunpack.c.l.b16 %v79
    %v1190 = vunpack.c.h.b16 %v79
    %v1191 = vunpack.c.l.b16 %v80
    %v1192 = vunpack.c.h.b16 %v80
    %v1193 = vunpack.c.l.b16 %v81
    %v1194 = vunpack.c.h.b16 %v81
    %v1195 = vunpack.c.l.b16 %v82
    %v1196 = vunpack.c.h.b16 %v82
    %v1197 = vunpack.c.l.b16 %v83
    %v1198 = vunpack.c.h.b16 %v83
    %v1199 = vunpack.c.l.b16 %v84
    %v1200 = vunpack.c.h.b16 %v84
    %v1201 = vunpack.c.l.b16 %v85
    %v1202 = vunpack.c.h.b16 %v85
    %v1203 = vunpack.c.l.b16 %v86
    %v1204 = vunpack.c.h.b16 %v86
    %v1205 = vunpack.c.l.b16 %v87
    %v1206 = vunpack.c.h.b16 %v87
    %v1207 = vunpack.c.l.b16 %v88
    %v1208 = vunpack.c.h.b16 %v88
    %v1209 = vunpack.c.l.b16 %v89
    %v1210 = vunpack.c.h.b16 %v89
    %v1211 = vunpack.c.l.b16 %v90
    %v1212 = vunpack.c.h.b16 %v90
    %v1213 = vunpack.c.l.b16 %v91
    %v1214 = vunpack.c.h.b16 %v91
    %v1215 = vunpack.c.l.b16 %v92
    %v1216 = vunpack.c.h.b16 %v92
    %v1217 = vunpack.c.l.b16 %v93
    %v1218 = vunpack.c.h.b16 %v93
    %v1219 = vunpack.c.l.b16 %v94
    %v1220 = vunpack.c.h.b16 %v94
    %v1221 = vunpack.c.l.b16 %v95
    %v1222 = vunpack.c.h.b16 %v95
    %v1223 = vunpack.c.l.b16 %v96
    %v1224 = vunpack.c.h.b16 %v96
    %v1225 = vunpack.c.l.b16 %v97
    %v1226 = vunpack.c.h.b16 %v97
    %v1227 = vunpack.c.l.b16 %v98
    %v1228 = vunpack.c.h.b16 %v98
    %v1229 = vunpack.c.l.b16 %v99
    %v1230 = vunpack.c.h.b16 %v99
    %v1231 = vunpack.c.l.b16 %v100
    %v1232 = vunpack.c.h.b16 %v100
    %v1233 = vunpack.c.l.b16 %v101
    %v1234 = vunpack.c.h.b16 %v101
    %v1235 = vunpack.c.l.b16 %v102
    %v1236 = vunpack.c.h.b16 %v102
    %v1237 = vunpack.c.l.b16 %v103
    %v1238 = vunpack.c.h.b16 %v103
    %v1239 = vunpack.c.l.b16 %v104
    %v1240 = vunpack.c.h.b16 %v104
    %v1241 = vunpack.c.l.b16 %v105
    %v1242 = vunpack.c.h.b16 %v105
    %v1243 = vunpack.c.l.b16 %v106
    %v1244 = vunpack.c.h.b16 %v106
    %v1245 = vunpack.c.l.b16 %v107
    %v1246 = vunpack.c.h.b16 %v107
    %v1247 = vunpack.c.l.b16 %v108
    %v1248 = vunpack.c.h.b16 %v108
    %v1249 = vunpack.c.l.b16 %v109
    %v1250 = vunpack.c.h.b16 %v109
    %v1251 = vunpack.c.l.b16 %v110
    %v1252 = vunpack.c.h.b16 %v110
    %v1253 = vunpack.c.l.b16 %v111
    %v1254 = vunpack.c.h.b16 %v111
    %v1255 = vunpack.c.l.b16 %v112
    %v1256 = vunpack.c.h.b16 %v112
    %v1257 = vunpack.c.l.b16 %v113
    %v1258 = vunpack.c.h.b16 %v113
    %v1259 = vunpack.c.l.b16 %v114
    %v1260 = vunpack.c.h.b16 %v114
    %v1261 = vunpack.c.l.b16 %v115
    %v1262 = vunpack.c.h.b16 %v115
    %v1263 = vunpack.c.l.b16 %v116
    %v1264 = vunpack.c.h.b16 %v116
    %v1265 = vunpack.c.l.b16 %v117
    %v1266 = vunpack.c.h.b16 %v117
    %v1267 = vunpack.c.l.b16 %v118
    %v1268 = vunpack.c.h.b16 %v118
    %v1269 = vunpack.c.l.b16 %v119
    %v1270 = vunpack.c.h.b16 %v119
    %v1271 = vunpack.c.l.b16 %v120
    %v1272 = vunpack.c.h.b16 %v120
    %v1273 = vunpack.c.l.b16 %v121
    %v1274 = vunpack.c.h.b16 %v121
    %v1275 = vunpack.c.l.b16 %v122
    %v1276 = vunpack.c.h.b16 %v122
    %v1277 = vunpack.c.l.b16 %v123
    %v1278 = vunpack.c.h.b16 %v123
    %v1279 = vunpack.c.l.b16 %v124
    %v1280 = vunpack.c.h.b16 %v124
    %v1281 = vunpack.c.l.b16 %v125
    %v1282 = vunpack.c.h.b16 %v125
    %v1283 = vunpack.c.l.b16 %v126
    %v1284 = vunpack.c.h.b16 %v126
    %v1285 = vunpack.c.l.b16 %v127
    %v1286 = vunpack.c.h.b16 %v127
    %v1287 = vunpack.c.l.b16 %v128
    %v1288 = vunpack.c.h.b16 %v128
    %v1289 = vunpack.c.l.b16 %v129
    %v1290 = vunpack.c.h.b16 %v129
    %v1291 = vunpack.c.l.b16 %v130
    %v1292 = vunpack.c.h.b16 %v130
    %v1293 = vunpack.c.l.b16 %v131
    %v1294 = vunpack.c.h.b16 %v131
    %v1295 = vunpack.c.l.b16 %v132
    %v1296 = vunpack.c.h.b16 %v132
    %v1297 = vunpack.c.l.b16 %v133
    %v1298 = vunpack.c.h.b16 %v133
    %v1299 = vunpack.c.l.b16 %v134
    %v1300 = vunpack.c.h.b16 %v134
    %v1301 = vunpack.c.l.b16 %v135
    %v1302 = vunpack.c.h.b16 %v135
    %v1303 = vunpack.c.l.b16 %v136
    %v1304 = vunpack.c.h.b16 %v136
    %v1305 = vunpack.c.l.b16 %v137
    %v1306 = vunpack.c.h.b16 %v137
    %v1307 = vunpack.c.l.b16 %v138
    %v1308 = vunpack.c.h.b16 %v138
    %v1309 = vunpack.c.l.b16 %v139
    %v1310 = vunpack.c.h.b16 %v139
    %v1311 = vunpack.c.l.b16 %v140
    %v1312 = vunpack.c.h.b16 %v140
    %v1313 = vunpack.c.l.b16 %v141
    %v1314 = vunpack.c.h.b16 %v141
    %v1315 = vunpack.c.l.b16 %v142
    %v1316 = vunpack.c.h.b16 %v142
    %v1317 = vunpack.c.l.b16 %v143
    %v1318 = vunpack.c.h.b16 %v143
    %v1319 = vunpack.c.l.b16 %v144
    %v1320 = vunpack.c.h.b16 %v144
    %v1321 = vunpack.c.l.b16 %v145
    %v1322 = vunpack.c.h.b16 %v145
    %v1323 = vunpack.c.l.b16 %v146
    %v1324 = vunpack.c.h.b16 %v146
    %v1325 = vunpack.c.l.b16 %v147
    %v1326 = vunpack.c.h.b16 %v147
    %v1327 = vunpack.c.l.b16 %v148
    %v1328 = vunpack.c.h.b16 %v148
    %v1329 = vunpack.c.l.b16 %v149
    %v1330 = vunpack.c.h.b16 %v149
    %v1331 = vunpack.c.l.b16 %v150
    %v1332 = vunpack.c.h.b16 %v150
    %v1333 = vunpack.c.l.b16 %v151
    %v1334 = vunpack.c.h.b16 %v151
    %v1335 = vunpack.c.l.b16 %v152
    %v1336 = vunpack.c.h.b16 %v152
    %v1337 = vunpack.c.l.b16 %v153
    %v1338 = vunpack.c.h.b16 %v153
    %v1339 = vunpack.c.l.b16 %v154
    %v1340 = vunpack.c.h.b16 %v154
    %v1341 = vunpack.c.l.b16 %v155
    %v1342 = vunpack.c.h.b16 %v155
    %v1343 = vunpack.c.l.b16 %v156
    %v1344 = vunpack.c.h.b16 %v156
    %v1345 = vunpack.c.l.b16 %v157
    %v1346 = vunpack.c.h.b16 %v157
    %v1347 = vunpack.c.l.b16 %v158
    %v1348 = vunpack.c.h.b16 %v158
    %v1349 = vunpack.c.l.b16 %v159
    %v1350 = vunpack.c.h.b16 %v159
    %v1351 = vunpack.c.l.b16 %v160
    %v1352 = vunpack.c.h.b16 %v160
    %v1353 = vunpack.c.l.b16 %v161
    %v1354 = vunpack.c.h.b16 %v161
    %v1355 = vunpack.c.l.b16 %v162
    %v1356 = vunpack.c.h.b16 %v162
    %v1357 = vunpack.c.l.b16 %v163
    %v1358 = vunpack.c.h.b16 %v163
    %v1359 = vunpack.c.l.b16 %v164
    %v1360 = vunpack.c.h.b16 %v164
    %v1361 = vunpack.c.l.b16 %v165
    %v1362 = vunpack.c.h.b16 %v165
    %v1363 = vunpack.c.l.b16 %v166
    %v1364 = vunpack.c.h.b16 %v166
    %v1365 = vunpack.c.l.b16 %v167
    %v1366 = vunpack.c.h.b16 %v167
    %v1367 = vunpack.c.l.b16 %v168
    %v1368 = vunpack.c.h.b16 %v168
    %v1369 = vunpack.c.l.b16 %v169
    %v1370 = vunpack.c.h.b16 %v169
    %v1371 = vunpack.c.l.b16 %v170
    %v1372 = vunpack.c.h.b16 %v170
    %v1373 = vunpack.c.l.b16 %v171
    %v1374 = vunpack.c.h.b16 %v171
    %v1375 = vunpack.c.l.b16 %v172
    %v1376 = vunpack.c.h.b16 %v172
    %v1377 = vunpack.c.l.b16 %v173
    %v1378 = vunpack.c.h.b16 %v173
    %v1379 = vunpack.c.l.b16 %v174
    %v1380 = vunpack.c.h.b16 %v174
    %v1381 = vunpack.c.l.b16 %v175
    %v1382 = vunpack.c.h.b16 %v175
    %v1383 = vunpack.c.l.b16 %v176
    %v1384 = vunpack.c.h.b16 %v176
    %v1385 = vunpack.c.l.b16 %v177
    %v1386 = vunpack.c.h.b16 %v177
    %v1387 = vunpack.c.l.b16 %v178
    %v1388 = vunpack.c.h.b16 %v178
    %v1389 = vunpack.c.l.b16 %v179
    %v1390 = vunpack.c.h.b16 %v179
    %v1391 = vunpack.c.l.b16 %v180
    %v1392 = vunpack.c.h.b16 %v180
    %v1393 = vunpack.c.l.b16 %v181
    %v1394 = vunpack.c.h.b16 %v181
    %v1395 = vunpack.c.l.b16 %v182
    %v1396 = vunpack.c.h.b16 %v182
    %v1397 = vunpack.c.l.b16 %v183
    %v1398 = vunpack.c.h.b16 %v183
    %v1399 = vunpack.c.l.b16 %v184
    %v1400 = vunpack.c.h.b16 %v184
    %v1401 = vunpack.c.l.b16 %v185
    %v1402 = vunpack.c.h.b16 %v185
    %v1403 = vunpack.c.l.b16 %v186
    %v1404 = vunpack.c.h.b16 %v186
    %v1405 = vunpack.c.l.b16 %v187
    %v1406 = vunpack.c.h.b16 %v187
    %v1407 = vunpack.c.l.b16 %v188
    %v1408 = vunpack.c.h.b16 %v188
    %v1409 = vunpack.c.l.b16 %v189
    %v1410 = vunpack.c.h.b16 %v189
    %v1411 = vunpack.c.l.b16 %v190
    %v1412 = vunpack.c.h.b16 %v190
    %v1413 = vunpack.c.l.b16 %v191
    %v1414 = vunpack.c.h.b16 %v191
    %v1415 = vunpack.c.l.b16 %v192
    %v1416 = vunpack.c.h.b16 %v192
    %v1417 = vunpack.c.l.b16 %v193
    %v1418 = vunpack.c.h.b16 %v193
    %v1419 = vunpack.c.l.b16 %v194
    %v1420 = vunpack.c.h.b16 %v194
    %v1421 = vunpack.c.l.b16 %v195
    %v1422 = vunpack.c.h.b16 %v195
    %v1423 = vunpack.c.l.b16 %v196
    %v1424 = vunpack.c.h.b16 %v196
    %v1425 = vunpack.c.l.b16 %v197
    %v1426 = vunpack.c.h.b16 %v197
    %v1427 = vunpack.c.l.b16 %v198
    %v1428 = vunpack.c.h.b16 %v198
    %v1429 = vunpack.c.l.b16 %v199
    %v1430 = vunpack.c.h.b16 %v199
    %v1431 = vunpack.c.l.b16 %v200
    %v1432 = vunpack.c.h.b16 %v200
    %v1433 = vunpack.c.l.b16 %v201
    %v1434 = vunpack.c.h.b16 %v201
    %v1435 = vunpack.c.l.b16 %v202
    %v1436 = vunpack.c.h.b16 %v202
    %v1437 = vunpack.c.l.b16 %v203
    %v1438 = vunpack.c.h.b16 %v203
    %v1439 = vunpack.c.l.b16 %v204
    %v1440 = vunpack.c.h.b16 %v204
    %v1441 = vunpack.c.l.b16 %v205
    %v1442 = vunpack.c.h.b16 %v205
    %v1443 = vunpack.c.l.b16 %v206
    %v1444 = vunpack.c.h.b16 %v206
    %v1445 = vunpack.c.l.b16 %v207
    %v1446 = vunpack.c.h.b16 %v207
    %v1447 = vunpack.c.l.b16 %v208
    %v1448 = vunpack.c.h.b16 %v208
    %v1449 = vunpack.c.l.b16 %v209
    %v1450 = vunpack.c.h.b16 %v209
    %v1451 = vunpack.c.l.b16 %v210
    %v1452 = vunpack.c.h.b16 %v210
    %v1453 = vunpack.c.l.b16 %v211
    %v1454 = vunpack.c.h.b16 %v211
    %v1455 = vunpack.c.l.b16 %v212
    %v1456 = vunpack.c.h.b16 %v212
    %v1457 = vunpack.c.l.b16 %v213
    %v1458 = vunpack.c.h.b16 %v213
    %v1459 = vunpack.c.l.b16 %v214
    %v1460 = vunpack.c.h.b16 %v214
    %v1461 = vunpack.c.l.b16 %v215
    %v1462 = vunpack.c.h.b16 %v215
    %v1463 = vunpack.c.l.b16 %v216
    %v1464 = vunpack.c.h.b16 %v216
    %v1465 = vunpack.c.l.b16 %v217
    %v1466 = vunpack.c.h.b16 %v217
    %v1467 = vunpack.c.l.b16 %v218
    %v1468 = vunpack.c.h.b16 %v218
    %v1469 = vunpack.c.l.b16 %v219
    %v1470 = vunpack.c.h.b16 %v219
    %v1471 = vunpack.c.l.b16 %v220
    %v1472 = vunpack.c.h.b16 %v220
    %v1473 = vunpack.c.l.b16 %v221
    %v1474 = vunpack.c.h.b16 %v221
    %v1475 = vunpack.c.l.b16 %v222
    %v1476 = vunpack.c.h.b16 %v222
    %v1477 = vunpack.c.l.b16 %v223
    %v1478 = vunpack.c.h.b16 %v223
    %v1479 = vunpack.c.l.b16 %v224
    %v1480 = vunpack.c.h.b16 %v224
    %v1481 = vunpack.c.l.b16 %v225
    %v1482 = vunpack.c.h.b16 %v225
    %v1483 = vunpack.c.l.b16 %v226
    %v1484 = vunpack.c.h.b16 %v226
    %v1485 = vunpack.c.l.b16 %v227
    %v1486 = vunpack.c.h.b16 %v227
    %v1487 = vunpack.c.l.b16 %v228
    %v1488 = vunpack.c.h.b16 %v228
    %v1489 = vunpack.c.l.b16 %v229
    %v1490 = vunpack.c.h.b16 %v229
    %v1491 = vunpack.c.l.b16 %v230
    %v1492 = vunpack.c.h.b16 %v230
    %v1493 = vunpack.c.l.b16 %v231
    %v1494 = vunpack.c.h.b16 %v231
    %v1495 = vunpack.c.l.b16 %v232
    %v1496 = vunpack.c.h.b16 %v232
    %v1497 = vunpack.c.l.b16 %v233
    %v1498 = vunpack.c.h.b16 %v233
    %v1499 = vunpack.c.l.b16 %v234
    %v1500 = vunpack.c.h.b16 %v234
    %v1501 = vunpack.c.l.b16 %v235
    %v1502 = vunpack.c.h.b16 %v235
    %v1503 = vunpack.c.l.b16 %v236
    %v1504 = vunpack.c.h.b16 %v236
    %v1505 = vunpack.c.l.b16 %v237
    %v1506 = vunpack.c.h.b16 %v237
    %v1507 = vunpack.c.l.b16 %v238
    %v1508 = vunpack.c.h.b16 %v238
    %v1509 = vunpack.c.l.b16 %v239
    %v1510 = vunpack.c.h.b16 %v239
    %v1511 = vunpack.c.l.b16 %v240
    %v1512 = vunpack.c.h.b16 %v240
    %v1513 = vunpack.c.l.b16 %v241
    %v1514 = vunpack.c.h.b16 %v241
    %v1515 = vunpack.c.l.b16 %v242
    %v1516 = vunpack.c.h.b16 %v242
    %v1517 = vunpack.c.l.b16 %v243
    %v1518 = vunpack.c.h.b16 %v243
    %v1519 = vunpack.c.l.b16 %v244
    %v1520 = vunpack.c.h.b16 %v244
    %v1521 = vunpack.c.l.b16 %v245
    %v1522 = vunpack.c.h.b16 %v245
    %v1523 = vunpack.c.l.b16 %v246
    %v1524 = vunpack.c.h.b16 %v246
    %v1525 = vunpack.c.l.b16 %v247
    %v1526 = vunpack.c.h.b16 %v247
    %v1527 = vunpack.c.l.b16 %v248
    %v1528 = vunpack.c.h.b16 %v248
    %v1529 = vunpack.c.l.b16 %v249
    %v1530 = vunpack.c.h.b16 %v249
    %v1531 = vunpack.c.l.b16 %v250
    %v1532 = vunpack.c.h.b16 %v250
    %v1533 = vunpack.c.l.b16 %v251
    %v1534 = vunpack.c.h.b16 %v251
    %v1535 = vunpack.c.l.b16 %v252
    %v1536 = vunpack.c.h.b16 %v252
    %v1537 = vunpack.c.l.b16 %v253
    %v1538 = vunpack.c.h.b16 %v253
    %v1539 = vunpack.c.l.b16 %v254
    %v1540 = vunpack.c.h.b16 %v254
    %v1541 = vunpack.c.l.b16 %v255
    %v1542 = vunpack.c.h.b16 %v255
    %v1543 = vunpack.c.l.b16 %v256
    %v1544 = vunpack.c.h.b16 %v256
    %v1545 = vunpack.c.l.b16 %v257
    %v1546 = vunpack.c.h.b16 %v257
    %v1547 = vunpack.c.l.b16 %v258
    %v1548 = vunpack.c.h.b16 %v258
    %v1549 = vunpack.c.l.b16 %v259
    %v1550 = vunpack.c.h.b16 %v259
    %v1551 = vunpack.c.l.b16 %v260
    %v1552 = vunpack.c.h.b16 %v260
    %v1553 = vunpack.c.l.b16 %v261
    %v1554 = vunpack.c.h.b16 %v261
    %v1555 = vunpack.c.l.b16 %v262
    %v1556 = vunpack.c.h.b16 %v262
    %v1557 = vunpack.c.l.b16 %v263
    %v1558 = vunpack.c.h.b16 %v263
    %v1559 = vunpack.c.l.b16 %v264
    %v1560 = vunpack.c.h.b16 %v264
    %v1561 = vunpack.c.l.b16 %v265
    %v1562 = vunpack.c.h.b16 %v265
    %v1563 = vunpack.c.l.b16 %v266
    %v1564 = vunpack.c.h.b16 %v266
    %v1565 = vunpack.c.l.b16 %v267
    %v1566 = vunpack.c.h.b16 %v267
    %v1567 = vunpack.c.l.b16 %v268
    %v1568 = vunpack.c.h.b16 %v268
    %v1569 = vunpack.c.l.b16 %v269
    %v1570 = vunpack.c.h.b16 %v269
    %v1571 = vunpack.c.l.b16 %v270
    %v1572 = vunpack.c.h.b16 %v270
    %v1573 = vunpack.c.l.b16 %v271
    %v1574 = vunpack.c.h.b16 %v271
    %v1575 = vunpack.c.l.b16 %v272
    %v1576 = vunpack.c.h.b16 %v272
    %v1577 = vunpack.c.l.b16 %v273
    %v1578 = vunpack.c.h.b16 %v273
    %v1579 = vunpack.c.l.b16 %v274
    %v1580 = vunpack.c.h.b16 %v274
    %v1581 = vunpack.c.l.b16 %v275
    %v1582 = vunpack.c.h.b16 %v275
    %v1583 = vunpack.c.l.b16 %v276
    %v1584 = vunpack.c.h.b16 %v276
    %v1585 = vunpack.c.l.b16 %v277
    %v1586 = vunpack.c.h.b16 %v277
    %v1587 = vunpack.c.l.b16 %v278
    %v1588 = vunpack.c.h.b16 %v278
    %v1589 = vunpack.c.l.b16 %v279
    %v1590 = vunpack.c.h.b16 %v279
    %v1591 = vunpack.c.l.b16 %v280
    %v1592 = vunpack.c.h.b16 %v280
    %v1593 = vunpack.c.l.b16 %v281
    %v1594 = vunpack.c.h.b16 %v281
    %v1595 = vunpack.c.l.b16 %v282
    %v1596 = vunpack.c.h.b16 %v282
    %v1597 = vunpack.c.l.b16 %v283
    %v1598 = vunpack.c.h.b16 %v283
    %v1599 = vunpack.c.l.b16 %v284
    %v1600 = vunpack.c.h.b16 %v284
    %v1601 = vunpack.c.l.b16 %v285
    %v1602 = vunpack.c.h.b16 %v285
    %v1603 = vunpack.c.l.b16 %v286
    %v1604 = vunpack.c.h.b16 %v286
    %v1605 = vunpack.c.l.b16 %v287
    %v1606 = vunpack.c.h.b16 %v287
    %v1607 = vunpack.c.l.b16 %v288
    %v1608 = vunpack.c.h.b16 %v288
    %v1609 = vunpack.c.l.b16 %v289
    %v1610 = vunpack.c.h.b16 %v289
    %v1611 = vunpack.c.l.b16 %v290
    %v1612 = vunpack.c.h.b16 %v290
    %v1613 = vunpack.c.l.b16 %v291
    %v1614 = vunpack.c.h.b16 %v291
    %v1615 = vunpack.c.l.b16 %v292
    %v1616 = vunpack.c.h.b16 %v292
    %v1617 = vunpack.c.l.b16 %v293
    %v1618 = vunpack.c.h.b16 %v293
    %v1619 = vunpack.c.l.b16 %v294
    %v1620 = vunpack.c.h.b16 %v294
    %v1621 = vunpack.c.l.b16 %v295
    %v1622 = vunpack.c.h.b16 %v295
    %v1623 = vunpack.c.l.b16 %v296
    %v1624 = vunpack.c.h.b16 %v296
    %v1625 = vunpack.c.l.b16 %v297
    %v1626 = vunpack.c.h.b16 %v297
    %v1627 = vunpack.c.l.b16 %v298
    %v1628 = vunpack.c.h.b16 %v298
    %v1629 = vunpack.c.l.b16 %v299
    %v1630 = vunpack.c.h.b16 %v299
    %v1631 = vunpack.c.l.b16 %v300
    %v1632 = vunpack.c.h.b16 %v300
    %v1633 = vunpack.c.l.b16 %v301
    %v1634 = vunpack.c.h.b16 %v301
    %v1635 = vunpack.c.l.b16 %v302
    %v1636 = vunpack.c.h.b16 %v302
    %v1637 = vunpack.c.l.b16 %v303
    %v1638 = vunpack.c.h.b16 %v303
    %v1639 = vunpack.c.l.b16 %v304
    %v1640 = vunpack.c.h.b16 %v304
    %v1641 = vunpack.c.l.b16 %v305
    %v1642 = vunpack.c.h.b16 %v305
    %v1643 = vunpack.c.l.b16 %v306
    %v1644 = vunpack.c.h.b16 %v306
    %v1645 = vunpack.c.l.b16 %v307
    %v1646 = vunpack.c.h.b16 %v307
    %v1647 = vunpack.c.l.b16 %v308
    %v1648 = vunpack.c.h.b16 %v308
    %v1649 = vunpack.c.l.b16 %v309
    %v1650 = vunpack.c.h.b16 %v309
    %v1651 = vunpack.c.l.b16 %v310
    %v1652 = vunpack.c.h.b16 %v310
    %v1653 = vunpack.c.l.b16 %v311
    %v1654 = vunpack.c.h.b16 %v311
    %v1655 = vunpack.c.l.b16 %v312
    %v1656 = vunpack.c.h.b16 %v312
    %v1657 = vunpack.c.l.b16 %v313
    %v1658 = vunpack.c.h.b16 %v313
    %v1659 = vunpack.c.l.b16 %v314
    %v1660 = vunpack.c.h.b16 %v314
    %v1661 = vunpack.c.l.b16 %v315
    %v1662 = vunpack.c.h.b16 %v315
    %v1663 = vunpack.c.l.b16 %v316
    %v1664 = vunpack.c.h.b16 %v316
    %v1665 = vunpack.c.l.b16 %v317
    %v1666 = vunpack.c.h.b16 %v317
    %v1667 = vunpack.c.l.b16 %v318
    %v1668 = vunpack.c.h.b16 %v318
    %v1669 = vunpack.c.l.b16 %v319
    %v1670 = vunpack.c.h.b16 %v319
    %v1671 = vunpack.c.l.b16 %v320
    %v1672 = vunpack.c.h.b16 %v320
    %v1673 = vunpack.c.l.b16 %v321
    %v1674 = vunpack.c.h.b16 %v321
    %v1675 = vunpack.c.l.b16 %v322
    %v1676 = vunpack.c.h.b16 %v322
    %v1677 = vunpack.c.l.b16 %v323
    %v1678 = vunpack.c.h.b16 %v323
    %v1679 = vunpack.c.l.b16 %v324
    %v1680 = vunpack.c.h.b16 %v324
    %v1681 = vunpack.c.l.b16 %v325
    %v1682 = vunpack.c.h.b16 %v325
    %v1683 = vunpack.c.l.b16 %v326
    %v1684 = vunpack.c.h.b16 %v326
    %v1685 = vunpack.c.l.b16 %v327
    %v1686 = vunpack.c.h.b16 %v327
    %v1687 = vunpack.c.l.b16 %v328
    %v1688 = vunpack.c.h.b16 %v328
    %v1689 = vunpack.c.l.b16 %v329
    %v1690 = vunpack.c.h.b16 %v329
    %v1691 = vunpack.c.l.b16 %v330
    %v1692 = vunpack.c.h.b16 %v330
    %v1693 = vunpack.c.l.b16 %v331
    %v1694 = vunpack.c.h.b16 %v331
    %v1695 = vunpack.c.l.b16 %v332
    %v1696 = vunpack.c.h.b16 %v332
    %v1697 = vunpack.c.l.b16 %v333
    %v1698 = vunpack.c.h.b16 %v333
    %v1699 = vunpack.c.l.b16 %v334
    %v1700 = vunpack.c.h.b16 %v334
    %v1701 = vunpack.c.l.b16 %v335
    %v1702 = vunpack.c.h.b16 %v335
    %v1703 = vunpack.c.l.b16 %v336
    %v1704 = vunpack.c.h.b16 %v336
    %v1705 = vunpack.c.l.b16 %v337
    %v1706 = vunpack.c.h.b16 %v337
    %v1707 = vunpack.c.l.b16 %v338
    %v1708 = vunpack.c.h.b16 %v338
    %v1709 = vunpack.c.l.b16 %v339
    %v1710 = vunpack.c.h.b16 %v339
    %v1711 = vunpack.c.l.b16 %v340
    %v1712 = vunpack.c.h.b16 %v340
    %v1713 = vunpack.c.l.b16 %v341
    %v1714 = vunpack.c.h.b16 %v341
    %v1715 = vunpack.c.l.b16 %v342
    %v1716 = vunpack.c.h.b16 %v342
    %v1717 = vunpack.c.l.b16 %v343
    %v1718 = vunpack.c.h.b16 %v343
    %v1719 = vunpack.c.l.b16 %v344
    %v1720 = vunpack.c.h.b16 %v344
    %v1721 = vunpack.c.l.b16 %v345
    %v1722 = vunpack.c.h.b16 %v345
    %v1723 = vunpack.c.l.b16 %v346
    %v1724 = vunpack.c.h.b16 %v346
    %v1725 = vunpack.c.l.b16 %v347
    %v1726 = vunpack.c.h.b16 %v347
    %v1727 = vunpack.c.l.b16 %v348
    %v1728 = vunpack.c.h.b16 %v348
    %v1729 = vunpack.c.l.b16 %v349
    %v1730 = vunpack.c.h.b16 %v349
    %v1731 = vunpack.c.l.b16 %v350
    %v1732 = vunpack.c.h.b16 %v350
    %v1733 = vunpack.c.l.b16 %v351
    %v1734 = vunpack.c.h.b16 %v351
    %v1735 = vunpack.c.l.b16 %v352
    %v1736 = vunpack.c.h.b16 %v352
    %v1737 = vunpack.c.l.b16 %v353
    %v1738 = vunpack.c.h.b16 %v353
    %v1739 = vunpack.c.l.b16 %v354
    %v1740 = vunpack.c.h.b16 %v354
    %v1741 = vunpack.c.l.b16 %v355
    %v1742 = vunpack.c.h.b16 %v355
    %v1743 = vunpack.c.l.b16 %v356
    %v1744 = vunpack.c.h.b16 %v356
    %v1745 = vunpack.c.l.b16 %v357
    %v1746 = vunpack.c.h.b16 %v357
    %v1747 = vunpack.c.l.b16 %v358
    %v1748 = vunpack.c.h.b16 %v358
    %v1749 = vunpack.c.l.b16 %v359
    %v1750 = vunpack.c.h.b16 %v359
    %v1751 = vunpack.c.l.b16 %v360
    %v1752 = vunpack.c.h.b16 %v360
    %v1753 = vunpack.c.l.b16 %v361
    %v1754 = vunpack.c.h.b16 %v361
    %v1755 = vunpack.c.l.b16 %v362
    %v1756 = vunpack.c.h.b16 %v362
    %v1757 = vunpack.c.l.b16 %v363
    %v1758 = vunpack.c.h.b16 %v363
    %v1759 = vunpack.c.l.b16 %v364
    %v1760 = vunpack.c.h.b16 %v364
    %v1761 = vunpack.c.l.b16 %v365
    %v1762 = vunpack.c.h.b16 %v365
    %v1763 = vunpack.c.l.b16 %v366
    %v1764 = vunpack.c.h.b16 %v366
    %v1765 = vunpack.c.l.b16 %v367
    %v1766 = vunpack.c.h.b16 %v367
    %v1767 = vunpack.c.l.b16 %v368
    %v1768 = vunpack.c.h.b16 %v368
    %v1769 = vunpack.c.l.b16 %v369
    %v1770 = vunpack.c.h.b16 %v369
    %v1771 = vunpack.c.l.b16 %v370
    %v1772 = vunpack.c.h.b16 %v370
    %v1773 = vunpack.c.l.b16 %v371
    %v1774 = vunpack.c.h.b16 %v371
    %v1775 = vunpack.c.l.b16 %v372
    %v1776 = vunpack.c.h.b16 %v372
    %v1777 = vunpack.c.l.b16 %v373
    %v1778 = vunpack.c.h.b16 %v373
    %v1779 = vunpack.c.l.b16 %v374
    %v1780 = vunpack.c.h.b16 %v374
    %v1781 = vunpack.c.l.b16 %v375
    %v1782 = vunpack.c.h.b16 %v375
    %v1783 = vunpack.c.l.b16 %v376
    %v1784 = vunpack.c.h.b16 %v376
    %v1785 = vunpack.c.l.b16 %v377
    %v1786 = vunpack.c.h.b16 %v377
    %v1787 = vunpack.c.l.b16 %v378
    %v1788 = vunpack.c.h.b16 %v378
    %v1789 = vunpack.c.l.b16 %v379
    %v1790 = vunpack.c.h.b16 %v379
    %v1791 = vunpack.c.l.b16 %v380
    %v1792 = vunpack.c.h.b16 %v380
    %v1793 = vunpack.c.l.b16 %v381
    %v1794 = vunpack.c.h.b16 %v381
    %v1795 = vunpack.c.l.b16 %v382
    %v1796 = vunpack.c.h.b16 %v382
    %v1797 = vunpack.c.l.b16 %v383
    %v1798 = vunpack.c.h.b16 %v383
    %v1799 = vunpack.c.l.b16 %v384
    %v1800 = vunpack.c.h.b16 %v384
    %v1801 = vunpack.c.l.b16 %v385
    %v1802 = vunpack.c.h.b16 %v385
    %v1803 = vunpack.c.l.b16 %v386
    %v1804 = vunpack.c.h.b16 %v386
    %v1805 = vunpack.c.l.b16 %v387
    %v1806 = vunpack.c.h.b16 %v387
    %v1807 = vunpack.c.l.b16 %v388
    %v1808 = vunpack.c.h.b16 %v388
    %v1809 = vunpack.c.l.b16 %v389
    %v1810 = vunpack.c.h.b16 %v389
    %v1811 = vunpack.c.l.b16 %v390
    %v1812 = vunpack.c.h.b16 %v390
    %v1813 = vunpack.c.l.b16 %v391
    %v1814 = vunpack.c.h.b16 %v391
    %v1815 = vunpack.c.l.b16 %v392
    %v1816 = vunpack.c.h.b16 %v392
    %v1817 = vunpack.c.l.b16 %v393
    %v1818 = vunpack.c.h.b16 %v393
    %v1819 = vunpack.c.l.b16 %v394
    %v1820 = vunpack.c.h.b16 %v394
    %v1821 = vunpack.c.l.b16 %v395
    %v1822 = vunpack.c.h.b16 %v395
    %v1823 = vunpack.c.l.b16 %v396
    %v1824 = vunpack.c.h.b16 %v396
    %v1825 = vunpack.c.l.b16 %v397
    %v1826 = vunpack.c.h.b16 %v397
    %v1827 = vunpack.c.l.b16 %v398
    %v1828 = vunpack.c.h.b16 %v398
    %v1829 = vunpack.c.l.b16 %v399
    %v1830 = vunpack.c.h.b16 %v399
    %v1831 = vunpack.c.l.b16 %v400
    %v1832 = vunpack.c.h.b16 %v400
    %v1833 = vunpack.c.l.b16 %v401
    %v1834 = vunpack.c.h.b16 %v401
    %v1835 = vunpack.c.l.b16 %v402
    %v1836 = vunpack.c.h.b16 %v402
    %v1837 = vunpack.c.l.b16 %v403
    %v1838 = vunpack.c.h.b16 %v403
    %v1839 = vunpack.c.l.b16 %v404
    %v1840 = vunpack.c.h.b16 %v404
    %v1841 = vunpack.c.l.b16 %v405
    %v1842 = vunpack.c.h.b16 %v405
    %v1843 = vunpack.c.l.b16 %v406
    %v1844 = vunpack.c.h.b16 %v406
    %v1845 = vunpack.c.l.b16 %v407
    %v1846 = vunpack.c.h.b16 %v407
    %v1847 = vunpack.c.l.b16 %v408
    %v1848 = vunpack.c.h.b16 %v408
    %v1849 = vunpack.c.l.b16 %v409
    %v1850 = vunpack.c.h.b16 %v409
    %v1851 = vunpack.c.l.b16 %v410
    %v1852 = vunpack.c.h.b16 %v410
    %v1853 = vunpack.c.l.b16 %v411
    %v1854 = vunpack.c.h.b16 %v411
    %v1855 = vunpack.c.l.b16 %v412
    %v1856 = vunpack.c.h.b16 %v412
    %v1857 = vunpack.c.l.b16 %v413
    %v1858 = vunpack.c.h.b16 %v413
    %v1859 = vunpack.c.l.b16 %v414
    %v1860 = vunpack.c.h.b16 %v414
    %v1861 = vunpack.c.l.b16 %v415
    %v1862 = vunpack.c.h.b16 %v415
    %v1863 = vunpack.c.l.b16 %v416
    %v1864 = vunpack.c.h.b16 %v416
    %v1865 = vunpack.c.l.b16 %v417
    %v1866 = vunpack.c.h.b16 %v417
    %v1867 = vunpack.c.l.b16 %v418
    %v1868 = vunpack.c.h.b16 %v418
    %v1869 = vunpack.c.l.b16 %v419
    %v1870 = vunpack.c.h.b16 %v419
    %v1871 = vunpack.c.l.b16 %v420
    %v1872 = vunpack.c.h.b16 %v420
    %v1873 = vunpack.c.l.b16 %v421
    %v1874 = vunpack.c.h.b16 %v421
    %v1875 = vunpack.c.l.b16 %v422
    %v1876 = vunpack.c.h.b16 %v422
    %v1877 = vunpack.c.l.b16 %v423
    %v1878 = vunpack.c.h.b16 %v423
    %v1879 = vunpack.c.l.b16 %v424
    %v1880 = vunpack.c.h.b16 %v424
    %v1881 = vunpack.c.l.b16 %v425
    %v1882 = vunpack.c.h.b16 %v425
    %v1883 = vunpack.c.l.b16 %v426
    %v1884 = vunpack.c.h.b16 %v426
    %v1885 = vunpack.c.l.b16 %v427
    %v1886 = vunpack.c.h.b16 %v427
    %v1887 = vunpack.c.l.b16 %v428
    %v1888 = vunpack.c.h.b16 %v428
    %v1889 = vunpack.c.l.b16 %v429
    %v1890 = vunpack.c.h.b16 %v429
    %v1891 = vunpack.c.l.b16 %v430
    %v1892 = vunpack.c.h.b16 %v430
    %v1893 = vunpack.c.l.b16 %v431
    %v1894 = vunpack.c.h.b16 %v431
    %v1895 = vunpack.c.l.b16 %v432
    %v1896 = vunpack.c.h.b16 %v432
    %v1897 = vunpack.c.l.b16 %v433
    %v1898 = vunpack.c.h.b16 %v433
    %v1899 = vunpack.c.l.b16 %v434
    %v1900 = vunpack.c.h.b16 %v434
    %v1901 = vunpack.c.l.b16 %v435
    %v1902 = vunpack.c.h.b16 %v435
    %v1903 = vunpack.c.l.b16 %v436
    %v1904 = vunpack.c.h.b16 %v436
    %v1905 = vunpack.c.l.b16 %v437
    %v1906 = vunpack.c.h.b16 %v437
    %v1907 = vunpack.c.l.b16 %v438
    %v1908 = vunpack.c.h.b16 %v438
    %v1909 = vunpack.c.l.b16 %v439
    %v1910 = vunpack.c.h.b16 %v439
    %v1911 = vunpack.c.l.b16 %v440
    %v1912 = vunpack.c.h.b16 %v440
    %v1913 = vunpack.c.l.b16 %v441
    %v1914 = vunpack.c.h.b16 %v441
    %v1915 = vunpack.c.l.b16 %v442
    %v1916 = vunpack.c.h.b16 %v442
    %v1917 = vunpack.c.l.b16 %v443
    %v1918 = vunpack.c.h.b16 %v443
    %v1919 = vunpack.c.l.b16 %v444
    %v1920 = vunpack.c.h.b16 %v444
    %v1921 = vunpack.c.l.b16 %v445
    %v1922 = vunpack.c.h.b16 %v445
    %v1923 = vunpack.c.l.b16 %v446
    %v1924 = vunpack.c.h.b16 %v446
    %v1925 = vunpack.c.l.b16 %v447
    %v1926 = vunpack.c.h.b16 %v447
    %v1927 = vunpack.c.l.b16 %v448
    %v1928 = vunpack.c.h.b16 %v448
    %v1929 = vunpack.c.l.b16 %v449
    %v1930 = vunpack.c.h.b16 %v449
    %v1931 = vunpack.c.l.b16 %v450
    %v1932 = vunpack.c.h.b16 %v450
    %v1933 = vunpack.c.l.b16 %v451
    %v1934 = vunpack.c.h.b16 %v451
    %v1935 = vunpack.c.l.b16 %v452
    %v1936 = vunpack.c.h.b16 %v452
    %v1937 = vunpack.c.l.b16 %v453
    %v1938 = vunpack.c.h.b16 %v453
    %v1939 = vunpack.c.l.b16 %v454
    %v1940 = vunpack.c.h.b16 %v454
    %v1941 = vunpack.c.l.b16 %v455
    %v1942 = vunpack.c.h.b16 %v455
    %v1943 = vunpack.c.l.b16 %v456
    %v1944 = vunpack.c.h.b16 %v456
    %v1945 = vunpack.c.l.b16 %v457
    %v1946 = vunpack.c.h.b16 %v457
    %v1947 = vunpack.c.l.b16 %v458
    %v1948 = vunpack.c.h.b16 %v458
    %v1949 = vunpack.c.l.b16 %v459
    %v1950 = vunpack.c.h.b16 %v459
    %v1951 = vunpack.c.l.b16 %v460
    %v1952 = vunpack.c.h.b16 %v460
    %v1953 = vunpack.c.l.b16 %v461
    %v1954 = vunpack.c.h.b16 %v461
    %v1955 = vunpack.c.l.b16 %v462
    %v1956 = vunpack.c.h.b16 %v462
    %v1957 = vunpack.c.l.b16 %v463
    %v1958 = vunpack.c.h.b16 %v463
    %v1959 = vunpack.c.l.b16 %v464
    %v1960 = vunpack.c.h.b16 %v464
    %v1961 = vunpack.c.l.b16 %v465
    %v1962 = vunpack.c.h.b16 %v465
    %v1963 = vunpack.c.l.b16 %v466
    %v1964 = vunpack.c.h.b16 %v466
    %v1965 = vunpack.c.l.b16 %v467
    %v1966 = vunpack.c.h.b16 %v467
    %v1967 = vunpack.c.l.b16 %v468
    %v1968 = vunpack.c.h.b16 %v468
    %v1969 = vunpack.c.l.b16 %v469
    %v1970 = vunpack.c.h.b16 %v469
    %v1971 = vunpack.c.l.b16 %v470
    %v1972 = vunpack.c.h.b16 %v470
    %v1973 = vunpack.c.l.b16 %v471
    %v1974 = vunpack.c.h.b16 %v471
    %v1975 = vunpack.c.l.b16 %v472
    %v1976 = vunpack.c.h.b16 %v472
    %v1977 = vunpack.c.l.b16 %v473
    %v1978 = vunpack.c.h.b16 %v473
    %v1979 = vunpack.c.l.b16 %v474
    %v1980 = vunpack.c.h.b16 %v474
    %v1981 = vunpack.c.l.b16 %v475
    %v1982 = vunpack.c.h.b16 %v475
    %v1983 = vunpack.c.l.b16 %v476
    %v1984 = vunpack.c.h.b16 %v476
    %v1985 = vunpack.c.l.b16 %v477
    %v1986 = vunpack.c.h.b16 %v477
    %v1987 = vunpack.c.l.b16 %v478
    %v1988 = vunpack.c.h.b16 %v478
    %v1989 = vunpack.c.l.b16 %v479
    %v1990 = vunpack.c.h.b16 %v479
    %v1991 = vunpack.c.l.b16 %v480
    %v1992 = vunpack.c.h.b16 %v480
    %v1993 = vunpack.c.l.b16 %v481
    %v1994 = vunpack.c.h.b16 %v481
    %v1995 = vunpack.c.l.b16 %v482
    %v1996 = vunpack.c.h.b16 %v482
    %v1997 = vunpack.c.l.b16 %v483
    %v1998 = vunpack.c.h.b16 %v483
    %v1999 = vunpack.c.l.b16 %v484
    %v2000 = vunpack.c.h.b16 %v484
    %v2001 = vunpack.c.l.b16 %v485
    %v2002 = vunpack.c.h.b16 %v485
    %v2003 = vunpack.c.l.b16 %v486
    %v2004 = vunpack.c.h.b16 %v486
    %v2005 = vunpack.c.l.b16 %v487
    %v2006 = vunpack.c.h.b16 %v487
    %v2007 = vunpack.c.l.b16 %v488
    %v2008 = vunpack.c.h.b16 %v488
    %v2009 = vunpack.c.l.b16 %v489
    %v2010 = vunpack.c.h.b16 %v489
    %v2011 = vunpack.c.l.b16 %v490
    %v2012 = vunpack.c.h.b16 %v490
    %v2013 = vunpack.c.l.b16 %v491
    %v2014 = vunpack.c.h.b16 %v491
    %v2015 = vunpack.c.l.b16 %v492
    %v2016 = vunpack.c.h.b16 %v492
    %v2017 = vunpack.c.l.b16 %v493
    %v2018 = vunpack.c.h.b16 %v493
    %v2019 = vunpack.c.l.b16 %v494
    %v2020 = vunpack.c.h.b16 %v494
    %v2021 = vunpack.c.l.b16 %v495
    %v2022 = vunpack.c.h.b16 %v495
    %v2023 = vunpack.c.l.b16 %v496
    %v2024 = vunpack.c.h.b16 %v496
    %v2025 = vunpack.c.l.b16 %v497
    %v2026 = vunpack.c.h.b16 %v497
    %v2027 = vunpack.c.l.b16 %v498
    %v2028 = vunpack.c.h.b16 %v498
    %v2029 = vunpack.c.l.b16 %v499
    %v2030 = vunpack.c.h.b16 %v499
    %v2031 = vunpack.c.l.b16 %v500
    %v2032 = vunpack.c.h.b16 %v500
    %v2033 = vunpack.c.l.b16 %v501
    %v2034 = vunpack.c.h.b16 %v501
    %v2035 = vunpack.c.l.b16 %v502
    %v2036 = vunpack.c.h.b16 %v502
    %v2037 = vunpack.c.l.b16 %v503
    %v2038 = vunpack.c.h.b16 %v503
    %v2039 = vunpack.c.l.b16 %v504
    %v2040 = vunpack.c.h.b16 %v504
    %v2041 = vunpack.c.l.b16 %v505
    %v2042 = vunpack.c.h.b16 %v505
    %v2043 = vunpack.c.l.b16 %v506
    %v2044 = vunpack.c.h.b16 %v506
    %v2045 = vunpack.c.l.b16 %v507
    %v2046 = vunpack.c.h.b16 %v507
    %v2047 = vunpack.c.l.b16 %v508
    %v2048 = vunpack.c.h.b16 %v508
    %v2049 = vunpack.c.l.b16 %v509
    %v2050 = vunpack.c.h.b16 %v509
    %v2051 = vunpack.c.l.b16 %v510
    %v2052 = vunpack.c.h.b16 %v510
    %v2053 = vunpack.c.l.b16 %v511
    %v2054 = vunpack.c.h.b16 %v511
    %v2055 = vunpack.c.l.b16 %v512
    %v2056 = vunpack.c.h.b16 %v512
    %v2057 = vunpack.c.l.b16 %v513
    %v2058 = vunpack.c.h.b16 %v513
    %v2059 = vunpack.c.l.b16 %v514
    %v2060 = vunpack.c.h.b16 %v514
    %v2061 = vunpack.c.l.b16 %v515
    %v2062 = vunpack.c.h.b16 %v515
    %v2063 = vunpack.c.l.b16 %v516
    %v2064 = vunpack.c.h.b16 %v516
    %v2065 = vunpack.c.l.b16 %v517
    %v2066 = vunpack.c.h.b16 %v517
    %v2067 = vunpack.c.l.b16 %v518
    %v2068 = vunpack.c.h.b16 %v518
    %v2069 = vunpack.c.l.b16 %v519
    %v2070 = vunpack.c.h.b16 %v519
    %v2071 = vunpack.c.l.b16 %v520
    %v2072 = vunpack.c.h.b16 %v520
    %v2073 = vunpack.c.l.b16 %v521
    %v2074 = vunpack.c.h.b16 %v521
    %v2075 = vunpack.c.l.b16 %v522
    %v2076 = vunpack.c.h.b16 %v522
    %v2077 = vunpack.c.l.b16 %v523
    %v2078 = vunpack.c.h.b16 %v523
    %v2079 = vunpack.c.l.b16 %v524
    %v2080 = vunpack.c.h.b16 %v524
    %v2081 = vunpack.c.l.b16 %v525
    %v2082 = vunpack.c.h.b16 %v525
    %v2083 = vunpack.c.l.b16 %v526
    %v2084 = vunpack.c.h.b16 %v526
    %v2085 = vunpack.c.l.b16 %v527
    %v2086 = vunpack.c.h.b16 %v527
    %v2087 = vunpack.c.l.b16 %v528
    %v2088 = vunpack.c.h.b16 %v528
    %v2089 = vunpack.c.l.b16 %v529
    %v2090 = vunpack.c.h.b16 %v529
    %v2091 = vunpack.c.l.b16 %v530
    %v2092 = vunpack.c.h.b16 %v530
    %v2093 = vunpack.c.l.b16 %v531
    %v2094 = vunpack.c.h.b16 %v531
    %v2095 = vunpack.c.l.b16 %v532
    %v2096 = vunpack.c.h.b16 %v532
    %v2097 = vunpack.c.l.b16 %v533
    %v2098 = vunpack.c.h.b16 %v533
    %v2099 = vunpack.c.l.b16 %v534
    %v2100 = vunpack.c.h.b16 %v534
    %v2101 = vunpack.c.l.b16 %v535
    %v2102 = vunpack.c.h.b16 %v535
    %v2103 = vunpack.c.l.b16 %v536
    %v2104 = vunpack.c.h.b16 %v536
    %v2105 = vunpack.c.l.b16 %v537
    %v2106 = vunpack.c.h.b16 %v537
    %v2107 = vunpack.c.l.b16 %v538
    %v2108 = vunpack.c.h.b16 %v538
    %v2109 = vunpack.c.l.b16 %v539
    %v2110 = vunpack.c.h.b16 %v539
    %v2111 = vunpack.c.l.b16 %v540
    %v2112 = vunpack.c.h.b16 %v540
    %v2113 = vunpack.c.l.b16 %v541
    %v2114 = vunpack.c.h.b16 %v541
    %v2115 = vunpack.c.l.b16 %v542
    %v2116 = vunpack.c.h.b16 %v542
    %v2117 = vunpack.c.l.b16 %v543
    %v2118 = vunpack.c.h.b16 %v543
    %v2119 = vunpack.c.l.b16 %v544
    %v2120 = vunpack.c.h.b16 %v544
    %v2121 = vunpack.c.l.b16 %v545
    %v2122 = vunpack.c.h.b16 %v545
    %v2123 = vunpack.c.l.b16 %v546
    %v2124 = vunpack.c.h.b16 %v546
    %v2125 = vunpack.c.l.b16 %v547
    %v2126 = vunpack.c.h.b16 %v547
    %v2127 = vunpack.c.l.b16 %v548
    %v2128 = vunpack.c.h.b16 %v548
    %v2129 = vunpack.c.l.b16 %v549
    %v2130 = vunpack.c.h.b16 %v549
    %v2131 = vunpack.c.l.b16 %v550
    %v2132 = vunpack.c.h.b16 %v550
    %v2133 = vunpack.c.l.b16 %v551
    %v2134 = vunpack.c.h.b16 %v551
    %v2135 = vunpack.c.l.b16 %v552
    %v2136 = vunpack.c.h.b16 %v552
    %v2137 = vunpack.c.l.b16 %v553
    %v2138 = vunpack.c.h.b16 %v553
    %v2139 = vunpack.c.l.b16 %v554
    %v2140 = vunpack.c.h.b16 %v554
    %v2141 = vunpack.c.l.b16 %v555
    %v2142 = vunpack.c.h.b16 %v555
    %v2143 = vunpack.c.l.b16 %v556
    %v2144 = vunpack.c.h.b16 %v556
    %v2145 = vunpack.c.l.b16 %v557
    %v2146 = vunpack.c.h.b16 %v557
    %v2147 = vunpack.c.l.b16 %v558
    %v2148 = vunpack.c.h.b16 %v558
    %v2149 = vunpack.c.l.b16 %v559
    %v2150 = vunpack.c.h.b16 %v559
    %v2151 = vunpack.c.l.b16 %v560
    %v2152 = vunpack.c.h.b16 %v560
    %v2153 = vunpack.c.l.b16 %v561
    %v2154 = vunpack.c.h.b16 %v561
    %v2155 = vunpack.c.l.b16 %v562
    %v2156 = vunpack.c.h.b16 %v562
    %v2157 = vunpack.c.l.b16 %v563
    %v2158 = vunpack.c.h.b16 %v563
    %v2159 = vunpack.c.l.b16 %v564
    %v2160 = vunpack.c.h.b16 %v564
    %v2161 = vunpack.c.l.b16 %v565
    %v2162 = vunpack.c.h.b16 %v565
    %v2163 = vunpack.c.l.b16 %v566
    %v2164 = vunpack.c.h.b16 %v566
    %v2165 = vunpack.c.l.b16 %v567
    %v2166 = vunpack.c.h.b16 %v567
    %v2167 = vunpack.c.l.b16 %v568
    %v2168 = vunpack.c.h.b16 %v568
    %v2169 = vunpack.c.l.b16 %v569
    %v2170 = vunpack.c.h.b16 %v569
    %v2171 = vunpack.c.l.b16 %v570
    %v2172 = vunpack.c.h.b16 %v570
    %v2173 = vunpack.c.l.b16 %v571
    %v2174 = vunpack.c.h.b16 %v571
    %v2175 = vunpack.c.l.b16 %v572
    %v2176 = vunpack.c.h.b16 %v572
    %v2177 = vunpack.c.l.b16 %v573
    %v2178 = vunpack.c.h.b16 %v573
    %v2179 = vunpack.c.l.b16 %v574
    %v2180 = vunpack.c.h.b16 %v574
    %v2181 = vunpack.c.l.b16 %v575
    %v2182 = vunpack.c.h.b16 %v575
    %v2183 = vunpack.c.l.b16 %v576
    %v2184 = vunpack.c.h.b16 %v576
    %v2185 = vunpack.c.l.b16 %v577
    %v2186 = vunpack.c.h.b16 %v577
    %v2187 = vunpack.c.l.b16 %v578
    %v2188 = vunpack.c.h.b16 %v578
    %v2189 = vunpack.c.l.b16 %v579
    %v2190 = vunpack.c.h.b16 %v579
    %v2191 = vunpack.c.l.b16 %v580
    %v2192 = vunpack.c.h.b16 %v580
    %v2193 = vunpack.c.l.b16 %v581
    %v2194 = vunpack.c.h.b16 %v581
    %v2195 = vunpack.c.l.b16 %v582
    %v2196 = vunpack.c.h.b16 %v582
    %v2197 = vunpack.c.l.b16 %v583
    %v2198 = vunpack.c.h.b16 %v583
    %v2199 = vunpack.c.l.b16 %v584
    %v2200 = vunpack.c.h.b16 %v584
    %v2201 = vunpack.c.l.b16 %v585
    %v2202 = vunpack.c.h.b16 %v585
    %v2203 = vunpack.c.l.b16 %v586
    %v2204 = vunpack.c.h.b16 %v586
    %v2205 = vunpack.c.l.b16 %v587
    %v2206 = vunpack.c.h.b16 %v587
    %v2207 = vunpack.c.l.b16 %v588
    %v2208 = vunpack.c.h.b16 %v588
    %v2209 = vpack.c.b16 %v1201, %v1185
    %v2210 = vpack.c.b16 %v1202, %v1186
    %v2211 = vpack.c.b16 %v1203, %v1187
    %v2212 = vpack.c.b16 %v1204, %v1188
    %v2213 = vpack.c.b16 %v1205, %v1189
    %v2214 = vpack.c.b16 %v1206, %v1190
    %v2215 = vpack.c.b16 %v1207, %v1191
    %v2216 = vpack.c.b16 %v1208, %v1192
    %v2217 = vpack.c.b16 %v1209, %v1193
    %v2218 = vpack.c.b16 %v1210, %v1194
    %v2219 = vpack.c.b16 %v1211, %v1195
    %v2220 = vpack.c.b16 %v1212, %v1196
    %v2221 = vpack.c.b16 %v1213, %v1197
    %v2222 = vpack.c.b16 %v1214, %v1198
    %v2223 = vpack.c.b16 %v1215, %v1199
    %v2224 = vpack.c.b16 %v1216, %v1200
    %v2225 = vpack.c.b16 %v1233, %v1217
    %v2226 = vpack.c.b16 %v1234, %v1218
    %v2227 = vpack.c.b16 %v1235, %v1219
    %v2228 = vpack.c.b16 %v1236, %v1220
    %v2229 = vpack.c.b16 %v1237, %v1221
    %v2230 = vpack.c.b16 %v1238, %v1222
    %v2231 = vpack.c.b16 %v1239, %v1223
    %v2232 = vpack.c.b16 %v1240, %v1224
    %v2233 = vpack.c.b16 %v1241, %v1225
    %v2234 = vpack.c.b16 %v1242, %v1226
    %v2235 = vpack.c.b16 %v1243, %v1227
    %v2236 = vpack.c.b16 %v1244, %v1228
    %v2237 = vpack.c.b16 %v1245, %v1229
    %v2238 = vpack.c.b16 %v1246, %v1230
    %v2239 = vpack.c.b16 %v1247, %v1231
    %v2240 = vpack.c.b16 %v1248, %v1232
    %v2241 = vpack.c.b16 %v1265, %v1249
    %v2242 = vpack.c.b16 %v1266, %v1250
    %v2243 = vpack.c.b16 %v1267, %v1251
    %v2244 = vpack.c.b16 %v1268, %v1252
    %v2245 = vpack.c.b16 %v1269, %v1253
    %v2246 = vpack.c.b16 %v1270, %v1254
    %v2247 = vpack.c.b16 %v1271, %v1255
    %v2248 = vpack.c.b16 %v1272, %v1256
    %v2249 = vpack.c.b16 %v1273, %v1257
    %v2250 = vpack.c.b16 %v1274, %v1258
    %v2251 = vpack.c.b16 %v1275, %v1259
    %v2252 = vpack.c.b16 %v1276, %v1260
    %v2253 = vpack.c.b16 %v1277, %v1261
    %v2254 = vpack.c.b16 %v1278, %v1262
    %v2255 = vpack.c.b16 %v1279, %v1263
    %v2256 = vpack.c.b16 %v1280, %v1264
    %v2257 = vpack.c.b16 %v1297, %v1281
    %v2258 = vpack.c.b16 %v1298, %v1282
    %v2259 = vpack.c.b16 %v1299, %v1283
    %v2260 = vpack.c.b16 %v1300, %v1284
    %v2261 = vpack.c.b16 %v1301, %v1285
    %v2262 = vpack.c.b16 %v1302, %v1286
    %v2263 = vpack.c.b16 %v1303, %v1287
    %v2264 = vpack.c.b16 %v1304, %v1288
    %v2265 = vpack.c.b16 %v1305, %v1289
    %v2266 = vpack.c.b16 %v1306, %v1290
    %v2267 = vpack.c.b16 %v1307, %v1291
    %v2268 = vpack.c.b16 %v1308, %v1292
    %v2269 = vpack.c.b16 %v1309, %v1293
    %v2270 = vpack.c.b16 %v1310, %v1294
    %v2271 = vpack.c.b16 %v1311, %v1295
    %v2272 = vpack.c.b16 %v1312, %v1296
    %v2273 = vpack.c.b16 %v1329, %v1313
    %v2274 = vpack.c.b16 %v1330, %v1314
    %v2275 = vpack.c.b16 %v1331, %v1315
    %v2276 = vpack.c.b16 %v1332, %v1316
    %v2277 = vpack.c.b16 %v1333, %v1317
    %v2278 = vpack.c.b16 %v1334, %v1318
    %v2279 = vpack.c.b16 %v1335, %v1319
    %v2280 = vpack.c.b16 %v1336, %v1320
    %v2281 = vpack.c.b16 %v1337, %v1321
    %v2282 = vpack.c.b16 %v1338, %v1322
    %v2283 = vpack.c.b16 %v1339, %v1323
    %v2284 = vpack.c.b16 %v1340, %v1324
    %v2285 = vpack.c.b16 %v1341, %v1325
    %v2286 = vpack.c.b16 %v1342, %v1326
    %v2287 = vpack.c.b16 %v1343, %v1327
    %v2288 = vpack.c.b16 %v1344, %v1328
    %v2289 = vpack.c.b16 %v1361, %v1345
    %v2290 = vpack.c.b16 %v1362, %v1346
    %v2291 = vpack.c.b16 %v1363, %v1347
    %v2292 = vpack.c.b16 %v1364, %v1348
    %v2293 = vpack.c.b16 %v1365, %v1349
    %v2294 = vpack.c.b16 %v1366, %v1350
    %v2295 = vpack.c.b16 %v1367, %v1351
    %v2296 = vpack.c.b16 %v1368, %v1352
    %v2297 = vpack.c.b16 %v1369, %v1353
    %v2298 = vpack.c.b16 %v1370, %v1354
    %v2299 = vpack.c.b16 %v1371, %v1355
    %v2300 = vpack.c.b16 %v1372, %v1356
    %v2301 = vpack.c.b16 %v1373, %v1357
    %v2302 = vpack.c.b16 %v1374, %v1358
    %v2303 = vpack.c.b16 %v1375, %v1359
    %v2304 = vpack.c.b16 %v1376, %v1360
    %v2305 = vpack.c.b16 %v1393, %v1377
    %v2306 = vpack.c.b16 %v1394, %v1378
    %v2307 = vpack.c.b16 %v1395, %v1379
    %v2308 = vpack.c.b16 %v1396, %v1380
    %v2309 = vpack.c.b16 %v1397, %v1381
    %v2310 = vpack.c.b16 %v1398, %v1382
    %v2311 = vpack.c.b16 %v1399, %v1383
    %v2312 = vpack.c.b16 %v1400, %v1384
    %v2313 = vpack.c.b16 %v1401, %v1385
    %v2314 = vpack.c.b16 %v1402, %v1386
    %v2315 = vpack.c.b16 %v1403, %v1387
    %v2316 = vpack.c.b16 %v1404, %v1388
    %v2317 = vpack.c.b16 %v1405, %v1389
    %v2318 = vpack.c.b16 %v1406, %v1390
    %v2319 = vpack.c.b16 %v1407, %v1391
    %v2320 = vpack.c.b16 %v1408, %v1392
    %v2321 = vpack.c.b16 %v1425, %v1409
    %v2322 = vpack.c.b16 %v1426, %v1410
    %v2323 = vpack.c.b16 %v1427, %v1411
    %v2324 = vpack.c.b16 %v1428, %v1412
    %v2325 = vpack.c.b16 %v1429, %v1413
    %v2326 = vpack.c.b16 %v1430, %v1414
    %v2327 = vpack.c.b16 %v1431, %v1415
    %v2328 = vpack.c.b16 %v1432, %v1416
    %v2329 = vpack.c.b16 %v1433, %v1417
    %v2330 = vpack.c.b16 %v1434, %v1418
    %v2331 = vpack.c.b16 %v1435, %v1419
    %v2332 = vpack.c.b16 %v1436, %v1420
    %v2333 = vpack.c.b16 %v1437, %v1421
    %v2334 = vpack.c.b16 %v1438, %v1422
    %v2335 = vpack.c.b16 %v1439, %v1423
    %v2336 = vpack.c.b16 %v1440, %v1424
    %v2337 = vpack.c.b16 %v1457, %v1441
    %v2338 = vpack.c.b16 %v1458, %v1442
    %v2339 = vpack.c.b16 %v1459, %v1443
    %v2340 = vpack.c.b16 %v1460, %v1444
    %v2341 = vpack.c.b16 %v1461, %v1445
    %v2342 = vpack.c.b16 %v1462, %v1446
    %v2343 = vpack.c.b16 %v1463, %v1447
    %v2344 = vpack.c.b16 %v1464, %v1448
    %v2345 = vpack.c.b16 %v1465, %v1449
    %v2346 = vpack.c.b16 %v1466, %v1450
    %v2347 = vpack.c.b16 %v1467, %v1451
    %v2348 = vpack.c.b16 %v1468, %v1452
    %v2349 = vpack.c.b16 %v1469, %v1453
    %v2350 = vpack.c.b16 %v1470, %v1454
    %v2351 = vpack.c.b16 %v1471, %v1455
    %v2352 = vpack.c.b16 %v1472, %v1456
    %v2353 = vpack.c.b16 %v1489, %v1473
    %v2354 = vpack.c.b16 %v1490, %v1474
    %v2355 = vpack.c.b16 %v1491, %v1475
    %v2356 = vpack.c.b16 %v1492, %v1476
    %v2357 = vpack.c.b16 %v1493, %v1477
    %v2358 = vpack.c.b16 %v1494, %v1478
    %v2359 = vpack.c.b16 %v1495, %v1479
    %v2360 = vpack.c.b16 %v1496, %v1480
    %v2361 = vpack.c.b16 %v1497, %v1481
    %v2362 = vpack.c.b16 %v1498, %v1482
    %v2363 = vpack.c.b16 %v1499, %v1483
    %v2364 = vpack.c.b16 %v1500, %v1484
    %v2365 = vpack.c.b16 %v1501, %v1485
    %v2366 = vpack.c.b16 %v1502, %v1486
    %v2367 = vpack.c.b16 %v1503, %v1487
    %v2368 = vpack.c.b16 %v1504, %v1488
    %v2369 = vpack.c.b16 %v1521, %v1505
    %v2370 = vpack.c.b16 %v1522, %v1506
    %v2371 = vpack.c.b16 %v1523, %v1507
    %v2372 = vpack.c.b16 %v1524, %v1508
    %v2373 = vpack.c.b16 %v1525, %v1509
    %v2374 = vpack.c.b16 %v1526, %v1510
    %v2375 = vpack.c.b16 %v1527, %v1511
    %v2376 = vpack.c.b16 %v1528, %v1512
    %v2377 = vpack.c.b16 %v1529, %v1513
    %v2378 = vpack.c.b16 %v1530, %v1514
    %v2379 = vpack.c.b16 %v1531, %v1515
    %v2380 = vpack.c.b16 %v1532, %v1516
    %v2381 = vpack.c.b16 %v1533, %v1517
    %v2382 = vpack.c.b16 %v1534, %v1518
    %v2383 = vpack.c.b16 %v1535, %v1519
    %v2384 = vpack.c.b16 %v1536, %v1520
    %v2385 = vpack.c.b16 %v1553, %v1537
    %v2386 = vpack.c.b16 %v1554, %v1538
    %v2387 = vpack.c.b16 %v1555, %v1539
    %v2388 = vpack.c.b16 %v1556, %v1540
    %v2389 = vpack.c.b16 %v1557, %v1541
    %v2390 = vpack.c.b16 %v1558, %v1542
    %v2391 = vpack.c.b16 %v1559, %v1543
    %v2392 = vpack.c.b16 %v1560, %v1544
    %v2393 = vpack.c.b16 %v1561, %v1545
    %v2394 = vpack.c.b16 %v1562, %v1546
    %v2395 = vpack.c.b16 %v1563, %v1547
    %v2396 = vpack.c.b16 %v1564, %v1548
    %v2397 = vpack.c.b16 %v1565, %v1549
    %v2398 = vpack.c.b16 %v1566, %v1550
    %v2399 = vpack.c.b16 %v1567, %v1551
    %v2400 = vpack.c.b16 %v1568, %v1552
    %v2401 = vpack.c.b16 %v1585, %v1569
    %v2402 = vpack.c.b16 %v1586, %v1570
    %v2403 = vpack.c.b16 %v1587, %v1571
    %v2404 = vpack.c.b16 %v1588, %v1572
    %v2405 = vpack.c.b16 %v1589, %v1573
    %v2406 = vpack.c.b16 %v1590, %v1574
    %v2407 = vpack.c.b16 %v1591, %v1575
    %v2408 = vpack.c.b16 %v1592, %v1576
    %v2409 = vpack.c.b16 %v1593, %v1577
    %v2410 = vpack.c.b16 %v1594, %v1578
    %v2411 = vpack.c.b16 %v1595, %v1579
    %v2412 = vpack.c.b16 %v1596, %v1580
    %v2413 = vpack.c.b16 %v1597, %v1581
    %v2414 = vpack.c.b16 %v1598, %v1582
    %v2415 = vpack.c.b16 %v1599, %v1583
    %v2416 = vpack.c.b16 %v1600, %v1584
    %v2417 = vpack.c.b16 %v1617, %v1601
    %v2418 = vpack.c.b16 %v1618, %v1602
    %v2419 = vpack.c.b16 %v1619, %v1603
    %v2420 = vpack.c.b16 %v1620, %v1604
    %v2421 = vpack.c.b16 %v1621, %v1605
    %v2422 = vpack.c.b16 %v1622, %v1606
    %v2423 = vpack.c.b16 %v1623, %v1607
    %v2424 = vpack.c.b16 %v1624, %v1608
    %v2425 = vpack.c.b16 %v1625, %v1609
    %v2426 = vpack.c.b16 %v1626, %v1610
    %v2427 = vpack.c.b16 %v1627, %v1611
    %v2428 = vpack.c.b16 %v1628, %v1612
    %v2429 = vpack.c.b16 %v1629, %v1613
    %v2430 = vpack.c.b16 %v1630, %v1614
    %v2431 = vpack.c.b16 %v1631, %v1615
    %v2432 = vpack.c.b16 %v1632, %v1616
    %v2433 = vpack.c.b16 %v1649, %v1633
    %v2434 = vpack.c.b16 %v1650, %v1634
    %v2435 = vpack.c.b16 %v1651, %v1635
    %v2436 = vpack.c.b16 %v1652, %v1636
    %v2437 = vpack.c.b16 %v1653, %v1637
    %v2438 = vpack.c.b16 %v1654, %v1638
    %v2439 = vpack.c.b16 %v1655, %v1639
    %v2440 = vpack.c.b16 %v1656, %v1640
    %v2441 = vpack.c.b16 %v1657, %v1641
    %v2442 = vpack.c.b16 %v1658, %v1642
    %v2443 = vpack.c.b16 %v1659, %v1643
    %v2444 = vpack.c.b16 %v1660, %v1644
    %v2445 = vpack.c.b16 %v1661, %v1645
    %v2446 = vpack.c.b16 %v1662, %v1646
    %v2447 = vpack.c.b16 %v1663, %v1647
    %v2448 = vpack.c.b16 %v1664, %v1648
    %v2449 = vpack.c.b16 %v1681, %v1665
    %v2450 = vpack.c.b16 %v1682, %v1666
    %v2451 = vpack.c.b16 %v1683, %v1667
    %v2452 = vpack.c.b16 %v1684, %v1668
    %v2453 = vpack.c.b16 %v1685, %v1669
    %v2454 = vpack.c.b16 %v1686, %v1670
    %v2455 = vpack.c.b16 %v1687, %v1671
    %v2456 = vpack.c.b16 %v1688, %v1672
    %v2457 = vpack.c.b16 %v1689, %v1673
    %v2458 = vpack.c.b16 %v1690, %v1674
    %v2459 = vpack.c.b16 %v1691, %v1675
    %v2460 = vpack.c.b16 %v1692, %v1676
    %v2461 = vpack.c.b16 %v1693, %v1677
    %v2462 = vpack.c.b16 %v1694, %v1678
    %v2463 = vpack.c.b16 %v1695, %v1679
    %v2464 = vpack.c.b16 %v1696, %v1680
    %v2465 = vpack.c.b16 %v1713, %v1697
    %v2466 = vpack.c.b16 %v1714, %v1698
    %v2467 = vpack.c.b16 %v1715, %v1699
    %v2468 = vpack.c.b16 %v1716, %v1700
    %v2469 = vpack.c.b16 %v1717, %v1701
    %v2470 = vpack.c.b16 %v1718, %v1702
    %v2471 = vpack.c.b16 %v1719, %v1703
    %v2472 = vpack.c.b16 %v1720, %v1704
    %v2473 = vpack.c.b16 %v1721, %v1705
    %v2474 = vpack.c.b16 %v1722, %v1706
    %v2475 = vpack.c.b16 %v1723, %v1707
    %v2476 = vpack.c.b16 %v1724, %v1708
    %v2477 = vpack.c.b16 %v1725, %v1709
    %v2478 = vpack.c.b16 %v1726, %v1710
    %v2479 = vpack.c.b16 %v1727, %v1711
    %v2480 = vpack.c.b16 %v1728, %v1712
    %v2481 = vpack.c.b16 %v1745, %v1729
    %v2482 = vpack.c.b16 %v1746, %v1730
    %v2483 = vpack.c.b16 %v1747, %v1731
    %v2484 = vpack.c.b16 %v1748, %v1732
    %v2485 = vpack.c.b16 %v1749, %v1733
    %v2486 = vpack.c.b16 %v1750, %v1734
    %v2487 = vpack.c.b16 %v1751, %v1735
    %v2488 = vpack.c.b16 %v1752, %v1736
    %v2489 = vpack.c.b16 %v1753, %v1737
    %v2490 = vpack.c.b16 %v1754, %v1738
    %v2491 = vpack.c.b16 %v1755, %v1739
    %v2492 = vpack.c.b16 %v1756, %v1740
    %v2493 = vpack.c.b16 %v1757, %v1741
    %v2494 = vpack.c.b16 %v1758, %v1742
    %v2495 = vpack.c.b16 %v1759, %v1743
    %v2496 = vpack.c.b16 %v1760, %v1744
    %v2497 = vpack.c.b16 %v1777, %v1761
    %v2498 = vpack.c.b16 %v1778, %v1762
    %v2499 = vpack.c.b16 %v1779, %v1763
    %v2500 = vpack.c.b16 %v1780, %v1764
    %v2501 = vpack.c.b16 %v1781, %v1765
    %v2502 = vpack.c.b16 %v1782, %v1766
    %v2503 = vpack.c.b16 %v1783, %v1767
    %v2504 = vpack.c.b16 %v1784, %v1768
    %v2505 = vpack.c.b16 %v1785, %v1769
    %v2506 = vpack.c.b16 %v1786, %v1770
    %v2507 = vpack.c.b16 %v1787, %v1771
    %v2508 = vpack.c.b16 %v1788, %v1772
    %v2509 = vpack.c.b16 %v1789, %v1773
    %v2510 = vpack.c.b16 %v1790, %v1774
    %v2511 = vpack.c.b16 %v1791, %v1775
    %v2512 = vpack.c.b16 %v1792, %v1776
    %v2513 = vpack.c.b16 %v1809, %v1793
    %v2514 = vpack.c.b16 %v1810, %v1794
    %v2515 = vpack.c.b16 %v1811, %v1795
    %v2516 = vpack.c.b16 %v1812, %v1796
    %v2517 = vpack.c.b16 %v1813, %v1797
    %v2518 = vpack.c.b16 %v1814, %v1798
    %v2519 = vpack.c.b16 %v1815, %v1799
    %v2520 = vpack.c.b16 %v1816, %v1800
    %v2521 = vpack.c.b16 %v1817, %v1801
    %v2522 = vpack.c.b16 %v1818, %v1802
    %v2523 = vpack.c.b16 %v1819, %v1803
    %v2524 = vpack.c.b16 %v1820, %v1804
    %v2525 = vpack.c.b16 %v1821, %v1805
    %v2526 = vpack.c.b16 %v1822, %v1806
    %v2527 = vpack.c.b16 %v1823, %v1807
    %v2528 = vpack.c.b16 %v1824, %v1808
    %v2529 = vpack.c.b16 %v1841, %v1825
    %v2530 = vpack.c.b16 %v1842, %v1826
    %v2531 = vpack.c.b16 %v1843, %v1827
    %v2532 = vpack.c.b16 %v1844, %v1828
    %v2533 = vpack.c.b16 %v1845, %v1829
    %v2534 = vpack.c.b16 %v1846, %v1830
    %v2535 = vpack.c.b16 %v1847, %v1831
    %v2536 = vpack.c.b16 %v1848, %v1832
    %v2537 = vpack.c.b16 %v1849, %v1833
    %v2538 = vpack.c.b16 %v1850, %v1834
    %v2539 = vpack.c.b16 %v1851, %v1835
    %v2540 = vpack.c.b16 %v1852, %v1836
    %v2541 = vpack.c.b16 %v1853, %v1837
    %v2542 = vpack.c.b16 %v1854, %v1838
    %v2543 = vpack.c.b16 %v1855, %v1839
    %v2544 = vpack.c.b16 %v1856, %v1840
    %v2545 = vpack.c.b16 %v1873, %v1857
    %v2546 = vpack.c.b16 %v1874, %v1858
    %v2547 = vpack.c.b16 %v1875, %v1859
    %v2548 = vpack.c.b16 %v1876, %v1860
    %v2549 = vpack.c.b16 %v1877, %v1861
    %v2550 = vpack.c.b16 %v1878, %v1862
    %v2551 = vpack.c.b16 %v1879, %v1863
    %v2552 = vpack.c.b16 %v1880, %v1864
    %v2553 = vpack.c.b16 %v1881, %v1865
    %v2554 = vpack.c.b16 %v1882, %v1866
    %v2555 = vpack.c.b16 %v1883, %v1867
    %v2556 = vpack.c.b16 %v1884, %v1868
    %v2557 = vpack.c.b16 %v1885, %v1869
    %v2558 = vpack.c.b16 %v1886, %v1870
    %v2559 = vpack.c.b16 %v1887, %v1871
    %v2560 = vpack.c.b16 %v1888, %v1872
    %v2561 = vpack.c.b16 %v1905, %v1889
    %v2562 = vpack.c.b16 %v1906, %v1890
    %v2563 = vpack.c.b16 %v1907, %v1891
    %v2564 = vpack.c.b16 %v1908, %v1892
    %v2565 = vpack.c.b16 %v1909, %v1893
    %v2566 = vpack.c.b16 %v1910, %v1894
    %v2567 = vpack.c.b16 %v1911, %v1895
    %v2568 = vpack.c.b16 %v1912, %v1896
    %v2569 = vpack.c.b16 %v1913, %v1897
    %v2570 = vpack.c.b16 %v1914, %v1898
    %v2571 = vpack.c.b16 %v1915, %v1899
    %v2572 = vpack.c.b16 %v1916, %v1900
    %v2573 = vpack.c.b16 %v1917, %v1901
    %v2574 = vpack.c.b16 %v1918, %v1902
    %v2575 = vpack.c.b16 %v1919, %v1903
    %v2576 = vpack.c.b16 %v1920, %v1904
    %v2577 = vpack.c.b16 %v1937, %v1921
    %v2578 = vpack.c.b16 %v1938, %v1922
    %v2579 = vpack.c.b16 %v1939, %v1923
    %v2580 = vpack.c.b16 %v1940, %v1924
    %v2581 = vpack.c.b16 %v1941, %v1925
    %v2582 = vpack.c.b16 %v1942, %v1926
    %v2583 = vpack.c.b16 %v1943, %v1927
    %v2584 = vpack.c.b16 %v1944, %v1928
    %v2585 = vpack.c.b16 %v1945, %v1929
    %v2586 = vpack.c.b16 %v1946, %v1930
    %v2587 = vpack.c.b16 %v1947, %v1931
    %v2588 = vpack.c.b16 %v1948, %v1932
    %v2589 = vpack.c.b16 %v1949, %v1933
    %v2590 = vpack.c.b16 %v1950, %v1934
    %v2591 = vpack.c.b16 %v1951, %v1935
    %v2592 = vpack.c.b16 %v1952, %v1936
    %v2593 = vpack.c.b16 %v1969, %v1953
    %v2594 = vpack.c.b16 %v1970, %v1954
    %v2595 = vpack.c.b16 %v1971, %v1955
    %v2596 = vpack.c.b16 %v1972, %v1956
    %v2597 = vpack.c.b16 %v1973, %v1957
    %v2598 = vpack.c.b16 %v1974, %v1958
    %v2599 = vpack.c.b16 %v1975, %v1959
    %v2600 = vpack.c.b16 %v1976, %v1960
    %v2601 = vpack.c.b16 %v1977, %v1961
    %v2602 = vpack.c.b16 %v1978, %v1962
    %v2603 = vpack.c.b16 %v1979, %v1963
    %v2604 = vpack.c.b16 %v1980, %v1964
    %v2605 = vpack.c.b16 %v1981, %v1965
    %v2606 = vpack.c.b16 %v1982, %v1966
    %v2607 = vpack.c.b16 %v1983, %v1967
    %v2608 = vpack.c.b16 %v1984, %v1968
    %v2609 = vpack.c.b16 %v2001, %v1985
    %v2610 = vpack.c.b16 %v2002, %v1986
    %v2611 = vpack.c.b16 %v2003, %v1987
    %v2612 = vpack.c.b16 %v2004, %v1988
    %v2613 = vpack.c.b16 %v2005, %v1989
    %v2614 = vpack.c.b16 %v2006, %v1990
    %v2615 = vpack.c.b16 %v2007, %v1991
    %v2616 = vpack.c.b16 %v2008, %v1992
    %v2617 = vpack.c.b16 %v2009, %v1993
    %v2618 = vpack.c.b16 %v2010, %v1994
    %v2619 = vpack.c.b16 %v2011, %v1995
    %v2620 = vpack.c.b16 %v2012, %v1996
    %v2621 = vpack.c.b16 %v2013, %v1997
    %v2622 = vpack.c.b16 %v2014, %v1998
    %v2623 = vpack.c.b16 %v2015, %v1999
    %v2624 = vpack.c.b16 %v2016, %v2000
    %v2625 = vpack.c.b16 %v2033, %v2017
    %v2626 = vpack.c.b16 %v2034, %v2018
    %v2627 = vpack.c.b16 %v2035, %v2019
    %v2628 = vpack.c.b16 %v2036, %v2020
    %v2629 = vpack.c.b16 %v2037, %v2021
    %v2630 = vpack.c.b16 %v2038, %v2022
    %v2631 = vpack.c.b16 %v2039, %v2023
    %v2632 = vpack.c.b16 %v2040, %v2024
    %v2633 = vpack.c.b16 %v2041, %v2025
    %v2634 = vpack.c.b16 %v2042, %v2026
    %v2635 = vpack.c.b16 %v2043, %v2027
    %v2636 = vpack.c.b16 %v2044, %v2028
    %v2637 = vpack.c.b16 %v2045, %v2029
    %v2638 = vpack.c.b16 %v2046, %v2030
    %v2639 = vpack.c.b16 %v2047, %v2031
    %v2640 = vpack.c.b16 %v2048, %v2032
    %v2641 = vpack.c.b16 %v2065, %v2049
    %v2642 = vpack.c.b16 %v2066, %v2050
    %v2643 = vpack.c.b16 %v2067, %v2051
    %v2644 = vpack.c.b16 %v2068, %v2052
    %v2645 = vpack.c.b16 %v2069, %v2053
    %v2646 = vpack.c.b16 %v2070, %v2054
    %v2647 = vpack.c.b16 %v2071, %v2055
    %v2648 = vpack.c.b16 %v2072, %v2056
    %v2649 = vpack.c.b16 %v2073, %v2057
    %v2650 = vpack.c.b16 %v2074, %v2058
    %v2651 = vpack.c.b16 %v2075, %v2059
    %v2652 = vpack.c.b16 %v2076, %v2060
    %v2653 = vpack.c.b16 %v2077, %v2061
    %v2654 = vpack.c.b16 %v2078, %v2062
    %v2655 = vpack.c.b16 %v2079, %v2063
    %v2656 = vpack.c.b16 %v2080, %v2064
    %v2657 = vpack.c.b16 %v2097, %v2081
    %v2658 = vpack.c.b16 %v2098, %v2082
    %v2659 = vpack.c.b16 %v2099, %v2083
    %v2660 = vpack.c.b16 %v2100, %v2084
    %v2661 = vpack.c.b16 %v2101, %v2085
    %v2662 = vpack.c.b16 %v2102, %v2086
    %v2663 = vpack.c.b16 %v2103, %v2087
    %v2664 = vpack.c.b16 %v2104, %v2088
    %v2665 = vpack.c.b16 %v2105, %v2089
    %v2666 = vpack.c.b16 %v2106, %v2090
    %v2667 = vpack.c.b16 %v2107, %v2091
    %v2668 = vpack.c.b16 %v2108, %v2092
    %v2669 = vpack.c.b16 %v2109, %v2093
    %v2670 = vpack.c.b16 %v2110, %v2094
    %v2671 = vpack.c.b16 %v2111, %v2095
    %v2672 = vpack.c.b16 %v2112, %v2096
    %v2673 = vpack.c.b16 %v2129, %v2113
    %v2674 = vpack.c.b16 %v2130, %v2114
    %v2675 = vpack.c.b16 %v2131, %v2115
    %v2676 = vpack.c.b16 %v2132, %v2116
    %v2677 = vpack.c.b16 %v2133, %v2117
    %v2678 = vpack.c.b16 %v2134, %v2118
    %v2679 = vpack.c.b16 %v2135, %v2119
    %v2680 = vpack.c.b16 %v2136, %v2120
    %v2681 = vpack.c.b16 %v2137, %v2121
    %v2682 = vpack.c.b16 %v2138, %v2122
    %v2683 = vpack.c.b16 %v2139, %v2123
    %v2684 = vpack.c.b16 %v2140, %v2124
    %v2685 = vpack.c.b16 %v2141, %v2125
    %v2686 = vpack.c.b16 %v2142, %v2126
    %v2687 = vpack.c.b16 %v2143, %v2127
    %v2688 = vpack.c.b16 %v2144, %v2128
    %v2689 = vpack.c.b16 %v2161, %v2145
    %v2690 = vpack.c.b16 %v2162, %v2146
    %v2691 = vpack.c.b16 %v2163, %v2147
    %v2692 = vpack.c.b16 %v2164, %v2148
    %v2693 = vpack.c.b16 %v2165, %v2149
    %v2694 = vpack.c.b16 %v2166, %v2150
    %v2695 = vpack.c.b16 %v2167, %v2151
    %v2696 = vpack.c.b16 %v2168, %v2152
    %v2697 = vpack.c.b16 %v2169, %v2153
    %v2698 = vpack.c.b16 %v2170, %v2154
    %v2699 = vpack.c.b16 %v2171, %v2155
    %v2700 = vpack.c.b16 %v2172, %v2156
    %v2701 = vpack.c.b16 %v2173, %v2157
    %v2702 = vpack.c.b16 %v2174, %v2158
    %v2703 = vpack.c.b16 %v2175, %v2159
    %v2704 = vpack.c.b16 %v2176, %v2160
    %v2705 = vpack.c.b16 %v2193, %v2177
    %v2706 = vpack.c.b16 %v2194, %v2178
    %v2707 = vpack.c.b16 %v2195, %v2179
    %v2708 = vpack.c.b16 %v2196, %v2180
    %v2709 = vpack.c.b16 %v2197, %v2181
    %v2710 = vpack.c.b16 %v2198, %v2182
    %v2711 = vpack.c.b16 %v2199, %v2183
    %v2712 = vpack.c.b16 %v2200, %v2184
    %v2713 = vpack.c.b16 %v2201, %v2185
    %v2714 = vpack.c.b16 %v2202, %v2186
    %v2715 = vpack.c.b16 %v2203, %v2187
    %v2716 = vpack.c.b16 %v2204, %v2188
    %v2717 = vpack.c.b16 %v2205, %v2189
    %v2718 = vpack.c.b16 %v2206, %v2190
    %v2719 = vpack.c.b16 %v2207, %v2191
    %v2720 = vpack.c.b16 %v2208, %v2192
    %3233 = vmatprep.subr.bf16.mxu0 %v2210
    %3234 = vmatpush1.bf16.msra.mxu0 %v2209
    %3235 = vmatprep.subr.bf16.mxu0 %v2226
    %3236 = vmatpush1.bf16.msra.mxu0 %v2225
    %3237 = vmatprep.subr.bf16.mxu0 %v2242
    %3238 = vmatpush1.bf16.msra.mxu0 %v2241
    %3239 = vmatprep.subr.bf16.mxu0 %v2258
    %3240 = vmatpush1.bf16.msra.mxu0 %v2257
    %3241 = vmatprep.subr.bf16.mxu0 %v2274
    %3242 = vmatpush1.bf16.msra.mxu0 %v2273
    %3243 = vmatprep.subr.bf16.mxu0 %v2290
    %3244 = vmatpush1.bf16.msra.mxu0 %v2289
    %3245 = vmatprep.subr.bf16.mxu0 %v2306
    %3246 = vmatpush1.bf16.msra.mxu0 %v2305
    %3247 = vmatprep.subr.bf16.mxu0 %v2322
    %3248 = vmatpush1.bf16.msra.mxu0 %v2321
    %3249 = vmatprep.subr.bf16.mxu0 %v2338
    %3250 = vmatpush1.bf16.msra.mxu0 %v2337
    %3251 = vmatprep.subr.bf16.mxu0 %v2354
    %3252 = vmatpush1.bf16.msra.mxu0 %v2353
    %3253 = vmatprep.subr.bf16.mxu0 %v2370
    %3254 = vmatpush1.bf16.msra.mxu0 %v2369
    %3255 = vmatprep.subr.bf16.mxu0 %v2386
    %3256 = vmatpush1.bf16.msra.mxu0 %v2385
    %3257 = vmatprep.subr.bf16.mxu0 %v2402
    %3258 = vmatpush1.bf16.msra.mxu0 %v2401
    %3259 = vmatprep.subr.bf16.mxu0 %v2418
    %3260 = vmatpush1.bf16.msra.mxu0 %v2417
    %3261 = vmatprep.subr.bf16.mxu0 %v2434
    %3262 = vmatpush1.bf16.msra.mxu0 %v2433
    %3263 = vmatprep.subr.bf16.mxu0 %v2450
    %3264 = vmatpush1.bf16.msra.mxu0 %v2449
    %3265 = vmatprep.mubr.bf16.mxu0 %v70
    %3266 = vmatmul.mubr.bf16.gmra.mrb[0].mxu0 %v69
    %v3267 = vpop.f32.mrb[0].mxu0
    %v3268 = vadd.f32 %v596, %v3267
    %v3269 = vpop.f32.mrb[0].mxu0
    %v3270 = vadd.f32 %v600, %v3269
    %v3271 = vpop.f32.mrb[0].mxu0
    %v3272 = vadd.f32 %v596, %v3271
    %v3273 = vpop.f32.mrb[0].mxu0
    %v3274 = vadd.f32 %v600, %v3273
    %3275 = vmatprep.mubr.bf16.mxu0 %v74
    %3276 = vmatmul.mubr.bf16.gmra.mrb[0].mxu0 %v73
    %v3277 = vpop.f32.mrb[0].mxu0
    %v3278 = vadd.f32 %v596, %v3277
    %v3279 = vpop.f32.mrb[0].mxu0
    %v3280 = vadd.f32 %v600, %v3279
    %v3281 = vpop.f32.mrb[0].mxu0
    %v3282 = vadd.f32 %v596, %v3281
    %v3283 = vpop.f32.mrb[0].mxu0
    %v3284 = vadd.f32 %v600, %v3283
    %3285 = vdwg.mxu0
    %3286 = vmatprep.subr.bf16.mxu0 %v2466
    %3287 = vmatpush1.bf16.msra.mxu0 %v2465
    %3288 = vmatprep.subr.bf16.mxu0 %v2482
    %3289 = vmatpush1.bf16.msra.mxu0 %v2481
    %3290 = vmatprep.subr.bf16.mxu0 %v2498
    %3291 = vmatpush1.bf16.msra.mxu0 %v2497
    %3292 = vmatprep.subr.bf16.mxu0 %v2514
    %3293 = vmatpush1.bf16.msra.mxu0 %v2513
    %3294 = vmatprep.subr.bf16.mxu0 %v2530
    %3295 = vmatpush1.bf16.msra.mxu0 %v2529
    %3296 = vmatprep.subr.bf16.mxu0 %v2546
    %3297 = vmatpush1.bf16.msra.mxu0 %v2545
    %3298 = vmatprep.subr.bf16.mxu0 %v2562
    %3299 = vmatpush1.bf16.msra.mxu0 %v2561
    %3300 = vmatprep.subr.bf16.mxu0 %v2578
    %3301 = vmatpush1.bf16.msra.mxu0 %v2577
    %3302 = vmatprep.subr.bf16.mxu0 %v2594
    %3303 = vmatpush1.bf16.msra.mxu0 %v2593
    %3304 = vmatprep.subr.bf16.mxu0 %v2610
    %3305 = vmatpush1.bf16.msra.mxu0 %v2609
    %3306 = vmatprep.subr.bf16.mxu0 %v2626
    %3307 = vmatpush1.bf16.msra.mxu0 %v2625
    %3308 = vmatprep.subr.bf16.mxu0 %v2642
    %3309 = vmatpush1.bf16.msra.mxu0 %v2641
    %3310 = vmatprep.subr.bf16.mxu0 %v2658
    %3311 = vmatpush1.bf16.msra.mxu0 %v2657
    %3312 = vmatprep.subr.bf16.mxu0 %v2674
    %3313 = vmatpush1.bf16.msra.mxu0 %v2673
    %3314 = vmatprep.subr.bf16.mxu0 %v2690
    %3315 = vmatpush1.bf16.msra.mxu0 %v2689
    %3316 = vmatprep.subr.bf16.mxu0 %v2706
    %3317 = vmatpush1.bf16.msra.mxu0 %v2705
    %3318 = vmatprep.mubr.bf16.mxu0 %v72
    %3319 = vmatmul.mubr.bf16.gmra.mrb[0].mxu0 %v71
    %v3320 = vpop.f32.mrb[0].mxu0
    %v3321 = vadd.f32 %v3268, %v3320
    %v3322 = vpop.f32.mrb[0].mxu0
    %v3323 = vadd.f32 %v3270, %v3322
    %v3324 = vpop.f32.mrb[0].mxu0
    %v3325 = vadd.f32 %v3272, %v3324
    %v3326 = vpop.f32.mrb[0].mxu0
    %v3327 = vadd.f32 %v3274, %v3326
    %3328 = vmatprep.mubr.bf16.mxu0 %v76
    %3329 = vmatmul.mubr.bf16.gmra.mrb[0].mxu0 %v75
    %v3330 = vpop.f32.mrb[0].mxu0
    %v3331 = vadd.f32 %v3278, %v3330
    %v3332 = vpop.f32.mrb[0].mxu0
    %v3333 = vadd.f32 %v3280, %v3332
    %v3334 = vpop.f32.mrb[0].mxu0
    %v3335 = vadd.f32 %v3282, %v3334
    %v3336 = vpop.f32.mrb[0].mxu0
    %v3337 = vadd.f32 %v3284, %v3336
    %3338 = vdwg.mxu0
    %3339 = vmatprep.subr.bf16.mxu0 %v2212
    %3340 = vmatpush1.bf16.msra.mxu0 %v2211
    %3341 = vmatprep.subr.bf16.mxu0 %v2228
    %3342 = vmatpush1.bf16.msra.mxu0 %v2227
    %3343 = vmatprep.subr.bf16.mxu0 %v2244
    %3344 = vmatpush1.bf16.msra.mxu0 %v2243
    %3345 = vmatprep.subr.bf16.mxu0 %v2260
    %3346 = vmatpush1.bf16.msra.mxu0 %v2259
    %3347 = vmatprep.subr.bf16.mxu0 %v2276
    %3348 = vmatpush1.bf16.msra.mxu0 %v2275
    %3349 = vmatprep.subr.bf16.mxu0 %v2292
    %3350 = vmatpush1.bf16.msra.mxu0 %v2291
    %3351 = vmatprep.subr.bf16.mxu0 %v2308
    %3352 = vmatpush1.bf16.msra.mxu0 %v2307
    %3353 = vmatprep.subr.bf16.mxu0 %v2324
    %3354 = vmatpush1.bf16.msra.mxu0 %v2323
    %3355 = vmatprep.subr.bf16.mxu0 %v2340
    %3356 = vmatpush1.bf16.msra.mxu0 %v2339
    %3357 = vmatprep.subr.bf16.mxu0 %v2356
    %3358 = vmatpush1.bf16.msra.mxu0 %v2355
    %3359 = vmatprep.subr.bf16.mxu0 %v2372
    %3360 = vmatpush1.bf16.msra.mxu0 %v2371
    %3361 = vmatprep.subr.bf16.mxu0 %v2388
    %3362 = vmatpush1.bf16.msra.mxu0 %v2387
    %3363 = vmatprep.subr.bf16.mxu0 %v2404
    %3364 = vmatpush1.bf16.msra.mxu0 %v2403
    %3365 = vmatprep.subr.bf16.mxu0 %v2420
    %3366 = vmatpush1.bf16.msra.mxu0 %v2419
    %3367 = vmatprep.subr.bf16.mxu0 %v2436
    %3368 = vmatpush1.bf16.msra.mxu0 %v2435
    %3369 = vmatprep.subr.bf16.mxu0 %v2452
    %3370 = vmatpush1.bf16.msra.mxu0 %v2451
    %3371 = vmatprep.mubr.bf16.mxu0 %v70
    %3372 = vmatmul.mubr.bf16.gmra.mrb[0].mxu0 %v69
    %v3373 = vpop.f32.mrb[0].mxu0
    %v3374 = vadd.f32 %v604, %v3373
    %v3375 = vpop.f32.mrb[0].mxu0
    %v3376 = vadd.f32 %v608, %v3375
    %v3377 = vpop.f32.mrb[0].mxu0
    %v3378 = vadd.f32 %v604, %v3377
    %v3379 = vpop.f32.mrb[0].mxu0
    %v3380 = vadd.f32 %v608, %v3379
    %3381 = vmatprep.mubr.bf16.mxu0 %v74
    %3382 = vmatmul.mubr.bf16.gmra.mrb[0].mxu0 %v73
    %v3383 = vpop.f32.mrb[0].mxu0
    %v3384 = vadd.f32 %v604, %v3383
    %v3385 = vpop.f32.mrb[0].mxu0
    %v3386 = vadd.f32 %v608, %v3385
    %v3387 = vpop.f32.mrb[0].mxu0
    %v3388 = vadd.f32 %v604, %v3387
    %v3389 = vpop.f32.mrb[0].mxu0
    %v3390 = vadd.f32 %v608, %v3389
    %3391 = vdwg.mxu0
    %3392 = vmatprep.subr.bf16.mxu0 %v2468
    %3393 = vmatpush1.bf16.msra.mxu0 %v2467
    %3394 = vmatprep.subr.bf16.mxu0 %v2484
    %3395 = vmatpush1.bf16.msra.mxu0 %v2483
    %3396 = vmatprep.subr.bf16.mxu0 %v2500
    %3397 = vmatpush1.bf16.msra.mxu0 %v2499
    %3398 = vmatprep.subr.bf16.mxu0 %v2516
    %3399 = vmatpush1.bf16.msra.mxu0 %v2515
    %3400 = vmatprep.subr.bf16.mxu0 %v2532
    %3401 = vmatpush1.bf16.msra.mxu0 %v2531
    %3402 = vmatprep.subr.bf16.mxu0 %v2548
    %3403 = vmatpush1.bf16.msra.mxu0 %v2547
    %3404 = vmatprep.subr.bf16.mxu0 %v2564
    %3405 = vmatpush1.bf16.msra.mxu0 %v2563
    %3406 = vmatprep.subr.bf16.mxu0 %v2580
    %3407 = vmatpush1.bf16.msra.mxu0 %v2579
    %3408 = vmatprep.subr.bf16.mxu0 %v2596
    %3409 = vmatpush1.bf16.msra.mxu0 %v2595
    %3410 = vmatprep.subr.bf16.mxu0 %v2612
    %3411 = vmatpush1.bf16.msra.mxu0 %v2611
    %3412 = vmatprep.subr.bf16.mxu0 %v2628
    %3413 = vmatpush1.bf16.msra.mxu0 %v2627
    %3414 = vmatprep.subr.bf16.mxu0 %v2644
    %3415 = vmatpush1.bf16.msra.mxu0 %v2643
    %3416 = vmatprep.subr.bf16.mxu0 %v2660
    %3417 = vmatpush1.bf16.msra.mxu0 %v2659
    %3418 = vmatprep.subr.bf16.mxu0 %v2676
    %3419 = vmatpush1.bf16.msra.mxu0 %v2675
    %3420 = vmatprep.subr.bf16.mxu0 %v2692
    %3421 = vmatpush1.bf16.msra.mxu0 %v2691
    %3422 = vmatprep.subr.bf16.mxu0 %v2708
    %3423 = vmatpush1.bf16.msra.mxu0 %v2707
    %3424 = vmatprep.mubr.bf16.mxu0 %v72
    %3425 = vmatmul.mubr.bf16.gmra.mrb[0].mxu0 %v71
    %v3426 = vpop.f32.mrb[0].mxu0
    %v3427 = vadd.f32 %v3374, %v3426
    %v3428 = vpop.f32.mrb[0].mxu0
    %v3429 = vadd.f32 %v3376, %v3428
    %v3430 = vpop.f32.mrb[0].mxu0
    %v3431 = vadd.f32 %v3378, %v3430
    %v3432 = vpop.f32.mrb[0].mxu0
    %v3433 = vadd.f32 %v3380, %v3432
    %3434 = vmatprep.mubr.bf16.mxu0 %v76
    %3435 = vmatmul.mubr.bf16.gmra.mrb[0].mxu0 %v75
    %v3436 = vpop.f32.mrb[0].mxu0
    %v3437 = vadd.f32 %v3384, %v3436
    %v3438 = vpop.f32.mrb[0].mxu0
    %v3439 = vadd.f32 %v3386, %v3438
    %v3440 = vpop.f32.mrb[0].mxu0
    %v3441 = vadd.f32 %v3388, %v3440
    %v3442 = vpop.f32.mrb[0].mxu0
    %v3443 = vadd.f32 %v3390, %v3442
    %3444 = vdwg.mxu0
    %3445 = vmatprep.subr.bf16.mxu0 %v2214
    %3446 = vmatpush1.bf16.msra.mxu0 %v2213
    %3447 = vmatprep.subr.bf16.mxu0 %v2230
    %3448 = vmatpush1.bf16.msra.mxu0 %v2229
    %3449 = vmatprep.subr.bf16.mxu0 %v2246
    %3450 = vmatpush1.bf16.msra.mxu0 %v2245
    %3451 = vmatprep.subr.bf16.mxu0 %v2262
    %3452 = vmatpush1.bf16.msra.mxu0 %v2261
    %3453 = vmatprep.subr.bf16.mxu0 %v2278
    %3454 = vmatpush1.bf16.msra.mxu0 %v2277
    %3455 = vmatprep.subr.bf16.mxu0 %v2294
    %3456 = vmatpush1.bf16.msra.mxu0 %v2293
    %3457 = vmatprep.subr.bf16.mxu0 %v2310
    %3458 = vmatpush1.bf16.msra.mxu0 %v2309
    %3459 = vmatprep.subr.bf16.mxu0 %v2326
    %3460 = vmatpush1.bf16.msra.mxu0 %v2325
    %3461 = vmatprep.subr.bf16.mxu0 %v2342
    %3462 = vmatpush1.bf16.msra.mxu0 %v2341
    %3463 = vmatprep.subr.bf16.mxu0 %v2358
    %3464 = vmatpush1.bf16.msra.mxu0 %v2357
    %3465 = vmatprep.subr.bf16.mxu0 %v2374
    %3466 = vmatpush1.bf16.msra.mxu0 %v2373
    %3467 = vmatprep.subr.bf16.mxu0 %v2390
    %3468 = vmatpush1.bf16.msra.mxu0 %v2389
    %3469 = vmatprep.subr.bf16.mxu0 %v2406
    %3470 = vmatpush1.bf16.msra.mxu0 %v2405
    %3471 = vmatprep.subr.bf16.mxu0 %v2422
    %3472 = vmatpush1.bf16.msra.mxu0 %v2421
    %3473 = vmatprep.subr.bf16.mxu0 %v2438
    %3474 = vmatpush1.bf16.msra.mxu0 %v2437
    %3475 = vmatprep.subr.bf16.mxu0 %v2454
    %3476 = vmatpush1.bf16.msra.mxu0 %v2453
    %3477 = vmatprep.mubr.bf16.mxu0 %v70
    %3478 = vmatmul.mubr.bf16.gmra.mrb[0].mxu0 %v69
    %v3479 = vpop.f32.mrb[0].mxu0
    %v3480 = vadd.f32 %v612, %v3479
    %v3481 = vpop.f32.mrb[0].mxu0
    %v3482 = vadd.f32 %v616, %v3481
    %v3483 = vpop.f32.mrb[0].mxu0
    %v3484 = vadd.f32 %v612, %v3483
    %v3485 = vpop.f32.mrb[0].mxu0
    %v3486 = vadd.f32 %v616, %v3485
    %3487 = vmatprep.mubr.bf16.mxu0 %v74
    %3488 = vmatmul.mubr.bf16.gmra.mrb[0].mxu0 %v73
    %v3489 = vpop.f32.mrb[0].mxu0
    %v3490 = vadd.f32 %v612, %v3489
    %v3491 = vpop.f32.mrb[0].mxu0
    %v3492 = vadd.f32 %v616, %v3491
    %v3493 = vpop.f32.mrb[0].mxu0
    %v3494 = vadd.f32 %v612, %v3493
    %v3495 = vpop.f32.mrb[0].mxu0
    %v3496 = vadd.f32 %v616, %v3495
    %3497 = vdwg.mxu0
    %3498 = vmatprep.subr.bf16.mxu0 %v2470
    %3499 = vmatpush1.bf16.msra.mxu0 %v2469
    %3500 = vmatprep.subr.bf16.mxu0 %v2486
    %3501 = vmatpush1.bf16.msra.mxu0 %v2485
    %3502 = vmatprep.subr.bf16.mxu0 %v2502
    %3503 = vmatpush1.bf16.msra.mxu0 %v2501
    %3504 = vmatprep.subr.bf16.mxu0 %v2518
    %3505 = vmatpush1.bf16.msra.mxu0 %v2517
    %3506 = vmatprep.subr.bf16.mxu0 %v2534
    %3507 = vmatpush1.bf16.msra.mxu0 %v2533
    %3508 = vmatprep.subr.bf16.mxu0 %v2550
    %3509 = vmatpush1.bf16.msra.mxu0 %v2549
    %3510 = vmatprep.subr.bf16.mxu0 %v2566
    %3511 = vmatpush1.bf16.msra.mxu0 %v2565
    %3512 = vmatprep.subr.bf16.mxu0 %v2582
    %3513 = vmatpush1.bf16.msra.mxu0 %v2581
    %3514 = vmatprep.subr.bf16.mxu0 %v2598
    %3515 = vmatpush1.bf16.msra.mxu0 %v2597
    %3516 = vmatprep.subr.bf16.mxu0 %v2614
    %3517 = vmatpush1.bf16.msra.mxu0 %v2613
    %3518 = vmatprep.subr.bf16.mxu0 %v2630
    %3519 = vmatpush1.bf16.msra.mxu0 %v2629
    %3520 = vmatprep.subr.bf16.mxu0 %v2646
    %3521 = vmatpush1.bf16.msra.mxu0 %v2645
    %3522 = vmatprep.subr.bf16.mxu0 %v2662
    %3523 = vmatpush1.bf16.msra.mxu0 %v2661
    %3524 = vmatprep.subr.bf16.mxu0 %v2678
    %3525 = vmatpush1.bf16.msra.mxu0 %v2677
    %3526 = vmatprep.subr.bf16.mxu0 %v2694
    %3527 = vmatpush1.bf16.msra.mxu0 %v2693
    %3528 = vmatprep.subr.bf16.mxu0 %v2710
    %3529 = vmatpush1.bf16.msra.mxu0 %v2709
    %3530 = vmatprep.mubr.bf16.mxu0 %v72
    %3531 = vmatmul.mubr.bf16.gmra.mrb[0].mxu0 %v71
    %v3532 = vpop.f32.mrb[0].mxu0
    %v3533 = vadd.f32 %v3480, %v3532
    %v3534 = vpop.f32.mrb[0].mxu0
    %v3535 = vadd.f32 %v3482, %v3534
    %v3536 = vpop.f32.mrb[0].mxu0
    %v3537 = vadd.f32 %v3484, %v3536
    %v3538 = vpop.f32.mrb[0].mxu0
    %v3539 = vadd.f32 %v3486, %v3538
    %3540 = vmatprep.mubr.bf16.mxu0 %v76
    %3541 = vmatmul.mubr.bf16.gmra.mrb[0].mxu0 %v75
    %v3542 = vpop.f32.mrb[0].mxu0
    %v3543 = vadd.f32 %v3490, %v3542
    %v3544 = vpop.f32.mrb[0].mxu0
    %v3545 = vadd.f32 %v3492, %v3544
    %v3546 = vpop.f32.mrb[0].mxu0
    %v3547 = vadd.f32 %v3494, %v3546
    %v3548 = vpop.f32.mrb[0].mxu0
    %v3549 = vadd.f32 %v3496, %v3548
    %3550 = vdwg.mxu0
    %3551 = vmatprep.subr.bf16.mxu0 %v2216
    %3552 = vmatpush1.bf16.msra.mxu0 %v2215
    %3553 = vmatprep.subr.bf16.mxu0 %v2232
    %3554 = vmatpush1.bf16.msra.mxu0 %v2231
    %3555 = vmatprep.subr.bf16.mxu0 %v2248
    %3556 = vmatpush1.bf16.msra.mxu0 %v2247
    %3557 = vmatprep.subr.bf16.mxu0 %v2264
    %3558 = vmatpush1.bf16.msra.mxu0 %v2263
    %3559 = vmatprep.subr.bf16.mxu0 %v2280
    %3560 = vmatpush1.bf16.msra.mxu0 %v2279
    %3561 = vmatprep.subr.bf16.mxu0 %v2296
    %3562 = vmatpush1.bf16.msra.mxu0 %v2295
    %3563 = vmatprep.subr.bf16.mxu0 %v2312
    %3564 = vmatpush1.bf16.msra.mxu0 %v2311
    %3565 = vmatprep.subr.bf16.mxu0 %v2328
    %3566 = vmatpush1.bf16.msra.mxu0 %v2327
    %3567 = vmatprep.subr.bf16.mxu0 %v2344
    %3568 = vmatpush1.bf16.msra.mxu0 %v2343
    %3569 = vmatprep.subr.bf16.mxu0 %v2360
    %3570 = vmatpush1.bf16.msra.mxu0 %v2359
    %3571 = vmatprep.subr.bf16.mxu0 %v2376
    %3572 = vmatpush1.bf16.msra.mxu0 %v2375
    %3573 = vmatprep.subr.bf16.mxu0 %v2392
    %3574 = vmatpush1.bf16.msra.mxu0 %v2391
    %3575 = vmatprep.subr.bf16.mxu0 %v2408
    %3576 = vmatpush1.bf16.msra.mxu0 %v2407
    %3577 = vmatprep.subr.bf16.mxu0 %v2424
    %3578 = vmatpush1.bf16.msra.mxu0 %v2423
    %3579 = vmatprep.subr.bf16.mxu0 %v2440
    %3580 = vmatpush1.bf16.msra.mxu0 %v2439
    %3581 = vmatprep.subr.bf16.mxu0 %v2456
    %3582 = vmatpush1.bf16.msra.mxu0 %v2455
    %3583 = vmatprep.mubr.bf16.mxu0 %v70
    %3584 = vmatmul.mubr.bf16.gmra.mrb[0].mxu0 %v69
    %v3585 = vpop.f32.mrb[0].mxu0
    %v3586 = vadd.f32 %v620, %v3585
    %v3587 = vpop.f32.mrb[0].mxu0
    %v3588 = vadd.f32 %v624, %v3587
    %v3589 = vpop.f32.mrb[0].mxu0
    %v3590 = vadd.f32 %v620, %v3589
    %v3591 = vpop.f32.mrb[0].mxu0
    %v3592 = vadd.f32 %v624, %v3591
    %3593 = vmatprep.mubr.bf16.mxu0 %v74
    %3594 = vmatmul.mubr.bf16.gmra.mrb[0].mxu0 %v73
    %v3595 = vpop.f32.mrb[0].mxu0
    %v3596 = vadd.f32 %v620, %v3595
    %v3597 = vpop.f32.mrb[0].mxu0
    %v3598 = vadd.f32 %v624, %v3597
    %v3599 = vpop.f32.mrb[0].mxu0
    %v3600 = vadd.f32 %v620, %v3599
    %v3601 = vpop.f32.mrb[0].mxu0
    %v3602 = vadd.f32 %v624, %v3601
    %3603 = vdwg.mxu0
    %3604 = vmatprep.subr.bf16.mxu0 %v2472
    %3605 = vmatpush1.bf16.msra.mxu0 %v2471
    %3606 = vmatprep.subr.bf16.mxu0 %v2488
    %3607 = vmatpush1.bf16.msra.mxu0 %v2487
    %3608 = vmatprep.subr.bf16.mxu0 %v2504
    %3609 = vmatpush1.bf16.msra.mxu0 %v2503
    %3610 = vmatprep.subr.bf16.mxu0 %v2520
    %3611 = vmatpush1.bf16.msra.mxu0 %v2519
    %3612 = vmatprep.subr.bf16.mxu0 %v2536
    %3613 = vmatpush1.bf16.msra.mxu0 %v2535
    %3614 = vmatprep.subr.bf16.mxu0 %v2552
    %3615 = vmatpush1.bf16.msra.mxu0 %v2551
    %3616 = vmatprep.subr.bf16.mxu0 %v2568
    %3617 = vmatpush1.bf16.msra.mxu0 %v2567
    %3618 = vmatprep.subr.bf16.mxu0 %v2584
    %3619 = vmatpush1.bf16.msra.mxu0 %v2583
    %3620 = vmatprep.subr.bf16.mxu0 %v2600
    %3621 = vmatpush1.bf16.msra.mxu0 %v2599
    %3622 = vmatprep.subr.bf16.mxu0 %v2616
    %3623 = vmatpush1.bf16.msra.mxu0 %v2615
    %3624 = vmatprep.subr.bf16.mxu0 %v2632
    %3625 = vmatpush1.bf16.msra.mxu0 %v2631
    %3626 = vmatprep.subr.bf16.mxu0 %v2648
    %3627 = vmatpush1.bf16.msra.mxu0 %v2647
    %3628 = vmatprep.subr.bf16.mxu0 %v2664
    %3629 = vmatpush1.bf16.msra.mxu0 %v2663
    %3630 = vmatprep.subr.bf16.mxu0 %v2680
    %3631 = vmatpush1.bf16.msra.mxu0 %v2679
    %3632 = vmatprep.subr.bf16.mxu0 %v2696
    %3633 = vmatpush1.bf16.msra.mxu0 %v2695
    %3634 = vmatprep.subr.bf16.mxu0 %v2712
    %3635 = vmatpush1.bf16.msra.mxu0 %v2711
    %3636 = vmatprep.mubr.bf16.mxu0 %v72
    %3637 = vmatmul.mubr.bf16.gmra.mrb[0].mxu0 %v71
    %v3638 = vpop.f32.mrb[0].mxu0
    %v3639 = vadd.f32 %v3586, %v3638
    %v3640 = vpop.f32.mrb[0].mxu0
    %v3641 = vadd.f32 %v3588, %v3640
    %v3642 = vpop.f32.mrb[0].mxu0
    %v3643 = vadd.f32 %v3590, %v3642
    %v3644 = vpop.f32.mrb[0].mxu0
    %v3645 = vadd.f32 %v3592, %v3644
    %3646 = vmatprep.mubr.bf16.mxu0 %v76
    %3647 = vmatmul.mubr.bf16.gmra.mrb[0].mxu0 %v75
    %v3648 = vpop.f32.mrb[0].mxu0
    %v3649 = vadd.f32 %v3596, %v3648
    %v3650 = vpop.f32.mrb[0].mxu0
    %v3651 = vadd.f32 %v3598, %v3650
    %v3652 = vpop.f32.mrb[0].mxu0
    %v3653 = vadd.f32 %v3600, %v3652
    %v3654 = vpop.f32.mrb[0].mxu0
    %v3655 = vadd.f32 %v3602, %v3654
    %3656 = vdwg.mxu0
    %3657 = vmatprep.subr.bf16.mxu0 %v2218
    %3658 = vmatpush1.bf16.msra.mxu0 %v2217
    %3659 = vmatprep.subr.bf16.mxu0 %v2234
    %3660 = vmatpush1.bf16.msra.mxu0 %v2233
    %3661 = vmatprep.subr.bf16.mxu0 %v2250
    %3662 = vmatpush1.bf16.msra.mxu0 %v2249
    %3663 = vmatprep.subr.bf16.mxu0 %v2266
    %3664 = vmatpush1.bf16.msra.mxu0 %v2265
    %3665 = vmatprep.subr.bf16.mxu0 %v2282
    %3666 = vmatpush1.bf16.msra.mxu0 %v2281
    %3667 = vmatprep.subr.bf16.mxu0 %v2298
    %3668 = vmatpush1.bf16.msra.mxu0 %v2297
    %3669 = vmatprep.subr.bf16.mxu0 %v2314
    %3670 = vmatpush1.bf16.msra.mxu0 %v2313
    %3671 = vmatprep.subr.bf16.mxu0 %v2330
    %3672 = vmatpush1.bf16.msra.mxu0 %v2329
    %3673 = vmatprep.subr.bf16.mxu0 %v2346
    %3674 = vmatpush1.bf16.msra.mxu0 %v2345
    %3675 = vmatprep.subr.bf16.mxu0 %v2362
    %3676 = vmatpush1.bf16.msra.mxu0 %v2361
    %3677 = vmatprep.subr.bf16.mxu0 %v2378
    %3678 = vmatpush1.bf16.msra.mxu0 %v2377
    %3679 = vmatprep.subr.bf16.mxu0 %v2394
    %3680 = vmatpush1.bf16.msra.mxu0 %v2393
    %3681 = vmatprep.subr.bf16.mxu0 %v2410
    %3682 = vmatpush1.bf16.msra.mxu0 %v2409
    %3683 = vmatprep.subr.bf16.mxu0 %v2426
    %3684 = vmatpush1.bf16.msra.mxu0 %v2425
    %3685 = vmatprep.subr.bf16.mxu0 %v2442
    %3686 = vmatpush1.bf16.msra.mxu0 %v2441
    %3687 = vmatprep.subr.bf16.mxu0 %v2458
    %3688 = vmatpush1.bf16.msra.mxu0 %v2457
    %3689 = vmatprep.mubr.bf16.mxu0 %v70
    %3690 = vmatmul.mubr.bf16.gmra.mrb[0].mxu0 %v69
    %v3691 = vpop.f32.mrb[0].mxu0
    %v3692 = vadd.f32 %v628, %v3691
    %v3693 = vpop.f32.mrb[0].mxu0
    %v3694 = vadd.f32 %v632, %v3693
    %v3695 = vpop.f32.mrb[0].mxu0
    %v3696 = vadd.f32 %v628, %v3695
    %v3697 = vpop.f32.mrb[0].mxu0
    %v3698 = vadd.f32 %v632, %v3697
    %3699 = vmatprep.mubr.bf16.mxu0 %v74
    %3700 = vmatmul.mubr.bf16.gmra.mrb[0].mxu0 %v73
    %v3701 = vpop.f32.mrb[0].mxu0
    %v3702 = vadd.f32 %v628, %v3701
    %v3703 = vpop.f32.mrb[0].mxu0
    %v3704 = vadd.f32 %v632, %v3703
    %v3705 = vpop.f32.mrb[0].mxu0
    %v3706 = vadd.f32 %v628, %v3705
    %v3707 = vpop.f32.mrb[0].mxu0
    %v3708 = vadd.f32 %v632, %v3707
    %3709 = vdwg.mxu0
    %3710 = vmatprep.subr.bf16.mxu0 %v2474
    %3711 = vmatpush1.bf16.msra.mxu0 %v2473
    %3712 = vmatprep.subr.bf16.mxu0 %v2490
    %3713 = vmatpush1.bf16.msra.mxu0 %v2489
    %3714 = vmatprep.subr.bf16.mxu0 %v2506
    %3715 = vmatpush1.bf16.msra.mxu0 %v2505
    %3716 = vmatprep.subr.bf16.mxu0 %v2522
    %3717 = vmatpush1.bf16.msra.mxu0 %v2521
    %3718 = vmatprep.subr.bf16.mxu0 %v2538
    %3719 = vmatpush1.bf16.msra.mxu0 %v2537
    %3720 = vmatprep.subr.bf16.mxu0 %v2554
    %3721 = vmatpush1.bf16.msra.mxu0 %v2553
    %3722 = vmatprep.subr.bf16.mxu0 %v2570
    %3723 = vmatpush1.bf16.msra.mxu0 %v2569
    %3724 = vmatprep.subr.bf16.mxu0 %v2586
    %3725 = vmatpush1.bf16.msra.mxu0 %v2585
    %3726 = vmatprep.subr.bf16.mxu0 %v2602
    %3727 = vmatpush1.bf16.msra.mxu0 %v2601
    %3728 = vmatprep.subr.bf16.mxu0 %v2618
    %3729 = vmatpush1.bf16.msra.mxu0 %v2617
    %3730 = vmatprep.subr.bf16.mxu0 %v2634
    %3731 = vmatpush1.bf16.msra.mxu0 %v2633
    %3732 = vmatprep.subr.bf16.mxu0 %v2650
    %3733 = vmatpush1.bf16.msra.mxu0 %v2649
    %3734 = vmatprep.subr.bf16.mxu0 %v2666
    %3735 = vmatpush1.bf16.msra.mxu0 %v2665
    %3736 = vmatprep.subr.bf16.mxu0 %v2682
    %3737 = vmatpush1.bf16.msra.mxu0 %v2681
    %3738 = vmatprep.subr.bf16.mxu0 %v2698
    %3739 = vmatpush1.bf16.msra.mxu0 %v2697
    %3740 = vmatprep.subr.bf16.mxu0 %v2714
    %3741 = vmatpush1.bf16.msra.mxu0 %v2713
    %3742 = vmatprep.mubr.bf16.mxu0 %v72
    %3743 = vmatmul.mubr.bf16.gmra.mrb[0].mxu0 %v71
    %v3744 = vpop.f32.mrb[0].mxu0
    %v3745 = vadd.f32 %v3692, %v3744
    %v3746 = vpop.f32.mrb[0].mxu0
    %v3747 = vadd.f32 %v3694, %v3746
    %v3748 = vpop.f32.mrb[0].mxu0
    %v3749 = vadd.f32 %v3696, %v3748
    %v3750 = vpop.f32.mrb[0].mxu0
    %v3751 = vadd.f32 %v3698, %v3750
    %3752 = vmatprep.mubr.bf16.mxu0 %v76
    %3753 = vmatmul.mubr.bf16.gmra.mrb[0].mxu0 %v75
    %v3754 = vpop.f32.mrb[0].mxu0
    %v3755 = vadd.f32 %v3702, %v3754
    %v3756 = vpop.f32.mrb[0].mxu0
    %v3757 = vadd.f32 %v3704, %v3756
    %v3758 = vpop.f32.mrb[0].mxu0
    %v3759 = vadd.f32 %v3706, %v3758
    %v3760 = vpop.f32.mrb[0].mxu0
    %v3761 = vadd.f32 %v3708, %v3760
    %3762 = vdwg.mxu0
    %3763 = vmatprep.subr.bf16.mxu0 %v2220
    %3764 = vmatpush1.bf16.msra.mxu0 %v2219
    %3765 = vmatprep.subr.bf16.mxu0 %v2236
    %3766 = vmatpush1.bf16.msra.mxu0 %v2235
    %3767 = vmatprep.subr.bf16.mxu0 %v2252
    %3768 = vmatpush1.bf16.msra.mxu0 %v2251
    %3769 = vmatprep.subr.bf16.mxu0 %v2268
    %3770 = vmatpush1.bf16.msra.mxu0 %v2267
    %3771 = vmatprep.subr.bf16.mxu0 %v2284
    %3772 = vmatpush1.bf16.msra.mxu0 %v2283
    %3773 = vmatprep.subr.bf16.mxu0 %v2300
    %3774 = vmatpush1.bf16.msra.mxu0 %v2299
    %3775 = vmatprep.subr.bf16.mxu0 %v2316
    %3776 = vmatpush1.bf16.msra.mxu0 %v2315
    %3777 = vmatprep.subr.bf16.mxu0 %v2332
    %3778 = vmatpush1.bf16.msra.mxu0 %v2331
    %3779 = vmatprep.subr.bf16.mxu0 %v2348
    %3780 = vmatpush1.bf16.msra.mxu0 %v2347
    %3781 = vmatprep.subr.bf16.mxu0 %v2364
    %3782 = vmatpush1.bf16.msra.mxu0 %v2363
    %3783 = vmatprep.subr.bf16.mxu0 %v2380
    %3784 = vmatpush1.bf16.msra.mxu0 %v2379
    %3785 = vmatprep.subr.bf16.mxu0 %v2396
    %3786 = vmatpush1.bf16.msra.mxu0 %v2395
    %3787 = vmatprep.subr.bf16.mxu0 %v2412
    %3788 = vmatpush1.bf16.msra.mxu0 %v2411
    %3789 = vmatprep.subr.bf16.mxu0 %v2428
    %3790 = vmatpush1.bf16.msra.mxu0 %v2427
    %3791 = vmatprep.subr.bf16.mxu0 %v2444
    %3792 = vmatpush1.bf16.msra.mxu0 %v2443
    %3793 = vmatprep.subr.bf16.mxu0 %v2460
    %3794 = vmatpush1.bf16.msra.mxu0 %v2459
    %3795 = vmatprep.mubr.bf16.mxu0 %v70
    %3796 = vmatmul.mubr.bf16.gmra.mrb[0].mxu0 %v69
    %v3797 = vpop.f32.mrb[0].mxu0
    %v3798 = vadd.f32 %v636, %v3797
    %v3799 = vpop.f32.mrb[0].mxu0
    %v3800 = vadd.f32 %v640, %v3799
    %v3801 = vpop.f32.mrb[0].mxu0
    %v3802 = vadd.f32 %v636, %v3801
    %v3803 = vpop.f32.mrb[0].mxu0
    %v3804 = vadd.f32 %v640, %v3803
    %3805 = vmatprep.mubr.bf16.mxu0 %v74
    %3806 = vmatmul.mubr.bf16.gmra.mrb[0].mxu0 %v73
    %v3807 = vpop.f32.mrb[0].mxu0
    %v3808 = vadd.f32 %v636, %v3807
    %v3809 = vpop.f32.mrb[0].mxu0
    %v3810 = vadd.f32 %v640, %v3809
    %v3811 = vpop.f32.mrb[0].mxu0
    %v3812 = vadd.f32 %v636, %v3811
    %v3813 = vpop.f32.mrb[0].mxu0
    %v3814 = vadd.f32 %v640, %v3813
    %3815 = vdwg.mxu0
    %3816 = vmatprep.subr.bf16.mxu0 %v2476
    %3817 = vmatpush1.bf16.msra.mxu0 %v2475
    %3818 = vmatprep.subr.bf16.mxu0 %v2492
    %3819 = vmatpush1.bf16.msra.mxu0 %v2491
    %3820 = vmatprep.subr.bf16.mxu0 %v2508
    %3821 = vmatpush1.bf16.msra.mxu0 %v2507
    %3822 = vmatprep.subr.bf16.mxu0 %v2524
    %3823 = vmatpush1.bf16.msra.mxu0 %v2523
    %3824 = vmatprep.subr.bf16.mxu0 %v2540
    %3825 = vmatpush1.bf16.msra.mxu0 %v2539
    %3826 = vmatprep.subr.bf16.mxu0 %v2556
    %3827 = vmatpush1.bf16.msra.mxu0 %v2555
    %3828 = vmatprep.subr.bf16.mxu0 %v2572
    %3829 = vmatpush1.bf16.msra.mxu0 %v2571
    %3830 = vmatprep.subr.bf16.mxu0 %v2588
    %3831 = vmatpush1.bf16.msra.mxu0 %v2587
    %3832 = vmatprep.subr.bf16.mxu0 %v2604
    %3833 = vmatpush1.bf16.msra.mxu0 %v2603
    %3834 = vmatprep.subr.bf16.mxu0 %v2620
    %3835 = vmatpush1.bf16.msra.mxu0 %v2619
    %3836 = vmatprep.subr.bf16.mxu0 %v2636
    %3837 = vmatpush1.bf16.msra.mxu0 %v2635
    %3838 = vmatprep.subr.bf16.mxu0 %v2652
    %3839 = vmatpush1.bf16.msra.mxu0 %v2651
    %3840 = vmatprep.subr.bf16.mxu0 %v2668
    %3841 = vmatpush1.bf16.msra.mxu0 %v2667
    %3842 = vmatprep.subr.bf16.mxu0 %v2684
    %3843 = vmatpush1.bf16.msra.mxu0 %v2683
    %3844 = vmatprep.subr.bf16.mxu0 %v2700
    %3845 = vmatpush1.bf16.msra.mxu0 %v2699
    %3846 = vmatprep.subr.bf16.mxu0 %v2716
    %3847 = vmatpush1.bf16.msra.mxu0 %v2715
    %3848 = vmatprep.mubr.bf16.mxu0 %v72
    %3849 = vmatmul.mubr.bf16.gmra.mrb[0].mxu0 %v71
    %v3850 = vpop.f32.mrb[0].mxu0
    %v3851 = vadd.f32 %v3798, %v3850
    %v3852 = vpop.f32.mrb[0].mxu0
    %v3853 = vadd.f32 %v3800, %v3852
    %v3854 = vpop.f32.mrb[0].mxu0
    %v3855 = vadd.f32 %v3802, %v3854
    %v3856 = vpop.f32.mrb[0].mxu0
    %v3857 = vadd.f32 %v3804, %v3856
    %3858 = vmatprep.mubr.bf16.mxu0 %v76
    %3859 = vmatmul.mubr.bf16.gmra.mrb[0].mxu0 %v75
    %v3860 = vpop.f32.mrb[0].mxu0
    %v3861 = vadd.f32 %v3808, %v3860
    %v3862 = vpop.f32.mrb[0].mxu0
    %v3863 = vadd.f32 %v3810, %v3862
    %v3864 = vpop.f32.mrb[0].mxu0
    %v3865 = vadd.f32 %v3812, %v3864
    %v3866 = vpop.f32.mrb[0].mxu0
    %v3867 = vadd.f32 %v3814, %v3866
    %3868 = vdwg.mxu0
    %3869 = vmatprep.subr.bf16.mxu0 %v2222
    %3870 = vmatpush1.bf16.msra.mxu0 %v2221
    %3871 = vmatprep.subr.bf16.mxu0 %v2238
    %3872 = vmatpush1.bf16.msra.mxu0 %v2237
    %3873 = vmatprep.subr.bf16.mxu0 %v2254
    %3874 = vmatpush1.bf16.msra.mxu0 %v2253
    %3875 = vmatprep.subr.bf16.mxu0 %v2270
    %3876 = vmatpush1.bf16.msra.mxu0 %v2269
    %3877 = vmatprep.subr.bf16.mxu0 %v2286
    %3878 = vmatpush1.bf16.msra.mxu0 %v2285
    %3879 = vmatprep.subr.bf16.mxu0 %v2302
    %3880 = vmatpush1.bf16.msra.mxu0 %v2301
    %3881 = vmatprep.subr.bf16.mxu0 %v2318
    %3882 = vmatpush1.bf16.msra.mxu0 %v2317
    %3883 = vmatprep.subr.bf16.mxu0 %v2334
    %3884 = vmatpush1.bf16.msra.mxu0 %v2333
    %3885 = vmatprep.subr.bf16.mxu0 %v2350
    %3886 = vmatpush1.bf16.msra.mxu0 %v2349
    %3887 = vmatprep.subr.bf16.mxu0 %v2366
    %3888 = vmatpush1.bf16.msra.mxu0 %v2365
    %3889 = vmatprep.subr.bf16.mxu0 %v2382
    %3890 = vmatpush1.bf16.msra.mxu0 %v2381
    %3891 = vmatprep.subr.bf16.mxu0 %v2398
    %3892 = vmatpush1.bf16.msra.mxu0 %v2397
    %3893 = vmatprep.subr.bf16.mxu0 %v2414
    %3894 = vmatpush1.bf16.msra.mxu0 %v2413
    %3895 = vmatprep.subr.bf16.mxu0 %v2430
    %3896 = vmatpush1.bf16.msra.mxu0 %v2429
    %3897 = vmatprep.subr.bf16.mxu0 %v2446
    %3898 = vmatpush1.bf16.msra.mxu0 %v2445
    %3899 = vmatprep.subr.bf16.mxu0 %v2462
    %3900 = vmatpush1.bf16.msra.mxu0 %v2461
    %3901 = vmatprep.mubr.bf16.mxu0 %v70
    %3902 = vmatmul.mubr.bf16.gmra.mrb[0].mxu0 %v69
    %v3903 = vpop.f32.mrb[0].mxu0
    %v3904 = vadd.f32 %v644, %v3903
    %v3905 = vpop.f32.mrb[0].mxu0
    %v3906 = vadd.f32 %v648, %v3905
    %v3907 = vpop.f32.mrb[0].mxu0
    %v3908 = vadd.f32 %v644, %v3907
    %v3909 = vpop.f32.mrb[0].mxu0
    %v3910 = vadd.f32 %v648, %v3909
    %3911 = vmatprep.mubr.bf16.mxu0 %v74
    %3912 = vmatmul.mubr.bf16.gmra.mrb[0].mxu0 %v73
    %v3913 = vpop.f32.mrb[0].mxu0
    %v3914 = vadd.f32 %v644, %v3913
    %v3915 = vpop.f32.mrb[0].mxu0
    %v3916 = vadd.f32 %v648, %v3915
    %v3917 = vpop.f32.mrb[0].mxu0
    %v3918 = vadd.f32 %v644, %v3917
    %v3919 = vpop.f32.mrb[0].mxu0
    %v3920 = vadd.f32 %v648, %v3919
    %3921 = vdwg.mxu0
    %3922 = vmatprep.subr.bf16.mxu0 %v2478
    %3923 = vmatpush1.bf16.msra.mxu0 %v2477
    %3924 = vmatprep.subr.bf16.mxu0 %v2494
    %3925 = vmatpush1.bf16.msra.mxu0 %v2493
    %3926 = vmatprep.subr.bf16.mxu0 %v2510
    %3927 = vmatpush1.bf16.msra.mxu0 %v2509
    %3928 = vmatprep.subr.bf16.mxu0 %v2526
    %3929 = vmatpush1.bf16.msra.mxu0 %v2525
    %3930 = vmatprep.subr.bf16.mxu0 %v2542
    %3931 = vmatpush1.bf16.msra.mxu0 %v2541
    %3932 = vmatprep.subr.bf16.mxu0 %v2558
    %3933 = vmatpush1.bf16.msra.mxu0 %v2557
    %3934 = vmatprep.subr.bf16.mxu0 %v2574
    %3935 = vmatpush1.bf16.msra.mxu0 %v2573
    %3936 = vmatprep.subr.bf16.mxu0 %v2590
    %3937 = vmatpush1.bf16.msra.mxu0 %v2589
    %3938 = vmatprep.subr.bf16.mxu0 %v2606
    %3939 = vmatpush1.bf16.msra.mxu0 %v2605
    %3940 = vmatprep.subr.bf16.mxu0 %v2622
    %3941 = vmatpush1.bf16.msra.mxu0 %v2621
    %3942 = vmatprep.subr.bf16.mxu0 %v2638
    %3943 = vmatpush1.bf16.msra.mxu0 %v2637
    %3944 = vmatprep.subr.bf16.mxu0 %v2654
    %3945 = vmatpush1.bf16.msra.mxu0 %v2653
    %3946 = vmatprep.subr.bf16.mxu0 %v2670
    %3947 = vmatpush1.bf16.msra.mxu0 %v2669
    %3948 = vmatprep.subr.bf16.mxu0 %v2686
    %3949 = vmatpush1.bf16.msra.mxu0 %v2685
    %3950 = vmatprep.subr.bf16.mxu0 %v2702
    %3951 = vmatpush1.bf16.msra.mxu0 %v2701
    %3952 = vmatprep.subr.bf16.mxu0 %v2718
    %3953 = vmatpush1.bf16.msra.mxu0 %v2717
    %3954 = vmatprep.mubr.bf16.mxu0 %v72
    %3955 = vmatmul.mubr.bf16.gmra.mrb[0].mxu0 %v71
    %v3956 = vpop.f32.mrb[0].mxu0
    %v3957 = vadd.f32 %v3904, %v3956
    %v3958 = vpop.f32.mrb[0].mxu0
    %v3959 = vadd.f32 %v3906, %v3958
    %v3960 = vpop.f32.mrb[0].mxu0
    %v3961 = vadd.f32 %v3908, %v3960
    %v3962 = vpop.f32.mrb[0].mxu0
    %v3963 = vadd.f32 %v3910, %v3962
    %3964 = vmatprep.mubr.bf16.mxu0 %v76
    %3965 = vmatmul.mubr.bf16.gmra.mrb[0].mxu0 %v75
    %v3966 = vpop.f32.mrb[0].mxu0
    %v3967 = vadd.f32 %v3914, %v3966
    %v3968 = vpop.f32.mrb[0].mxu0
    %v3969 = vadd.f32 %v3916, %v3968
    %v3970 = vpop.f32.mrb[0].mxu0
    %v3971 = vadd.f32 %v3918, %v3970
    %v3972 = vpop.f32.mrb[0].mxu0
    %v3973 = vadd.f32 %v3920, %v3972
    %3974 = vdwg.mxu0
    %3975 = vmatprep.subr.bf16.mxu0 %v2224
    %3976 = vmatpush1.bf16.msra.mxu0 %v2223
    %3977 = vmatprep.subr.bf16.mxu0 %v2240
    %3978 = vmatpush1.bf16.msra.mxu0 %v2239
    %3979 = vmatprep.subr.bf16.mxu0 %v2256
    %3980 = vmatpush1.bf16.msra.mxu0 %v2255
    %3981 = vmatprep.subr.bf16.mxu0 %v2272
    %3982 = vmatpush1.bf16.msra.mxu0 %v2271
    %3983 = vmatprep.subr.bf16.mxu0 %v2288
    %3984 = vmatpush1.bf16.msra.mxu0 %v2287
    %3985 = vmatprep.subr.bf16.mxu0 %v2304
    %3986 = vmatpush1.bf16.msra.mxu0 %v2303
    %3987 = vmatprep.subr.bf16.mxu0 %v2320
    %3988 = vmatpush1.bf16.msra.mxu0 %v2319
    %3989 = vmatprep.subr.bf16.mxu0 %v2336
    %3990 = vmatpush1.bf16.msra.mxu0 %v2335
    %3991 = vmatprep.subr.bf16.mxu0 %v2352
    %3992 = vmatpush1.bf16.msra.mxu0 %v2351
    %3993 = vmatprep.subr.bf16.mxu0 %v2368
    %3994 = vmatpush1.bf16.msra.mxu0 %v2367
    %3995 = vmatprep.subr.bf16.mxu0 %v2384
    %3996 = vmatpush1.bf16.msra.mxu0 %v2383
    %3997 = vmatprep.subr.bf16.mxu0 %v2400
    %3998 = vmatpush1.bf16.msra.mxu0 %v2399
    %3999 = vmatprep.subr.bf16.mxu0 %v2416
    %4000 = vmatpush1.bf16.msra.mxu0 %v2415
    %4001 = vmatprep.subr.bf16.mxu0 %v2432
    %4002 = vmatpush1.bf16.msra.mxu0 %v2431
    %4003 = vmatprep.subr.bf16.mxu0 %v2448
    %4004 = vmatpush1.bf16.msra.mxu0 %v2447
    %4005 = vmatprep.subr.bf16.mxu0 %v2464
    %4006 = vmatpush1.bf16.msra.mxu0 %v2463
    %4007 = vmatprep.mubr.bf16.mxu0 %v70
    %4008 = vmatmul.mubr.bf16.gmra.mrb[0].mxu0 %v69
    %v4009 = vpop.f32.mrb[0].mxu0
    %v4010 = vadd.f32 %v652, %v4009
    %v4011 = vpop.f32.mrb[0].mxu0
    %v4012 = vadd.f32 %v656, %v4011
    %v4013 = vpop.f32.mrb[0].mxu0
    %v4014 = vadd.f32 %v652, %v4013
    %v4015 = vpop.f32.mrb[0].mxu0
    %v4016 = vadd.f32 %v656, %v4015
    %4017 = vmatprep.mubr.bf16.mxu0 %v74
    %4018 = vmatmul.mubr.bf16.gmra.mrb[0].mxu0 %v73
    %v4019 = vpop.f32.mrb[0].mxu0
    %v4020 = vadd.f32 %v652, %v4019
    %v4021 = vpop.f32.mrb[0].mxu0
    %v4022 = vadd.f32 %v656, %v4021
    %v4023 = vpop.f32.mrb[0].mxu0
    %v4024 = vadd.f32 %v652, %v4023
    %v4025 = vpop.f32.mrb[0].mxu0
    %v4026 = vadd.f32 %v656, %v4025
    %4027 = vdwg.mxu0
    %4028 = vmatprep.subr.bf16.mxu0 %v2480
    %4029 = vmatpush1.bf16.msra.mxu0 %v2479
    %4030 = vmatprep.subr.bf16.mxu0 %v2496
    %4031 = vmatpush1.bf16.msra.mxu0 %v2495
    %4032 = vmatprep.subr.bf16.mxu0 %v2512
    %4033 = vmatpush1.bf16.msra.mxu0 %v2511
    %4034 = vmatprep.subr.bf16.mxu0 %v2528
    %4035 = vmatpush1.bf16.msra.mxu0 %v2527
    %4036 = vmatprep.subr.bf16.mxu0 %v2544
    %4037 = vmatpush1.bf16.msra.mxu0 %v2543
    %4038 = vmatprep.subr.bf16.mxu0 %v2560
    %4039 = vmatpush1.bf16.msra.mxu0 %v2559
    %4040 = vmatprep.subr.bf16.mxu0 %v2576
    %4041 = vmatpush1.bf16.msra.mxu0 %v2575
    %4042 = vmatprep.subr.bf16.mxu0 %v2592
    %4043 = vmatpush1.bf16.msra.mxu0 %v2591
    %4044 = vmatprep.subr.bf16.mxu0 %v2608
    %4045 = vmatpush1.bf16.msra.mxu0 %v2607
    %4046 = vmatprep.subr.bf16.mxu0 %v2624
    %4047 = vmatpush1.bf16.msra.mxu0 %v2623
    %4048 = vmatprep.subr.bf16.mxu0 %v2640
    %4049 = vmatpush1.bf16.msra.mxu0 %v2639
    %4050 = vmatprep.subr.bf16.mxu0 %v2656
    %4051 = vmatpush1.bf16.msra.mxu0 %v2655
    %4052 = vmatprep.subr.bf16.mxu0 %v2672
    %4053 = vmatpush1.bf16.msra.mxu0 %v2671
    %4054 = vmatprep.subr.bf16.mxu0 %v2688
    %4055 = vmatpush1.bf16.msra.mxu0 %v2687
    %4056 = vmatprep.subr.bf16.mxu0 %v2704
    %4057 = vmatpush1.bf16.msra.mxu0 %v2703
    %4058 = vmatprep.subr.bf16.mxu0 %v2720
    %4059 = vmatpush1.bf16.msra.mxu0 %v2719
    %4060 = vmatprep.mubr.bf16.mxu0 %v72
    %4061 = vmatmul.mubr.bf16.gmra.mrb[0].mxu0 %v71
    %v4062 = vpop.f32.mrb[0].mxu0
    %v4063 = vadd.f32 %v4010, %v4062
    %v4064 = vpop.f32.mrb[0].mxu0
    %v4065 = vadd.f32 %v4012, %v4064
    %v4066 = vpop.f32.mrb[0].mxu0
    %v4067 = vadd.f32 %v4014, %v4066
    %v4068 = vpop.f32.mrb[0].mxu0
    %v4069 = vadd.f32 %v4016, %v4068
    %4070 = vmatprep.mubr.bf16.mxu0 %v76
    %4071 = vmatmul.mubr.bf16.gmra.mrb[0].mxu0 %v75
    %v4072 = vpop.f32.mrb[0].mxu0
    %v4073 = vadd.f32 %v4020, %v4072
    %v4074 = vpop.f32.mrb[0].mxu0
    %v4075 = vadd.f32 %v4022, %v4074
    %v4076 = vpop.f32.mrb[0].mxu0
    %v4077 = vadd.f32 %v4024, %v4076
    %v4078 = vpop.f32.mrb[0].mxu0
    %v4079 = vadd.f32 %v4026, %v4078
    %4080 = vdwg.mxu0
    %v4081 = vpack.c.bf16 %v3325, %v3321
    %v4082 = vpack.c.bf16 %v3327, %v3323
    %v4083 = vpack.c.bf16 %v3431, %v3427
    %v4084 = vpack.c.bf16 %v3433, %v3429
    %v4085 = vpack.c.bf16 %v3537, %v3533
    %v4086 = vpack.c.bf16 %v3539, %v3535
    %v4087 = vpack.c.bf16 %v3643, %v3639
    %v4088 = vpack.c.bf16 %v3645, %v3641
    %v4089 = vpack.c.bf16 %v3749, %v3745
    %v4090 = vpack.c.bf16 %v3751, %v3747
    %v4091 = vpack.c.bf16 %v3855, %v3851
    %v4092 = vpack.c.bf16 %v3857, %v3853
    %v4093 = vpack.c.bf16 %v3961, %v3957
    %v4094 = vpack.c.bf16 %v3963, %v3959
    %v4095 = vpack.c.bf16 %v4067, %v4063
    %v4096 = vpack.c.bf16 %v4069, %v4065
    %v4097 = vpack.c.bf16 %v3335, %v3331
    %v4098 = vpack.c.bf16 %v3337, %v3333
    %v4099 = vpack.c.bf16 %v3441, %v3437
    %v4100 = vpack.c.bf16 %v3443, %v3439
    %v4101 = vpack.c.bf16 %v3547, %v3543
    %v4102 = vpack.c.bf16 %v3549, %v3545
    %v4103 = vpack.c.bf16 %v3653, %v3649
    %v4104 = vpack.c.bf16 %v3655, %v3651
    %v4105 = vpack.c.bf16 %v3759, %v3755
    %v4106 = vpack.c.bf16 %v3761, %v3757
    %v4107 = vpack.c.bf16 %v3865, %v3861
    %v4108 = vpack.c.bf16 %v3867, %v3863
    %v4109 = vpack.c.bf16 %v3971, %v3967
    %v4110 = vpack.c.bf16 %v3973, %v3969
    %v4111 = vpack.c.bf16 %v4077, %v4073
    %v4112 = vpack.c.bf16 %v4079, %v4075
    %v4145 = vunpack.c.l.b16 %v4081
    %v4146 = vunpack.c.l.b16 %v4082
    %v4147 = vunpack.c.l.b16 %v4083
    %v4148 = vunpack.c.l.b16 %v4084
    %v4149 = vunpack.c.l.b16 %v4085
    %v4150 = vunpack.c.l.b16 %v4086
    %v4151 = vunpack.c.l.b16 %v4087
    %v4152 = vunpack.c.l.b16 %v4088
    %v4153 = vunpack.c.l.b16 %v4089
    %v4154 = vunpack.c.l.b16 %v4090
    %v4155 = vunpack.c.l.b16 %v4091
    %v4156 = vunpack.c.l.b16 %v4092
    %v4157 = vunpack.c.l.b16 %v4093
    %v4158 = vunpack.c.l.b16 %v4094
    %v4159 = vunpack.c.l.b16 %v4095
    %v4160 = vunpack.c.l.b16 %v4096
    %v4161 = vunpack.c.h.b16 %v4081
    %v4162 = vunpack.c.h.b16 %v4082
    %v4163 = vunpack.c.h.b16 %v4083
    %v4164 = vunpack.c.h.b16 %v4084
    %v4165 = vunpack.c.h.b16 %v4085
    %v4166 = vunpack.c.h.b16 %v4086
    %v4167 = vunpack.c.h.b16 %v4087
    %v4168 = vunpack.c.h.b16 %v4088
    %v4169 = vunpack.c.h.b16 %v4089
    %v4170 = vunpack.c.h.b16 %v4090
    %v4171 = vunpack.c.h.b16 %v4091
    %v4172 = vunpack.c.h.b16 %v4092
    %v4173 = vunpack.c.h.b16 %v4093
    %v4174 = vunpack.c.h.b16 %v4094
    %v4175 = vunpack.c.h.b16 %v4095
    %v4176 = vunpack.c.h.b16 %v4096
    %v4177 = vunpack.c.l.b16 %v4097
    %v4178 = vunpack.c.l.b16 %v4098
    %v4179 = vunpack.c.l.b16 %v4099
    %v4180 = vunpack.c.l.b16 %v4100
    %v4181 = vunpack.c.l.b16 %v4101
    %v4182 = vunpack.c.l.b16 %v4102
    %v4183 = vunpack.c.l.b16 %v4103
    %v4184 = vunpack.c.l.b16 %v4104
    %v4185 = vunpack.c.l.b16 %v4105
    %v4186 = vunpack.c.l.b16 %v4106
    %v4187 = vunpack.c.l.b16 %v4107
    %v4188 = vunpack.c.l.b16 %v4108
    %v4189 = vunpack.c.l.b16 %v4109
    %v4190 = vunpack.c.l.b16 %v4110
    %v4191 = vunpack.c.l.b16 %v4111
    %v4192 = vunpack.c.l.b16 %v4112
    %v4193 = vunpack.c.h.b16 %v4097
    %v4194 = vunpack.c.h.b16 %v4098
    %v4195 = vunpack.c.h.b16 %v4099
    %v4196 = vunpack.c.h.b16 %v4100
    %v4197 = vunpack.c.h.b16 %v4101
    %v4198 = vunpack.c.h.b16 %v4102
    %v4199 = vunpack.c.h.b16 %v4103
    %v4200 = vunpack.c.h.b16 %v4104
    %v4201 = vunpack.c.h.b16 %v4105
    %v4202 = vunpack.c.h.b16 %v4106
    %v4203 = vunpack.c.h.b16 %v4107
    %v4204 = vunpack.c.h.b16 %v4108
    %v4205 = vunpack.c.h.b16 %v4109
    %v4206 = vunpack.c.h.b16 %v4110
    %v4207 = vunpack.c.h.b16 %v4111
    %v4208 = vunpack.c.h.b16 %v4112
    %v4209 = vpack.c.b16 %v4146, %v4145
    %v4210 = vpack.c.b16 %v4148, %v4147
    %v4211 = vpack.c.b16 %v4150, %v4149
    %v4212 = vpack.c.b16 %v4152, %v4151
    %v4213 = vpack.c.b16 %v4154, %v4153
    %v4214 = vpack.c.b16 %v4156, %v4155
    %v4215 = vpack.c.b16 %v4158, %v4157
    %v4216 = vpack.c.b16 %v4160, %v4159
    %v4217 = vpack.c.b16 %v4162, %v4161
    %v4218 = vpack.c.b16 %v4164, %v4163
    %v4219 = vpack.c.b16 %v4166, %v4165
    %v4220 = vpack.c.b16 %v4168, %v4167
    %v4221 = vpack.c.b16 %v4170, %v4169
    %v4222 = vpack.c.b16 %v4172, %v4171
    %v4223 = vpack.c.b16 %v4174, %v4173
    %v4224 = vpack.c.b16 %v4176, %v4175
    %v4225 = vpack.c.b16 %v4178, %v4177
    %v4226 = vpack.c.b16 %v4180, %v4179
    %v4227 = vpack.c.b16 %v4182, %v4181
    %v4228 = vpack.c.b16 %v4184, %v4183
    %v4229 = vpack.c.b16 %v4186, %v4185
    %v4230 = vpack.c.b16 %v4188, %v4187
    %v4231 = vpack.c.b16 %v4190, %v4189
    %v4232 = vpack.c.b16 %v4192, %v4191
    %v4233 = vpack.c.b16 %v4194, %v4193
    %v4234 = vpack.c.b16 %v4196, %v4195
    %v4235 = vpack.c.b16 %v4198, %v4197
    %v4236 = vpack.c.b16 %v4200, %v4199
    %v4237 = vpack.c.b16 %v4202, %v4201
    %v4238 = vpack.c.b16 %v4204, %v4203
    %v4239 = vpack.c.b16 %v4206, %v4205
    %v4240 = vpack.c.b16 %v4208, %v4207
    %4273 = vst [vmem:[%s3] sm:$0xff] %v4209
    %4274 = vst [vmem:[%s3 + $0x8] sm:$0xff] %v4210
    %4275 = vst [vmem:[%s3 + $0x10] sm:$0xff] %v4211
    %4276 = vst [vmem:[%s3 + $0x18] sm:$0xff] %v4212
    %4277 = vst [vmem:[%s3 + $0x20] sm:$0xff] %v4213
    %4278 = vst [vmem:[%s3 + $0x28] sm:$0xff] %v4214
    %4279 = vst [vmem:[%s3 + $0x30] sm:$0xff] %v4215
    %4280 = vst [vmem:[%s3 + $0x38] sm:$0xff] %v4216
    %4281 = vst [vmem:[%s3 + $0x40] sm:$0xff] %v4217
    %4282 = vst [vmem:[%s3 + $0x48] sm:$0xff] %v4218
    %4283 = vst [vmem:[%s3 + $0x50] sm:$0xff] %v4219
    %4284 = vst [vmem:[%s3 + $0x58] sm:$0xff] %v4220
    %4285 = vst [vmem:[%s3 + $0x60] sm:$0xff] %v4221
    %4286 = vst [vmem:[%s3 + $0x68] sm:$0xff] %v4222
    %4287 = vst [vmem:[%s3 + $0x70] sm:$0xff] %v4223
    %4288 = vst [vmem:[%s3 + $0x78] sm:$0xff] %v4224
    %4289 = vst [vmem:[%s3 + $0x80] sm:$0xff] %v4225
    %4290 = vst [vmem:[%s3 + $0x88] sm:$0xff] %v4226
    %4291 = vst [vmem:[%s3 + $0x90] sm:$0xff] %v4227
    %4292 = vst [vmem:[%s3 + $0x98] sm:$0xff] %v4228
    %4293 = vst [vmem:[%s3 + $0xa0] sm:$0xff] %v4229
    %4294 = vst [vmem:[%s3 + $0xa8] sm:$0xff] %v4230
    %4295 = vst [vmem:[%s3 + $0xb0] sm:$0xff] %v4231
    %4296 = vst [vmem:[%s3 + $0xb8] sm:$0xff] %v4232
    %4297 = vst [vmem:[%s3 + $0xc0] sm:$0xff] %v4233
    %4298 = vst [vmem:[%s3 + $0xc8] sm:$0xff] %v4234
    %4299 = vst [vmem:[%s3 + $0xd0] sm:$0xff] %v4235
    %4300 = vst [vmem:[%s3 + $0xd8] sm:$0xff] %v4236
    %4301 = vst [vmem:[%s3 + $0xe0] sm:$0xff] %v4237
    %4302 = vst [vmem:[%s3 + $0xe8] sm:$0xff] %v4238
    %4303 = vst [vmem:[%s3 + $0xf0] sm:$0xff] %v4239
    %4304 = vst [vmem:[%s3 + $0xf8] sm:$0xff] %v4240
    // Predicated region
    $region26: #{_run_kernel.2} parent=1 // pred_check
      _
    $region27: #{_run_kernel.2} parent=1 // pred_check_branch
      %4306 = sbr.rel (0) target = $region29
    $region28: #{_run_kernel.2} parent=1 // pred_region
      _
    $region29: #{_run_kernel.2} parent=1 // pred_fallthru
      _
    // Predicated region
    $region30: #{_run_kernel.2} parent=1 // pred_check
      _
    $region31: #{_run_kernel.2} parent=1 // pred_check_branch
      %4308 = sbr.rel (0) target = $region33
    $region32: #{_run_kernel.2} parent=1 // pred_region
      _
    $region33: #{_run_kernel.2} parent=1 // pred_fallthru
      _
    %4309 = vsyncpa [#allocation3], 1
    %4310 = vsyncpa [#allocation5], 1

// kernel: _run_kernel.3
$region0: #{_run_kernel.3}
  #allocation0 [shape = 'u32[]', space=smem, size = 0x4, offset = 0x4, fixed_abs, tag = 'smem constant byte address 0x4 - core index']
  #allocation1 [shape = 'u32[144,128]{1,0:T(1,128)}', space=vmem, size = 0x12000, scoped, tag = 'internal scratch']
  #allocation2 [shape = 's32[1]{0}', space=sflag, size = 0x4, scoped, tag = 'scoped memory for _run_kernel.3']
  #allocation3 [shape = 's32[1]{0:T(128)S(6)}', space=smem, size = 0x200, scoped, tag = 'prefetched SMEM operand 0']
  #allocation4 [shape = 's32[1]{0:T(128)S(6)}', space=smem, size = 0x200, scoped, tag = 'prefetched SMEM operand 1']
  %s0 = inlined_call_operand.<no memory space> [shape: s32[1], index: 0, kind: input, shape index: {}]
  %s1 = inlined_call_operand.<no memory space> [shape: s32[1], index: 1, kind: input, shape index: {}]
  %s2 = inlined_call_operand.vmem [shape: bf16[1,32,2048], index: 2, kind: input, shape index: {}]
  %s3 = inlined_call_operand.vmem [shape: f32[32,512], index: 3, kind: input, shape index: {}]
  %s4 = inlined_call_operand.vmem [shape: f32[32,512], index: 4, kind: input, shape index: {}]
  %s5 = inlined_call_operand.vmem [shape: bf16[512,2048], index: 5, kind: input, shape index: {}]
  %s6 = inlined_call_operand.hbm [shape: bf16[512,512], index: 6, kind: input, shape index: {}]
  %s7 = inlined_call_operand.vmem [shape: f32[1,512], index: 7, kind: input, shape index: {}]
  %s8 = inlined_call_operand.hbm [shape: bf16[11,512,512], index: 8, kind: input, shape index: {}]
  %s9 = inlined_call_operand.vmem [shape: f32[11,1,512], index: 9, kind: input, shape index: {}]
  %s10 = inlined_call_operand.hbm [shape: f32[1,32,512], index: 10, kind: output, shape index: {0}]
  %s11 = inlined_call_operand.hbm [shape: f32[32,512], index: 11, kind: output, shape index: {1}]
  %s12 = inlined_call_operand.hbm [shape: f32[32,512], index: 12, kind: output, shape index: {2}]
  %13 = xla_tuple %s10, %s11, %s12
  %s14 = sld [smem:[#allocation0]]
  $region78: #{_run_kernel.3} parent=0
    _
  %s16 = ssub.s32 1, %s14
  %s17 = scalar_select 0, %s16, %s14
  %18 = sst [smem:[#allocation3]] %s0
  %19 = sst [smem:[#allocation4]] %s1
  $region1: #{_run_kernel.3} parent=0
    #allocation5 [shape = 'u8[524288]{0}', space=vmem, size = 0x80000, scoped, tag = 'input window, operand 6, single buffered']
    #allocation6 [shape = 's32[1]{0}', space=sflag, size = 0x4, scoped, tag = 'scoped memory for _run_kernel.3']
    #allocation7 [shape = 's32[1]{0}', space=sflag, size = 0x4, scoped, tag = 'scoped memory for _run_kernel.3']
    #allocation8 [shape = 'u8[5767168]{0}', space=vmem, size = 0x580000, scoped, tag = 'input window, operand 8, single buffered']
    #allocation9 [shape = 's32[1]{0}', space=sflag, size = 0x4, scoped, tag = 'scoped memory for _run_kernel.3']
    #allocation10 [shape = 'u8[65536]{0}', space=vmem, size = 0x10000, scoped, tag = 'output window, operand 0, single buffered']
    #allocation11 [shape = 'u8[65536]{0}', space=vmem, size = 0x10000, scoped, tag = 'output window, operand 1, single buffered']
    #allocation12 [shape = 's32[1]{0}', space=sflag, size = 0x4, scoped, tag = 'scoped memory for _run_kernel.3']
    #allocation13 [shape = 'u8[65536]{0}', space=vmem, size = 0x10000, scoped, tag = 'output window, operand 2, single buffered']
    %20 = vsyncpa [#allocation6], 0
    %21 = vsyncpa [#allocation9], 0
    %22 = vsyncpa [#allocation7], 0
    %23 = vsyncpa [#allocation12], 0
    // Predicated region
    $region2: #{_run_kernel.3} parent=1 // pred_check
      _
    $region3: #{_run_kernel.3} parent=1 // pred_check_branch
      %25 = sbr.rel (0) target = $region5
    $region4: #{_run_kernel.3} parent=1 // pred_region
      _
    $region5: #{_run_kernel.3} parent=1 // pred_fallthru
      _
    // Predicated region
    $region6: #{_run_kernel.3} parent=1 // pred_check
      _
    $region7: #{_run_kernel.3} parent=1 // pred_check_branch
      %27 = sbr.rel (0) target = $region9
    $region8: #{_run_kernel.3} parent=1 // pred_region
      _
    $region9: #{_run_kernel.3} parent=1 // pred_fallthru
      _
    // Predicated region
    $region10: #{_run_kernel.3} parent=1 // pred_check
      _
    $region11: #{_run_kernel.3} parent=1 // pred_check_branch
      %29 = sbr.rel (0) target = $region13
    $region12: #{_run_kernel.3} parent=1 // pred_region
      _
    $region13: #{_run_kernel.3} parent=1 // pred_fallthru
      _
    // Predicated region
    $region14: #{_run_kernel.3} parent=1 // pred_check
      _
    $region15: #{_run_kernel.3} parent=1 // pred_check_branch
      %31 = sbr.rel (0) target = $region17
    $region16: #{_run_kernel.3} parent=1 // pred_region
      _
    $region17: #{_run_kernel.3} parent=1 // pred_fallthru
      _
    // Predicated region
    $region18: #{_run_kernel.3} parent=1 // pred_check
      _
    $region19: #{_run_kernel.3} parent=1 // pred_check_branch
      %33 = sbr.rel (0) target = $region21
    $region20: #{_run_kernel.3} parent=1 // pred_region
      %s35 = ssub.s32 16384, 16384
      %36 = vsyncadd [#allocation6], %s35
      %s37 = sshll.u32 [#allocation5], 4
      %s38 = int_to_ptr.vmem [resolvable:$true] %s37
      %43 = dma.hbm_to_vmem [thread:$0]  %s6, 16384, %s38, [#allocation6], 256, 256, 16
    $region21: #{_run_kernel.3} parent=1 // pred_fallthru
      _
    // Predicated region
    $region22: #{_run_kernel.3} parent=1 // pred_check
      _
    $region23: #{_run_kernel.3} parent=1 // pred_check_branch
      %45 = sbr.rel (0) target = $region25
    $region24: #{_run_kernel.3} parent=1 // pred_region
      _
    $region25: #{_run_kernel.3} parent=1 // pred_fallthru
      _
    // Predicated region
    $region26: #{_run_kernel.3} parent=1 // pred_check
      _
    $region27: #{_run_kernel.3} parent=1 // pred_check_branch
      %47 = sbr.rel (0) target = $region29
    $region28: #{_run_kernel.3} parent=1 // pred_region
      %s49 = ssub.s32 180224, 180224
      %50 = vsyncadd [#allocation9], %s49
      %s51 = sshll.u32 [#allocation8], 4
      %s52 = int_to_ptr.vmem [resolvable:$true] %s51
      %57 = dma.hbm_to_vmem [thread:$0]  %s8, 180224, %s52, [#allocation9], 256, 256, 16
    $region29: #{_run_kernel.3} parent=1 // pred_fallthru
      _
    // Predicated region
    $region30: #{_run_kernel.3} parent=1 // pred_check
      _
    $region31: #{_run_kernel.3} parent=1 // pred_check_branch
      %59 = sbr.rel (0) target = $region33
    $region32: #{_run_kernel.3} parent=1 // pred_region
      _
    $region33: #{_run_kernel.3} parent=1 // pred_fallthru
      _
    // Predicated region
    $region34: #{_run_kernel.3} parent=1 // pred_check
      _
    $region35: #{_run_kernel.3} parent=1 // pred_check_branch
      %61 = sbr.rel (0) target = $region37
    $region36: #{_run_kernel.3} parent=1 // pred_region
      %62 = dma.done [#allocation6], 16384
    $region37: #{_run_kernel.3} parent=1 // pred_fallthru
      _
    // Predicated region
    $region38: #{_run_kernel.3} parent=1 // pred_check
      _
    $region39: #{_run_kernel.3} parent=1 // pred_check_branch
      %64 = sbr.rel (0) target = $region41
    $region40: #{_run_kernel.3} parent=1 // pred_region
      %65 = dma.done [#allocation9], 180224
    $region41: #{_run_kernel.3} parent=1 // pred_fallthru
      _
    %p66 = scmp.eq.s32.totalorder 0, 0
    // Predicated region
    $region42: #{_run_kernel.3} parent=1 // pred_check
      %p67 = pneg %p66
    $region43: #{_run_kernel.3} parent=1 // pred_check_branch
      %69 = sbr.rel (%p67) target = $region45
    $region44: #{_run_kernel.3} parent=1 // pred_region
      %v70 = vld [vmem:[%s3] sm:$0xff]
      %v71 = vld [vmem:[%s3 + $0x8] sm:$0xff]
      %v72 = vld [vmem:[%s3 + $0x10] sm:$0xff]
      %v73 = vld [vmem:[%s3 + $0x18] sm:$0xff]
      %v74 = vld [vmem:[%s3 + $0x20] sm:$0xff]
      %v75 = vld [vmem:[%s3 + $0x28] sm:$0xff]
      %v76 = vld [vmem:[%s3 + $0x30] sm:$0xff]
      %v77 = vld [vmem:[%s3 + $0x38] sm:$0xff]
      %v78 = vld [vmem:[%s3 + $0x40] sm:$0xff]
      %v79 = vld [vmem:[%s3 + $0x48] sm:$0xff]
      %v80 = vld [vmem:[%s3 + $0x50] sm:$0xff]
      %v81 = vld [vmem:[%s3 + $0x58] sm:$0xff]
      %v82 = vld [vmem:[%s3 + $0x60] sm:$0xff]
      %v83 = vld [vmem:[%s3 + $0x68] sm:$0xff]
      %v84 = vld [vmem:[%s3 + $0x70] sm:$0xff]
      %v85 = vld [vmem:[%s3 + $0x78] sm:$0xff]
      %86 = vst [vmem:[#allocation11] sm:$0xff] %v70
      %87 = vst [vmem:[#allocation11 + $0x8] sm:$0xff] %v71
      %88 = vst [vmem:[#allocation11 + $0x10] sm:$0xff] %v72
      %89 = vst [vmem:[#allocation11 + $0x18] sm:$0xff] %v73
      %90 = vst [vmem:[#allocation11 + $0x20] sm:$0xff] %v74
      %91 = vst [vmem:[#allocation11 + $0x28] sm:$0xff] %v75
      %92 = vst [vmem:[#allocation11 + $0x30] sm:$0xff] %v76
      %93 = vst [vmem:[#allocation11 + $0x38] sm:$0xff] %v77
      %94 = vst [vmem:[#allocation11 + $0x40] sm:$0xff] %v78
      %95 = vst [vmem:[#allocation11 + $0x48] sm:$0xff] %v79
      %96 = vst [vmem:[#allocation11 + $0x50] sm:$0xff] %v80
      %97 = vst [vmem:[#allocation11 + $0x58] sm:$0xff] %v81
      %98 = vst [vmem:[#allocation11 + $0x60] sm:$0xff] %v82
      %99 = vst [vmem:[#allocation11 + $0x68] sm:$0xff] %v83
      %100 = vst [vmem:[#allocation11 + $0x70] sm:$0xff] %v84
      %101 = vst [vmem:[#allocation11 + $0x78] sm:$0xff] %v85
      %v102 = vld [vmem:[%s4] sm:$0xff]
      %v103 = vld [vmem:[%s4 + $0x8] sm:$0xff]
      %v104 = vld [vmem:[%s4 + $0x10] sm:$0xff]
      %v105 = vld [vmem:[%s4 + $0x18] sm:$0xff]
      %v106 = vld [vmem:[%s4 + $0x20] sm:$0xff]
      %v107 = vld [vmem:[%s4 + $0x28] sm:$0xff]
      %v108 = vld [vmem:[%s4 + $0x30] sm:$0xff]
      %v109 = vld [vmem:[%s4 + $0x38] sm:$0xff]
      %v110 = vld [vmem:[%s4 + $0x40] sm:$0xff]
      %v111 = vld [vmem:[%s4 + $0x48] sm:$0xff]
      %v112 = vld [vmem:[%s4 + $0x50] sm:$0xff]
      %v113 = vld [vmem:[%s4 + $0x58] sm:$0xff]
      %v114 = vld [vmem:[%s4 + $0x60] sm:$0xff]
      %v115 = vld [vmem:[%s4 + $0x68] sm:$0xff]
      %v116 = vld [vmem:[%s4 + $0x70] sm:$0xff]
      %v117 = vld [vmem:[%s4 + $0x78] sm:$0xff]
      %118 = vst [vmem:[#allocation13] sm:$0xff] %v102
      %119 = vst [vmem:[#allocation13 + $0x8] sm:$0xff] %v103
      %120 = vst [vmem:[#allocation13 + $0x10] sm:$0xff] %v104
      %121 = vst [vmem:[#allocation13 + $0x18] sm:$0xff] %v105
      %122 = vst [vmem:[#allocation13 + $0x20] sm:$0xff] %v106
      %123 = vst [vmem:[#allocation13 + $0x28] sm:$0xff] %v107
      %124 = vst [vmem:[#allocation13 + $0x30] sm:$0xff] %v108
      %125 = vst [vmem:[#allocation13 + $0x38] sm:$0xff] %v109
      %126 = vst [vmem:[#allocation13 + $0x40] sm:$0xff] %v110
      %127 = vst [vmem:[#allocation13 + $0x48] sm:$0xff] %v111
      %128 = vst [vmem:[#allocation13 + $0x50] sm:$0xff] %v112
      %129 = vst [vmem:[#allocation13 + $0x58] sm:$0xff] %v113
      %130 = vst [vmem:[#allocation13 + $0x60] sm:$0xff] %v114
      %131 = vst [vmem:[#allocation13 + $0x68] sm:$0xff] %v115
      %132 = vst [vmem:[#allocation13 + $0x70] sm:$0xff] %v116
      %133 = vst [vmem:[#allocation13 + $0x78] sm:$0xff] %v117
    $region45: #{_run_kernel.3} parent=1 // pred_fallthru
      _
    %v134 = vld [vmem:[#allocation11] sm:$0xff]
    %v135 = vld [vmem:[#allocation11 + $0x8] sm:$0xff]
    %v136 = vld [vmem:[#allocation11 + $0x10] sm:$0xff]
    %v137 = vld [vmem:[#allocation11 + $0x18] sm:$0xff]
    %v138 = vld [vmem:[#allocation11 + $0x20] sm:$0xff]
    %v139 = vld [vmem:[#allocation11 + $0x28] sm:$0xff]
    %v140 = vld [vmem:[#allocation11 + $0x30] sm:$0xff]
    %v141 = vld [vmem:[#allocation11 + $0x38] sm:$0xff]
    %v142 = vld [vmem:[#allocation11 + $0x40] sm:$0xff]
    %v143 = vld [vmem:[#allocation11 + $0x48] sm:$0xff]
    %v144 = vld [vmem:[#allocation11 + $0x50] sm:$0xff]
    %v145 = vld [vmem:[#allocation11 + $0x58] sm:$0xff]
    %v146 = vld [vmem:[#allocation11 + $0x60] sm:$0xff]
    %v147 = vld [vmem:[#allocation11 + $0x68] sm:$0xff]
    %v148 = vld [vmem:[#allocation11 + $0x70] sm:$0xff]
    %v149 = vld [vmem:[#allocation11 + $0x78] sm:$0xff]
    %v150 = vld [vmem:[#allocation13] sm:$0xff]
    %v151 = vld [vmem:[#allocation13 + $0x8] sm:$0xff]
    %v152 = vld [vmem:[#allocation13 + $0x10] sm:$0xff]
    %v153 = vld [vmem:[#allocation13 + $0x18] sm:$0xff]
    %v154 = vld [vmem:[#allocation13 + $0x20] sm:$0xff]
    %v155 = vld [vmem:[#allocation13 + $0x28] sm:$0xff]
    %v156 = vld [vmem:[#allocation13 + $0x30] sm:$0xff]
    %v157 = vld [vmem:[#allocation13 + $0x38] sm:$0xff]
    %v158 = vld [vmem:[#allocation13 + $0x40] sm:$0xff]
    %v159 = vld [vmem:[#allocation13 + $0x48] sm:$0xff]
    %v160 = vld [vmem:[#allocation13 + $0x50] sm:$0xff]
    %v161 = vld [vmem:[#allocation13 + $0x58] sm:$0xff]
    %v162 = vld [vmem:[#allocation13 + $0x60] sm:$0xff]
    %v163 = vld [vmem:[#allocation13 + $0x68] sm:$0xff]
    %v164 = vld [vmem:[#allocation13 + $0x70] sm:$0xff]
    %v165 = vld [vmem:[#allocation13 + $0x78] sm:$0xff]
    %s166 = sld [smem:[#allocation4]]
    %p167 = scmp.ge.s32.totalorder %s166, 0
    %p168 = scmp.gt.s32.totalorder %s166, 0
    %v169 = vld [vmem:[%s2] sm:$0xff]
    %v170 = vld [vmem:[%s2 + $0x8] sm:$0xff]
    %v171 = vld [vmem:[%s2 + $0x10] sm:$0xff]
    %v172 = vld [vmem:[%s2 + $0x18] sm:$0xff]
    %v173 = vld [vmem:[%s2 + $0x20] sm:$0xff]
    %v174 = vld [vmem:[%s2 + $0x28] sm:$0xff]
    %v175 = vld [vmem:[%s2 + $0x30] sm:$0xff]
    %v176 = vld [vmem:[%s2 + $0x38] sm:$0xff]
    %v177 = vld [vmem:[%s2 + $0x40] sm:$0xff]
    %v178 = vld [vmem:[%s2 + $0x48] sm:$0xff]
    %v179 = vld [vmem:[%s2 + $0x50] sm:$0xff]
    %v180 = vld [vmem:[%s2 + $0x58] sm:$0xff]
    %v181 = vld [vmem:[%s2 + $0x60] sm:$0xff]
    %v182 = vld [vmem:[%s2 + $0x68] sm:$0xff]
    %v183 = vld [vmem:[%s2 + $0x70] sm:$0xff]
    %v184 = vld [vmem:[%s2 + $0x78] sm:$0xff]
    %v185 = vld [vmem:[%s2 + $0x80] sm:$0xff]
    %v186 = vld [vmem:[%s2 + $0x88] sm:$0xff]
    %v187 = vld [vmem:[%s2 + $0x90] sm:$0xff]
    %v188 = vld [vmem:[%s2 + $0x98] sm:$0xff]
    %v189 = vld [vmem:[%s2 + $0xa0] sm:$0xff]
    %v190 = vld [vmem:[%s2 + $0xa8] sm:$0xff]
    %v191 = vld [vmem:[%s2 + $0xb0] sm:$0xff]
    %v192 = vld [vmem:[%s2 + $0xb8] sm:$0xff]
    %v193 = vld [vmem:[%s2 + $0xc0] sm:$0xff]
    %v194 = vld [vmem:[%s2 + $0xc8] sm:$0xff]
    %v195 = vld [vmem:[%s2 + $0xd0] sm:$0xff]
    %v196 = vld [vmem:[%s2 + $0xd8] sm:$0xff]
    %v197 = vld [vmem:[%s2 + $0xe0] sm:$0xff]
    %v198 = vld [vmem:[%s2 + $0xe8] sm:$0xff]
    %v199 = vld [vmem:[%s2 + $0xf0] sm:$0xff]
    %v200 = vld [vmem:[%s2 + $0xf8] sm:$0xff]
    %v201 = vunpack.c.l.bf16 %v169
    %v202 = vunpack.c.h.bf16 %v169
    %v203 = vunpack.c.l.bf16 %v170
    %v204 = vunpack.c.h.bf16 %v170
    %v205 = vunpack.c.l.bf16 %v171
    %v206 = vunpack.c.h.bf16 %v171
    %v207 = vunpack.c.l.bf16 %v172
    %v208 = vunpack.c.h.bf16 %v172
    %v209 = vunpack.c.l.bf16 %v173
    %v210 = vunpack.c.h.bf16 %v173
    %v211 = vunpack.c.l.bf16 %v174
    %v212 = vunpack.c.h.bf16 %v174
    %v213 = vunpack.c.l.bf16 %v175
    %v214 = vunpack.c.h.bf16 %v175
    %v215 = vunpack.c.l.bf16 %v176
    %v216 = vunpack.c.h.bf16 %v176
    %v217 = vunpack.c.l.bf16 %v177
    %v218 = vunpack.c.h.bf16 %v177
    %v219 = vunpack.c.l.bf16 %v178
    %v220 = vunpack.c.h.bf16 %v178
    %v221 = vunpack.c.l.bf16 %v179
    %v222 = vunpack.c.h.bf16 %v179
    %v223 = vunpack.c.l.bf16 %v180
    %v224 = vunpack.c.h.bf16 %v180
    %v225 = vunpack.c.l.bf16 %v181
    %v226 = vunpack.c.h.bf16 %v181
    %v227 = vunpack.c.l.bf16 %v182
    %v228 = vunpack.c.h.bf16 %v182
    %v229 = vunpack.c.l.bf16 %v183
    %v230 = vunpack.c.h.bf16 %v183
    %v231 = vunpack.c.l.bf16 %v184
    %v232 = vunpack.c.h.bf16 %v184
    %v233 = vunpack.c.l.bf16 %v185
    %v234 = vunpack.c.h.bf16 %v185
    %v235 = vunpack.c.l.bf16 %v186
    %v236 = vunpack.c.h.bf16 %v186
    %v237 = vunpack.c.l.bf16 %v187
    %v238 = vunpack.c.h.bf16 %v187
    %v239 = vunpack.c.l.bf16 %v188
    %v240 = vunpack.c.h.bf16 %v188
    %v241 = vunpack.c.l.bf16 %v189
    %v242 = vunpack.c.h.bf16 %v189
    %v243 = vunpack.c.l.bf16 %v190
    %v244 = vunpack.c.h.bf16 %v190
    %v245 = vunpack.c.l.bf16 %v191
    %v246 = vunpack.c.h.bf16 %v191
    %v247 = vunpack.c.l.bf16 %v192
    %v248 = vunpack.c.h.bf16 %v192
    %v249 = vunpack.c.l.bf16 %v193
    %v250 = vunpack.c.h.bf16 %v193
    %v251 = vunpack.c.l.bf16 %v194
    %v252 = vunpack.c.h.bf16 %v194
    %v253 = vunpack.c.l.bf16 %v195
    %v254 = vunpack.c.h.bf16 %v195
    %v255 = vunpack.c.l.bf16 %v196
    %v256 = vunpack.c.h.bf16 %v196
    %v257 = vunpack.c.l.bf16 %v197
    %v258 = vunpack.c.h.bf16 %v197
    %v259 = vunpack.c.l.bf16 %v198
    %v260 = vunpack.c.h.bf16 %v198
    %v261 = vunpack.c.l.bf16 %v199
    %v262 = vunpack.c.h.bf16 %v199
    %v263 = vunpack.c.l.bf16 %v200
    %v264 = vunpack.c.h.bf16 %v200
    %v265 = vpack.c.bf16 %v138, %v134
    %v266 = vpack.c.bf16 %v139, %v135
    %v267 = vpack.c.bf16 %v140, %v136
    %v268 = vpack.c.bf16 %v141, %v137
    %v269 = vpack.c.bf16 %v146, %v142
    %v270 = vpack.c.bf16 %v147, %v143
    %v271 = vpack.c.bf16 %v148, %v144
    %v272 = vpack.c.bf16 %v149, %v145
    %v273 = vld [vmem:[%s5] sm:$0xff]
    %v274 = vld [vmem:[%s5 + $0x8] sm:$0xff]
    %v275 = vld [vmem:[%s5 + $0x10] sm:$0xff]
    %v276 = vld [vmem:[%s5 + $0x18] sm:$0xff]
    %v277 = vld [vmem:[%s5 + $0x20] sm:$0xff]
    %v278 = vld [vmem:[%s5 + $0x28] sm:$0xff]
    %v279 = vld [vmem:[%s5 + $0x30] sm:$0xff]
    %v280 = vld [vmem:[%s5 + $0x38] sm:$0xff]
    %v281 = vld [vmem:[%s5 + $0x40] sm:$0xff]
    %v282 = vld [vmem:[%s5 + $0x48] sm:$0xff]
    %v283 = vld [vmem:[%s5 + $0x50] sm:$0xff]
    %v284 = vld [vmem:[%s5 + $0x58] sm:$0xff]
    %v285 = vld [vmem:[%s5 + $0x60] sm:$0xff]
    %v286 = vld [vmem:[%s5 + $0x68] sm:$0xff]
    %v287 = vld [vmem:[%s5 + $0x70] sm:$0xff]
    %v288 = vld [vmem:[%s5 + $0x78] sm:$0xff]
    %v289 = vld [vmem:[%s5 + $0x80] sm:$0xff]
    %v290 = vld [vmem:[%s5 + $0x88] sm:$0xff]
    %v291 = vld [vmem:[%s5 + $0x90] sm:$0xff]
    %v292 = vld [vmem:[%s5 + $0x98] sm:$0xff]
    %v293 = vld [vmem:[%s5 + $0xa0] sm:$0xff]
    %v294 = vld [vmem:[%s5 + $0xa8] sm:$0xff]
    %v295 = vld [vmem:[%s5 + $0xb0] sm:$0xff]
    %v296 = vld [vmem:[%s5 + $0xb8] sm:$0xff]
    %v297 = vld [vmem:[%s5 + $0xc0] sm:$0xff]
    %v298 = vld [vmem:[%s5 + $0xc8] sm:$0xff]
    %v299 = vld [vmem:[%s5 + $0xd0] sm:$0xff]
    %v300 = vld [vmem:[%s5 + $0xd8] sm:$0xff]
    %v301 = vld [vmem:[%s5 + $0xe0] sm:$0xff]
    %v302 = vld [vmem:[%s5 + $0xe8] sm:$0xff]
    %v303 = vld [vmem:[%s5 + $0xf0] sm:$0xff]
    %v304 = vld [vmem:[%s5 + $0xf8] sm:$0xff]
    %v305 = vld [vmem:[%s5 + $0x100] sm:$0xff]
    %v306 = vld [vmem:[%s5 + $0x108] sm:$0xff]
    %v307 = vld [vmem:[%s5 + $0x110] sm:$0xff]
    %v308 = vld [vmem:[%s5 + $0x118] sm:$0xff]
    %v309 = vld [vmem:[%s5 + $0x120] sm:$0xff]
    %v310 = vld [vmem:[%s5 + $0x128] sm:$0xff]
    %v311 = vld [vmem:[%s5 + $0x130] sm:$0xff]
    %v312 = vld [vmem:[%s5 + $0x138] sm:$0xff]
    %v313 = vld [vmem:[%s5 + $0x140] sm:$0xff]
    %v314 = vld [vmem:[%s5 + $0x148] sm:$0xff]
    %v315 = vld [vmem:[%s5 + $0x150] sm:$0xff]
    %v316 = vld [vmem:[%s5 + $0x158] sm:$0xff]
    %v317 = vld [vmem:[%s5 + $0x160] sm:$0xff]
    %v318 = vld [vmem:[%s5 + $0x168] sm:$0xff]
    %v319 = vld [vmem:[%s5 + $0x170] sm:$0xff]
    %v320 = vld [vmem:[%s5 + $0x178] sm:$0xff]
    %v321 = vld [vmem:[%s5 + $0x180] sm:$0xff]
    %v322 = vld [vmem:[%s5 + $0x188] sm:$0xff]
    %v323 = vld [vmem:[%s5 + $0x190] sm:$0xff]
    %v324 = vld [vmem:[%s5 + $0x198] sm:$0xff]
    %v325 = vld [vmem:[%s5 + $0x1a0] sm:$0xff]
    %v326 = vld [vmem:[%s5 + $0x1a8] sm:$0xff]
    %v327 = vld [vmem:[%s5 + $0x1b0] sm:$0xff]
    %v328 = vld [vmem:[%s5 + $0x1b8] sm:$0xff]
    %v329 = vld [vmem:[%s5 + $0x1c0] sm:$0xff]
    %v330 = vld [vmem:[%s5 + $0x1c8] sm:$0xff]
    %v331 = vld [vmem:[%s5 + $0x1d0] sm:$0xff]
    %v332 = vld [vmem:[%s5 + $0x1d8] sm:$0xff]
    %v333 = vld [vmem:[%s5 + $0x1e0] sm:$0xff]
    %v334 = vld [vmem:[%s5 + $0x1e8] sm:$0xff]
    %v335 = vld [vmem:[%s5 + $0x1f0] sm:$0xff]
    %v336 = vld [vmem:[%s5 + $0x1f8] sm:$0xff]
    %v337 = vld [vmem:[%s5 + $0x200] sm:$0xff]
    %v338 = vld [vmem:[%s5 + $0x208] sm:$0xff]
    %v339 = vld [vmem:[%s5 + $0x210] sm:$0xff]
    %v340 = vld [vmem:[%s5 + $0x218] sm:$0xff]
    %v341 = vld [vmem:[%s5 + $0x220] sm:$0xff]
    %v342 = vld [vmem:[%s5 + $0x228] sm:$0xff]
    %v343 = vld [vmem:[%s5 + $0x230] sm:$0xff]
    %v344 = vld [vmem:[%s5 + $0x238] sm:$0xff]
    %v345 = vld [vmem:[%s5 + $0x240] sm:$0xff]
    %v346 = vld [vmem:[%s5 + $0x248] sm:$0xff]
    %v347 = vld [vmem:[%s5 + $0x250] sm:$0xff]
    %v348 = vld [vmem:[%s5 + $0x258] sm:$0xff]
    %v349 = vld [vmem:[%s5 + $0x260] sm:$0xff]
    %v350 = vld [vmem:[%s5 + $0x268] sm:$0xff]
    %v351 = vld [vmem:[%s5 + $0x270] sm:$0xff]
    %v352 = vld [vmem:[%s5 + $0x278] sm:$0xff]
    %v353 = vld [vmem:[%s5 + $0x280] sm:$0xff]
    %v354 = vld [vmem:[%s5 + $0x288] sm:$0xff]
    %v355 = vld [vmem:[%s5 + $0x290] sm:$0xff]
    %v356 = vld [vmem:[%s5 + $0x298] sm:$0xff]
    %v357 = vld [vmem:[%s5 + $0x2a0] sm:$0xff]
    %v358 = vld [vmem:[%s5 + $0x2a8] sm:$0xff]
    %v359 = vld [vmem:[%s5 + $0x2b0] sm:$0xff]
    %v360 = vld [vmem:[%s5 + $0x2b8] sm:$0xff]
    %v361 = vld [vmem:[%s5 + $0x2c0] sm:$0xff]
    %v362 = vld [vmem:[%s5 + $0x2c8] sm:$0xff]
    %v363 = vld [vmem:[%s5 + $0x2d0] sm:$0xff]
    %v364 = vld [vmem:[%s5 + $0x2d8] sm:$0xff]
    %v365 = vld [vmem:[%s5 + $0x2e0] sm:$0xff]
    %v366 = vld [vmem:[%s5 + $0x2e8] sm:$0xff]
    %v367 = vld [vmem:[%s5 + $0x2f0] sm:$0xff]
    %v368 = vld [vmem:[%s5 + $0x2f8] sm:$0xff]
    %v369 = vld [vmem:[%s5 + $0x300] sm:$0xff]
    %v370 = vld [vmem:[%s5 + $0x308] sm:$0xff]
    %v371 = vld [vmem:[%s5 + $0x310] sm:$0xff]
    %v372 = vld [vmem:[%s5 + $0x318] sm:$0xff]
    %v373 = vld [vmem:[%s5 + $0x320] sm:$0xff]
    %v374 = vld [vmem:[%s5 + $0x328] sm:$0xff]
    %v375 = vld [vmem:[%s5 + $0x330] sm:$0xff]
    %v376 = vld [vmem:[%s5 + $0x338] sm:$0xff]
    %v377 = vld [vmem:[%s5 + $0x340] sm:$0xff]
    %v378 = vld [vmem:[%s5 + $0x348] sm:$0xff]
    %v379 = vld [vmem:[%s5 + $0x350] sm:$0xff]
    %v380 = vld [vmem:[%s5 + $0x358] sm:$0xff]
    %v381 = vld [vmem:[%s5 + $0x360] sm:$0xff]
    %v382 = vld [vmem:[%s5 + $0x368] sm:$0xff]
    %v383 = vld [vmem:[%s5 + $0x370] sm:$0xff]
    %v384 = vld [vmem:[%s5 + $0x378] sm:$0xff]
    %v385 = vld [vmem:[%s5 + $0x380] sm:$0xff]
    %v386 = vld [vmem:[%s5 + $0x388] sm:$0xff]
    %v387 = vld [vmem:[%s5 + $0x390] sm:$0xff]
    %v388 = vld [vmem:[%s5 + $0x398] sm:$0xff]
    %v389 = vld [vmem:[%s5 + $0x3a0] sm:$0xff]
    %v390 = vld [vmem:[%s5 + $0x3a8] sm:$0xff]
    %v391 = vld [vmem:[%s5 + $0x3b0] sm:$0xff]
    %v392 = vld [vmem:[%s5 + $0x3b8] sm:$0xff]
    %v393 = vld [vmem:[%s5 + $0x3c0] sm:$0xff]
    %v394 = vld [vmem:[%s5 + $0x3c8] sm:$0xff]
    %v395 = vld [vmem:[%s5 + $0x3d0] sm:$0xff]
    %v396 = vld [vmem:[%s5 + $0x3d8] sm:$0xff]
    %v397 = vld [vmem:[%s5 + $0x3e0] sm:$0xff]
    %v398 = vld [vmem:[%s5 + $0x3e8] sm:$0xff]
    %v399 = vld [vmem:[%s5 + $0x3f0] sm:$0xff]
    %v400 = vld [vmem:[%s5 + $0x3f8] sm:$0xff]
    %v401 = vld [vmem:[%s5 + $0x400] sm:$0xff]
    %v402 = vld [vmem:[%s5 + $0x408] sm:$0xff]
    %v403 = vld [vmem:[%s5 + $0x410] sm:$0xff]
    %v404 = vld [vmem:[%s5 + $0x418] sm:$0xff]
    %v405 = vld [vmem:[%s5 + $0x420] sm:$0xff]
    %v406 = vld [vmem:[%s5 + $0x428] sm:$0xff]
    %v407 = vld [vmem:[%s5 + $0x430] sm:$0xff]
    %v408 = vld [vmem:[%s5 + $0x438] sm:$0xff]
    %v409 = vld [vmem:[%s5 + $0x440] sm:$0xff]
    %v410 = vld [vmem:[%s5 + $0x448] sm:$0xff]
    %v411 = vld [vmem:[%s5 + $0x450] sm:$0xff]
    %v412 = vld [vmem:[%s5 + $0x458] sm:$0xff]
    %v413 = vld [vmem:[%s5 + $0x460] sm:$0xff]
    %v414 = vld [vmem:[%s5 + $0x468] sm:$0xff]
    %v415 = vld [vmem:[%s5 + $0x470] sm:$0xff]
    %v416 = vld [vmem:[%s5 + $0x478] sm:$0xff]
    %v417 = vld [vmem:[%s5 + $0x480] sm:$0xff]
    %v418 = vld [vmem:[%s5 + $0x488] sm:$0xff]
    %v419 = vld [vmem:[%s5 + $0x490] sm:$0xff]
    %v420 = vld [vmem:[%s5 + $0x498] sm:$0xff]
    %v421 = vld [vmem:[%s5 + $0x4a0] sm:$0xff]
    %v422 = vld [vmem:[%s5 + $0x4a8] sm:$0xff]
    %v423 = vld [vmem:[%s5 + $0x4b0] sm:$0xff]
    %v424 = vld [vmem:[%s5 + $0x4b8] sm:$0xff]
    %v425 = vld [vmem:[%s5 + $0x4c0] sm:$0xff]
    %v426 = vld [vmem:[%s5 + $0x4c8] sm:$0xff]
    %v427 = vld [vmem:[%s5 + $0x4d0] sm:$0xff]
    %v428 = vld [vmem:[%s5 + $0x4d8] sm:$0xff]
    %v429 = vld [vmem:[%s5 + $0x4e0] sm:$0xff]
    %v430 = vld [vmem:[%s5 + $0x4e8] sm:$0xff]
    %v431 = vld [vmem:[%s5 + $0x4f0] sm:$0xff]
    %v432 = vld [vmem:[%s5 + $0x4f8] sm:$0xff]
    %v433 = vld [vmem:[%s5 + $0x500] sm:$0xff]
    %v434 = vld [vmem:[%s5 + $0x508] sm:$0xff]
    %v435 = vld [vmem:[%s5 + $0x510] sm:$0xff]
    %v436 = vld [vmem:[%s5 + $0x518] sm:$0xff]
    %v437 = vld [vmem:[%s5 + $0x520] sm:$0xff]
    %v438 = vld [vmem:[%s5 + $0x528] sm:$0xff]
    %v439 = vld [vmem:[%s5 + $0x530] sm:$0xff]
    %v440 = vld [vmem:[%s5 + $0x538] sm:$0xff]
    %v441 = vld [vmem:[%s5 + $0x540] sm:$0xff]
    %v442 = vld [vmem:[%s5 + $0x548] sm:$0xff]
    %v443 = vld [vmem:[%s5 + $0x550] sm:$0xff]
    %v444 = vld [vmem:[%s5 + $0x558] sm:$0xff]
    %v445 = vld [vmem:[%s5 + $0x560] sm:$0xff]
    %v446 = vld [vmem:[%s5 + $0x568] sm:$0xff]
    %v447 = vld [vmem:[%s5 + $0x570] sm:$0xff]
    %v448 = vld [vmem:[%s5 + $0x578] sm:$0xff]
    %v449 = vld [vmem:[%s5 + $0x580] sm:$0xff]
    %v450 = vld [vmem:[%s5 + $0x588] sm:$0xff]
    %v451 = vld [vmem:[%s5 + $0x590] sm:$0xff]
    %v452 = vld [vmem:[%s5 + $0x598] sm:$0xff]
    %v453 = vld [vmem:[%s5 + $0x5a0] sm:$0xff]
    %v454 = vld [vmem:[%s5 + $0x5a8] sm:$0xff]
    %v455 = vld [vmem:[%s5 + $0x5b0] sm:$0xff]
    %v456 = vld [vmem:[%s5 + $0x5b8] sm:$0xff]
    %v457 = vld [vmem:[%s5 + $0x5c0] sm:$0xff]
    %v458 = vld [vmem:[%s5 + $0x5c8] sm:$0xff]
    %v459 = vld [vmem:[%s5 + $0x5d0] sm:$0xff]
    %v460 = vld [vmem:[%s5 + $0x5d8] sm:$0xff]
    %v461 = vld [vmem:[%s5 + $0x5e0] sm:$0xff]
    %v462 = vld [vmem:[%s5 + $0x5e8] sm:$0xff]
    %v463 = vld [vmem:[%s5 + $0x5f0] sm:$0xff]
    %v464 = vld [vmem:[%s5 + $0x5f8] sm:$0xff]
    %v465 = vld [vmem:[%s5 + $0x600] sm:$0xff]
    %v466 = vld [vmem:[%s5 + $0x608] sm:$0xff]
    %v467 = vld [vmem:[%s5 + $0x610] sm:$0xff]
    %v468 = vld [vmem:[%s5 + $0x618] sm:$0xff]
    %v469 = vld [vmem:[%s5 + $0x620] sm:$0xff]
    %v470 = vld [vmem:[%s5 + $0x628] sm:$0xff]
    %v471 = vld [vmem:[%s5 + $0x630] sm:$0xff]
    %v472 = vld [vmem:[%s5 + $0x638] sm:$0xff]
    %v473 = vld [vmem:[%s5 + $0x640] sm:$0xff]
    %v474 = vld [vmem:[%s5 + $0x648] sm:$0xff]
    %v475 = vld [vmem:[%s5 + $0x650] sm:$0xff]
    %v476 = vld [vmem:[%s5 + $0x658] sm:$0xff]
    %v477 = vld [vmem:[%s5 + $0x660] sm:$0xff]
    %v478 = vld [vmem:[%s5 + $0x668] sm:$0xff]
    %v479 = vld [vmem:[%s5 + $0x670] sm:$0xff]
    %v480 = vld [vmem:[%s5 + $0x678] sm:$0xff]
    %v481 = vld [vmem:[%s5 + $0x680] sm:$0xff]
    %v482 = vld [vmem:[%s5 + $0x688] sm:$0xff]
    %v483 = vld [vmem:[%s5 + $0x690] sm:$0xff]
    %v484 = vld [vmem:[%s5 + $0x698] sm:$0xff]
    %v485 = vld [vmem:[%s5 + $0x6a0] sm:$0xff]
    %v486 = vld [vmem:[%s5 + $0x6a8] sm:$0xff]
    %v487 = vld [vmem:[%s5 + $0x6b0] sm:$0xff]
    %v488 = vld [vmem:[%s5 + $0x6b8] sm:$0xff]
    %v489 = vld [vmem:[%s5 + $0x6c0] sm:$0xff]
    %v490 = vld [vmem:[%s5 + $0x6c8] sm:$0xff]
    %v491 = vld [vmem:[%s5 + $0x6d0] sm:$0xff]
    %v492 = vld [vmem:[%s5 + $0x6d8] sm:$0xff]
    %v493 = vld [vmem:[%s5 + $0x6e0] sm:$0xff]
    %v494 = vld [vmem:[%s5 + $0x6e8] sm:$0xff]
    %v495 = vld [vmem:[%s5 + $0x6f0] sm:$0xff]
    %v496 = vld [vmem:[%s5 + $0x6f8] sm:$0xff]
    %v497 = vld [vmem:[%s5 + $0x700] sm:$0xff]
    %v498 = vld [vmem:[%s5 + $0x708] sm:$0xff]
    %v499 = vld [vmem:[%s5 + $0x710] sm:$0xff]
    %v500 = vld [vmem:[%s5 + $0x718] sm:$0xff]
    %v501 = vld [vmem:[%s5 + $0x720] sm:$0xff]
    %v502 = vld [vmem:[%s5 + $0x728] sm:$0xff]
    %v503 = vld [vmem:[%s5 + $0x730] sm:$0xff]
    %v504 = vld [vmem:[%s5 + $0x738] sm:$0xff]
    %v505 = vld [vmem:[%s5 + $0x740] sm:$0xff]
    %v506 = vld [vmem:[%s5 + $0x748] sm:$0xff]
    %v507 = vld [vmem:[%s5 + $0x750] sm:$0xff]
    %v508 = vld [vmem:[%s5 + $0x758] sm:$0xff]
    %v509 = vld [vmem:[%s5 + $0x760] sm:$0xff]
    %v510 = vld [vmem:[%s5 + $0x768] sm:$0xff]
    %v511 = vld [vmem:[%s5 + $0x770] sm:$0xff]
    %v512 = vld [vmem:[%s5 + $0x778] sm:$0xff]
    %v513 = vld [vmem:[%s5 + $0x780] sm:$0xff]
    %v514 = vld [vmem:[%s5 + $0x788] sm:$0xff]
    %v515 = vld [vmem:[%s5 + $0x790] sm:$0xff]
    %v516 = vld [vmem:[%s5 + $0x798] sm:$0xff]
    %v517 = vld [vmem:[%s5 + $0x7a0] sm:$0xff]
    %v518 = vld [vmem:[%s5 + $0x7a8] sm:$0xff]
    %v519 = vld [vmem:[%s5 + $0x7b0] sm:$0xff]
    %v520 = vld [vmem:[%s5 + $0x7b8] sm:$0xff]
    %v521 = vld [vmem:[%s5 + $0x7c0] sm:$0xff]
    %v522 = vld [vmem:[%s5 + $0x7c8] sm:$0xff]
    %v523 = vld [vmem:[%s5 + $0x7d0] sm:$0xff]
    %v524 = vld [vmem:[%s5 + $0x7d8] sm:$0xff]
    %v525 = vld [vmem:[%s5 + $0x7e0] sm:$0xff]
    %v526 = vld [vmem:[%s5 + $0x7e8] sm:$0xff]
    %v527 = vld [vmem:[%s5 + $0x7f0] sm:$0xff]
    %v528 = vld [vmem:[%s5 + $0x7f8] sm:$0xff]
    %v529 = vld [vmem:[%s5 + $0x800] sm:$0xff]
    %v530 = vld [vmem:[%s5 + $0x808] sm:$0xff]
    %v531 = vld [vmem:[%s5 + $0x810] sm:$0xff]
    %v532 = vld [vmem:[%s5 + $0x818] sm:$0xff]
    %v533 = vld [vmem:[%s5 + $0x820] sm:$0xff]
    %v534 = vld [vmem:[%s5 + $0x828] sm:$0xff]
    %v535 = vld [vmem:[%s5 + $0x830] sm:$0xff]
    %v536 = vld [vmem:[%s5 + $0x838] sm:$0xff]
    %v537 = vld [vmem:[%s5 + $0x840] sm:$0xff]
    %v538 = vld [vmem:[%s5 + $0x848] sm:$0xff]
    %v539 = vld [vmem:[%s5 + $0x850] sm:$0xff]
    %v540 = vld [vmem:[%s5 + $0x858] sm:$0xff]
    %v541 = vld [vmem:[%s5 + $0x860] sm:$0xff]
    %v542 = vld [vmem:[%s5 + $0x868] sm:$0xff]
    %v543 = vld [vmem:[%s5 + $0x870] sm:$0xff]
    %v544 = vld [vmem:[%s5 + $0x878] sm:$0xff]
    %v545 = vld [vmem:[%s5 + $0x880] sm:$0xff]
    %v546 = vld [vmem:[%s5 + $0x888] sm:$0xff]
    %v547 = vld [vmem:[%s5 + $0x890] sm:$0xff]
    %v548 = vld [vmem:[%s5 + $0x898] sm:$0xff]
    %v549 = vld [vmem:[%s5 + $0x8a0] sm:$0xff]
    %v550 = vld [vmem:[%s5 + $0x8a8] sm:$0xff]
    %v551 = vld [vmem:[%s5 + $0x8b0] sm:$0xff]
    %v552 = vld [vmem:[%s5 + $0x8b8] sm:$0xff]
    %v553 = vld [vmem:[%s5 + $0x8c0] sm:$0xff]
    %v554 = vld [vmem:[%s5 + $0x8c8] sm:$0xff]
    %v555 = vld [vmem:[%s5 + $0x8d0] sm:$0xff]
    %v556 = vld [vmem:[%s5 + $0x8d8] sm:$0xff]
    %v557 = vld [vmem:[%s5 + $0x8e0] sm:$0xff]
    %v558 = vld [vmem:[%s5 + $0x8e8] sm:$0xff]
    %v559 = vld [vmem:[%s5 + $0x8f0] sm:$0xff]
    %v560 = vld [vmem:[%s5 + $0x8f8] sm:$0xff]
    %v561 = vld [vmem:[%s5 + $0x900] sm:$0xff]
    %v562 = vld [vmem:[%s5 + $0x908] sm:$0xff]
    %v563 = vld [vmem:[%s5 + $0x910] sm:$0xff]
    %v564 = vld [vmem:[%s5 + $0x918] sm:$0xff]
    %v565 = vld [vmem:[%s5 + $0x920] sm:$0xff]
    %v566 = vld [vmem:[%s5 + $0x928] sm:$0xff]
    %v567 = vld [vmem:[%s5 + $0x930] sm:$0xff]
    %v568 = vld [vmem:[%s5 + $0x938] sm:$0xff]
    %v569 = vld [vmem:[%s5 + $0x940] sm:$0xff]
    %v570 = vld [vmem:[%s5 + $0x948] sm:$0xff]
    %v571 = vld [vmem:[%s5 + $0x950] sm:$0xff]
    %v572 = vld [vmem:[%s5 + $0x958] sm:$0xff]
    %v573 = vld [vmem:[%s5 + $0x960] sm:$0xff]
    %v574 = vld [vmem:[%s5 + $0x968] sm:$0xff]
    %v575 = vld [vmem:[%s5 + $0x970] sm:$0xff]
    %v576 = vld [vmem:[%s5 + $0x978] sm:$0xff]
    %v577 = vld [vmem:[%s5 + $0x980] sm:$0xff]
    %v578 = vld [vmem:[%s5 + $0x988] sm:$0xff]
    %v579 = vld [vmem:[%s5 + $0x990] sm:$0xff]
    %v580 = vld [vmem:[%s5 + $0x998] sm:$0xff]
    %v581 = vld [vmem:[%s5 + $0x9a0] sm:$0xff]
    %v582 = vld [vmem:[%s5 + $0x9a8] sm:$0xff]
    %v583 = vld [vmem:[%s5 + $0x9b0] sm:$0xff]
    %v584 = vld [vmem:[%s5 + $0x9b8] sm:$0xff]
    %v585 = vld [vmem:[%s5 + $0x9c0] sm:$0xff]
    %v586 = vld [vmem:[%s5 + $0x9c8] sm:$0xff]
    %v587 = vld [vmem:[%s5 + $0x9d0] sm:$0xff]
    %v588 = vld [vmem:[%s5 + $0x9d8] sm:$0xff]
    %v589 = vld [vmem:[%s5 + $0x9e0] sm:$0xff]
    %v590 = vld [vmem:[%s5 + $0x9e8] sm:$0xff]
    %v591 = vld [vmem:[%s5 + $0x9f0] sm:$0xff]
    %v592 = vld [vmem:[%s5 + $0x9f8] sm:$0xff]
    %v593 = vld [vmem:[%s5 + $0xa00] sm:$0xff]
    %v594 = vld [vmem:[%s5 + $0xa08] sm:$0xff]
    %v595 = vld [vmem:[%s5 + $0xa10] sm:$0xff]
    %v596 = vld [vmem:[%s5 + $0xa18] sm:$0xff]
    %v597 = vld [vmem:[%s5 + $0xa20] sm:$0xff]
    %v598 = vld [vmem:[%s5 + $0xa28] sm:$0xff]
    %v599 = vld [vmem:[%s5 + $0xa30] sm:$0xff]
    %v600 = vld [vmem:[%s5 + $0xa38] sm:$0xff]
    %v601 = vld [vmem:[%s5 + $0xa40] sm:$0xff]
    %v602 = vld [vmem:[%s5 + $0xa48] sm:$0xff]
    %v603 = vld [vmem:[%s5 + $0xa50] sm:$0xff]
    %v604 = vld [vmem:[%s5 + $0xa58] sm:$0xff]
    %v605 = vld [vmem:[%s5 + $0xa60] sm:$0xff]
    %v606 = vld [vmem:[%s5 + $0xa68] sm:$0xff]
    %v607 = vld [vmem:[%s5 + $0xa70] sm:$0xff]
    %v608 = vld [vmem:[%s5 + $0xa78] sm:$0xff]
    %v609 = vld [vmem:[%s5 + $0xa80] sm:$0xff]
    %v610 = vld [vmem:[%s5 + $0xa88] sm:$0xff]
    %v611 = vld [vmem:[%s5 + $0xa90] sm:$0xff]
    %v612 = vld [vmem:[%s5 + $0xa98] sm:$0xff]
    %v613 = vld [vmem:[%s5 + $0xaa0] sm:$0xff]
    %v614 = vld [vmem:[%s5 + $0xaa8] sm:$0xff]
    %v615 = vld [vmem:[%s5 + $0xab0] sm:$0xff]
    %v616 = vld [vmem:[%s5 + $0xab8] sm:$0xff]
    %v617 = vld [vmem:[%s5 + $0xac0] sm:$0xff]
    %v618 = vld [vmem:[%s5 + $0xac8] sm:$0xff]
    %v619 = vld [vmem:[%s5 + $0xad0] sm:$0xff]
    %v620 = vld [vmem:[%s5 + $0xad8] sm:$0xff]
    %v621 = vld [vmem:[%s5 + $0xae0] sm:$0xff]
    %v622 = vld [vmem:[%s5 + $0xae8] sm:$0xff]
    %v623 = vld [vmem:[%s5 + $0xaf0] sm:$0xff]
    %v624 = vld [vmem:[%s5 + $0xaf8] sm:$0xff]
    %v625 = vld [vmem:[%s5 + $0xb00] sm:$0xff]
    %v626 = vld [vmem:[%s5 + $0xb08] sm:$0xff]
    %v627 = vld [vmem:[%s5 + $0xb10] sm:$0xff]
    %v628 = vld [vmem:[%s5 + $0xb18] sm:$0xff]
    %v629 = vld [vmem:[%s5 + $0xb20] sm:$0xff]
    %v630 = vld [vmem:[%s5 + $0xb28] sm:$0xff]
    %v631 = vld [vmem:[%s5 + $0xb30] sm:$0xff]
    %v632 = vld [vmem:[%s5 + $0xb38] sm:$0xff]
    %v633 = vld [vmem:[%s5 + $0xb40] sm:$0xff]
    %v634 = vld [vmem:[%s5 + $0xb48] sm:$0xff]
    %v635 = vld [vmem:[%s5 + $0xb50] sm:$0xff]
    %v636 = vld [vmem:[%s5 + $0xb58] sm:$0xff]
    %v637 = vld [vmem:[%s5 + $0xb60] sm:$0xff]
    %v638 = vld [vmem:[%s5 + $0xb68] sm:$0xff]
    %v639 = vld [vmem:[%s5 + $0xb70] sm:$0xff]
    %v640 = vld [vmem:[%s5 + $0xb78] sm:$0xff]
    %v641 = vld [vmem:[%s5 + $0xb80] sm:$0xff]
    %v642 = vld [vmem:[%s5 + $0xb88] sm:$0xff]
    %v643 = vld [vmem:[%s5 + $0xb90] sm:$0xff]
    %v644 = vld [vmem:[%s5 + $0xb98] sm:$0xff]
    %v645 = vld [vmem:[%s5 + $0xba0] sm:$0xff]
    %v646 = vld [vmem:[%s5 + $0xba8] sm:$0xff]
    %v647 = vld [vmem:[%s5 + $0xbb0] sm:$0xff]
    %v648 = vld [vmem:[%s5 + $0xbb8] sm:$0xff]
    %v649 = vld [vmem:[%s5 + $0xbc0] sm:$0xff]
    %v650 = vld [vmem:[%s5 + $0xbc8] sm:$0xff]
    %v651 = vld [vmem:[%s5 + $0xbd0] sm:$0xff]
    %v652 = vld [vmem:[%s5 + $0xbd8] sm:$0xff]
    %v653 = vld [vmem:[%s5 + $0xbe0] sm:$0xff]
    %v654 = vld [vmem:[%s5 + $0xbe8] sm:$0xff]
    %v655 = vld [vmem:[%s5 + $0xbf0] sm:$0xff]
    %v656 = vld [vmem:[%s5 + $0xbf8] sm:$0xff]
    %v657 = vld [vmem:[%s5 + $0xc00] sm:$0xff]
    %v658 = vld [vmem:[%s5 + $0xc08] sm:$0xff]
    %v659 = vld [vmem:[%s5 + $0xc10] sm:$0xff]
    %v660 = vld [vmem:[%s5 + $0xc18] sm:$0xff]
    %v661 = vld [vmem:[%s5 + $0xc20] sm:$0xff]
    %v662 = vld [vmem:[%s5 + $0xc28] sm:$0xff]
    %v663 = vld [vmem:[%s5 + $0xc30] sm:$0xff]
    %v664 = vld [vmem:[%s5 + $0xc38] sm:$0xff]
    %v665 = vld [vmem:[%s5 + $0xc40] sm:$0xff]
    %v666 = vld [vmem:[%s5 + $0xc48] sm:$0xff]
    %v667 = vld [vmem:[%s5 + $0xc50] sm:$0xff]
    %v668 = vld [vmem:[%s5 + $0xc58] sm:$0xff]
    %v669 = vld [vmem:[%s5 + $0xc60] sm:$0xff]
    %v670 = vld [vmem:[%s5 + $0xc68] sm:$0xff]
    %v671 = vld [vmem:[%s5 + $0xc70] sm:$0xff]
    %v672 = vld [vmem:[%s5 + $0xc78] sm:$0xff]
    %v673 = vld [vmem:[%s5 + $0xc80] sm:$0xff]
    %v674 = vld [vmem:[%s5 + $0xc88] sm:$0xff]
    %v675 = vld [vmem:[%s5 + $0xc90] sm:$0xff]
    %v676 = vld [vmem:[%s5 + $0xc98] sm:$0xff]
    %v677 = vld [vmem:[%s5 + $0xca0] sm:$0xff]
    %v678 = vld [vmem:[%s5 + $0xca8] sm:$0xff]
    %v679 = vld [vmem:[%s5 + $0xcb0] sm:$0xff]
    %v680 = vld [vmem:[%s5 + $0xcb8] sm:$0xff]
    %v681 = vld [vmem:[%s5 + $0xcc0] sm:$0xff]
    %v682 = vld [vmem:[%s5 + $0xcc8] sm:$0xff]
    %v683 = vld [vmem:[%s5 + $0xcd0] sm:$0xff]
    %v684 = vld [vmem:[%s5 + $0xcd8] sm:$0xff]
    %v685 = vld [vmem:[%s5 + $0xce0] sm:$0xff]
    %v686 = vld [vmem:[%s5 + $0xce8] sm:$0xff]
    %v687 = vld [vmem:[%s5 + $0xcf0] sm:$0xff]
    %v688 = vld [vmem:[%s5 + $0xcf8] sm:$0xff]
    %v689 = vld [vmem:[%s5 + $0xd00] sm:$0xff]
    %v690 = vld [vmem:[%s5 + $0xd08] sm:$0xff]
    %v691 = vld [vmem:[%s5 + $0xd10] sm:$0xff]
    %v692 = vld [vmem:[%s5 + $0xd18] sm:$0xff]
    %v693 = vld [vmem:[%s5 + $0xd20] sm:$0xff]
    %v694 = vld [vmem:[%s5 + $0xd28] sm:$0xff]
    %v695 = vld [vmem:[%s5 + $0xd30] sm:$0xff]
    %v696 = vld [vmem:[%s5 + $0xd38] sm:$0xff]
    %v697 = vld [vmem:[%s5 + $0xd40] sm:$0xff]
    %v698 = vld [vmem:[%s5 + $0xd48] sm:$0xff]
    %v699 = vld [vmem:[%s5 + $0xd50] sm:$0xff]
    %v700 = vld [vmem:[%s5 + $0xd58] sm:$0xff]
    %v701 = vld [vmem:[%s5 + $0xd60] sm:$0xff]
    %v702 = vld [vmem:[%s5 + $0xd68] sm:$0xff]
    %v703 = vld [vmem:[%s5 + $0xd70] sm:$0xff]
    %v704 = vld [vmem:[%s5 + $0xd78] sm:$0xff]
    %v705 = vld [vmem:[%s5 + $0xd80] sm:$0xff]
    %v706 = vld [vmem:[%s5 + $0xd88] sm:$0xff]
    %v707 = vld [vmem:[%s5 + $0xd90] sm:$0xff]
    %v708 = vld [vmem:[%s5 + $0xd98] sm:$0xff]
    %v709 = vld [vmem:[%s5 + $0xda0] sm:$0xff]
    %v710 = vld [vmem:[%s5 + $0xda8] sm:$0xff]
    %v711 = vld [vmem:[%s5 + $0xdb0] sm:$0xff]
    %v712 = vld [vmem:[%s5 + $0xdb8] sm:$0xff]
    %v713 = vld [vmem:[%s5 + $0xdc0] sm:$0xff]
    %v714 = vld [vmem:[%s5 + $0xdc8] sm:$0xff]
    %v715 = vld [vmem:[%s5 + $0xdd0] sm:$0xff]
    %v716 = vld [vmem:[%s5 + $0xdd8] sm:$0xff]
    %v717 = vld [vmem:[%s5 + $0xde0] sm:$0xff]
    %v718 = vld [vmem:[%s5 + $0xde8] sm:$0xff]
    %v719 = vld [vmem:[%s5 + $0xdf0] sm:$0xff]
    %v720 = vld [vmem:[%s5 + $0xdf8] sm:$0xff]
    %v721 = vld [vmem:[%s5 + $0xe00] sm:$0xff]
    %v722 = vld [vmem:[%s5 + $0xe08] sm:$0xff]
    %v723 = vld [vmem:[%s5 + $0xe10] sm:$0xff]
    %v724 = vld [vmem:[%s5 + $0xe18] sm:$0xff]
    %v725 = vld [vmem:[%s5 + $0xe20] sm:$0xff]
    %v726 = vld [vmem:[%s5 + $0xe28] sm:$0xff]
    %v727 = vld [vmem:[%s5 + $0xe30] sm:$0xff]
    %v728 = vld [vmem:[%s5 + $0xe38] sm:$0xff]
    %v729 = vld [vmem:[%s5 + $0xe40] sm:$0xff]
    %v730 = vld [vmem:[%s5 + $0xe48] sm:$0xff]
    %v731 = vld [vmem:[%s5 + $0xe50] sm:$0xff]
    %v732 = vld [vmem:[%s5 + $0xe58] sm:$0xff]
    %v733 = vld [vmem:[%s5 + $0xe60] sm:$0xff]
    %v734 = vld [vmem:[%s5 + $0xe68] sm:$0xff]
    %v735 = vld [vmem:[%s5 + $0xe70] sm:$0xff]
    %v736 = vld [vmem:[%s5 + $0xe78] sm:$0xff]
    %v737 = vld [vmem:[%s5 + $0xe80] sm:$0xff]
    %v738 = vld [vmem:[%s5 + $0xe88] sm:$0xff]
    %v739 = vld [vmem:[%s5 + $0xe90] sm:$0xff]
    %v740 = vld [vmem:[%s5 + $0xe98] sm:$0xff]
    %v741 = vld [vmem:[%s5 + $0xea0] sm:$0xff]
    %v742 = vld [vmem:[%s5 + $0xea8] sm:$0xff]
    %v743 = vld [vmem:[%s5 + $0xeb0] sm:$0xff]
    %v744 = vld [vmem:[%s5 + $0xeb8] sm:$0xff]
    %v745 = vld [vmem:[%s5 + $0xec0] sm:$0xff]
    %v746 = vld [vmem:[%s5 + $0xec8] sm:$0xff]
    %v747 = vld [vmem:[%s5 + $0xed0] sm:$0xff]
    %v748 = vld [vmem:[%s5 + $0xed8] sm:$0xff]
    %v749 = vld [vmem:[%s5 + $0xee0] sm:$0xff]
    %v750 = vld [vmem:[%s5 + $0xee8] sm:$0xff]
    %v751 = vld [vmem:[%s5 + $0xef0] sm:$0xff]
    %v752 = vld [vmem:[%s5 + $0xef8] sm:$0xff]
    %v753 = vld [vmem:[%s5 + $0xf00] sm:$0xff]
    %v754 = vld [vmem:[%s5 + $0xf08] sm:$0xff]
    %v755 = vld [vmem:[%s5 + $0xf10] sm:$0xff]
    %v756 = vld [vmem:[%s5 + $0xf18] sm:$0xff]
    %v757 = vld [vmem:[%s5 + $0xf20] sm:$0xff]
    %v758 = vld [vmem:[%s5 + $0xf28] sm:$0xff]
    %v759 = vld [vmem:[%s5 + $0xf30] sm:$0xff]
    %v760 = vld [vmem:[%s5 + $0xf38] sm:$0xff]
    %v761 = vld [vmem:[%s5 + $0xf40] sm:$0xff]
    %v762 = vld [vmem:[%s5 + $0xf48] sm:$0xff]
    %v763 = vld [vmem:[%s5 + $0xf50] sm:$0xff]
    %v764 = vld [vmem:[%s5 + $0xf58] sm:$0xff]
    %v765 = vld [vmem:[%s5 + $0xf60] sm:$0xff]
    %v766 = vld [vmem:[%s5 + $0xf68] sm:$0xff]
    %v767 = vld [vmem:[%s5 + $0xf70] sm:$0xff]
    %v768 = vld [vmem:[%s5 + $0xf78] sm:$0xff]
    %v769 = vld [vmem:[%s5 + $0xf80] sm:$0xff]
    %v770 = vld [vmem:[%s5 + $0xf88] sm:$0xff]
    %v771 = vld [vmem:[%s5 + $0xf90] sm:$0xff]
    %v772 = vld [vmem:[%s5 + $0xf98] sm:$0xff]
    %v773 = vld [vmem:[%s5 + $0xfa0] sm:$0xff]
    %v774 = vld [vmem:[%s5 + $0xfa8] sm:$0xff]
    %v775 = vld [vmem:[%s5 + $0xfb0] sm:$0xff]
    %v776 = vld [vmem:[%s5 + $0xfb8] sm:$0xff]
    %v777 = vld [vmem:[%s5 + $0xfc0] sm:$0xff]
    %v778 = vld [vmem:[%s5 + $0xfc8] sm:$0xff]
    %v779 = vld [vmem:[%s5 + $0xfd0] sm:$0xff]
    %v780 = vld [vmem:[%s5 + $0xfd8] sm:$0xff]
    %v781 = vld [vmem:[%s5 + $0xfe0] sm:$0xff]
    %v782 = vld [vmem:[%s5 + $0xfe8] sm:$0xff]
    %v783 = vld [vmem:[%s5 + $0xff0] sm:$0xff]
    %v784 = vld [vmem:[%s5 + $0xff8] sm:$0xff]
    %v1297 = vunpack.c.l.b16 %v273
    %v1298 = vunpack.c.h.b16 %v273
    %v1299 = vunpack.c.l.b16 %v274
    %v1300 = vunpack.c.h.b16 %v274
    %v1301 = vunpack.c.l.b16 %v275
    %v1302 = vunpack.c.h.b16 %v275
    %v1303 = vunpack.c.l.b16 %v276
    %v1304 = vunpack.c.h.b16 %v276
    %v1305 = vunpack.c.l.b16 %v277
    %v1306 = vunpack.c.h.b16 %v277
    %v1307 = vunpack.c.l.b16 %v278
    %v1308 = vunpack.c.h.b16 %v278
    %v1309 = vunpack.c.l.b16 %v279
    %v1310 = vunpack.c.h.b16 %v279
    %v1311 = vunpack.c.l.b16 %v280
    %v1312 = vunpack.c.h.b16 %v280
    %v1313 = vunpack.c.l.b16 %v281
    %v1314 = vunpack.c.h.b16 %v281
    %v1315 = vunpack.c.l.b16 %v282
    %v1316 = vunpack.c.h.b16 %v282
    %v1317 = vunpack.c.l.b16 %v283
    %v1318 = vunpack.c.h.b16 %v283
    %v1319 = vunpack.c.l.b16 %v284
    %v1320 = vunpack.c.h.b16 %v284
    %v1321 = vunpack.c.l.b16 %v285
    %v1322 = vunpack.c.h.b16 %v285
    %v1323 = vunpack.c.l.b16 %v286
    %v1324 = vunpack.c.h.b16 %v286
    %v1325 = vunpack.c.l.b16 %v287
    %v1326 = vunpack.c.h.b16 %v287
    %v1327 = vunpack.c.l.b16 %v288
    %v1328 = vunpack.c.h.b16 %v288
    %v1329 = vunpack.c.l.b16 %v289
    %v1330 = vunpack.c.h.b16 %v289
    %v1331 = vunpack.c.l.b16 %v290
    %v1332 = vunpack.c.h.b16 %v290
    %v1333 = vunpack.c.l.b16 %v291
    %v1334 = vunpack.c.h.b16 %v291
    %v1335 = vunpack.c.l.b16 %v292
    %v1336 = vunpack.c.h.b16 %v292
    %v1337 = vunpack.c.l.b16 %v293
    %v1338 = vunpack.c.h.b16 %v293
    %v1339 = vunpack.c.l.b16 %v294
    %v1340 = vunpack.c.h.b16 %v294
    %v1341 = vunpack.c.l.b16 %v295
    %v1342 = vunpack.c.h.b16 %v295
    %v1343 = vunpack.c.l.b16 %v296
    %v1344 = vunpack.c.h.b16 %v296
    %v1345 = vunpack.c.l.b16 %v297
    %v1346 = vunpack.c.h.b16 %v297
    %v1347 = vunpack.c.l.b16 %v298
    %v1348 = vunpack.c.h.b16 %v298
    %v1349 = vunpack.c.l.b16 %v299
    %v1350 = vunpack.c.h.b16 %v299
    %v1351 = vunpack.c.l.b16 %v300
    %v1352 = vunpack.c.h.b16 %v300
    %v1353 = vunpack.c.l.b16 %v301
    %v1354 = vunpack.c.h.b16 %v301
    %v1355 = vunpack.c.l.b16 %v302
    %v1356 = vunpack.c.h.b16 %v302
    %v1357 = vunpack.c.l.b16 %v303
    %v1358 = vunpack.c.h.b16 %v303
    %v1359 = vunpack.c.l.b16 %v304
    %v1360 = vunpack.c.h.b16 %v304
    %v1361 = vunpack.c.l.b16 %v305
    %v1362 = vunpack.c.h.b16 %v305
    %v1363 = vunpack.c.l.b16 %v306
    %v1364 = vunpack.c.h.b16 %v306
    %v1365 = vunpack.c.l.b16 %v307
    %v1366 = vunpack.c.h.b16 %v307
    %v1367 = vunpack.c.l.b16 %v308
    %v1368 = vunpack.c.h.b16 %v308
    %v1369 = vunpack.c.l.b16 %v309
    %v1370 = vunpack.c.h.b16 %v309
    %v1371 = vunpack.c.l.b16 %v310
    %v1372 = vunpack.c.h.b16 %v310
    %v1373 = vunpack.c.l.b16 %v311
    %v1374 = vunpack.c.h.b16 %v311
    %v1375 = vunpack.c.l.b16 %v312
    %v1376 = vunpack.c.h.b16 %v312
    %v1377 = vunpack.c.l.b16 %v313
    %v1378 = vunpack.c.h.b16 %v313
    %v1379 = vunpack.c.l.b16 %v314
    %v1380 = vunpack.c.h.b16 %v314
    %v1381 = vunpack.c.l.b16 %v315
    %v1382 = vunpack.c.h.b16 %v315
    %v1383 = vunpack.c.l.b16 %v316
    %v1384 = vunpack.c.h.b16 %v316
    %v1385 = vunpack.c.l.b16 %v317
    %v1386 = vunpack.c.h.b16 %v317
    %v1387 = vunpack.c.l.b16 %v318
    %v1388 = vunpack.c.h.b16 %v318
    %v1389 = vunpack.c.l.b16 %v319
    %v1390 = vunpack.c.h.b16 %v319
    %v1391 = vunpack.c.l.b16 %v320
    %v1392 = vunpack.c.h.b16 %v320
    %v1393 = vunpack.c.l.b16 %v321
    %v1394 = vunpack.c.h.b16 %v321
    %v1395 = vunpack.c.l.b16 %v322
    %v1396 = vunpack.c.h.b16 %v322
    %v1397 = vunpack.c.l.b16 %v323
    %v1398 = vunpack.c.h.b16 %v323
    %v1399 = vunpack.c.l.b16 %v324
    %v1400 = vunpack.c.h.b16 %v324
    %v1401 = vunpack.c.l.b16 %v325
    %v1402 = vunpack.c.h.b16 %v325
    %v1403 = vunpack.c.l.b16 %v326
    %v1404 = vunpack.c.h.b16 %v326
    %v1405 = vunpack.c.l.b16 %v327
    %v1406 = vunpack.c.h.b16 %v327
    %v1407 = vunpack.c.l.b16 %v328
    %v1408 = vunpack.c.h.b16 %v328
    %v1409 = vunpack.c.l.b16 %v329
    %v1410 = vunpack.c.h.b16 %v329
    %v1411 = vunpack.c.l.b16 %v330
    %v1412 = vunpack.c.h.b16 %v330
    %v1413 = vunpack.c.l.b16 %v331
    %v1414 = vunpack.c.h.b16 %v331
    %v1415 = vunpack.c.l.b16 %v332
    %v1416 = vunpack.c.h.b16 %v332
    %v1417 = vunpack.c.l.b16 %v333
    %v1418 = vunpack.c.h.b16 %v333
    %v1419 = vunpack.c.l.b16 %v334
    %v1420 = vunpack.c.h.b16 %v334
    %v1421 = vunpack.c.l.b16 %v335
    %v1422 = vunpack.c.h.b16 %v335
    %v1423 = vunpack.c.l.b16 %v336
    %v1424 = vunpack.c.h.b16 %v336
    %v1425 = vunpack.c.l.b16 %v337
    %v1426 = vunpack.c.h.b16 %v337
    %v1427 = vunpack.c.l.b16 %v338
    %v1428 = vunpack.c.h.b16 %v338
    %v1429 = vunpack.c.l.b16 %v339
    %v1430 = vunpack.c.h.b16 %v339
    %v1431 = vunpack.c.l.b16 %v340
    %v1432 = vunpack.c.h.b16 %v340
    %v1433 = vunpack.c.l.b16 %v341
    %v1434 = vunpack.c.h.b16 %v341
    %v1435 = vunpack.c.l.b16 %v342
    %v1436 = vunpack.c.h.b16 %v342
    %v1437 = vunpack.c.l.b16 %v343
    %v1438 = vunpack.c.h.b16 %v343
    %v1439 = vunpack.c.l.b16 %v344
    %v1440 = vunpack.c.h.b16 %v344
    %v1441 = vunpack.c.l.b16 %v345
    %v1442 = vunpack.c.h.b16 %v345
    %v1443 = vunpack.c.l.b16 %v346
    %v1444 = vunpack.c.h.b16 %v346
    %v1445 = vunpack.c.l.b16 %v347
    %v1446 = vunpack.c.h.b16 %v347
    %v1447 = vunpack.c.l.b16 %v348
    %v1448 = vunpack.c.h.b16 %v348
    %v1449 = vunpack.c.l.b16 %v349
    %v1450 = vunpack.c.h.b16 %v349
    %v1451 = vunpack.c.l.b16 %v350
    %v1452 = vunpack.c.h.b16 %v350
    %v1453 = vunpack.c.l.b16 %v351
    %v1454 = vunpack.c.h.b16 %v351
    %v1455 = vunpack.c.l.b16 %v352
    %v1456 = vunpack.c.h.b16 %v352
    %v1457 = vunpack.c.l.b16 %v353
    %v1458 = vunpack.c.h.b16 %v353
    %v1459 = vunpack.c.l.b16 %v354
    %v1460 = vunpack.c.h.b16 %v354
    %v1461 = vunpack.c.l.b16 %v355
    %v1462 = vunpack.c.h.b16 %v355
    %v1463 = vunpack.c.l.b16 %v356
    %v1464 = vunpack.c.h.b16 %v356
    %v1465 = vunpack.c.l.b16 %v357
    %v1466 = vunpack.c.h.b16 %v357
    %v1467 = vunpack.c.l.b16 %v358
    %v1468 = vunpack.c.h.b16 %v358
    %v1469 = vunpack.c.l.b16 %v359
    %v1470 = vunpack.c.h.b16 %v359
    %v1471 = vunpack.c.l.b16 %v360
    %v1472 = vunpack.c.h.b16 %v360
    %v1473 = vunpack.c.l.b16 %v361
    %v1474 = vunpack.c.h.b16 %v361
    %v1475 = vunpack.c.l.b16 %v362
    %v1476 = vunpack.c.h.b16 %v362
    %v1477 = vunpack.c.l.b16 %v363
    %v1478 = vunpack.c.h.b16 %v363
    %v1479 = vunpack.c.l.b16 %v364
    %v1480 = vunpack.c.h.b16 %v364
    %v1481 = vunpack.c.l.b16 %v365
    %v1482 = vunpack.c.h.b16 %v365
    %v1483 = vunpack.c.l.b16 %v366
    %v1484 = vunpack.c.h.b16 %v366
    %v1485 = vunpack.c.l.b16 %v367
    %v1486 = vunpack.c.h.b16 %v367
    %v1487 = vunpack.c.l.b16 %v368
    %v1488 = vunpack.c.h.b16 %v368
    %v1489 = vunpack.c.l.b16 %v369
    %v1490 = vunpack.c.h.b16 %v369
    %v1491 = vunpack.c.l.b16 %v370
    %v1492 = vunpack.c.h.b16 %v370
    %v1493 = vunpack.c.l.b16 %v371
    %v1494 = vunpack.c.h.b16 %v371
    %v1495 = vunpack.c.l.b16 %v372
    %v1496 = vunpack.c.h.b16 %v372
    %v1497 = vunpack.c.l.b16 %v373
    %v1498 = vunpack.c.h.b16 %v373
    %v1499 = vunpack.c.l.b16 %v374
    %v1500 = vunpack.c.h.b16 %v374
    %v1501 = vunpack.c.l.b16 %v375
    %v1502 = vunpack.c.h.b16 %v375
    %v1503 = vunpack.c.l.b16 %v376
    %v1504 = vunpack.c.h.b16 %v376
    %v1505 = vunpack.c.l.b16 %v377
    %v1506 = vunpack.c.h.b16 %v377
    %v1507 = vunpack.c.l.b16 %v378
    %v1508 = vunpack.c.h.b16 %v378
    %v1509 = vunpack.c.l.b16 %v379
    %v1510 = vunpack.c.h.b16 %v379
    %v1511 = vunpack.c.l.b16 %v380
    %v1512 = vunpack.c.h.b16 %v380
    %v1513 = vunpack.c.l.b16 %v381
    %v1514 = vunpack.c.h.b16 %v381
    %v1515 = vunpack.c.l.b16 %v382
    %v1516 = vunpack.c.h.b16 %v382
    %v1517 = vunpack.c.l.b16 %v383
    %v1518 = vunpack.c.h.b16 %v383
    %v1519 = vunpack.c.l.b16 %v384
    %v1520 = vunpack.c.h.b16 %v384
    %v1521 = vunpack.c.l.b16 %v385
    %v1522 = vunpack.c.h.b16 %v385
    %v1523 = vunpack.c.l.b16 %v386
    %v1524 = vunpack.c.h.b16 %v386
    %v1525 = vunpack.c.l.b16 %v387
    %v1526 = vunpack.c.h.b16 %v387
    %v1527 = vunpack.c.l.b16 %v388
    %v1528 = vunpack.c.h.b16 %v388
    %v1529 = vunpack.c.l.b16 %v389
    %v1530 = vunpack.c.h.b16 %v389
    %v1531 = vunpack.c.l.b16 %v390
    %v1532 = vunpack.c.h.b16 %v390
    %v1533 = vunpack.c.l.b16 %v391
    %v1534 = vunpack.c.h.b16 %v391
    %v1535 = vunpack.c.l.b16 %v392
    %v1536 = vunpack.c.h.b16 %v392
    %v1537 = vunpack.c.l.b16 %v393
    %v1538 = vunpack.c.h.b16 %v393
    %v1539 = vunpack.c.l.b16 %v394
    %v1540 = vunpack.c.h.b16 %v394
    %v1541 = vunpack.c.l.b16 %v395
    %v1542 = vunpack.c.h.b16 %v395
    %v1543 = vunpack.c.l.b16 %v396
    %v1544 = vunpack.c.h.b16 %v396
    %v1545 = vunpack.c.l.b16 %v397
    %v1546 = vunpack.c.h.b16 %v397
    %v1547 = vunpack.c.l.b16 %v398
    %v1548 = vunpack.c.h.b16 %v398
    %v1549 = vunpack.c.l.b16 %v399
    %v1550 = vunpack.c.h.b16 %v399
    %v1551 = vunpack.c.l.b16 %v400
    %v1552 = vunpack.c.h.b16 %v400
    %v1553 = vunpack.c.l.b16 %v401
    %v1554 = vunpack.c.h.b16 %v401
    %v1555 = vunpack.c.l.b16 %v402
    %v1556 = vunpack.c.h.b16 %v402
    %v1557 = vunpack.c.l.b16 %v403
    %v1558 = vunpack.c.h.b16 %v403
    %v1559 = vunpack.c.l.b16 %v404
    %v1560 = vunpack.c.h.b16 %v404
    %v1561 = vunpack.c.l.b16 %v405
    %v1562 = vunpack.c.h.b16 %v405
    %v1563 = vunpack.c.l.b16 %v406
    %v1564 = vunpack.c.h.b16 %v406
    %v1565 = vunpack.c.l.b16 %v407
    %v1566 = vunpack.c.h.b16 %v407
    %v1567 = vunpack.c.l.b16 %v408
    %v1568 = vunpack.c.h.b16 %v408
    %v1569 = vunpack.c.l.b16 %v409
    %v1570 = vunpack.c.h.b16 %v409
    %v1571 = vunpack.c.l.b16 %v410
    %v1572 = vunpack.c.h.b16 %v410
    %v1573 = vunpack.c.l.b16 %v411
    %v1574 = vunpack.c.h.b16 %v411
    %v1575 = vunpack.c.l.b16 %v412
    %v1576 = vunpack.c.h.b16 %v412
    %v1577 = vunpack.c.l.b16 %v413
    %v1578 = vunpack.c.h.b16 %v413
    %v1579 = vunpack.c.l.b16 %v414
    %v1580 = vunpack.c.h.b16 %v414
    %v1581 = vunpack.c.l.b16 %v415
    %v1582 = vunpack.c.h.b16 %v415
    %v1583 = vunpack.c.l.b16 %v416
    %v1584 = vunpack.c.h.b16 %v416
    %v1585 = vunpack.c.l.b16 %v417
    %v1586 = vunpack.c.h.b16 %v417
    %v1587 = vunpack.c.l.b16 %v418
    %v1588 = vunpack.c.h.b16 %v418
    %v1589 = vunpack.c.l.b16 %v419
    %v1590 = vunpack.c.h.b16 %v419
    %v1591 = vunpack.c.l.b16 %v420
    %v1592 = vunpack.c.h.b16 %v420
    %v1593 = vunpack.c.l.b16 %v421
    %v1594 = vunpack.c.h.b16 %v421
    %v1595 = vunpack.c.l.b16 %v422
    %v1596 = vunpack.c.h.b16 %v422
    %v1597 = vunpack.c.l.b16 %v423
    %v1598 = vunpack.c.h.b16 %v423
    %v1599 = vunpack.c.l.b16 %v424
    %v1600 = vunpack.c.h.b16 %v424
    %v1601 = vunpack.c.l.b16 %v425
    %v1602 = vunpack.c.h.b16 %v425
    %v1603 = vunpack.c.l.b16 %v426
    %v1604 = vunpack.c.h.b16 %v426
    %v1605 = vunpack.c.l.b16 %v427
    %v1606 = vunpack.c.h.b16 %v427
    %v1607 = vunpack.c.l.b16 %v428
    %v1608 = vunpack.c.h.b16 %v428
    %v1609 = vunpack.c.l.b16 %v429
    %v1610 = vunpack.c.h.b16 %v429
    %v1611 = vunpack.c.l.b16 %v430
    %v1612 = vunpack.c.h.b16 %v430
    %v1613 = vunpack.c.l.b16 %v431
    %v1614 = vunpack.c.h.b16 %v431
    %v1615 = vunpack.c.l.b16 %v432
    %v1616 = vunpack.c.h.b16 %v432
    %v1617 = vunpack.c.l.b16 %v433
    %v1618 = vunpack.c.h.b16 %v433
    %v1619 = vunpack.c.l.b16 %v434
    %v1620 = vunpack.c.h.b16 %v434
    %v1621 = vunpack.c.l.b16 %v435
    %v1622 = vunpack.c.h.b16 %v435
    %v1623 = vunpack.c.l.b16 %v436
    %v1624 = vunpack.c.h.b16 %v436
    %v1625 = vunpack.c.l.b16 %v437
    %v1626 = vunpack.c.h.b16 %v437
    %v1627 = vunpack.c.l.b16 %v438
    %v1628 = vunpack.c.h.b16 %v438
    %v1629 = vunpack.c.l.b16 %v439
    %v1630 = vunpack.c.h.b16 %v439
    %v1631 = vunpack.c.l.b16 %v440
    %v1632 = vunpack.c.h.b16 %v440
    %v1633 = vunpack.c.l.b16 %v441
    %v1634 = vunpack.c.h.b16 %v441
    %v1635 = vunpack.c.l.b16 %v442
    %v1636 = vunpack.c.h.b16 %v442
    %v1637 = vunpack.c.l.b16 %v443
    %v1638 = vunpack.c.h.b16 %v443
    %v1639 = vunpack.c.l.b16 %v444
    %v1640 = vunpack.c.h.b16 %v444
    %v1641 = vunpack.c.l.b16 %v445
    %v1642 = vunpack.c.h.b16 %v445
    %v1643 = vunpack.c.l.b16 %v446
    %v1644 = vunpack.c.h.b16 %v446
    %v1645 = vunpack.c.l.b16 %v447
    %v1646 = vunpack.c.h.b16 %v447
    %v1647 = vunpack.c.l.b16 %v448
    %v1648 = vunpack.c.h.b16 %v448
    %v1649 = vunpack.c.l.b16 %v449
    %v1650 = vunpack.c.h.b16 %v449
    %v1651 = vunpack.c.l.b16 %v450
    %v1652 = vunpack.c.h.b16 %v450
    %v1653 = vunpack.c.l.b16 %v451
    %v1654 = vunpack.c.h.b16 %v451
    %v1655 = vunpack.c.l.b16 %v452
    %v1656 = vunpack.c.h.b16 %v452
    %v1657 = vunpack.c.l.b16 %v453
    %v1658 = vunpack.c.h.b16 %v453
    %v1659 = vunpack.c.l.b16 %v454
    %v1660 = vunpack.c.h.b16 %v454
    %v1661 = vunpack.c.l.b16 %v455
    %v1662 = vunpack.c.h.b16 %v455
    %v1663 = vunpack.c.l.b16 %v456
    %v1664 = vunpack.c.h.b16 %v456
    %v1665 = vunpack.c.l.b16 %v457
    %v1666 = vunpack.c.h.b16 %v457
    %v1667 = vunpack.c.l.b16 %v458
    %v1668 = vunpack.c.h.b16 %v458
    %v1669 = vunpack.c.l.b16 %v459
    %v1670 = vunpack.c.h.b16 %v459
    %v1671 = vunpack.c.l.b16 %v460
    %v1672 = vunpack.c.h.b16 %v460
    %v1673 = vunpack.c.l.b16 %v461
    %v1674 = vunpack.c.h.b16 %v461
    %v1675 = vunpack.c.l.b16 %v462
    %v1676 = vunpack.c.h.b16 %v462
    %v1677 = vunpack.c.l.b16 %v463
    %v1678 = vunpack.c.h.b16 %v463
    %v1679 = vunpack.c.l.b16 %v464
    %v1680 = vunpack.c.h.b16 %v464
    %v1681 = vunpack.c.l.b16 %v465
    %v1682 = vunpack.c.h.b16 %v465
    %v1683 = vunpack.c.l.b16 %v466
    %v1684 = vunpack.c.h.b16 %v466
    %v1685 = vunpack.c.l.b16 %v467
    %v1686 = vunpack.c.h.b16 %v467
    %v1687 = vunpack.c.l.b16 %v468
    %v1688 = vunpack.c.h.b16 %v468
    %v1689 = vunpack.c.l.b16 %v469
    %v1690 = vunpack.c.h.b16 %v469
    %v1691 = vunpack.c.l.b16 %v470
    %v1692 = vunpack.c.h.b16 %v470
    %v1693 = vunpack.c.l.b16 %v471
    %v1694 = vunpack.c.h.b16 %v471
    %v1695 = vunpack.c.l.b16 %v472
    %v1696 = vunpack.c.h.b16 %v472
    %v1697 = vunpack.c.l.b16 %v473
    %v1698 = vunpack.c.h.b16 %v473
    %v1699 = vunpack.c.l.b16 %v474
    %v1700 = vunpack.c.h.b16 %v474
    %v1701 = vunpack.c.l.b16 %v475
    %v1702 = vunpack.c.h.b16 %v475
    %v1703 = vunpack.c.l.b16 %v476
    %v1704 = vunpack.c.h.b16 %v476
    %v1705 = vunpack.c.l.b16 %v477
    %v1706 = vunpack.c.h.b16 %v477
    %v1707 = vunpack.c.l.b16 %v478
    %v1708 = vunpack.c.h.b16 %v478
    %v1709 = vunpack.c.l.b16 %v479
    %v1710 = vunpack.c.h.b16 %v479
    %v1711 = vunpack.c.l.b16 %v480
    %v1712 = vunpack.c.h.b16 %v480
    %v1713 = vunpack.c.l.b16 %v481
    %v1714 = vunpack.c.h.b16 %v481
    %v1715 = vunpack.c.l.b16 %v482
    %v1716 = vunpack.c.h.b16 %v482
    %v1717 = vunpack.c.l.b16 %v483
    %v1718 = vunpack.c.h.b16 %v483
    %v1719 = vunpack.c.l.b16 %v484
    %v1720 = vunpack.c.h.b16 %v484
    %v1721 = vunpack.c.l.b16 %v485
    %v1722 = vunpack.c.h.b16 %v485
    %v1723 = vunpack.c.l.b16 %v486
    %v1724 = vunpack.c.h.b16 %v486
    %v1725 = vunpack.c.l.b16 %v487
    %v1726 = vunpack.c.h.b16 %v487
    %v1727 = vunpack.c.l.b16 %v488
    %v1728 = vunpack.c.h.b16 %v488
    %v1729 = vunpack.c.l.b16 %v489
    %v1730 = vunpack.c.h.b16 %v489
    %v1731 = vunpack.c.l.b16 %v490
    %v1732 = vunpack.c.h.b16 %v490
    %v1733 = vunpack.c.l.b16 %v491
    %v1734 = vunpack.c.h.b16 %v491
    %v1735 = vunpack.c.l.b16 %v492
    %v1736 = vunpack.c.h.b16 %v492
    %v1737 = vunpack.c.l.b16 %v493
    %v1738 = vunpack.c.h.b16 %v493
    %v1739 = vunpack.c.l.b16 %v494
    %v1740 = vunpack.c.h.b16 %v494
    %v1741 = vunpack.c.l.b16 %v495
    %v1742 = vunpack.c.h.b16 %v495
    %v1743 = vunpack.c.l.b16 %v496
    %v1744 = vunpack.c.h.b16 %v496
    %v1745 = vunpack.c.l.b16 %v497
    %v1746 = vunpack.c.h.b16 %v497
    %v1747 = vunpack.c.l.b16 %v498
    %v1748 = vunpack.c.h.b16 %v498
    %v1749 = vunpack.c.l.b16 %v499
    %v1750 = vunpack.c.h.b16 %v499
    %v1751 = vunpack.c.l.b16 %v500
    %v1752 = vunpack.c.h.b16 %v500
    %v1753 = vunpack.c.l.b16 %v501
    %v1754 = vunpack.c.h.b16 %v501
    %v1755 = vunpack.c.l.b16 %v502
    %v1756 = vunpack.c.h.b16 %v502
    %v1757 = vunpack.c.l.b16 %v503
    %v1758 = vunpack.c.h.b16 %v503
    %v1759 = vunpack.c.l.b16 %v504
    %v1760 = vunpack.c.h.b16 %v504
    %v1761 = vunpack.c.l.b16 %v505
    %v1762 = vunpack.c.h.b16 %v505
    %v1763 = vunpack.c.l.b16 %v506
    %v1764 = vunpack.c.h.b16 %v506
    %v1765 = vunpack.c.l.b16 %v507
    %v1766 = vunpack.c.h.b16 %v507
    %v1767 = vunpack.c.l.b16 %v508
    %v1768 = vunpack.c.h.b16 %v508
    %v1769 = vunpack.c.l.b16 %v509
    %v1770 = vunpack.c.h.b16 %v509
    %v1771 = vunpack.c.l.b16 %v510
    %v1772 = vunpack.c.h.b16 %v510
    %v1773 = vunpack.c.l.b16 %v511
    %v1774 = vunpack.c.h.b16 %v511
    %v1775 = vunpack.c.l.b16 %v512
    %v1776 = vunpack.c.h.b16 %v512
    %v1777 = vunpack.c.l.b16 %v513
    %v1778 = vunpack.c.h.b16 %v513
    %v1779 = vunpack.c.l.b16 %v514
    %v1780 = vunpack.c.h.b16 %v514
    %v1781 = vunpack.c.l.b16 %v515
    %v1782 = vunpack.c.h.b16 %v515
    %v1783 = vunpack.c.l.b16 %v516
    %v1784 = vunpack.c.h.b16 %v516
    %v1785 = vunpack.c.l.b16 %v517
    %v1786 = vunpack.c.h.b16 %v517
    %v1787 = vunpack.c.l.b16 %v518
    %v1788 = vunpack.c.h.b16 %v518
    %v1789 = vunpack.c.l.b16 %v519
    %v1790 = vunpack.c.h.b16 %v519
    %v1791 = vunpack.c.l.b16 %v520
    %v1792 = vunpack.c.h.b16 %v520
    %v1793 = vunpack.c.l.b16 %v521
    %v1794 = vunpack.c.h.b16 %v521
    %v1795 = vunpack.c.l.b16 %v522
    %v1796 = vunpack.c.h.b16 %v522
    %v1797 = vunpack.c.l.b16 %v523
    %v1798 = vunpack.c.h.b16 %v523
    %v1799 = vunpack.c.l.b16 %v524
    %v1800 = vunpack.c.h.b16 %v524
    %v1801 = vunpack.c.l.b16 %v525
    %v1802 = vunpack.c.h.b16 %v525
    %v1803 = vunpack.c.l.b16 %v526
    %v1804 = vunpack.c.h.b16 %v526
    %v1805 = vunpack.c.l.b16 %v527
    %v1806 = vunpack.c.h.b16 %v527
    %v1807 = vunpack.c.l.b16 %v528
    %v1808 = vunpack.c.h.b16 %v528
    %v1809 = vunpack.c.l.b16 %v529
    %v1810 = vunpack.c.h.b16 %v529
    %v1811 = vunpack.c.l.b16 %v530
    %v1812 = vunpack.c.h.b16 %v530
    %v1813 = vunpack.c.l.b16 %v531
    %v1814 = vunpack.c.h.b16 %v531
    %v1815 = vunpack.c.l.b16 %v532
    %v1816 = vunpack.c.h.b16 %v532
    %v1817 = vunpack.c.l.b16 %v533
    %v1818 = vunpack.c.h.b16 %v533
    %v1819 = vunpack.c.l.b16 %v534
    %v1820 = vunpack.c.h.b16 %v534
    %v1821 = vunpack.c.l.b16 %v535
    %v1822 = vunpack.c.h.b16 %v535
    %v1823 = vunpack.c.l.b16 %v536
    %v1824 = vunpack.c.h.b16 %v536
    %v1825 = vunpack.c.l.b16 %v537
    %v1826 = vunpack.c.h.b16 %v537
    %v1827 = vunpack.c.l.b16 %v538
    %v1828 = vunpack.c.h.b16 %v538
    %v1829 = vunpack.c.l.b16 %v539
    %v1830 = vunpack.c.h.b16 %v539
    %v1831 = vunpack.c.l.b16 %v540
    %v1832 = vunpack.c.h.b16 %v540
    %v1833 = vunpack.c.l.b16 %v541
    %v1834 = vunpack.c.h.b16 %v541
    %v1835 = vunpack.c.l.b16 %v542
    %v1836 = vunpack.c.h.b16 %v542
    %v1837 = vunpack.c.l.b16 %v543
    %v1838 = vunpack.c.h.b16 %v543
    %v1839 = vunpack.c.l.b16 %v544
    %v1840 = vunpack.c.h.b16 %v544
    %v1841 = vunpack.c.l.b16 %v545
    %v1842 = vunpack.c.h.b16 %v545
    %v1843 = vunpack.c.l.b16 %v546
    %v1844 = vunpack.c.h.b16 %v546
    %v1845 = vunpack.c.l.b16 %v547
    %v1846 = vunpack.c.h.b16 %v547
    %v1847 = vunpack.c.l.b16 %v548
    %v1848 = vunpack.c.h.b16 %v548
    %v1849 = vunpack.c.l.b16 %v549
    %v1850 = vunpack.c.h.b16 %v549
    %v1851 = vunpack.c.l.b16 %v550
    %v1852 = vunpack.c.h.b16 %v550
    %v1853 = vunpack.c.l.b16 %v551
    %v1854 = vunpack.c.h.b16 %v551
    %v1855 = vunpack.c.l.b16 %v552
    %v1856 = vunpack.c.h.b16 %v552
    %v1857 = vunpack.c.l.b16 %v553
    %v1858 = vunpack.c.h.b16 %v553
    %v1859 = vunpack.c.l.b16 %v554
    %v1860 = vunpack.c.h.b16 %v554
    %v1861 = vunpack.c.l.b16 %v555
    %v1862 = vunpack.c.h.b16 %v555
    %v1863 = vunpack.c.l.b16 %v556
    %v1864 = vunpack.c.h.b16 %v556
    %v1865 = vunpack.c.l.b16 %v557
    %v1866 = vunpack.c.h.b16 %v557
    %v1867 = vunpack.c.l.b16 %v558
    %v1868 = vunpack.c.h.b16 %v558
    %v1869 = vunpack.c.l.b16 %v559
    %v1870 = vunpack.c.h.b16 %v559
    %v1871 = vunpack.c.l.b16 %v560
    %v1872 = vunpack.c.h.b16 %v560
    %v1873 = vunpack.c.l.b16 %v561
    %v1874 = vunpack.c.h.b16 %v561
    %v1875 = vunpack.c.l.b16 %v562
    %v1876 = vunpack.c.h.b16 %v562
    %v1877 = vunpack.c.l.b16 %v563
    %v1878 = vunpack.c.h.b16 %v563
    %v1879 = vunpack.c.l.b16 %v564
    %v1880 = vunpack.c.h.b16 %v564
    %v1881 = vunpack.c.l.b16 %v565
    %v1882 = vunpack.c.h.b16 %v565
    %v1883 = vunpack.c.l.b16 %v566
    %v1884 = vunpack.c.h.b16 %v566
    %v1885 = vunpack.c.l.b16 %v567
    %v1886 = vunpack.c.h.b16 %v567
    %v1887 = vunpack.c.l.b16 %v568
    %v1888 = vunpack.c.h.b16 %v568
    %v1889 = vunpack.c.l.b16 %v569
    %v1890 = vunpack.c.h.b16 %v569
    %v1891 = vunpack.c.l.b16 %v570
    %v1892 = vunpack.c.h.b16 %v570
    %v1893 = vunpack.c.l.b16 %v571
    %v1894 = vunpack.c.h.b16 %v571
    %v1895 = vunpack.c.l.b16 %v572
    %v1896 = vunpack.c.h.b16 %v572
    %v1897 = vunpack.c.l.b16 %v573
    %v1898 = vunpack.c.h.b16 %v573
    %v1899 = vunpack.c.l.b16 %v574
    %v1900 = vunpack.c.h.b16 %v574
    %v1901 = vunpack.c.l.b16 %v575
    %v1902 = vunpack.c.h.b16 %v575
    %v1903 = vunpack.c.l.b16 %v576
    %v1904 = vunpack.c.h.b16 %v576
    %v1905 = vunpack.c.l.b16 %v577
    %v1906 = vunpack.c.h.b16 %v577
    %v1907 = vunpack.c.l.b16 %v578
    %v1908 = vunpack.c.h.b16 %v578
    %v1909 = vunpack.c.l.b16 %v579
    %v1910 = vunpack.c.h.b16 %v579
    %v1911 = vunpack.c.l.b16 %v580
    %v1912 = vunpack.c.h.b16 %v580
    %v1913 = vunpack.c.l.b16 %v581
    %v1914 = vunpack.c.h.b16 %v581
    %v1915 = vunpack.c.l.b16 %v582
    %v1916 = vunpack.c.h.b16 %v582
    %v1917 = vunpack.c.l.b16 %v583
    %v1918 = vunpack.c.h.b16 %v583
    %v1919 = vunpack.c.l.b16 %v584
    %v1920 = vunpack.c.h.b16 %v584
    %v1921 = vunpack.c.l.b16 %v585
    %v1922 = vunpack.c.h.b16 %v585
    %v1923 = vunpack.c.l.b16 %v586
    %v1924 = vunpack.c.h.b16 %v586
    %v1925 = vunpack.c.l.b16 %v587
    %v1926 = vunpack.c.h.b16 %v587
    %v1927 = vunpack.c.l.b16 %v588
    %v1928 = vunpack.c.h.b16 %v588
    %v1929 = vunpack.c.l.b16 %v589
    %v1930 = vunpack.c.h.b16 %v589
    %v1931 = vunpack.c.l.b16 %v590
    %v1932 = vunpack.c.h.b16 %v590
    %v1933 = vunpack.c.l.b16 %v591
    %v1934 = vunpack.c.h.b16 %v591
    %v1935 = vunpack.c.l.b16 %v592
    %v1936 = vunpack.c.h.b16 %v592
    %v1937 = vunpack.c.l.b16 %v593
    %v1938 = vunpack.c.h.b16 %v593
    %v1939 = vunpack.c.l.b16 %v594
    %v1940 = vunpack.c.h.b16 %v594
    %v1941 = vunpack.c.l.b16 %v595
    %v1942 = vunpack.c.h.b16 %v595
    %v1943 = vunpack.c.l.b16 %v596
    %v1944 = vunpack.c.h.b16 %v596
    %v1945 = vunpack.c.l.b16 %v597
    %v1946 = vunpack.c.h.b16 %v597
    %v1947 = vunpack.c.l.b16 %v598
    %v1948 = vunpack.c.h.b16 %v598
    %v1949 = vunpack.c.l.b16 %v599
    %v1950 = vunpack.c.h.b16 %v599
    %v1951 = vunpack.c.l.b16 %v600
    %v1952 = vunpack.c.h.b16 %v600
    %v1953 = vunpack.c.l.b16 %v601
    %v1954 = vunpack.c.h.b16 %v601
    %v1955 = vunpack.c.l.b16 %v602
    %v1956 = vunpack.c.h.b16 %v602
    %v1957 = vunpack.c.l.b16 %v603
    %v1958 = vunpack.c.h.b16 %v603
    %v1959 = vunpack.c.l.b16 %v604
    %v1960 = vunpack.c.h.b16 %v604
    %v1961 = vunpack.c.l.b16 %v605
    %v1962 = vunpack.c.h.b16 %v605
    %v1963 = vunpack.c.l.b16 %v606
    %v1964 = vunpack.c.h.b16 %v606
    %v1965 = vunpack.c.l.b16 %v607
    %v1966 = vunpack.c.h.b16 %v607
    %v1967 = vunpack.c.l.b16 %v608
    %v1968 = vunpack.c.h.b16 %v608
    %v1969 = vunpack.c.l.b16 %v609
    %v1970 = vunpack.c.h.b16 %v609
    %v1971 = vunpack.c.l.b16 %v610
    %v1972 = vunpack.c.h.b16 %v610
    %v1973 = vunpack.c.l.b16 %v611
    %v1974 = vunpack.c.h.b16 %v611
    %v1975 = vunpack.c.l.b16 %v612
    %v1976 = vunpack.c.h.b16 %v612
    %v1977 = vunpack.c.l.b16 %v613
    %v1978 = vunpack.c.h.b16 %v613
    %v1979 = vunpack.c.l.b16 %v614
    %v1980 = vunpack.c.h.b16 %v614
    %v1981 = vunpack.c.l.b16 %v615
    %v1982 = vunpack.c.h.b16 %v615
    %v1983 = vunpack.c.l.b16 %v616
    %v1984 = vunpack.c.h.b16 %v616
    %v1985 = vunpack.c.l.b16 %v617
    %v1986 = vunpack.c.h.b16 %v617
    %v1987 = vunpack.c.l.b16 %v618
    %v1988 = vunpack.c.h.b16 %v618
    %v1989 = vunpack.c.l.b16 %v619
    %v1990 = vunpack.c.h.b16 %v619
    %v1991 = vunpack.c.l.b16 %v620
    %v1992 = vunpack.c.h.b16 %v620
    %v1993 = vunpack.c.l.b16 %v621
    %v1994 = vunpack.c.h.b16 %v621
    %v1995 = vunpack.c.l.b16 %v622
    %v1996 = vunpack.c.h.b16 %v622
    %v1997 = vunpack.c.l.b16 %v623
    %v1998 = vunpack.c.h.b16 %v623
    %v1999 = vunpack.c.l.b16 %v624
    %v2000 = vunpack.c.h.b16 %v624
    %v2001 = vunpack.c.l.b16 %v625
    %v2002 = vunpack.c.h.b16 %v625
    %v2003 = vunpack.c.l.b16 %v626
    %v2004 = vunpack.c.h.b16 %v626
    %v2005 = vunpack.c.l.b16 %v627
    %v2006 = vunpack.c.h.b16 %v627
    %v2007 = vunpack.c.l.b16 %v628
    %v2008 = vunpack.c.h.b16 %v628
    %v2009 = vunpack.c.l.b16 %v629
    %v2010 = vunpack.c.h.b16 %v629
    %v2011 = vunpack.c.l.b16 %v630
    %v2012 = vunpack.c.h.b16 %v630
    %v2013 = vunpack.c.l.b16 %v631
    %v2014 = vunpack.c.h.b16 %v631
    %v2015 = vunpack.c.l.b16 %v632
    %v2016 = vunpack.c.h.b16 %v632
    %v2017 = vunpack.c.l.b16 %v633
    %v2018 = vunpack.c.h.b16 %v633
    %v2019 = vunpack.c.l.b16 %v634
    %v2020 = vunpack.c.h.b16 %v634
    %v2021 = vunpack.c.l.b16 %v635
    %v2022 = vunpack.c.h.b16 %v635
    %v2023 = vunpack.c.l.b16 %v636
    %v2024 = vunpack.c.h.b16 %v636
    %v2025 = vunpack.c.l.b16 %v637
    %v2026 = vunpack.c.h.b16 %v637
    %v2027 = vunpack.c.l.b16 %v638
    %v2028 = vunpack.c.h.b16 %v638
    %v2029 = vunpack.c.l.b16 %v639
    %v2030 = vunpack.c.h.b16 %v639
    %v2031 = vunpack.c.l.b16 %v640
    %v2032 = vunpack.c.h.b16 %v640
    %v2033 = vunpack.c.l.b16 %v641
    %v2034 = vunpack.c.h.b16 %v641
    %v2035 = vunpack.c.l.b16 %v642
    %v2036 = vunpack.c.h.b16 %v642
    %v2037 = vunpack.c.l.b16 %v643
    %v2038 = vunpack.c.h.b16 %v643
    %v2039 = vunpack.c.l.b16 %v644
    %v2040 = vunpack.c.h.b16 %v644
    %v2041 = vunpack.c.l.b16 %v645
    %v2042 = vunpack.c.h.b16 %v645
    %v2043 = vunpack.c.l.b16 %v646
    %v2044 = vunpack.c.h.b16 %v646
    %v2045 = vunpack.c.l.b16 %v647
    %v2046 = vunpack.c.h.b16 %v647
    %v2047 = vunpack.c.l.b16 %v648
    %v2048 = vunpack.c.h.b16 %v648
    %v2049 = vunpack.c.l.b16 %v649
    %v2050 = vunpack.c.h.b16 %v649
    %v2051 = vunpack.c.l.b16 %v650
    %v2052 = vunpack.c.h.b16 %v650
    %v2053 = vunpack.c.l.b16 %v651
    %v2054 = vunpack.c.h.b16 %v651
    %v2055 = vunpack.c.l.b16 %v652
    %v2056 = vunpack.c.h.b16 %v652
    %v2057 = vunpack.c.l.b16 %v653
    %v2058 = vunpack.c.h.b16 %v653
    %v2059 = vunpack.c.l.b16 %v654
    %v2060 = vunpack.c.h.b16 %v654
    %v2061 = vunpack.c.l.b16 %v655
    %v2062 = vunpack.c.h.b16 %v655
    %v2063 = vunpack.c.l.b16 %v656
    %v2064 = vunpack.c.h.b16 %v656
    %v2065 = vunpack.c.l.b16 %v657
    %v2066 = vunpack.c.h.b16 %v657
    %v2067 = vunpack.c.l.b16 %v658
    %v2068 = vunpack.c.h.b16 %v658
    %v2069 = vunpack.c.l.b16 %v659
    %v2070 = vunpack.c.h.b16 %v659
    %v2071 = vunpack.c.l.b16 %v660
    %v2072 = vunpack.c.h.b16 %v660
    %v2073 = vunpack.c.l.b16 %v661
    %v2074 = vunpack.c.h.b16 %v661
    %v2075 = vunpack.c.l.b16 %v662
    %v2076 = vunpack.c.h.b16 %v662
    %v2077 = vunpack.c.l.b16 %v663
    %v2078 = vunpack.c.h.b16 %v663
    %v2079 = vunpack.c.l.b16 %v664
    %v2080 = vunpack.c.h.b16 %v664
    %v2081 = vunpack.c.l.b16 %v665
    %v2082 = vunpack.c.h.b16 %v665
    %v2083 = vunpack.c.l.b16 %v666
    %v2084 = vunpack.c.h.b16 %v666
    %v2085 = vunpack.c.l.b16 %v667
    %v2086 = vunpack.c.h.b16 %v667
    %v2087 = vunpack.c.l.b16 %v668
    %v2088 = vunpack.c.h.b16 %v668
    %v2089 = vunpack.c.l.b16 %v669
    %v2090 = vunpack.c.h.b16 %v669
    %v2091 = vunpack.c.l.b16 %v670
    %v2092 = vunpack.c.h.b16 %v670
    %v2093 = vunpack.c.l.b16 %v671
    %v2094 = vunpack.c.h.b16 %v671
    %v2095 = vunpack.c.l.b16 %v672
    %v2096 = vunpack.c.h.b16 %v672
    %v2097 = vunpack.c.l.b16 %v673
    %v2098 = vunpack.c.h.b16 %v673
    %v2099 = vunpack.c.l.b16 %v674
    %v2100 = vunpack.c.h.b16 %v674
    %v2101 = vunpack.c.l.b16 %v675
    %v2102 = vunpack.c.h.b16 %v675
    %v2103 = vunpack.c.l.b16 %v676
    %v2104 = vunpack.c.h.b16 %v676
    %v2105 = vunpack.c.l.b16 %v677
    %v2106 = vunpack.c.h.b16 %v677
    %v2107 = vunpack.c.l.b16 %v678
    %v2108 = vunpack.c.h.b16 %v678
    %v2109 = vunpack.c.l.b16 %v679
    %v2110 = vunpack.c.h.b16 %v679
    %v2111 = vunpack.c.l.b16 %v680
    %v2112 = vunpack.c.h.b16 %v680
    %v2113 = vunpack.c.l.b16 %v681
    %v2114 = vunpack.c.h.b16 %v681
    %v2115 = vunpack.c.l.b16 %v682
    %v2116 = vunpack.c.h.b16 %v682
    %v2117 = vunpack.c.l.b16 %v683
    %v2118 = vunpack.c.h.b16 %v683
    %v2119 = vunpack.c.l.b16 %v684
    %v2120 = vunpack.c.h.b16 %v684
    %v2121 = vunpack.c.l.b16 %v685
    %v2122 = vunpack.c.h.b16 %v685
    %v2123 = vunpack.c.l.b16 %v686
    %v2124 = vunpack.c.h.b16 %v686
    %v2125 = vunpack.c.l.b16 %v687
    %v2126 = vunpack.c.h.b16 %v687
    %v2127 = vunpack.c.l.b16 %v688
    %v2128 = vunpack.c.h.b16 %v688
    %v2129 = vunpack.c.l.b16 %v689
    %v2130 = vunpack.c.h.b16 %v689
    %v2131 = vunpack.c.l.b16 %v690
    %v2132 = vunpack.c.h.b16 %v690
    %v2133 = vunpack.c.l.b16 %v691
    %v2134 = vunpack.c.h.b16 %v691
    %v2135 = vunpack.c.l.b16 %v692
    %v2136 = vunpack.c.h.b16 %v692
    %v2137 = vunpack.c.l.b16 %v693
    %v2138 = vunpack.c.h.b16 %v693
    %v2139 = vunpack.c.l.b16 %v694
    %v2140 = vunpack.c.h.b16 %v694
    %v2141 = vunpack.c.l.b16 %v695
    %v2142 = vunpack.c.h.b16 %v695
    %v2143 = vunpack.c.l.b16 %v696
    %v2144 = vunpack.c.h.b16 %v696
    %v2145 = vunpack.c.l.b16 %v697
    %v2146 = vunpack.c.h.b16 %v697
    %v2147 = vunpack.c.l.b16 %v698
    %v2148 = vunpack.c.h.b16 %v698
    %v2149 = vunpack.c.l.b16 %v699
    %v2150 = vunpack.c.h.b16 %v699
    %v2151 = vunpack.c.l.b16 %v700
    %v2152 = vunpack.c.h.b16 %v700
    %v2153 = vunpack.c.l.b16 %v701
    %v2154 = vunpack.c.h.b16 %v701
    %v2155 = vunpack.c.l.b16 %v702
    %v2156 = vunpack.c.h.b16 %v702
    %v2157 = vunpack.c.l.b16 %v703
    %v2158 = vunpack.c.h.b16 %v703
    %v2159 = vunpack.c.l.b16 %v704
    %v2160 = vunpack.c.h.b16 %v704
    %v2161 = vunpack.c.l.b16 %v705
    %v2162 = vunpack.c.h.b16 %v705
    %v2163 = vunpack.c.l.b16 %v706
    %v2164 = vunpack.c.h.b16 %v706
    %v2165 = vunpack.c.l.b16 %v707
    %v2166 = vunpack.c.h.b16 %v707
    %v2167 = vunpack.c.l.b16 %v708
    %v2168 = vunpack.c.h.b16 %v708
    %v2169 = vunpack.c.l.b16 %v709
    %v2170 = vunpack.c.h.b16 %v709
    %v2171 = vunpack.c.l.b16 %v710
    %v2172 = vunpack.c.h.b16 %v710
    %v2173 = vunpack.c.l.b16 %v711
    %v2174 = vunpack.c.h.b16 %v711
    %v2175 = vunpack.c.l.b16 %v712
    %v2176 = vunpack.c.h.b16 %v712
    %v2177 = vunpack.c.l.b16 %v713
    %v2178 = vunpack.c.h.b16 %v713
    %v2179 = vunpack.c.l.b16 %v714
    %v2180 = vunpack.c.h.b16 %v714
    %v2181 = vunpack.c.l.b16 %v715
    %v2182 = vunpack.c.h.b16 %v715
    %v2183 = vunpack.c.l.b16 %v716
    %v2184 = vunpack.c.h.b16 %v716
    %v2185 = vunpack.c.l.b16 %v717
    %v2186 = vunpack.c.h.b16 %v717
    %v2187 = vunpack.c.l.b16 %v718
    %v2188 = vunpack.c.h.b16 %v718
    %v2189 = vunpack.c.l.b16 %v719
    %v2190 = vunpack.c.h.b16 %v719
    %v2191 = vunpack.c.l.b16 %v720
    %v2192 = vunpack.c.h.b16 %v720
    %v2193 = vunpack.c.l.b16 %v721
    %v2194 = vunpack.c.h.b16 %v721
    %v2195 = vunpack.c.l.b16 %v722
    %v2196 = vunpack.c.h.b16 %v722
    %v2197 = vunpack.c.l.b16 %v723
    %v2198 = vunpack.c.h.b16 %v723
    %v2199 = vunpack.c.l.b16 %v724
    %v2200 = vunpack.c.h.b16 %v724
    %v2201 = vunpack.c.l.b16 %v725
    %v2202 = vunpack.c.h.b16 %v725
    %v2203 = vunpack.c.l.b16 %v726
    %v2204 = vunpack.c.h.b16 %v726
    %v2205 = vunpack.c.l.b16 %v727
    %v2206 = vunpack.c.h.b16 %v727
    %v2207 = vunpack.c.l.b16 %v728
    %v2208 = vunpack.c.h.b16 %v728
    %v2209 = vunpack.c.l.b16 %v729
    %v2210 = vunpack.c.h.b16 %v729
    %v2211 = vunpack.c.l.b16 %v730
    %v2212 = vunpack.c.h.b16 %v730
    %v2213 = vunpack.c.l.b16 %v731
    %v2214 = vunpack.c.h.b16 %v731
    %v2215 = vunpack.c.l.b16 %v732
    %v2216 = vunpack.c.h.b16 %v732
    %v2217 = vunpack.c.l.b16 %v733
    %v2218 = vunpack.c.h.b16 %v733
    %v2219 = vunpack.c.l.b16 %v734
    %v2220 = vunpack.c.h.b16 %v734
    %v2221 = vunpack.c.l.b16 %v735
    %v2222 = vunpack.c.h.b16 %v735
    %v2223 = vunpack.c.l.b16 %v736
    %v2224 = vunpack.c.h.b16 %v736
    %v2225 = vunpack.c.l.b16 %v737
    %v2226 = vunpack.c.h.b16 %v737
    %v2227 = vunpack.c.l.b16 %v738
    %v2228 = vunpack.c.h.b16 %v738
    %v2229 = vunpack.c.l.b16 %v739
    %v2230 = vunpack.c.h.b16 %v739
    %v2231 = vunpack.c.l.b16 %v740
    %v2232 = vunpack.c.h.b16 %v740
    %v2233 = vunpack.c.l.b16 %v741
    %v2234 = vunpack.c.h.b16 %v741
    %v2235 = vunpack.c.l.b16 %v742
    %v2236 = vunpack.c.h.b16 %v742
    %v2237 = vunpack.c.l.b16 %v743
    %v2238 = vunpack.c.h.b16 %v743
    %v2239 = vunpack.c.l.b16 %v744
    %v2240 = vunpack.c.h.b16 %v744
    %v2241 = vunpack.c.l.b16 %v745
    %v2242 = vunpack.c.h.b16 %v745
    %v2243 = vunpack.c.l.b16 %v746
    %v2244 = vunpack.c.h.b16 %v746
    %v2245 = vunpack.c.l.b16 %v747
    %v2246 = vunpack.c.h.b16 %v747
    %v2247 = vunpack.c.l.b16 %v748
    %v2248 = vunpack.c.h.b16 %v748
    %v2249 = vunpack.c.l.b16 %v749
    %v2250 = vunpack.c.h.b16 %v749
    %v2251 = vunpack.c.l.b16 %v750
    %v2252 = vunpack.c.h.b16 %v750
    %v2253 = vunpack.c.l.b16 %v751
    %v2254 = vunpack.c.h.b16 %v751
    %v2255 = vunpack.c.l.b16 %v752
    %v2256 = vunpack.c.h.b16 %v752
    %v2257 = vunpack.c.l.b16 %v753
    %v2258 = vunpack.c.h.b16 %v753
    %v2259 = vunpack.c.l.b16 %v754
    %v2260 = vunpack.c.h.b16 %v754
    %v2261 = vunpack.c.l.b16 %v755
    %v2262 = vunpack.c.h.b16 %v755
    %v2263 = vunpack.c.l.b16 %v756
    %v2264 = vunpack.c.h.b16 %v756
    %v2265 = vunpack.c.l.b16 %v757
    %v2266 = vunpack.c.h.b16 %v757
    %v2267 = vunpack.c.l.b16 %v758
    %v2268 = vunpack.c.h.b16 %v758
    %v2269 = vunpack.c.l.b16 %v759
    %v2270 = vunpack.c.h.b16 %v759
    %v2271 = vunpack.c.l.b16 %v760
    %v2272 = vunpack.c.h.b16 %v760
    %v2273 = vunpack.c.l.b16 %v761
    %v2274 = vunpack.c.h.b16 %v761
    %v2275 = vunpack.c.l.b16 %v762
    %v2276 = vunpack.c.h.b16 %v762
    %v2277 = vunpack.c.l.b16 %v763
    %v2278 = vunpack.c.h.b16 %v763
    %v2279 = vunpack.c.l.b16 %v764
    %v2280 = vunpack.c.h.b16 %v764
    %v2281 = vunpack.c.l.b16 %v765
    %v2282 = vunpack.c.h.b16 %v765
    %v2283 = vunpack.c.l.b16 %v766
    %v2284 = vunpack.c.h.b16 %v766
    %v2285 = vunpack.c.l.b16 %v767
    %v2286 = vunpack.c.h.b16 %v767
    %v2287 = vunpack.c.l.b16 %v768
    %v2288 = vunpack.c.h.b16 %v768
    %v2289 = vunpack.c.l.b16 %v769
    %v2290 = vunpack.c.h.b16 %v769
    %v2291 = vunpack.c.l.b16 %v770
    %v2292 = vunpack.c.h.b16 %v770
    %v2293 = vunpack.c.l.b16 %v771
    %v2294 = vunpack.c.h.b16 %v771
    %v2295 = vunpack.c.l.b16 %v772
    %v2296 = vunpack.c.h.b16 %v772
    %v2297 = vunpack.c.l.b16 %v773
    %v2298 = vunpack.c.h.b16 %v773
    %v2299 = vunpack.c.l.b16 %v774
    %v2300 = vunpack.c.h.b16 %v774
    %v2301 = vunpack.c.l.b16 %v775
    %v2302 = vunpack.c.h.b16 %v775
    %v2303 = vunpack.c.l.b16 %v776
    %v2304 = vunpack.c.h.b16 %v776
    %v2305 = vunpack.c.l.b16 %v777
    %v2306 = vunpack.c.h.b16 %v777
    %v2307 = vunpack.c.l.b16 %v778
    %v2308 = vunpack.c.h.b16 %v778
    %v2309 = vunpack.c.l.b16 %v779
    %v2310 = vunpack.c.h.b16 %v779
    %v2311 = vunpack.c.l.b16 %v780
    %v2312 = vunpack.c.h.b16 %v780
    %v2313 = vunpack.c.l.b16 %v781
    %v2314 = vunpack.c.h.b16 %v781
    %v2315 = vunpack.c.l.b16 %v782
    %v2316 = vunpack.c.h.b16 %v782
    %v2317 = vunpack.c.l.b16 %v783
    %v2318 = vunpack.c.h.b16 %v783
    %v2319 = vunpack.c.l.b16 %v784
    %v2320 = vunpack.c.h.b16 %v784
    %v2321 = vpack.c.b16 %v1313, %v1297
    %v2322 = vpack.c.b16 %v1314, %v1298
    %v2323 = vpack.c.b16 %v1315, %v1299
    %v2324 = vpack.c.b16 %v1316, %v1300
    %v2325 = vpack.c.b16 %v1317, %v1301
    %v2326 = vpack.c.b16 %v1318, %v1302
    %v2327 = vpack.c.b16 %v1319, %v1303
    %v2328 = vpack.c.b16 %v1320, %v1304
    %v2329 = vpack.c.b16 %v1321, %v1305
    %v2330 = vpack.c.b16 %v1322, %v1306
    %v2331 = vpack.c.b16 %v1323, %v1307
    %v2332 = vpack.c.b16 %v1324, %v1308
    %v2333 = vpack.c.b16 %v1325, %v1309
    %v2334 = vpack.c.b16 %v1326, %v1310
    %v2335 = vpack.c.b16 %v1327, %v1311
    %v2336 = vpack.c.b16 %v1328, %v1312
    %v2337 = vpack.c.b16 %v1345, %v1329
    %v2338 = vpack.c.b16 %v1346, %v1330
    %v2339 = vpack.c.b16 %v1347, %v1331
    %v2340 = vpack.c.b16 %v1348, %v1332
    %v2341 = vpack.c.b16 %v1349, %v1333
    %v2342 = vpack.c.b16 %v1350, %v1334
    %v2343 = vpack.c.b16 %v1351, %v1335
    %v2344 = vpack.c.b16 %v1352, %v1336
    %v2345 = vpack.c.b16 %v1353, %v1337
    %v2346 = vpack.c.b16 %v1354, %v1338
    %v2347 = vpack.c.b16 %v1355, %v1339
    %v2348 = vpack.c.b16 %v1356, %v1340
    %v2349 = vpack.c.b16 %v1357, %v1341
    %v2350 = vpack.c.b16 %v1358, %v1342
    %v2351 = vpack.c.b16 %v1359, %v1343
    %v2352 = vpack.c.b16 %v1360, %v1344
    %v2353 = vpack.c.b16 %v1377, %v1361
    %v2354 = vpack.c.b16 %v1378, %v1362
    %v2355 = vpack.c.b16 %v1379, %v1363
    %v2356 = vpack.c.b16 %v1380, %v1364
    %v2357 = vpack.c.b16 %v1381, %v1365
    %v2358 = vpack.c.b16 %v1382, %v1366
    %v2359 = vpack.c.b16 %v1383, %v1367
    %v2360 = vpack.c.b16 %v1384, %v1368
    %v2361 = vpack.c.b16 %v1385, %v1369
    %v2362 = vpack.c.b16 %v1386, %v1370
    %v2363 = vpack.c.b16 %v1387, %v1371
    %v2364 = vpack.c.b16 %v1388, %v1372
    %v2365 = vpack.c.b16 %v1389, %v1373
    %v2366 = vpack.c.b16 %v1390, %v1374
    %v2367 = vpack.c.b16 %v1391, %v1375
    %v2368 = vpack.c.b16 %v1392, %v1376
    %v2369 = vpack.c.b16 %v1409, %v1393
    %v2370 = vpack.c.b16 %v1410, %v1394
    %v2371 = vpack.c.b16 %v1411, %v1395
    %v2372 = vpack.c.b16 %v1412, %v1396
    %v2373 = vpack.c.b16 %v1413, %v1397
    %v2374 = vpack.c.b16 %v1414, %v1398
    %v2375 = vpack.c.b16 %v1415, %v1399
    %v2376 = vpack.c.b16 %v1416, %v1400
    %v2377 = vpack.c.b16 %v1417, %v1401
    %v2378 = vpack.c.b16 %v1418, %v1402
    %v2379 = vpack.c.b16 %v1419, %v1403
    %v2380 = vpack.c.b16 %v1420, %v1404
    %v2381 = vpack.c.b16 %v1421, %v1405
    %v2382 = vpack.c.b16 %v1422, %v1406
    %v2383 = vpack.c.b16 %v1423, %v1407
    %v2384 = vpack.c.b16 %v1424, %v1408
    %v2385 = vpack.c.b16 %v1441, %v1425
    %v2386 = vpack.c.b16 %v1442, %v1426
    %v2387 = vpack.c.b16 %v1443, %v1427
    %v2388 = vpack.c.b16 %v1444, %v1428
    %v2389 = vpack.c.b16 %v1445, %v1429
    %v2390 = vpack.c.b16 %v1446, %v1430
    %v2391 = vpack.c.b16 %v1447, %v1431
    %v2392 = vpack.c.b16 %v1448, %v1432
    %v2393 = vpack.c.b16 %v1449, %v1433
    %v2394 = vpack.c.b16 %v1450, %v1434
    %v2395 = vpack.c.b16 %v1451, %v1435
    %v2396 = vpack.c.b16 %v1452, %v1436
    %v2397 = vpack.c.b16 %v1453, %v1437
    %v2398 = vpack.c.b16 %v1454, %v1438
    %v2399 = vpack.c.b16 %v1455, %v1439
    %v2400 = vpack.c.b16 %v1456, %v1440
    %v2401 = vpack.c.b16 %v1473, %v1457
    %v2402 = vpack.c.b16 %v1474, %v1458
    %v2403 = vpack.c.b16 %v1475, %v1459
    %v2404 = vpack.c.b16 %v1476, %v1460
    %v2405 = vpack.c.b16 %v1477, %v1461
    %v2406 = vpack.c.b16 %v1478, %v1462
    %v2407 = vpack.c.b16 %v1479, %v1463
    %v2408 = vpack.c.b16 %v1480, %v1464
    %v2409 = vpack.c.b16 %v1481, %v1465
    %v2410 = vpack.c.b16 %v1482, %v1466
    %v2411 = vpack.c.b16 %v1483, %v1467
    %v2412 = vpack.c.b16 %v1484, %v1468
    %v2413 = vpack.c.b16 %v1485, %v1469
    %v2414 = vpack.c.b16 %v1486, %v1470
    %v2415 = vpack.c.b16 %v1487, %v1471
    %v2416 = vpack.c.b16 %v1488, %v1472
    %v2417 = vpack.c.b16 %v1505, %v1489
    %v2418 = vpack.c.b16 %v1506, %v1490
    %v2419 = vpack.c.b16 %v1507, %v1491
    %v2420 = vpack.c.b16 %v1508, %v1492
    %v2421 = vpack.c.b16 %v1509, %v1493
    %v2422 = vpack.c.b16 %v1510, %v1494
    %v2423 = vpack.c.b16 %v1511, %v1495
    %v2424 = vpack.c.b16 %v1512, %v1496
    %v2425 = vpack.c.b16 %v1513, %v1497
    %v2426 = vpack.c.b16 %v1514, %v1498
    %v2427 = vpack.c.b16 %v1515, %v1499
    %v2428 = vpack.c.b16 %v1516, %v1500
    %v2429 = vpack.c.b16 %v1517, %v1501
    %v2430 = vpack.c.b16 %v1518, %v1502
    %v2431 = vpack.c.b16 %v1519, %v1503
    %v2432 = vpack.c.b16 %v1520, %v1504
    %v2433 = vpack.c.b16 %v1537, %v1521
    %v2434 = vpack.c.b16 %v1538, %v1522
    %v2435 = vpack.c.b16 %v1539, %v1523
    %v2436 = vpack.c.b16 %v1540, %v1524
    %v2437 = vpack.c.b16 %v1541, %v1525
    %v2438 = vpack.c.b16 %v1542, %v1526
    %v2439 = vpack.c.b16 %v1543, %v1527
    %v2440 = vpack.c.b16 %v1544, %v1528
    %v2441 = vpack.c.b16 %v1545, %v1529
    %v2442 = vpack.c.b16 %v1546, %v1530
    %v2443 = vpack.c.b16 %v1547, %v1531
    %v2444 = vpack.c.b16 %v1548, %v1532
    %v2445 = vpack.c.b16 %v1549, %v1533
    %v2446 = vpack.c.b16 %v1550, %v1534
    %v2447 = vpack.c.b16 %v1551, %v1535
    %v2448 = vpack.c.b16 %v1552, %v1536
    %v2449 = vpack.c.b16 %v1569, %v1553
    %v2450 = vpack.c.b16 %v1570, %v1554
    %v2451 = vpack.c.b16 %v1571, %v1555
    %v2452 = vpack.c.b16 %v1572, %v1556
    %v2453 = vpack.c.b16 %v1573, %v1557
    %v2454 = vpack.c.b16 %v1574, %v1558
    %v2455 = vpack.c.b16 %v1575, %v1559
    %v2456 = vpack.c.b16 %v1576, %v1560
    %v2457 = vpack.c.b16 %v1577, %v1561
    %v2458 = vpack.c.b16 %v1578, %v1562
    %v2459 = vpack.c.b16 %v1579, %v1563
    %v2460 = vpack.c.b16 %v1580, %v1564
    %v2461 = vpack.c.b16 %v1581, %v1565
    %v2462 = vpack.c.b16 %v1582, %v1566
    %v2463 = vpack.c.b16 %v1583, %v1567
    %v2464 = vpack.c.b16 %v1584, %v1568
    %v2465 = vpack.c.b16 %v1601, %v1585
    %v2466 = vpack.c.b16 %v1602, %v1586
    %v2467 = vpack.c.b16 %v1603, %v1587
    %v2468 = vpack.c.b16 %v1604, %v1588
    %v2469 = vpack.c.b16 %v1605, %v1589
    %v2470 = vpack.c.b16 %v1606, %v1590
    %v2471 = vpack.c.b16 %v1607, %v1591
    %v2472 = vpack.c.b16 %v1608, %v1592
    %v2473 = vpack.c.b16 %v1609, %v1593
    %v2474 = vpack.c.b16 %v1610, %v1594
    %v2475 = vpack.c.b16 %v1611, %v1595
    %v2476 = vpack.c.b16 %v1612, %v1596
    %v2477 = vpack.c.b16 %v1613, %v1597
    %v2478 = vpack.c.b16 %v1614, %v1598
    %v2479 = vpack.c.b16 %v1615, %v1599
    %v2480 = vpack.c.b16 %v1616, %v1600
    %v2481 = vpack.c.b16 %v1633, %v1617
    %v2482 = vpack.c.b16 %v1634, %v1618
    %v2483 = vpack.c.b16 %v1635, %v1619
    %v2484 = vpack.c.b16 %v1636, %v1620
    %v2485 = vpack.c.b16 %v1637, %v1621
    %v2486 = vpack.c.b16 %v1638, %v1622
    %v2487 = vpack.c.b16 %v1639, %v1623
    %v2488 = vpack.c.b16 %v1640, %v1624
    %v2489 = vpack.c.b16 %v1641, %v1625
    %v2490 = vpack.c.b16 %v1642, %v1626
    %v2491 = vpack.c.b16 %v1643, %v1627
    %v2492 = vpack.c.b16 %v1644, %v1628
    %v2493 = vpack.c.b16 %v1645, %v1629
    %v2494 = vpack.c.b16 %v1646, %v1630
    %v2495 = vpack.c.b16 %v1647, %v1631
    %v2496 = vpack.c.b16 %v1648, %v1632
    %v2497 = vpack.c.b16 %v1665, %v1649
    %v2498 = vpack.c.b16 %v1666, %v1650
    %v2499 = vpack.c.b16 %v1667, %v1651
    %v2500 = vpack.c.b16 %v1668, %v1652
    %v2501 = vpack.c.b16 %v1669, %v1653
    %v2502 = vpack.c.b16 %v1670, %v1654
    %v2503 = vpack.c.b16 %v1671, %v1655
    %v2504 = vpack.c.b16 %v1672, %v1656
    %v2505 = vpack.c.b16 %v1673, %v1657
    %v2506 = vpack.c.b16 %v1674, %v1658
    %v2507 = vpack.c.b16 %v1675, %v1659
    %v2508 = vpack.c.b16 %v1676, %v1660
    %v2509 = vpack.c.b16 %v1677, %v1661
    %v2510 = vpack.c.b16 %v1678, %v1662
    %v2511 = vpack.c.b16 %v1679, %v1663
    %v2512 = vpack.c.b16 %v1680, %v1664
    %v2513 = vpack.c.b16 %v1697, %v1681
    %v2514 = vpack.c.b16 %v1698, %v1682
    %v2515 = vpack.c.b16 %v1699, %v1683
    %v2516 = vpack.c.b16 %v1700, %v1684
    %v2517 = vpack.c.b16 %v1701, %v1685
    %v2518 = vpack.c.b16 %v1702, %v1686
    %v2519 = vpack.c.b16 %v1703, %v1687
    %v2520 = vpack.c.b16 %v1704, %v1688
    %v2521 = vpack.c.b16 %v1705, %v1689
    %v2522 = vpack.c.b16 %v1706, %v1690
    %v2523 = vpack.c.b16 %v1707, %v1691
    %v2524 = vpack.c.b16 %v1708, %v1692
    %v2525 = vpack.c.b16 %v1709, %v1693
    %v2526 = vpack.c.b16 %v1710, %v1694
    %v2527 = vpack.c.b16 %v1711, %v1695
    %v2528 = vpack.c.b16 %v1712, %v1696
    %v2529 = vpack.c.b16 %v1729, %v1713
    %v2530 = vpack.c.b16 %v1730, %v1714
    %v2531 = vpack.c.b16 %v1731, %v1715
    %v2532 = vpack.c.b16 %v1732, %v1716
    %v2533 = vpack.c.b16 %v1733, %v1717
    %v2534 = vpack.c.b16 %v1734, %v1718
    %v2535 = vpack.c.b16 %v1735, %v1719
    %v2536 = vpack.c.b16 %v1736, %v1720
    %v2537 = vpack.c.b16 %v1737, %v1721
    %v2538 = vpack.c.b16 %v1738, %v1722
    %v2539 = vpack.c.b16 %v1739, %v1723
    %v2540 = vpack.c.b16 %v1740, %v1724
    %v2541 = vpack.c.b16 %v1741, %v1725
    %v2542 = vpack.c.b16 %v1742, %v1726
    %v2543 = vpack.c.b16 %v1743, %v1727
    %v2544 = vpack.c.b16 %v1744, %v1728
    %v2545 = vpack.c.b16 %v1761, %v1745
    %v2546 = vpack.c.b16 %v1762, %v1746
    %v2547 = vpack.c.b16 %v1763, %v1747
    %v2548 = vpack.c.b16 %v1764, %v1748
    %v2549 = vpack.c.b16 %v1765, %v1749
    %v2550 = vpack.c.b16 %v1766, %v1750
    %v2551 = vpack.c.b16 %v1767, %v1751
    %v2552 = vpack.c.b16 %v1768, %v1752
    %v2553 = vpack.c.b16 %v1769, %v1753
    %v2554 = vpack.c.b16 %v1770, %v1754
    %v2555 = vpack.c.b16 %v1771, %v1755
    %v2556 = vpack.c.b16 %v1772, %v1756
    %v2557 = vpack.c.b16 %v1773, %v1757
    %v2558 = vpack.c.b16 %v1774, %v1758
    %v2559 = vpack.c.b16 %v1775, %v1759
    %v2560 = vpack.c.b16 %v1776, %v1760
    %v2561 = vpack.c.b16 %v1793, %v1777
    %v2562 = vpack.c.b16 %v1794, %v1778
    %v2563 = vpack.c.b16 %v1795, %v1779
    %v2564 = vpack.c.b16 %v1796, %v1780
    %v2565 = vpack.c.b16 %v1797, %v1781
    %v2566 = vpack.c.b16 %v1798, %v1782
    %v2567 = vpack.c.b16 %v1799, %v1783
    %v2568 = vpack.c.b16 %v1800, %v1784
    %v2569 = vpack.c.b16 %v1801, %v1785
    %v2570 = vpack.c.b16 %v1802, %v1786
    %v2571 = vpack.c.b16 %v1803, %v1787
    %v2572 = vpack.c.b16 %v1804, %v1788
    %v2573 = vpack.c.b16 %v1805, %v1789
    %v2574 = vpack.c.b16 %v1806, %v1790
    %v2575 = vpack.c.b16 %v1807, %v1791
    %v2576 = vpack.c.b16 %v1808, %v1792
    %v2577 = vpack.c.b16 %v1825, %v1809
    %v2578 = vpack.c.b16 %v1826, %v1810
    %v2579 = vpack.c.b16 %v1827, %v1811
    %v2580 = vpack.c.b16 %v1828, %v1812
    %v2581 = vpack.c.b16 %v1829, %v1813
    %v2582 = vpack.c.b16 %v1830, %v1814
    %v2583 = vpack.c.b16 %v1831, %v1815
    %v2584 = vpack.c.b16 %v1832, %v1816
    %v2585 = vpack.c.b16 %v1833, %v1817
    %v2586 = vpack.c.b16 %v1834, %v1818
    %v2587 = vpack.c.b16 %v1835, %v1819
    %v2588 = vpack.c.b16 %v1836, %v1820
    %v2589 = vpack.c.b16 %v1837, %v1821
    %v2590 = vpack.c.b16 %v1838, %v1822
    %v2591 = vpack.c.b16 %v1839, %v1823
    %v2592 = vpack.c.b16 %v1840, %v1824
    %v2593 = vpack.c.b16 %v1857, %v1841
    %v2594 = vpack.c.b16 %v1858, %v1842
    %v2595 = vpack.c.b16 %v1859, %v1843
    %v2596 = vpack.c.b16 %v1860, %v1844
    %v2597 = vpack.c.b16 %v1861, %v1845
    %v2598 = vpack.c.b16 %v1862, %v1846
    %v2599 = vpack.c.b16 %v1863, %v1847
    %v2600 = vpack.c.b16 %v1864, %v1848
    %v2601 = vpack.c.b16 %v1865, %v1849
    %v2602 = vpack.c.b16 %v1866, %v1850
    %v2603 = vpack.c.b16 %v1867, %v1851
    %v2604 = vpack.c.b16 %v1868, %v1852
    %v2605 = vpack.c.b16 %v1869, %v1853
    %v2606 = vpack.c.b16 %v1870, %v1854
    %v2607 = vpack.c.b16 %v1871, %v1855
    %v2608 = vpack.c.b16 %v1872, %v1856
    %v2609 = vpack.c.b16 %v1889, %v1873
    %v2610 = vpack.c.b16 %v1890, %v1874
    %v2611 = vpack.c.b16 %v1891, %v1875
    %v2612 = vpack.c.b16 %v1892, %v1876
    %v2613 = vpack.c.b16 %v1893, %v1877
    %v2614 = vpack.c.b16 %v1894, %v1878
    %v2615 = vpack.c.b16 %v1895, %v1879
    %v2616 = vpack.c.b16 %v1896, %v1880
    %v2617 = vpack.c.b16 %v1897, %v1881
    %v2618 = vpack.c.b16 %v1898, %v1882
    %v2619 = vpack.c.b16 %v1899, %v1883
    %v2620 = vpack.c.b16 %v1900, %v1884
    %v2621 = vpack.c.b16 %v1901, %v1885
    %v2622 = vpack.c.b16 %v1902, %v1886
    %v2623 = vpack.c.b16 %v1903, %v1887
    %v2624 = vpack.c.b16 %v1904, %v1888
    %v2625 = vpack.c.b16 %v1921, %v1905
    %v2626 = vpack.c.b16 %v1922, %v1906
    %v2627 = vpack.c.b16 %v1923, %v1907
    %v2628 = vpack.c.b16 %v1924, %v1908
    %v2629 = vpack.c.b16 %v1925, %v1909
    %v2630 = vpack.c.b16 %v1926, %v1910
    %v2631 = vpack.c.b16 %v1927, %v1911
    %v2632 = vpack.c.b16 %v1928, %v1912
    %v2633 = vpack.c.b16 %v1929, %v1913
    %v2634 = vpack.c.b16 %v1930, %v1914
    %v2635 = vpack.c.b16 %v1931, %v1915
    %v2636 = vpack.c.b16 %v1932, %v1916
    %v2637 = vpack.c.b16 %v1933, %v1917
    %v2638 = vpack.c.b16 %v1934, %v1918
    %v2639 = vpack.c.b16 %v1935, %v1919
    %v2640 = vpack.c.b16 %v1936, %v1920
    %v2641 = vpack.c.b16 %v1953, %v1937
    %v2642 = vpack.c.b16 %v1954, %v1938
    %v2643 = vpack.c.b16 %v1955, %v1939
    %v2644 = vpack.c.b16 %v1956, %v1940
    %v2645 = vpack.c.b16 %v1957, %v1941
    %v2646 = vpack.c.b16 %v1958, %v1942
    %v2647 = vpack.c.b16 %v1959, %v1943
    %v2648 = vpack.c.b16 %v1960, %v1944
    %v2649 = vpack.c.b16 %v1961, %v1945
    %v2650 = vpack.c.b16 %v1962, %v1946
    %v2651 = vpack.c.b16 %v1963, %v1947
    %v2652 = vpack.c.b16 %v1964, %v1948
    %v2653 = vpack.c.b16 %v1965, %v1949
    %v2654 = vpack.c.b16 %v1966, %v1950
    %v2655 = vpack.c.b16 %v1967, %v1951
    %v2656 = vpack.c.b16 %v1968, %v1952
    %v2657 = vpack.c.b16 %v1985, %v1969
    %v2658 = vpack.c.b16 %v1986, %v1970
    %v2659 = vpack.c.b16 %v1987, %v1971
    %v2660 = vpack.c.b16 %v1988, %v1972
    %v2661 = vpack.c.b16 %v1989, %v1973
    %v2662 = vpack.c.b16 %v1990, %v1974
    %v2663 = vpack.c.b16 %v1991, %v1975
    %v2664 = vpack.c.b16 %v1992, %v1976
    %v2665 = vpack.c.b16 %v1993, %v1977
    %v2666 = vpack.c.b16 %v1994, %v1978
    %v2667 = vpack.c.b16 %v1995, %v1979
    %v2668 = vpack.c.b16 %v1996, %v1980
    %v2669 = vpack.c.b16 %v1997, %v1981
    %v2670 = vpack.c.b16 %v1998, %v1982
    %v2671 = vpack.c.b16 %v1999, %v1983
    %v2672 = vpack.c.b16 %v2000, %v1984
    %v2673 = vpack.c.b16 %v2017, %v2001
    %v2674 = vpack.c.b16 %v2018, %v2002
    %v2675 = vpack.c.b16 %v2019, %v2003
    %v2676 = vpack.c.b16 %v2020, %v2004
    %v2677 = vpack.c.b16 %v2021, %v2005
    %v2678 = vpack.c.b16 %v2022, %v2006
    %v2679 = vpack.c.b16 %v2023, %v2007
    %v2680 = vpack.c.b16 %v2024, %v2008
    %v2681 = vpack.c.b16 %v2025, %v2009
    %v2682 = vpack.c.b16 %v2026, %v2010
    %v2683 = vpack.c.b16 %v2027, %v2011
    %v2684 = vpack.c.b16 %v2028, %v2012
    %v2685 = vpack.c.b16 %v2029, %v2013
    %v2686 = vpack.c.b16 %v2030, %v2014
    %v2687 = vpack.c.b16 %v2031, %v2015
    %v2688 = vpack.c.b16 %v2032, %v2016
    %v2689 = vpack.c.b16 %v2049, %v2033
    %v2690 = vpack.c.b16 %v2050, %v2034
    %v2691 = vpack.c.b16 %v2051, %v2035
    %v2692 = vpack.c.b16 %v2052, %v2036
    %v2693 = vpack.c.b16 %v2053, %v2037
    %v2694 = vpack.c.b16 %v2054, %v2038
    %v2695 = vpack.c.b16 %v2055, %v2039
    %v2696 = vpack.c.b16 %v2056, %v2040
    %v2697 = vpack.c.b16 %v2057, %v2041
    %v2698 = vpack.c.b16 %v2058, %v2042
    %v2699 = vpack.c.b16 %v2059, %v2043
    %v2700 = vpack.c.b16 %v2060, %v2044
    %v2701 = vpack.c.b16 %v2061, %v2045
    %v2702 = vpack.c.b16 %v2062, %v2046
    %v2703 = vpack.c.b16 %v2063, %v2047
    %v2704 = vpack.c.b16 %v2064, %v2048
    %v2705 = vpack.c.b16 %v2081, %v2065
    %v2706 = vpack.c.b16 %v2082, %v2066
    %v2707 = vpack.c.b16 %v2083, %v2067
    %v2708 = vpack.c.b16 %v2084, %v2068
    %v2709 = vpack.c.b16 %v2085, %v2069
    %v2710 = vpack.c.b16 %v2086, %v2070
    %v2711 = vpack.c.b16 %v2087, %v2071
    %v2712 = vpack.c.b16 %v2088, %v2072
    %v2713 = vpack.c.b16 %v2089, %v2073
    %v2714 = vpack.c.b16 %v2090, %v2074
    %v2715 = vpack.c.b16 %v2091, %v2075
    %v2716 = vpack.c.b16 %v2092, %v2076
    %v2717 = vpack.c.b16 %v2093, %v2077
    %v2718 = vpack.c.b16 %v2094, %v2078
    %v2719 = vpack.c.b16 %v2095, %v2079
    %v2720 = vpack.c.b16 %v2096, %v2080
    %v2721 = vpack.c.b16 %v2113, %v2097
    %v2722 = vpack.c.b16 %v2114, %v2098
    %v2723 = vpack.c.b16 %v2115, %v2099
    %v2724 = vpack.c.b16 %v2116, %v2100
    %v2725 = vpack.c.b16 %v2117, %v2101
    %v2726 = vpack.c.b16 %v2118, %v2102
    %v2727 = vpack.c.b16 %v2119, %v2103
    %v2728 = vpack.c.b16 %v2120, %v2104
    %v2729 = vpack.c.b16 %v2121, %v2105
    %v2730 = vpack.c.b16 %v2122, %v2106
    %v2731 = vpack.c.b16 %v2123, %v2107
    %v2732 = vpack.c.b16 %v2124, %v2108
    %v2733 = vpack.c.b16 %v2125, %v2109
    %v2734 = vpack.c.b16 %v2126, %v2110
    %v2735 = vpack.c.b16 %v2127, %v2111
    %v2736 = vpack.c.b16 %v2128, %v2112
    %v2737 = vpack.c.b16 %v2145, %v2129
    %v2738 = vpack.c.b16 %v2146, %v2130
    %v2739 = vpack.c.b16 %v2147, %v2131
    %v2740 = vpack.c.b16 %v2148, %v2132
    %v2741 = vpack.c.b16 %v2149, %v2133
    %v2742 = vpack.c.b16 %v2150, %v2134
    %v2743 = vpack.c.b16 %v2151, %v2135
    %v2744 = vpack.c.b16 %v2152, %v2136
    %v2745 = vpack.c.b16 %v2153, %v2137
    %v2746 = vpack.c.b16 %v2154, %v2138
    %v2747 = vpack.c.b16 %v2155, %v2139
    %v2748 = vpack.c.b16 %v2156, %v2140
    %v2749 = vpack.c.b16 %v2157, %v2141
    %v2750 = vpack.c.b16 %v2158, %v2142
    %v2751 = vpack.c.b16 %v2159, %v2143
    %v2752 = vpack.c.b16 %v2160, %v2144
    %v2753 = vpack.c.b16 %v2177, %v2161
    %v2754 = vpack.c.b16 %v2178, %v2162
    %v2755 = vpack.c.b16 %v2179, %v2163
    %v2756 = vpack.c.b16 %v2180, %v2164
    %v2757 = vpack.c.b16 %v2181, %v2165
    %v2758 = vpack.c.b16 %v2182, %v2166
    %v2759 = vpack.c.b16 %v2183, %v2167
    %v2760 = vpack.c.b16 %v2184, %v2168
    %v2761 = vpack.c.b16 %v2185, %v2169
    %v2762 = vpack.c.b16 %v2186, %v2170
    %v2763 = vpack.c.b16 %v2187, %v2171
    %v2764 = vpack.c.b16 %v2188, %v2172
    %v2765 = vpack.c.b16 %v2189, %v2173
    %v2766 = vpack.c.b16 %v2190, %v2174
    %v2767 = vpack.c.b16 %v2191, %v2175
    %v2768 = vpack.c.b16 %v2192, %v2176
    %v2769 = vpack.c.b16 %v2209, %v2193
    %v2770 = vpack.c.b16 %v2210, %v2194
    %v2771 = vpack.c.b16 %v2211, %v2195
    %v2772 = vpack.c.b16 %v2212, %v2196
    %v2773 = vpack.c.b16 %v2213, %v2197
    %v2774 = vpack.c.b16 %v2214, %v2198
    %v2775 = vpack.c.b16 %v2215, %v2199
    %v2776 = vpack.c.b16 %v2216, %v2200
    %v2777 = vpack.c.b16 %v2217, %v2201
    %v2778 = vpack.c.b16 %v2218, %v2202
    %v2779 = vpack.c.b16 %v2219, %v2203
    %v2780 = vpack.c.b16 %v2220, %v2204
    %v2781 = vpack.c.b16 %v2221, %v2205
    %v2782 = vpack.c.b16 %v2222, %v2206
    %v2783 = vpack.c.b16 %v2223, %v2207
    %v2784 = vpack.c.b16 %v2224, %v2208
    %v2785 = vpack.c.b16 %v2241, %v2225
    %v2786 = vpack.c.b16 %v2242, %v2226
    %v2787 = vpack.c.b16 %v2243, %v2227
    %v2788 = vpack.c.b16 %v2244, %v2228
    %v2789 = vpack.c.b16 %v2245, %v2229
    %v2790 = vpack.c.b16 %v2246, %v2230
    %v2791 = vpack.c.b16 %v2247, %v2231
    %v2792 = vpack.c.b16 %v2248, %v2232
    %v2793 = vpack.c.b16 %v2249, %v2233
    %v2794 = vpack.c.b16 %v2250, %v2234
    %v2795 = vpack.c.b16 %v2251, %v2235
    %v2796 = vpack.c.b16 %v2252, %v2236
    %v2797 = vpack.c.b16 %v2253, %v2237
    %v2798 = vpack.c.b16 %v2254, %v2238
    %v2799 = vpack.c.b16 %v2255, %v2239
    %v2800 = vpack.c.b16 %v2256, %v2240
    %v2801 = vpack.c.b16 %v2273, %v2257
    %v2802 = vpack.c.b16 %v2274, %v2258
    %v2803 = vpack.c.b16 %v2275, %v2259
    %v2804 = vpack.c.b16 %v2276, %v2260
    %v2805 = vpack.c.b16 %v2277, %v2261
    %v2806 = vpack.c.b16 %v2278, %v2262
    %v2807 = vpack.c.b16 %v2279, %v2263
    %v2808 = vpack.c.b16 %v2280, %v2264
    %v2809 = vpack.c.b16 %v2281, %v2265
    %v2810 = vpack.c.b16 %v2282, %v2266
    %v2811 = vpack.c.b16 %v2283, %v2267
    %v2812 = vpack.c.b16 %v2284, %v2268
    %v2813 = vpack.c.b16 %v2285, %v2269
    %v2814 = vpack.c.b16 %v2286, %v2270
    %v2815 = vpack.c.b16 %v2287, %v2271
    %v2816 = vpack.c.b16 %v2288, %v2272
    %v2817 = vpack.c.b16 %v2305, %v2289
    %v2818 = vpack.c.b16 %v2306, %v2290
    %v2819 = vpack.c.b16 %v2307, %v2291
    %v2820 = vpack.c.b16 %v2308, %v2292
    %v2821 = vpack.c.b16 %v2309, %v2293
    %v2822 = vpack.c.b16 %v2310, %v2294
    %v2823 = vpack.c.b16 %v2311, %v2295
    %v2824 = vpack.c.b16 %v2312, %v2296
    %v2825 = vpack.c.b16 %v2313, %v2297
    %v2826 = vpack.c.b16 %v2314, %v2298
    %v2827 = vpack.c.b16 %v2315, %v2299
    %v2828 = vpack.c.b16 %v2316, %v2300
    %v2829 = vpack.c.b16 %v2317, %v2301
    %v2830 = vpack.c.b16 %v2318, %v2302
    %v2831 = vpack.c.b16 %v2319, %v2303
    %v2832 = vpack.c.b16 %v2320, %v2304
    %3345 = vmatprep.subr.bf16.mxu0 %v2322
    %3346 = vmatpush1.bf16.msra.mxu0 %v2321
    %3347 = vmatprep.subr.bf16.mxu0 %v2338
    %3348 = vmatpush1.bf16.msra.mxu0 %v2337
    %3349 = vmatprep.subr.bf16.mxu0 %v2354
    %3350 = vmatpush1.bf16.msra.mxu0 %v2353
    %3351 = vmatprep.subr.bf16.mxu0 %v2370
    %3352 = vmatpush1.bf16.msra.mxu0 %v2369
    %3353 = vmatprep.subr.bf16.mxu0 %v2386
    %3354 = vmatpush1.bf16.msra.mxu0 %v2385
    %3355 = vmatprep.subr.bf16.mxu0 %v2402
    %3356 = vmatpush1.bf16.msra.mxu0 %v2401
    %3357 = vmatprep.subr.bf16.mxu0 %v2418
    %3358 = vmatpush1.bf16.msra.mxu0 %v2417
    %3359 = vmatprep.subr.bf16.mxu0 %v2434
    %3360 = vmatpush1.bf16.msra.mxu0 %v2433
    %3361 = vmatprep.subr.bf16.mxu0 %v2450
    %3362 = vmatpush1.bf16.msra.mxu0 %v2449
    %3363 = vmatprep.subr.bf16.mxu0 %v2466
    %3364 = vmatpush1.bf16.msra.mxu0 %v2465
    %3365 = vmatprep.subr.bf16.mxu0 %v2482
    %3366 = vmatpush1.bf16.msra.mxu0 %v2481
    %3367 = vmatprep.subr.bf16.mxu0 %v2498
    %3368 = vmatpush1.bf16.msra.mxu0 %v2497
    %3369 = vmatprep.subr.bf16.mxu0 %v2514
    %3370 = vmatpush1.bf16.msra.mxu0 %v2513
    %3371 = vmatprep.subr.bf16.mxu0 %v2530
    %3372 = vmatpush1.bf16.msra.mxu0 %v2529
    %3373 = vmatprep.subr.bf16.mxu0 %v2546
    %3374 = vmatpush1.bf16.msra.mxu0 %v2545
    %3375 = vmatprep.subr.bf16.mxu0 %v2562
    %3376 = vmatpush1.bf16.msra.mxu0 %v2561
    %3377 = vmatprep.mubr.bf16.mxu0 %v266
    %3378 = vmatmul.mubr.bf16.gmra.mrb[0].mxu0 %v265
    %v3379 = vpop.f32.mrb[0].mxu0
    %v3380 = vadd.f32 0.0, %v3379
    %v3381 = vpop.f32.mrb[0].mxu0
    %v3382 = vadd.f32 0.0, %v3381
    %v3383 = vpop.f32.mrb[0].mxu0
    %v3384 = vadd.f32 0.0, %v3383
    %v3385 = vpop.f32.mrb[0].mxu0
    %v3386 = vadd.f32 0.0, %v3385
    %3387 = vmatprep.mubr.bf16.mxu0 %v270
    %3388 = vmatmul.mubr.bf16.gmra.mrb[0].mxu0 %v269
    %v3389 = vpop.f32.mrb[0].mxu0
    %v3390 = vadd.f32 0.0, %v3389
    %v3391 = vpop.f32.mrb[0].mxu0
    %v3392 = vadd.f32 0.0, %v3391
    %v3393 = vpop.f32.mrb[0].mxu0
    %v3394 = vadd.f32 0.0, %v3393
    %v3395 = vpop.f32.mrb[0].mxu0
    %v3396 = vadd.f32 0.0, %v3395
    %3397 = vdwg.mxu0
    %3398 = vmatprep.subr.bf16.mxu0 %v2578
    %3399 = vmatpush1.bf16.msra.mxu0 %v2577
    %3400 = vmatprep.subr.bf16.mxu0 %v2594
    %3401 = vmatpush1.bf16.msra.mxu0 %v2593
    %3402 = vmatprep.subr.bf16.mxu0 %v2610
    %3403 = vmatpush1.bf16.msra.mxu0 %v2609
    %3404 = vmatprep.subr.bf16.mxu0 %v2626
    %3405 = vmatpush1.bf16.msra.mxu0 %v2625
    %3406 = vmatprep.subr.bf16.mxu0 %v2642
    %3407 = vmatpush1.bf16.msra.mxu0 %v2641
    %3408 = vmatprep.subr.bf16.mxu0 %v2658
    %3409 = vmatpush1.bf16.msra.mxu0 %v2657
    %3410 = vmatprep.subr.bf16.mxu0 %v2674
    %3411 = vmatpush1.bf16.msra.mxu0 %v2673
    %3412 = vmatprep.subr.bf16.mxu0 %v2690
    %3413 = vmatpush1.bf16.msra.mxu0 %v2689
    %3414 = vmatprep.subr.bf16.mxu0 %v2706
    %3415 = vmatpush1.bf16.msra.mxu0 %v2705
    %3416 = vmatprep.subr.bf16.mxu0 %v2722
    %3417 = vmatpush1.bf16.msra.mxu0 %v2721
    %3418 = vmatprep.subr.bf16.mxu0 %v2738
    %3419 = vmatpush1.bf16.msra.mxu0 %v2737
    %3420 = vmatprep.subr.bf16.mxu0 %v2754
    %3421 = vmatpush1.bf16.msra.mxu0 %v2753
    %3422 = vmatprep.subr.bf16.mxu0 %v2770
    %3423 = vmatpush1.bf16.msra.mxu0 %v2769
    %3424 = vmatprep.subr.bf16.mxu0 %v2786
    %3425 = vmatpush1.bf16.msra.mxu0 %v2785
    %3426 = vmatprep.subr.bf16.mxu0 %v2802
    %3427 = vmatpush1.bf16.msra.mxu0 %v2801
    %3428 = vmatprep.subr.bf16.mxu0 %v2818
    %3429 = vmatpush1.bf16.msra.mxu0 %v2817
    %3430 = vmatprep.mubr.bf16.mxu0 %v268
    %3431 = vmatmul.mubr.bf16.gmra.mrb[0].mxu0 %v267
    %v3432 = vpop.f32.mrb[0].mxu0
    %v3433 = vadd.f32 %v3380, %v3432
    %v3434 = vpop.f32.mrb[0].mxu0
    %v3435 = vadd.f32 %v3382, %v3434
    %v3436 = vpop.f32.mrb[0].mxu0
    %v3437 = vadd.f32 %v3384, %v3436
    %v3438 = vpop.f32.mrb[0].mxu0
    %v3439 = vadd.f32 %v3386, %v3438
    %3440 = vmatprep.mubr.bf16.mxu0 %v272
    %3441 = vmatmul.mubr.bf16.gmra.mrb[0].mxu0 %v271
    %v3442 = vpop.f32.mrb[0].mxu0
    %v3443 = vadd.f32 %v3390, %v3442
    %v3444 = vpop.f32.mrb[0].mxu0
    %v3445 = vadd.f32 %v3392, %v3444
    %v3446 = vpop.f32.mrb[0].mxu0
    %v3447 = vadd.f32 %v3394, %v3446
    %v3448 = vpop.f32.mrb[0].mxu0
    %v3449 = vadd.f32 %v3396, %v3448
    %3450 = vdwg.mxu0
    %3451 = vmatprep.subr.bf16.mxu0 %v2324
    %3452 = vmatpush1.bf16.msra.mxu0 %v2323
    %3453 = vmatprep.subr.bf16.mxu0 %v2340
    %3454 = vmatpush1.bf16.msra.mxu0 %v2339
    %3455 = vmatprep.subr.bf16.mxu0 %v2356
    %3456 = vmatpush1.bf16.msra.mxu0 %v2355
    %3457 = vmatprep.subr.bf16.mxu0 %v2372
    %3458 = vmatpush1.bf16.msra.mxu0 %v2371
    %3459 = vmatprep.subr.bf16.mxu0 %v2388
    %3460 = vmatpush1.bf16.msra.mxu0 %v2387
    %3461 = vmatprep.subr.bf16.mxu0 %v2404
    %3462 = vmatpush1.bf16.msra.mxu0 %v2403
    %3463 = vmatprep.subr.bf16.mxu0 %v2420
    %3464 = vmatpush1.bf16.msra.mxu0 %v2419
    %3465 = vmatprep.subr.bf16.mxu0 %v2436
    %3466 = vmatpush1.bf16.msra.mxu0 %v2435
    %3467 = vmatprep.subr.bf16.mxu0 %v2452
    %3468 = vmatpush1.bf16.msra.mxu0 %v2451
    %3469 = vmatprep.subr.bf16.mxu0 %v2468
    %3470 = vmatpush1.bf16.msra.mxu0 %v2467
    %3471 = vmatprep.subr.bf16.mxu0 %v2484
    %3472 = vmatpush1.bf16.msra.mxu0 %v2483
    %3473 = vmatprep.subr.bf16.mxu0 %v2500
    %3474 = vmatpush1.bf16.msra.mxu0 %v2499
    %3475 = vmatprep.subr.bf16.mxu0 %v2516
    %3476 = vmatpush1.bf16.msra.mxu0 %v2515
    %3477 = vmatprep.subr.bf16.mxu0 %v2532
    %3478 = vmatpush1.bf16.msra.mxu0 %v2531
    %3479 = vmatprep.subr.bf16.mxu0 %v2548
    %3480 = vmatpush1.bf16.msra.mxu0 %v2547
    %3481 = vmatprep.subr.bf16.mxu0 %v2564
    %3482 = vmatpush1.bf16.msra.mxu0 %v2563
    %3483 = vmatprep.mubr.bf16.mxu0 %v266
    %3484 = vmatmul.mubr.bf16.gmra.mrb[0].mxu0 %v265
    %v3485 = vpop.f32.mrb[0].mxu0
    %v3486 = vadd.f32 0.0, %v3485
    %v3487 = vpop.f32.mrb[0].mxu0
    %v3488 = vadd.f32 0.0, %v3487
    %v3489 = vpop.f32.mrb[0].mxu0
    %v3490 = vadd.f32 0.0, %v3489
    %v3491 = vpop.f32.mrb[0].mxu0
    %v3492 = vadd.f32 0.0, %v3491
    %3493 = vmatprep.mubr.bf16.mxu0 %v270
    %3494 = vmatmul.mubr.bf16.gmra.mrb[0].mxu0 %v269
    %v3495 = vpop.f32.mrb[0].mxu0
    %v3496 = vadd.f32 0.0, %v3495
    %v3497 = vpop.f32.mrb[0].mxu0
    %v3498 = vadd.f32 0.0, %v3497
    %v3499 = vpop.f32.mrb[0].mxu0
    %v3500 = vadd.f32 0.0, %v3499
    %v3501 = vpop.f32.mrb[0].mxu0
    %v3502 = vadd.f32 0.0, %v3501
    %3503 = vdwg.mxu0
    %3504 = vmatprep.subr.bf16.mxu0 %v2580
    %3505 = vmatpush1.bf16.msra.mxu0 %v2579
    %3506 = vmatprep.subr.bf16.mxu0 %v2596
    %3507 = vmatpush1.bf16.msra.mxu0 %v2595
    %3508 = vmatprep.subr.bf16.mxu0 %v2612
    %3509 = vmatpush1.bf16.msra.mxu0 %v2611
    %3510 = vmatprep.subr.bf16.mxu0 %v2628
    %3511 = vmatpush1.bf16.msra.mxu0 %v2627
    %3512 = vmatprep.subr.bf16.mxu0 %v2644
    %3513 = vmatpush1.bf16.msra.mxu0 %v2643
    %3514 = vmatprep.subr.bf16.mxu0 %v2660
    %3515 = vmatpush1.bf16.msra.mxu0 %v2659
    %3516 = vmatprep.subr.bf16.mxu0 %v2676
    %3517 = vmatpush1.bf16.msra.mxu0 %v2675
    %3518 = vmatprep.subr.bf16.mxu0 %v2692
    %3519 = vmatpush1.bf16.msra.mxu0 %v2691
    %3520 = vmatprep.subr.bf16.mxu0 %v2708
    %3521 = vmatpush1.bf16.msra.mxu0 %v2707
    %3522 = vmatprep.subr.bf16.mxu0 %v2724
    %3523 = vmatpush1.bf16.msra.mxu0 %v2723
    %3524 = vmatprep.subr.bf16.mxu0 %v2740
    %3525 = vmatpush1.bf16.msra.mxu0 %v2739
    %3526 = vmatprep.subr.bf16.mxu0 %v2756
    %3527 = vmatpush1.bf16.msra.mxu0 %v2755
    %3528 = vmatprep.subr.bf16.mxu0 %v2772
    %3529 = vmatpush1.bf16.msra.mxu0 %v2771
    %3530 = vmatprep.subr.bf16.mxu0 %v2788
    %3531 = vmatpush1.bf16.msra.mxu0 %v2787
    %3532 = vmatprep.subr.bf16.mxu0 %v2804
    %3533 = vmatpush1.bf16.msra.mxu0 %v2803
    %3534 = vmatprep.subr.bf16.mxu0 %v2820
    %3535 = vmatpush1.bf16.msra.mxu0 %v2819
    %3536 = vmatprep.mubr.bf16.mxu0 %v268
    %3537 = vmatmul.mubr.bf16.gmra.mrb[0].mxu0 %v267
    %v3538 = vpop.f32.mrb[0].mxu0
    %v3539 = vadd.f32 %v3486, %v3538
    %v3540 = vpop.f32.mrb[0].mxu0
    %v3541 = vadd.f32 %v3488, %v3540
    %v3542 = vpop.f32.mrb[0].mxu0
    %v3543 = vadd.f32 %v3490, %v3542
    %v3544 = vpop.f32.mrb[0].mxu0
    %v3545 = vadd.f32 %v3492, %v3544
    %3546 = vmatprep.mubr.bf16.mxu0 %v272
    %3547 = vmatmul.mubr.bf16.gmra.mrb[0].mxu0 %v271
    %v3548 = vpop.f32.mrb[0].mxu0
    %v3549 = vadd.f32 %v3496, %v3548
    %v3550 = vpop.f32.mrb[0].mxu0
    %v3551 = vadd.f32 %v3498, %v3550
    %v3552 = vpop.f32.mrb[0].mxu0
    %v3553 = vadd.f32 %v3500, %v3552
    %v3554 = vpop.f32.mrb[0].mxu0
    %v3555 = vadd.f32 %v3502, %v3554
    %3556 = vdwg.mxu0
    %3557 = vmatprep.subr.bf16.mxu0 %v2326
    %3558 = vmatpush1.bf16.msra.mxu0 %v2325
    %3559 = vmatprep.subr.bf16.mxu0 %v2342
    %3560 = vmatpush1.bf16.msra.mxu0 %v2341
    %3561 = vmatprep.subr.bf16.mxu0 %v2358
    %3562 = vmatpush1.bf16.msra.mxu0 %v2357
    %3563 = vmatprep.subr.bf16.mxu0 %v2374
    %3564 = vmatpush1.bf16.msra.mxu0 %v2373
    %3565 = vmatprep.subr.bf16.mxu0 %v2390
    %3566 = vmatpush1.bf16.msra.mxu0 %v2389
    %3567 = vmatprep.subr.bf16.mxu0 %v2406
    %3568 = vmatpush1.bf16.msra.mxu0 %v2405
    %3569 = vmatprep.subr.bf16.mxu0 %v2422
    %3570 = vmatpush1.bf16.msra.mxu0 %v2421
    %3571 = vmatprep.subr.bf16.mxu0 %v2438
    %3572 = vmatpush1.bf16.msra.mxu0 %v2437
    %3573 = vmatprep.subr.bf16.mxu0 %v2454
    %3574 = vmatpush1.bf16.msra.mxu0 %v2453
    %3575 = vmatprep.subr.bf16.mxu0 %v2470
    %3576 = vmatpush1.bf16.msra.mxu0 %v2469
    %3577 = vmatprep.subr.bf16.mxu0 %v2486
    %3578 = vmatpush1.bf16.msra.mxu0 %v2485
    %3579 = vmatprep.subr.bf16.mxu0 %v2502
    %3580 = vmatpush1.bf16.msra.mxu0 %v2501
    %3581 = vmatprep.subr.bf16.mxu0 %v2518
    %3582 = vmatpush1.bf16.msra.mxu0 %v2517
    %3583 = vmatprep.subr.bf16.mxu0 %v2534
    %3584 = vmatpush1.bf16.msra.mxu0 %v2533
    %3585 = vmatprep.subr.bf16.mxu0 %v2550
    %3586 = vmatpush1.bf16.msra.mxu0 %v2549
    %3587 = vmatprep.subr.bf16.mxu0 %v2566
    %3588 = vmatpush1.bf16.msra.mxu0 %v2565
    %3589 = vmatprep.mubr.bf16.mxu0 %v266
    %3590 = vmatmul.mubr.bf16.gmra.mrb[0].mxu0 %v265
    %v3591 = vpop.f32.mrb[0].mxu0
    %v3592 = vadd.f32 0.0, %v3591
    %v3593 = vpop.f32.mrb[0].mxu0
    %v3594 = vadd.f32 0.0, %v3593
    %v3595 = vpop.f32.mrb[0].mxu0
    %v3596 = vadd.f32 0.0, %v3595
    %v3597 = vpop.f32.mrb[0].mxu0
    %v3598 = vadd.f32 0.0, %v3597
    %3599 = vmatprep.mubr.bf16.mxu0 %v270
    %3600 = vmatmul.mubr.bf16.gmra.mrb[0].mxu0 %v269
    %v3601 = vpop.f32.mrb[0].mxu0
    %v3602 = vadd.f32 0.0, %v3601
    %v3603 = vpop.f32.mrb[0].mxu0
    %v3604 = vadd.f32 0.0, %v3603
    %v3605 = vpop.f32.mrb[0].mxu0
    %v3606 = vadd.f32 0.0, %v3605
    %v3607 = vpop.f32.mrb[0].mxu0
    %v3608 = vadd.f32 0.0, %v3607
    %3609 = vdwg.mxu0
    %3610 = vmatprep.subr.bf16.mxu0 %v2582
    %3611 = vmatpush1.bf16.msra.mxu0 %v2581
    %3612 = vmatprep.subr.bf16.mxu0 %v2598
    %3613 = vmatpush1.bf16.msra.mxu0 %v2597
    %3614 = vmatprep.subr.bf16.mxu0 %v2614
    %3615 = vmatpush1.bf16.msra.mxu0 %v2613
    %3616 = vmatprep.subr.bf16.mxu0 %v2630
    %3617 = vmatpush1.bf16.msra.mxu0 %v2629
    %3618 = vmatprep.subr.bf16.mxu0 %v2646
    %3619 = vmatpush1.bf16.msra.mxu0 %v2645
    %3620 = vmatprep.subr.bf16.mxu0 %v2662
    %3621 = vmatpush1.bf16.msra.mxu0 %v2661
    %3622 = vmatprep.subr.bf16.mxu0 %v2678
    %3623 = vmatpush1.bf16.msra.mxu0 %v2677
    %3624 = vmatprep.subr.bf16.mxu0 %v2694
    %3625 = vmatpush1.bf16.msra.mxu0 %v2693
    %3626 = vmatprep.subr.bf16.mxu0 %v2710
    %3627 = vmatpush1.bf16.msra.mxu0 %v2709
    %3628 = vmatprep.subr.bf16.mxu0 %v2726
    %3629 = vmatpush1.bf16.msra.mxu0 %v2725
    %3630 = vmatprep.subr.bf16.mxu0 %v2742
    %3631 = vmatpush1.bf16.msra.mxu0 %v2741
    %3632 = vmatprep.subr.bf16.mxu0 %v2758
    %3633 = vmatpush1.bf16.msra.mxu0 %v2757
    %3634 = vmatprep.subr.bf16.mxu0 %v2774
    %3635 = vmatpush1.bf16.msra.mxu0 %v2773
    %3636 = vmatprep.subr.bf16.mxu0 %v2790
    %3637 = vmatpush1.bf16.msra.mxu0 %v2789
    %3638 = vmatprep.subr.bf16.mxu0 %v2806
    %3639 = vmatpush1.bf16.msra.mxu0 %v2805
    %3640 = vmatprep.subr.bf16.mxu0 %v2822
    %3641 = vmatpush1.bf16.msra.mxu0 %v2821
    %3642 = vmatprep.mubr.bf16.mxu0 %v268
    %3643 = vmatmul.mubr.bf16.gmra.mrb[0].mxu0 %v267
    %v3644 = vpop.f32.mrb[0].mxu0
    %v3645 = vadd.f32 %v3592, %v3644
    %v3646 = vpop.f32.mrb[0].mxu0
    %v3647 = vadd.f32 %v3594, %v3646
    %v3648 = vpop.f32.mrb[0].mxu0
    %v3649 = vadd.f32 %v3596, %v3648
    %v3650 = vpop.f32.mrb[0].mxu0
    %v3651 = vadd.f32 %v3598, %v3650
    %3652 = vmatprep.mubr.bf16.mxu0 %v272
    %3653 = vmatmul.mubr.bf16.gmra.mrb[0].mxu0 %v271
    %v3654 = vpop.f32.mrb[0].mxu0
    %v3655 = vadd.f32 %v3602, %v3654
    %v3656 = vpop.f32.mrb[0].mxu0
    %v3657 = vadd.f32 %v3604, %v3656
    %v3658 = vpop.f32.mrb[0].mxu0
    %v3659 = vadd.f32 %v3606, %v3658
    %v3660 = vpop.f32.mrb[0].mxu0
    %v3661 = vadd.f32 %v3608, %v3660
    %3662 = vdwg.mxu0
    %3663 = vmatprep.subr.bf16.mxu0 %v2328
    %3664 = vmatpush1.bf16.msra.mxu0 %v2327
    %3665 = vmatprep.subr.bf16.mxu0 %v2344
    %3666 = vmatpush1.bf16.msra.mxu0 %v2343
    %3667 = vmatprep.subr.bf16.mxu0 %v2360
    %3668 = vmatpush1.bf16.msra.mxu0 %v2359
    %3669 = vmatprep.subr.bf16.mxu0 %v2376
    %3670 = vmatpush1.bf16.msra.mxu0 %v2375
    %3671 = vmatprep.subr.bf16.mxu0 %v2392
    %3672 = vmatpush1.bf16.msra.mxu0 %v2391
    %3673 = vmatprep.subr.bf16.mxu0 %v2408
    %3674 = vmatpush1.bf16.msra.mxu0 %v2407
    %3675 = vmatprep.subr.bf16.mxu0 %v2424
    %3676 = vmatpush1.bf16.msra.mxu0 %v2423
    %3677 = vmatprep.subr.bf16.mxu0 %v2440
    %3678 = vmatpush1.bf16.msra.mxu0 %v2439
    %3679 = vmatprep.subr.bf16.mxu0 %v2456
    %3680 = vmatpush1.bf16.msra.mxu0 %v2455
    %3681 = vmatprep.subr.bf16.mxu0 %v2472
    %3682 = vmatpush1.bf16.msra.mxu0 %v2471
    %3683 = vmatprep.subr.bf16.mxu0 %v2488
    %3684 = vmatpush1.bf16.msra.mxu0 %v2487
    %3685 = vmatprep.subr.bf16.mxu0 %v2504
    %3686 = vmatpush1.bf16.msra.mxu0 %v2503
    %3687 = vmatprep.subr.bf16.mxu0 %v2520
    %3688 = vmatpush1.bf16.msra.mxu0 %v2519
    %3689 = vmatprep.subr.bf16.mxu0 %v2536
    %3690 = vmatpush1.bf16.msra.mxu0 %v2535
    %3691 = vmatprep.subr.bf16.mxu0 %v2552
    %3692 = vmatpush1.bf16.msra.mxu0 %v2551
    %3693 = vmatprep.subr.bf16.mxu0 %v2568
    %3694 = vmatpush1.bf16.msra.mxu0 %v2567
    %3695 = vmatprep.mubr.bf16.mxu0 %v266
    %3696 = vmatmul.mubr.bf16.gmra.mrb[0].mxu0 %v265
    %v3697 = vpop.f32.mrb[0].mxu0
    %v3698 = vadd.f32 0.0, %v3697
    %v3699 = vpop.f32.mrb[0].mxu0
    %v3700 = vadd.f32 0.0, %v3699
    %v3701 = vpop.f32.mrb[0].mxu0
    %v3702 = vadd.f32 0.0, %v3701
    %v3703 = vpop.f32.mrb[0].mxu0
    %v3704 = vadd.f32 0.0, %v3703
    %3705 = vmatprep.mubr.bf16.mxu0 %v270
    %3706 = vmatmul.mubr.bf16.gmra.mrb[0].mxu0 %v269
    %v3707 = vpop.f32.mrb[0].mxu0
    %v3708 = vadd.f32 0.0, %v3707
    %v3709 = vpop.f32.mrb[0].mxu0
    %v3710 = vadd.f32 0.0, %v3709
    %v3711 = vpop.f32.mrb[0].mxu0
    %v3712 = vadd.f32 0.0, %v3711
    %v3713 = vpop.f32.mrb[0].mxu0
    %v3714 = vadd.f32 0.0, %v3713
    %3715 = vdwg.mxu0
    %3716 = vmatprep.subr.bf16.mxu0 %v2584
    %3717 = vmatpush1.bf16.msra.mxu0 %v2583
    %3718 = vmatprep.subr.bf16.mxu0 %v2600
    %3719 = vmatpush1.bf16.msra.mxu0 %v2599
    %3720 = vmatprep.subr.bf16.mxu0 %v2616
    %3721 = vmatpush1.bf16.msra.mxu0 %v2615
    %3722 = vmatprep.subr.bf16.mxu0 %v2632
    %3723 = vmatpush1.bf16.msra.mxu0 %v2631
    %3724 = vmatprep.subr.bf16.mxu0 %v2648
    %3725 = vmatpush1.bf16.msra.mxu0 %v2647
    %3726 = vmatprep.subr.bf16.mxu0 %v2664
    %3727 = vmatpush1.bf16.msra.mxu0 %v2663
    %3728 = vmatprep.subr.bf16.mxu0 %v2680
    %3729 = vmatpush1.bf16.msra.mxu0 %v2679
    %3730 = vmatprep.subr.bf16.mxu0 %v2696
    %3731 = vmatpush1.bf16.msra.mxu0 %v2695
    %3732 = vmatprep.subr.bf16.mxu0 %v2712
    %3733 = vmatpush1.bf16.msra.mxu0 %v2711
    %3734 = vmatprep.subr.bf16.mxu0 %v2728
    %3735 = vmatpush1.bf16.msra.mxu0 %v2727
    %3736 = vmatprep.subr.bf16.mxu0 %v2744
    %3737 = vmatpush1.bf16.msra.mxu0 %v2743
    %3738 = vmatprep.subr.bf16.mxu0 %v2760
    %3739 = vmatpush1.bf16.msra.mxu0 %v2759
    %3740 = vmatprep.subr.bf16.mxu0 %v2776
    %3741 = vmatpush1.bf16.msra.mxu0 %v2775
    %3742 = vmatprep.subr.bf16.mxu0 %v2792
    %3743 = vmatpush1.bf16.msra.mxu0 %v2791
    %3744 = vmatprep.subr.bf16.mxu0 %v2808
    %3745 = vmatpush1.bf16.msra.mxu0 %v2807
    %3746 = vmatprep.subr.bf16.mxu0 %v2824
    %3747 = vmatpush1.bf16.msra.mxu0 %v2823
    %3748 = vmatprep.mubr.bf16.mxu0 %v268
    %3749 = vmatmul.mubr.bf16.gmra.mrb[0].mxu0 %v267
    %v3750 = vpop.f32.mrb[0].mxu0
    %v3751 = vadd.f32 %v3698, %v3750
    %v3752 = vpop.f32.mrb[0].mxu0
    %v3753 = vadd.f32 %v3700, %v3752
    %v3754 = vpop.f32.mrb[0].mxu0
    %v3755 = vadd.f32 %v3702, %v3754
    %v3756 = vpop.f32.mrb[0].mxu0
    %v3757 = vadd.f32 %v3704, %v3756
    %3758 = vmatprep.mubr.bf16.mxu0 %v272
    %3759 = vmatmul.mubr.bf16.gmra.mrb[0].mxu0 %v271
    %v3760 = vpop.f32.mrb[0].mxu0
    %v3761 = vadd.f32 %v3708, %v3760
    %v3762 = vpop.f32.mrb[0].mxu0
    %v3763 = vadd.f32 %v3710, %v3762
    %v3764 = vpop.f32.mrb[0].mxu0
    %v3765 = vadd.f32 %v3712, %v3764
    %v3766 = vpop.f32.mrb[0].mxu0
    %v3767 = vadd.f32 %v3714, %v3766
    %3768 = vdwg.mxu0
    %3769 = vmatprep.subr.bf16.mxu0 %v2330
    %3770 = vmatpush1.bf16.msra.mxu0 %v2329
    %3771 = vmatprep.subr.bf16.mxu0 %v2346
    %3772 = vmatpush1.bf16.msra.mxu0 %v2345
    %3773 = vmatprep.subr.bf16.mxu0 %v2362
    %3774 = vmatpush1.bf16.msra.mxu0 %v2361
    %3775 = vmatprep.subr.bf16.mxu0 %v2378
    %3776 = vmatpush1.bf16.msra.mxu0 %v2377
    %3777 = vmatprep.subr.bf16.mxu0 %v2394
    %3778 = vmatpush1.bf16.msra.mxu0 %v2393
    %3779 = vmatprep.subr.bf16.mxu0 %v2410
    %3780 = vmatpush1.bf16.msra.mxu0 %v2409
    %3781 = vmatprep.subr.bf16.mxu0 %v2426
    %3782 = vmatpush1.bf16.msra.mxu0 %v2425
    %3783 = vmatprep.subr.bf16.mxu0 %v2442
    %3784 = vmatpush1.bf16.msra.mxu0 %v2441
    %3785 = vmatprep.subr.bf16.mxu0 %v2458
    %3786 = vmatpush1.bf16.msra.mxu0 %v2457
    %3787 = vmatprep.subr.bf16.mxu0 %v2474
    %3788 = vmatpush1.bf16.msra.mxu0 %v2473
    %3789 = vmatprep.subr.bf16.mxu0 %v2490
    %3790 = vmatpush1.bf16.msra.mxu0 %v2489
    %3791 = vmatprep.subr.bf16.mxu0 %v2506
    %3792 = vmatpush1.bf16.msra.mxu0 %v2505
    %3793 = vmatprep.subr.bf16.mxu0 %v2522
    %3794 = vmatpush1.bf16.msra.mxu0 %v2521
    %3795 = vmatprep.subr.bf16.mxu0 %v2538
    %3796 = vmatpush1.bf16.msra.mxu0 %v2537
    %3797 = vmatprep.subr.bf16.mxu0 %v2554
    %3798 = vmatpush1.bf16.msra.mxu0 %v2553
    %3799 = vmatprep.subr.bf16.mxu0 %v2570
    %3800 = vmatpush1.bf16.msra.mxu0 %v2569
    %3801 = vmatprep.mubr.bf16.mxu0 %v266
    %3802 = vmatmul.mubr.bf16.gmra.mrb[0].mxu0 %v265
    %v3803 = vpop.f32.mrb[0].mxu0
    %v3804 = vadd.f32 0.0, %v3803
    %v3805 = vpop.f32.mrb[0].mxu0
    %v3806 = vadd.f32 0.0, %v3805
    %v3807 = vpop.f32.mrb[0].mxu0
    %v3808 = vadd.f32 0.0, %v3807
    %v3809 = vpop.f32.mrb[0].mxu0
    %v3810 = vadd.f32 0.0, %v3809
    %3811 = vmatprep.mubr.bf16.mxu0 %v270
    %3812 = vmatmul.mubr.bf16.gmra.mrb[0].mxu0 %v269
    %v3813 = vpop.f32.mrb[0].mxu0
    %v3814 = vadd.f32 0.0, %v3813
    %v3815 = vpop.f32.mrb[0].mxu0
    %v3816 = vadd.f32 0.0, %v3815
    %v3817 = vpop.f32.mrb[0].mxu0
    %v3818 = vadd.f32 0.0, %v3817
    %v3819 = vpop.f32.mrb[0].mxu0
    %v3820 = vadd.f32 0.0, %v3819
    %3821 = vdwg.mxu0
    %3822 = vmatprep.subr.bf16.mxu0 %v2586
    %3823 = vmatpush1.bf16.msra.mxu0 %v2585
    %3824 = vmatprep.subr.bf16.mxu0 %v2602
    %3825 = vmatpush1.bf16.msra.mxu0 %v2601
    %3826 = vmatprep.subr.bf16.mxu0 %v2618
    %3827 = vmatpush1.bf16.msra.mxu0 %v2617
    %3828 = vmatprep.subr.bf16.mxu0 %v2634
    %3829 = vmatpush1.bf16.msra.mxu0 %v2633
    %3830 = vmatprep.subr.bf16.mxu0 %v2650
    %3831 = vmatpush1.bf16.msra.mxu0 %v2649
    %3832 = vmatprep.subr.bf16.mxu0 %v2666
    %3833 = vmatpush1.bf16.msra.mxu0 %v2665
    %3834 = vmatprep.subr.bf16.mxu0 %v2682
    %3835 = vmatpush1.bf16.msra.mxu0 %v2681
    %3836 = vmatprep.subr.bf16.mxu0 %v2698
    %3837 = vmatpush1.bf16.msra.mxu0 %v2697
    %3838 = vmatprep.subr.bf16.mxu0 %v2714
    %3839 = vmatpush1.bf16.msra.mxu0 %v2713
    %3840 = vmatprep.subr.bf16.mxu0 %v2730
    %3841 = vmatpush1.bf16.msra.mxu0 %v2729
    %3842 = vmatprep.subr.bf16.mxu0 %v2746
    %3843 = vmatpush1.bf16.msra.mxu0 %v2745
    %3844 = vmatprep.subr.bf16.mxu0 %v2762
    %3845 = vmatpush1.bf16.msra.mxu0 %v2761
    %3846 = vmatprep.subr.bf16.mxu0 %v2778
    %3847 = vmatpush1.bf16.msra.mxu0 %v2777
    %3848 = vmatprep.subr.bf16.mxu0 %v2794
    %3849 = vmatpush1.bf16.msra.mxu0 %v2793
    %3850 = vmatprep.subr.bf16.mxu0 %v2810
    %3851 = vmatpush1.bf16.msra.mxu0 %v2809
    %3852 = vmatprep.subr.bf16.mxu0 %v2826
    %3853 = vmatpush1.bf16.msra.mxu0 %v2825
    %3854 = vmatprep.mubr.bf16.mxu0 %v268
    %3855 = vmatmul.mubr.bf16.gmra.mrb[0].mxu0 %v267
    %v3856 = vpop.f32.mrb[0].mxu0
    %v3857 = vadd.f32 %v3804, %v3856
    %v3858 = vpop.f32.mrb[0].mxu0
    %v3859 = vadd.f32 %v3806, %v3858
    %v3860 = vpop.f32.mrb[0].mxu0
    %v3861 = vadd.f32 %v3808, %v3860
    %v3862 = vpop.f32.mrb[0].mxu0
    %v3863 = vadd.f32 %v3810, %v3862
    %3864 = vmatprep.mubr.bf16.mxu0 %v272
    %3865 = vmatmul.mubr.bf16.gmra.mrb[0].mxu0 %v271
    %v3866 = vpop.f32.mrb[0].mxu0
    %v3867 = vadd.f32 %v3814, %v3866
    %v3868 = vpop.f32.mrb[0].mxu0
    %v3869 = vadd.f32 %v3816, %v3868
    %v3870 = vpop.f32.mrb[0].mxu0
    %v3871 = vadd.f32 %v3818, %v3870
    %v3872 = vpop.f32.mrb[0].mxu0
    %v3873 = vadd.f32 %v3820, %v3872
    %3874 = vdwg.mxu0
    %3875 = vmatprep.subr.bf16.mxu0 %v2332
    %3876 = vmatpush1.bf16.msra.mxu0 %v2331
    %3877 = vmatprep.subr.bf16.mxu0 %v2348
    %3878 = vmatpush1.bf16.msra.mxu0 %v2347
    %3879 = vmatprep.subr.bf16.mxu0 %v2364
    %3880 = vmatpush1.bf16.msra.mxu0 %v2363
    %3881 = vmatprep.subr.bf16.mxu0 %v2380
    %3882 = vmatpush1.bf16.msra.mxu0 %v2379
    %3883 = vmatprep.subr.bf16.mxu0 %v2396
    %3884 = vmatpush1.bf16.msra.mxu0 %v2395
    %3885 = vmatprep.subr.bf16.mxu0 %v2412
    %3886 = vmatpush1.bf16.msra.mxu0 %v2411
    %3887 = vmatprep.subr.bf16.mxu0 %v2428
    %3888 = vmatpush1.bf16.msra.mxu0 %v2427
    %3889 = vmatprep.subr.bf16.mxu0 %v2444
    %3890 = vmatpush1.bf16.msra.mxu0 %v2443
    %3891 = vmatprep.subr.bf16.mxu0 %v2460
    %3892 = vmatpush1.bf16.msra.mxu0 %v2459
    %3893 = vmatprep.subr.bf16.mxu0 %v2476
    %3894 = vmatpush1.bf16.msra.mxu0 %v2475
    %3895 = vmatprep.subr.bf16.mxu0 %v2492
    %3896 = vmatpush1.bf16.msra.mxu0 %v2491
    %3897 = vmatprep.subr.bf16.mxu0 %v2508
    %3898 = vmatpush1.bf16.msra.mxu0 %v2507
    %3899 = vmatprep.subr.bf16.mxu0 %v2524
    %3900 = vmatpush1.bf16.msra.mxu0 %v2523
    %3901 = vmatprep.subr.bf16.mxu0 %v2540
    %3902 = vmatpush1.bf16.msra.mxu0 %v2539
    %3903 = vmatprep.subr.bf16.mxu0 %v2556
    %3904 = vmatpush1.bf16.msra.mxu0 %v2555
    %3905 = vmatprep.subr.bf16.mxu0 %v2572
    %3906 = vmatpush1.bf16.msra.mxu0 %v2571
    %3907 = vmatprep.mubr.bf16.mxu0 %v266
    %3908 = vmatmul.mubr.bf16.gmra.mrb[0].mxu0 %v265
    %v3909 = vpop.f32.mrb[0].mxu0
    %v3910 = vadd.f32 0.0, %v3909
    %v3911 = vpop.f32.mrb[0].mxu0
    %v3912 = vadd.f32 0.0, %v3911
    %v3913 = vpop.f32.mrb[0].mxu0
    %v3914 = vadd.f32 0.0, %v3913
    %v3915 = vpop.f32.mrb[0].mxu0
    %v3916 = vadd.f32 0.0, %v3915
    %3917 = vmatprep.mubr.bf16.mxu0 %v270
    %3918 = vmatmul.mubr.bf16.gmra.mrb[0].mxu0 %v269
    %v3919 = vpop.f32.mrb[0].mxu0
    %v3920 = vadd.f32 0.0, %v3919
    %v3921 = vpop.f32.mrb[0].mxu0
    %v3922 = vadd.f32 0.0, %v3921
    %v3923 = vpop.f32.mrb[0].mxu0
    %v3924 = vadd.f32 0.0, %v3923
    %v3925 = vpop.f32.mrb[0].mxu0
    %v3926 = vadd.f32 0.0, %v3925
    %3927 = vdwg.mxu0
    %3928 = vmatprep.subr.bf16.mxu0 %v2588
    %3929 = vmatpush1.bf16.msra.mxu0 %v2587
    %3930 = vmatprep.subr.bf16.mxu0 %v2604
    %3931 = vmatpush1.bf16.msra.mxu0 %v2603
    %3932 = vmatprep.subr.bf16.mxu0 %v2620
    %3933 = vmatpush1.bf16.msra.mxu0 %v2619
    %3934 = vmatprep.subr.bf16.mxu0 %v2636
    %3935 = vmatpush1.bf16.msra.mxu0 %v2635
    %3936 = vmatprep.subr.bf16.mxu0 %v2652
    %3937 = vmatpush1.bf16.msra.mxu0 %v2651
    %3938 = vmatprep.subr.bf16.mxu0 %v2668
    %3939 = vmatpush1.bf16.msra.mxu0 %v2667
    %3940 = vmatprep.subr.bf16.mxu0 %v2684
    %3941 = vmatpush1.bf16.msra.mxu0 %v2683
    %3942 = vmatprep.subr.bf16.mxu0 %v2700
    %3943 = vmatpush1.bf16.msra.mxu0 %v2699
    %3944 = vmatprep.subr.bf16.mxu0 %v2716
    %3945 = vmatpush1.bf16.msra.mxu0 %v2715
    %3946 = vmatprep.subr.bf16.mxu0 %v2732
    %3947 = vmatpush1.bf16.msra.mxu0 %v2731
    %3948 = vmatprep.subr.bf16.mxu0 %v2748
    %3949 = vmatpush1.bf16.msra.mxu0 %v2747
    %3950 = vmatprep.subr.bf16.mxu0 %v2764
    %3951 = vmatpush1.bf16.msra.mxu0 %v2763
    %3952 = vmatprep.subr.bf16.mxu0 %v2780
    %3953 = vmatpush1.bf16.msra.mxu0 %v2779
    %3954 = vmatprep.subr.bf16.mxu0 %v2796
    %3955 = vmatpush1.bf16.msra.mxu0 %v2795
    %3956 = vmatprep.subr.bf16.mxu0 %v2812
    %3957 = vmatpush1.bf16.msra.mxu0 %v2811
    %3958 = vmatprep.subr.bf16.mxu0 %v2828
    %3959 = vmatpush1.bf16.msra.mxu0 %v2827
    %3960 = vmatprep.mubr.bf16.mxu0 %v268
    %3961 = vmatmul.mubr.bf16.gmra.mrb[0].mxu0 %v267
    %v3962 = vpop.f32.mrb[0].mxu0
    %v3963 = vadd.f32 %v3910, %v3962
    %v3964 = vpop.f32.mrb[0].mxu0
    %v3965 = vadd.f32 %v3912, %v3964
    %v3966 = vpop.f32.mrb[0].mxu0
    %v3967 = vadd.f32 %v3914, %v3966
    %v3968 = vpop.f32.mrb[0].mxu0
    %v3969 = vadd.f32 %v3916, %v3968
    %3970 = vmatprep.mubr.bf16.mxu0 %v272
    %3971 = vmatmul.mubr.bf16.gmra.mrb[0].mxu0 %v271
    %v3972 = vpop.f32.mrb[0].mxu0
    %v3973 = vadd.f32 %v3920, %v3972
    %v3974 = vpop.f32.mrb[0].mxu0
    %v3975 = vadd.f32 %v3922, %v3974
    %v3976 = vpop.f32.mrb[0].mxu0
    %v3977 = vadd.f32 %v3924, %v3976
    %v3978 = vpop.f32.mrb[0].mxu0
    %v3979 = vadd.f32 %v3926, %v3978
    %3980 = vdwg.mxu0
    %3981 = vmatprep.subr.bf16.mxu0 %v2334
    %3982 = vmatpush1.bf16.msra.mxu0 %v2333
    %3983 = vmatprep.subr.bf16.mxu0 %v2350
    %3984 = vmatpush1.bf16.msra.mxu0 %v2349
    %3985 = vmatprep.subr.bf16.mxu0 %v2366
    %3986 = vmatpush1.bf16.msra.mxu0 %v2365
    %3987 = vmatprep.subr.bf16.mxu0 %v2382
    %3988 = vmatpush1.bf16.msra.mxu0 %v2381
    %3989 = vmatprep.subr.bf16.mxu0 %v2398
    %3990 = vmatpush1.bf16.msra.mxu0 %v2397
    %3991 = vmatprep.subr.bf16.mxu0 %v2414
    %3992 = vmatpush1.bf16.msra.mxu0 %v2413
    %3993 = vmatprep.subr.bf16.mxu0 %v2430
    %3994 = vmatpush1.bf16.msra.mxu0 %v2429
    %3995 = vmatprep.subr.bf16.mxu0 %v2446
    %3996 = vmatpush1.bf16.msra.mxu0 %v2445
    %3997 = vmatprep.subr.bf16.mxu0 %v2462
    %3998 = vmatpush1.bf16.msra.mxu0 %v2461
    %3999 = vmatprep.subr.bf16.mxu0 %v2478
    %4000 = vmatpush1.bf16.msra.mxu0 %v2477
    %4001 = vmatprep.subr.bf16.mxu0 %v2494
    %4002 = vmatpush1.bf16.msra.mxu0 %v2493
    %4003 = vmatprep.subr.bf16.mxu0 %v2510
    %4004 = vmatpush1.bf16.msra.mxu0 %v2509
    %4005 = vmatprep.subr.bf16.mxu0 %v2526
    %4006 = vmatpush1.bf16.msra.mxu0 %v2525
    %4007 = vmatprep.subr.bf16.mxu0 %v2542
    %4008 = vmatpush1.bf16.msra.mxu0 %v2541
    %4009 = vmatprep.subr.bf16.mxu0 %v2558
    %4010 = vmatpush1.bf16.msra.mxu0 %v2557
    %4011 = vmatprep.subr.bf16.mxu0 %v2574
    %4012 = vmatpush1.bf16.msra.mxu0 %v2573
    %4013 = vmatprep.mubr.bf16.mxu0 %v266
    %4014 = vmatmul.mubr.bf16.gmra.mrb[0].mxu0 %v265
    %v4015 = vpop.f32.mrb[0].mxu0
    %v4016 = vadd.f32 0.0, %v4015
    %v4017 = vpop.f32.mrb[0].mxu0
    %v4018 = vadd.f32 0.0, %v4017
    %v4019 = vpop.f32.mrb[0].mxu0
    %v4020 = vadd.f32 0.0, %v4019
    %v4021 = vpop.f32.mrb[0].mxu0
    %v4022 = vadd.f32 0.0, %v4021
    %4023 = vmatprep.mubr.bf16.mxu0 %v270
    %4024 = vmatmul.mubr.bf16.gmra.mrb[0].mxu0 %v269
    %v4025 = vpop.f32.mrb[0].mxu0
    %v4026 = vadd.f32 0.0, %v4025
    %v4027 = vpop.f32.mrb[0].mxu0
    %v4028 = vadd.f32 0.0, %v4027
    %v4029 = vpop.f32.mrb[0].mxu0
    %v4030 = vadd.f32 0.0, %v4029
    %v4031 = vpop.f32.mrb[0].mxu0
    %v4032 = vadd.f32 0.0, %v4031
    %4033 = vdwg.mxu0
    %4034 = vmatprep.subr.bf16.mxu0 %v2590
    %4035 = vmatpush1.bf16.msra.mxu0 %v2589
    %4036 = vmatprep.subr.bf16.mxu0 %v2606
    %4037 = vmatpush1.bf16.msra.mxu0 %v2605
    %4038 = vmatprep.subr.bf16.mxu0 %v2622
    %4039 = vmatpush1.bf16.msra.mxu0 %v2621
    %4040 = vmatprep.subr.bf16.mxu0 %v2638
    %4041 = vmatpush1.bf16.msra.mxu0 %v2637
    %4042 = vmatprep.subr.bf16.mxu0 %v2654
    %4043 = vmatpush1.bf16.msra.mxu0 %v2653
    %4044 = vmatprep.subr.bf16.mxu0 %v2670
    %4045 = vmatpush1.bf16.msra.mxu0 %v2669
    %4046 = vmatprep.subr.bf16.mxu0 %v2686
    %4047 = vmatpush1.bf16.msra.mxu0 %v2685
    %4048 = vmatprep.subr.bf16.mxu0 %v2702
    %4049 = vmatpush1.bf16.msra.mxu0 %v2701
    %4050 = vmatprep.subr.bf16.mxu0 %v2718
    %4051 = vmatpush1.bf16.msra.mxu0 %v2717
    %4052 = vmatprep.subr.bf16.mxu0 %v2734
    %4053 = vmatpush1.bf16.msra.mxu0 %v2733
    %4054 = vmatprep.subr.bf16.mxu0 %v2750
    %4055 = vmatpush1.bf16.msra.mxu0 %v2749
    %4056 = vmatprep.subr.bf16.mxu0 %v2766
    %4057 = vmatpush1.bf16.msra.mxu0 %v2765
    %4058 = vmatprep.subr.bf16.mxu0 %v2782
    %4059 = vmatpush1.bf16.msra.mxu0 %v2781
    %4060 = vmatprep.subr.bf16.mxu0 %v2798
    %4061 = vmatpush1.bf16.msra.mxu0 %v2797
    %4062 = vmatprep.subr.bf16.mxu0 %v2814
    %4063 = vmatpush1.bf16.msra.mxu0 %v2813
    %4064 = vmatprep.subr.bf16.mxu0 %v2830
    %4065 = vmatpush1.bf16.msra.mxu0 %v2829
    %4066 = vmatprep.mubr.bf16.mxu0 %v268
    %4067 = vmatmul.mubr.bf16.gmra.mrb[0].mxu0 %v267
    %v4068 = vpop.f32.mrb[0].mxu0
    %v4069 = vadd.f32 %v4016, %v4068
    %v4070 = vpop.f32.mrb[0].mxu0
    %v4071 = vadd.f32 %v4018, %v4070
    %v4072 = vpop.f32.mrb[0].mxu0
    %v4073 = vadd.f32 %v4020, %v4072
    %v4074 = vpop.f32.mrb[0].mxu0
    %v4075 = vadd.f32 %v4022, %v4074
    %4076 = vmatprep.mubr.bf16.mxu0 %v272
    %4077 = vmatmul.mubr.bf16.gmra.mrb[0].mxu0 %v271
    %v4078 = vpop.f32.mrb[0].mxu0
    %v4079 = vadd.f32 %v4026, %v4078
    %v4080 = vpop.f32.mrb[0].mxu0
    %v4081 = vadd.f32 %v4028, %v4080
    %v4082 = vpop.f32.mrb[0].mxu0
    %v4083 = vadd.f32 %v4030, %v4082
    %v4084 = vpop.f32.mrb[0].mxu0
    %v4085 = vadd.f32 %v4032, %v4084
    %4086 = vdwg.mxu0
    %4087 = vmatprep.subr.bf16.mxu0 %v2336
    %4088 = vmatpush1.bf16.msra.mxu0 %v2335
    %4089 = vmatprep.subr.bf16.mxu0 %v2352
    %4090 = vmatpush1.bf16.msra.mxu0 %v2351
    %4091 = vmatprep.subr.bf16.mxu0 %v2368
    %4092 = vmatpush1.bf16.msra.mxu0 %v2367
    %4093 = vmatprep.subr.bf16.mxu0 %v2384
    %4094 = vmatpush1.bf16.msra.mxu0 %v2383
    %4095 = vmatprep.subr.bf16.mxu0 %v2400
    %4096 = vmatpush1.bf16.msra.mxu0 %v2399
    %4097 = vmatprep.subr.bf16.mxu0 %v2416
    %4098 = vmatpush1.bf16.msra.mxu0 %v2415
    %4099 = vmatprep.subr.bf16.mxu0 %v2432
    %4100 = vmatpush1.bf16.msra.mxu0 %v2431
    %4101 = vmatprep.subr.bf16.mxu0 %v2448
    %4102 = vmatpush1.bf16.msra.mxu0 %v2447
    %4103 = vmatprep.subr.bf16.mxu0 %v2464
    %4104 = vmatpush1.bf16.msra.mxu0 %v2463
    %4105 = vmatprep.subr.bf16.mxu0 %v2480
    %4106 = vmatpush1.bf16.msra.mxu0 %v2479
    %4107 = vmatprep.subr.bf16.mxu0 %v2496
    %4108 = vmatpush1.bf16.msra.mxu0 %v2495
    %4109 = vmatprep.subr.bf16.mxu0 %v2512
    %4110 = vmatpush1.bf16.msra.mxu0 %v2511
    %4111 = vmatprep.subr.bf16.mxu0 %v2528
    %4112 = vmatpush1.bf16.msra.mxu0 %v2527
    %4113 = vmatprep.subr.bf16.mxu0 %v2544
    %4114 = vmatpush1.bf16.msra.mxu0 %v2543
    %4115 = vmatprep.subr.bf16.mxu0 %v2560
    %4116 = vmatpush1.bf16.msra.mxu0 %v2559
    %4117 = vmatprep.subr.bf16.mxu0 %v2576
    %4118 = vmatpush1.bf16.msra.mxu0 %v2575
    %4119 = vmatprep.mubr.bf16.mxu0 %v266
    %4120 = vmatmul.mubr.bf16.gmra.mrb[0].mxu0 %v265
    %v4121 = vpop.f32.mrb[0].mxu0
    %v4122 = vadd.f32 0.0, %v4121
    %v4123 = vpop.f32.mrb[0].mxu0
    %v4124 = vadd.f32 0.0, %v4123
    %v4125 = vpop.f32.mrb[0].mxu0
    %v4126 = vadd.f32 0.0, %v4125
    %v4127 = vpop.f32.mrb[0].mxu0
    %v4128 = vadd.f32 0.0, %v4127
    %4129 = vmatprep.mubr.bf16.mxu0 %v270
    %4130 = vmatmul.mubr.bf16.gmra.mrb[0].mxu0 %v269
    %v4131 = vpop.f32.mrb[0].mxu0
    %v4132 = vadd.f32 0.0, %v4131
    %v4133 = vpop.f32.mrb[0].mxu0
    %v4134 = vadd.f32 0.0, %v4133
    %v4135 = vpop.f32.mrb[0].mxu0
    %v4136 = vadd.f32 0.0, %v4135
    %v4137 = vpop.f32.mrb[0].mxu0
    %v4138 = vadd.f32 0.0, %v4137
    %4139 = vdwg.mxu0
    %4140 = vmatprep.subr.bf16.mxu0 %v2592
    %4141 = vmatpush1.bf16.msra.mxu0 %v2591
    %4142 = vmatprep.subr.bf16.mxu0 %v2608
    %4143 = vmatpush1.bf16.msra.mxu0 %v2607
    %4144 = vmatprep.subr.bf16.mxu0 %v2624
    %4145 = vmatpush1.bf16.msra.mxu0 %v2623
    %4146 = vmatprep.subr.bf16.mxu0 %v2640
    %4147 = vmatpush1.bf16.msra.mxu0 %v2639
    %4148 = vmatprep.subr.bf16.mxu0 %v2656
    %4149 = vmatpush1.bf16.msra.mxu0 %v2655
    %4150 = vmatprep.subr.bf16.mxu0 %v2672
    %4151 = vmatpush1.bf16.msra.mxu0 %v2671
    %4152 = vmatprep.subr.bf16.mxu0 %v2688
    %4153 = vmatpush1.bf16.msra.mxu0 %v2687
    %4154 = vmatprep.subr.bf16.mxu0 %v2704
    %4155 = vmatpush1.bf16.msra.mxu0 %v2703
    %4156 = vmatprep.subr.bf16.mxu0 %v2720
    %4157 = vmatpush1.bf16.msra.mxu0 %v2719
    %4158 = vmatprep.subr.bf16.mxu0 %v2736
    %4159 = vmatpush1.bf16.msra.mxu0 %v2735
    %4160 = vmatprep.subr.bf16.mxu0 %v2752
    %4161 = vmatpush1.bf16.msra.mxu0 %v2751
    %4162 = vmatprep.subr.bf16.mxu0 %v2768
    %4163 = vmatpush1.bf16.msra.mxu0 %v2767
    %4164 = vmatprep.subr.bf16.mxu0 %v2784
    %4165 = vmatpush1.bf16.msra.mxu0 %v2783
    %4166 = vmatprep.subr.bf16.mxu0 %v2800
    %4167 = vmatpush1.bf16.msra.mxu0 %v2799
    %4168 = vmatprep.subr.bf16.mxu0 %v2816
    %4169 = vmatpush1.bf16.msra.mxu0 %v2815
    %4170 = vmatprep.subr.bf16.mxu0 %v2832
    %4171 = vmatpush1.bf16.msra.mxu0 %v2831
    %4172 = vmatprep.mubr.bf16.mxu0 %v268
    %4173 = vmatmul.mubr.bf16.gmra.mrb[0].mxu0 %v267
    %v4174 = vpop.f32.mrb[0].mxu0
    %v4175 = vadd.f32 %v4122, %v4174
    %v4176 = vpop.f32.mrb[0].mxu0
    %v4177 = vadd.f32 %v4124, %v4176
    %v4178 = vpop.f32.mrb[0].mxu0
    %v4179 = vadd.f32 %v4126, %v4178
    %v4180 = vpop.f32.mrb[0].mxu0
    %v4181 = vadd.f32 %v4128, %v4180
    %4182 = vmatprep.mubr.bf16.mxu0 %v272
    %4183 = vmatmul.mubr.bf16.gmra.mrb[0].mxu0 %v271
    %v4184 = vpop.f32.mrb[0].mxu0
    %v4185 = vadd.f32 %v4132, %v4184
    %v4186 = vpop.f32.mrb[0].mxu0
    %v4187 = vadd.f32 %v4134, %v4186
    %v4188 = vpop.f32.mrb[0].mxu0
    %v4189 = vadd.f32 %v4136, %v4188
    %v4190 = vpop.f32.mrb[0].mxu0
    %v4191 = vadd.f32 %v4138, %v4190
    %4192 = vdwg.mxu0
    %v4193 = vadd.f32 %v201, %v3433
    %v4194 = vadd.f32 %v202, %v3435
    %v4195 = vadd.f32 %v203, %v3539
    %v4196 = vadd.f32 %v204, %v3541
    %v4197 = vadd.f32 %v205, %v3645
    %v4198 = vadd.f32 %v206, %v3647
    %v4199 = vadd.f32 %v207, %v3751
    %v4200 = vadd.f32 %v208, %v3753
    %v4201 = vadd.f32 %v209, %v3857
    %v4202 = vadd.f32 %v210, %v3859
    %v4203 = vadd.f32 %v211, %v3963
    %v4204 = vadd.f32 %v212, %v3965
    %v4205 = vadd.f32 %v213, %v4069
    %v4206 = vadd.f32 %v214, %v4071
    %v4207 = vadd.f32 %v215, %v4175
    %v4208 = vadd.f32 %v216, %v4177
    %v4209 = vadd.f32 %v217, %v3437
    %v4210 = vadd.f32 %v218, %v3439
    %v4211 = vadd.f32 %v219, %v3543
    %v4212 = vadd.f32 %v220, %v3545
    %v4213 = vadd.f32 %v221, %v3649
    %v4214 = vadd.f32 %v222, %v3651
    %v4215 = vadd.f32 %v223, %v3755
    %v4216 = vadd.f32 %v224, %v3757
    %v4217 = vadd.f32 %v225, %v3861
    %v4218 = vadd.f32 %v226, %v3863
    %v4219 = vadd.f32 %v227, %v3967
    %v4220 = vadd.f32 %v228, %v3969
    %v4221 = vadd.f32 %v229, %v4073
    %v4222 = vadd.f32 %v230, %v4075
    %v4223 = vadd.f32 %v231, %v4179
    %v4224 = vadd.f32 %v232, %v4181
    %v4225 = vadd.f32 %v233, %v3443
    %v4226 = vadd.f32 %v234, %v3445
    %v4227 = vadd.f32 %v235, %v3549
    %v4228 = vadd.f32 %v236, %v3551
    %v4229 = vadd.f32 %v237, %v3655
    %v4230 = vadd.f32 %v238, %v3657
    %v4231 = vadd.f32 %v239, %v3761
    %v4232 = vadd.f32 %v240, %v3763
    %v4233 = vadd.f32 %v241, %v3867
    %v4234 = vadd.f32 %v242, %v3869
    %v4235 = vadd.f32 %v243, %v3973
    %v4236 = vadd.f32 %v244, %v3975
    %v4237 = vadd.f32 %v245, %v4079
    %v4238 = vadd.f32 %v246, %v4081
    %v4239 = vadd.f32 %v247, %v4185
    %v4240 = vadd.f32 %v248, %v4187
    %v4241 = vadd.f32 %v249, %v3447
    %v4242 = vadd.f32 %v250, %v3449
    %v4243 = vadd.f32 %v251, %v3553
    %v4244 = vadd.f32 %v252, %v3555
    %v4245 = vadd.f32 %v253, %v3659
    %v4246 = vadd.f32 %v254, %v3661
    %v4247 = vadd.f32 %v255, %v3765
    %v4248 = vadd.f32 %v256, %v3767
    %v4249 = vadd.f32 %v257, %v3871
    %v4250 = vadd.f32 %v258, %v3873
    %v4251 = vadd.f32 %v259, %v3977
    %v4252 = vadd.f32 %v260, %v3979
    %v4253 = vadd.f32 %v261, %v4083
    %v4254 = vadd.f32 %v262, %v4085
    %v4255 = vadd.f32 %v263, %v4189
    %v4256 = vadd.f32 %v264, %v4191
    %v4257 = vmul.f32 %v4193, 0.5
    %v4258 = vmul.f32 %v4194, 0.5
    %v4259 = vmul.f32 %v4195, 0.5
    %v4260 = vmul.f32 %v4196, 0.5
    %v4261 = vmul.f32 %v4209, 0.5
    %v4262 = vmul.f32 %v4210, 0.5
    %v4263 = vmul.f32 %v4211, 0.5
    %v4264 = vmul.f32 %v4212, 0.5
    %v4265 = vmul.f32 %v4225, 0.5
    %v4266 = vmul.f32 %v4226, 0.5
    %v4267 = vmul.f32 %v4227, 0.5
    %v4268 = vmul.f32 %v4228, 0.5
    %v4269 = vmul.f32 %v4241, 0.5
    %v4270 = vmul.f32 %v4242, 0.5
    %v4271 = vmul.f32 %v4243, 0.5
    %v4272 = vmul.f32 %v4244, 0.5
    %v4273 = vtanh.pop %v4257
    %v4274 = vtanh.pop %v4258
    %v4275 = vtanh.pop %v4259
    %v4276 = vtanh.pop %v4260
    %v4277 = vtanh.pop %v4261
    %v4278 = vtanh.pop %v4262
    %v4279 = vtanh.pop %v4263
    %v4280 = vtanh.pop %v4264
    %v4281 = vtanh.pop %v4265
    %v4282 = vtanh.pop %v4266
    %v4283 = vtanh.pop %v4267
    %v4284 = vtanh.pop %v4268
    %v4285 = vtanh.pop %v4269
    %v4286 = vtanh.pop %v4270
    %v4287 = vtanh.pop %v4271
    %v4288 = vtanh.pop %v4272
    %v4289 = vmul.f32 %v4273, 0.5
    %v4290 = vmul.f32 %v4274, 0.5
    %v4291 = vmul.f32 %v4275, 0.5
    %v4292 = vmul.f32 %v4276, 0.5
    %v4293 = vmul.f32 %v4277, 0.5
    %v4294 = vmul.f32 %v4278, 0.5
    %v4295 = vmul.f32 %v4279, 0.5
    %v4296 = vmul.f32 %v4280, 0.5
    %v4297 = vmul.f32 %v4281, 0.5
    %v4298 = vmul.f32 %v4282, 0.5
    %v4299 = vmul.f32 %v4283, 0.5
    %v4300 = vmul.f32 %v4284, 0.5
    %v4301 = vmul.f32 %v4285, 0.5
    %v4302 = vmul.f32 %v4286, 0.5
    %v4303 = vmul.f32 %v4287, 0.5
    %v4304 = vmul.f32 %v4288, 0.5
    %v4305 = vadd.f32 %v4289, 0.5
    %v4306 = vadd.f32 %v4290, 0.5
    %v4307 = vadd.f32 %v4291, 0.5
    %v4308 = vadd.f32 %v4292, 0.5
    %v4309 = vadd.f32 %v4293, 0.5
    %v4310 = vadd.f32 %v4294, 0.5
    %v4311 = vadd.f32 %v4295, 0.5
    %v4312 = vadd.f32 %v4296, 0.5
    %v4313 = vadd.f32 %v4297, 0.5
    %v4314 = vadd.f32 %v4298, 0.5
    %v4315 = vadd.f32 %v4299, 0.5
    %v4316 = vadd.f32 %v4300, 0.5
    %v4317 = vadd.f32 %v4301, 0.5
    %v4318 = vadd.f32 %v4302, 0.5
    %v4319 = vadd.f32 %v4303, 0.5
    %v4320 = vadd.f32 %v4304, 0.5
    %v4321 = vmul.f32 %v4197, 0.5
    %v4322 = vmul.f32 %v4198, 0.5
    %v4323 = vmul.f32 %v4199, 0.5
    %v4324 = vmul.f32 %v4200, 0.5
    %v4325 = vmul.f32 %v4213, 0.5
    %v4326 = vmul.f32 %v4214, 0.5
    %v4327 = vmul.f32 %v4215, 0.5
    %v4328 = vmul.f32 %v4216, 0.5
    %v4329 = vmul.f32 %v4229, 0.5
    %v4330 = vmul.f32 %v4230, 0.5
    %v4331 = vmul.f32 %v4231, 0.5
    %v4332 = vmul.f32 %v4232, 0.5
    %v4333 = vmul.f32 %v4245, 0.5
    %v4334 = vmul.f32 %v4246, 0.5
    %v4335 = vmul.f32 %v4247, 0.5
    %v4336 = vmul.f32 %v4248, 0.5
    %v4337 = vtanh.pop %v4321
    %v4338 = vtanh.pop %v4322
    %v4339 = vtanh.pop %v4323
    %v4340 = vtanh.pop %v4324
    %v4341 = vtanh.pop %v4325
    %v4342 = vtanh.pop %v4326
    %v4343 = vtanh.pop %v4327
    %v4344 = vtanh.pop %v4328
    %v4345 = vtanh.pop %v4329
    %v4346 = vtanh.pop %v4330
    %v4347 = vtanh.pop %v4331
    %v4348 = vtanh.pop %v4332
    %v4349 = vtanh.pop %v4333
    %v4350 = vtanh.pop %v4334
    %v4351 = vtanh.pop %v4335
    %v4352 = vtanh.pop %v4336
    %v4353 = vmul.f32 %v4337, 0.5
    %v4354 = vmul.f32 %v4338, 0.5
    %v4355 = vmul.f32 %v4339, 0.5
    %v4356 = vmul.f32 %v4340, 0.5
    %v4357 = vmul.f32 %v4341, 0.5
    %v4358 = vmul.f32 %v4342, 0.5
    %v4359 = vmul.f32 %v4343, 0.5
    %v4360 = vmul.f32 %v4344, 0.5
    %v4361 = vmul.f32 %v4345, 0.5
    %v4362 = vmul.f32 %v4346, 0.5
    %v4363 = vmul.f32 %v4347, 0.5
    %v4364 = vmul.f32 %v4348, 0.5
    %v4365 = vmul.f32 %v4349, 0.5
    %v4366 = vmul.f32 %v4350, 0.5
    %v4367 = vmul.f32 %v4351, 0.5
    %v4368 = vmul.f32 %v4352, 0.5
    %v4369 = vadd.f32 %v4353, 0.5
    %v4370 = vadd.f32 %v4354, 0.5
    %v4371 = vadd.f32 %v4355, 0.5
    %v4372 = vadd.f32 %v4356, 0.5
    %v4373 = vadd.f32 %v4357, 0.5
    %v4374 = vadd.f32 %v4358, 0.5
    %v4375 = vadd.f32 %v4359, 0.5
    %v4376 = vadd.f32 %v4360, 0.5
    %v4377 = vadd.f32 %v4361, 0.5
    %v4378 = vadd.f32 %v4362, 0.5
    %v4379 = vadd.f32 %v4363, 0.5
    %v4380 = vadd.f32 %v4364, 0.5
    %v4381 = vadd.f32 %v4365, 0.5
    %v4382 = vadd.f32 %v4366, 0.5
    %v4383 = vadd.f32 %v4367, 0.5
    %v4384 = vadd.f32 %v4368, 0.5
    %v4385 = vmul.f32 %v4201, 0.5
    %v4386 = vmul.f32 %v4202, 0.5
    %v4387 = vmul.f32 %v4203, 0.5
    %v4388 = vmul.f32 %v4204, 0.5
    %v4389 = vmul.f32 %v4217, 0.5
    %v4390 = vmul.f32 %v4218, 0.5
    %v4391 = vmul.f32 %v4219, 0.5
    %v4392 = vmul.f32 %v4220, 0.5
    %v4393 = vmul.f32 %v4233, 0.5
    %v4394 = vmul.f32 %v4234, 0.5
    %v4395 = vmul.f32 %v4235, 0.5
    %v4396 = vmul.f32 %v4236, 0.5
    %v4397 = vmul.f32 %v4249, 0.5
    %v4398 = vmul.f32 %v4250, 0.5
    %v4399 = vmul.f32 %v4251, 0.5
    %v4400 = vmul.f32 %v4252, 0.5
    %v4401 = vtanh.pop %v4385
    %v4402 = vtanh.pop %v4386
    %v4403 = vtanh.pop %v4387
    %v4404 = vtanh.pop %v4388
    %v4405 = vtanh.pop %v4389
    %v4406 = vtanh.pop %v4390
    %v4407 = vtanh.pop %v4391
    %v4408 = vtanh.pop %v4392
    %v4409 = vtanh.pop %v4393
    %v4410 = vtanh.pop %v4394
    %v4411 = vtanh.pop %v4395
    %v4412 = vtanh.pop %v4396
    %v4413 = vtanh.pop %v4397
    %v4414 = vtanh.pop %v4398
    %v4415 = vtanh.pop %v4399
    %v4416 = vtanh.pop %v4400
    %v4417 = vmul.f32 %v4401, 0.5
    %v4418 = vmul.f32 %v4402, 0.5
    %v4419 = vmul.f32 %v4403, 0.5
    %v4420 = vmul.f32 %v4404, 0.5
    %v4421 = vmul.f32 %v4405, 0.5
    %v4422 = vmul.f32 %v4406, 0.5
    %v4423 = vmul.f32 %v4407, 0.5
    %v4424 = vmul.f32 %v4408, 0.5
    %v4425 = vmul.f32 %v4409, 0.5
    %v4426 = vmul.f32 %v4410, 0.5
    %v4427 = vmul.f32 %v4411, 0.5
    %v4428 = vmul.f32 %v4412, 0.5
    %v4429 = vmul.f32 %v4413, 0.5
    %v4430 = vmul.f32 %v4414, 0.5
    %v4431 = vmul.f32 %v4415, 0.5
    %v4432 = vmul.f32 %v4416, 0.5
    %v4433 = vadd.f32 %v4417, 0.5
    %v4434 = vadd.f32 %v4418, 0.5
    %v4435 = vadd.f32 %v4419, 0.5
    %v4436 = vadd.f32 %v4420, 0.5
    %v4437 = vadd.f32 %v4421, 0.5
    %v4438 = vadd.f32 %v4422, 0.5
    %v4439 = vadd.f32 %v4423, 0.5
    %v4440 = vadd.f32 %v4424, 0.5
    %v4441 = vadd.f32 %v4425, 0.5
    %v4442 = vadd.f32 %v4426, 0.5
    %v4443 = vadd.f32 %v4427, 0.5
    %v4444 = vadd.f32 %v4428, 0.5
    %v4445 = vadd.f32 %v4429, 0.5
    %v4446 = vadd.f32 %v4430, 0.5
    %v4447 = vadd.f32 %v4431, 0.5
    %v4448 = vadd.f32 %v4432, 0.5
    %v4449 = vtanh.pop %v4205
    %v4450 = vtanh.pop %v4206
    %v4451 = vtanh.pop %v4207
    %v4452 = vtanh.pop %v4208
    %v4453 = vtanh.pop %v4221
    %v4454 = vtanh.pop %v4222
    %v4455 = vtanh.pop %v4223
    %v4456 = vtanh.pop %v4224
    %v4457 = vtanh.pop %v4237
    %v4458 = vtanh.pop %v4238
    %v4459 = vtanh.pop %v4239
    %v4460 = vtanh.pop %v4240
    %v4461 = vtanh.pop %v4253
    %v4462 = vtanh.pop %v4254
    %v4463 = vtanh.pop %v4255
    %v4464 = vtanh.pop %v4256
    %v4465 = vmul.f32 %v4369, %v150
    %v4466 = vmul.f32 %v4370, %v151
    %v4467 = vmul.f32 %v4371, %v152
    %v4468 = vmul.f32 %v4372, %v153
    %v4469 = vmul.f32 %v4373, %v154
    %v4470 = vmul.f32 %v4374, %v155
    %v4471 = vmul.f32 %v4375, %v156
    %v4472 = vmul.f32 %v4376, %v157
    %v4473 = vmul.f32 %v4377, %v158
    %v4474 = vmul.f32 %v4378, %v159
    %v4475 = vmul.f32 %v4379, %v160
    %v4476 = vmul.f32 %v4380, %v161
    %v4477 = vmul.f32 %v4381, %v162
    %v4478 = vmul.f32 %v4382, %v163
    %v4479 = vmul.f32 %v4383, %v164
    %v4480 = vmul.f32 %v4384, %v165
    %v4481 = vmul.f32 %v4305, %v4449
    %v4482 = vmul.f32 %v4306, %v4450
    %v4483 = vmul.f32 %v4307, %v4451
    %v4484 = vmul.f32 %v4308, %v4452
    %v4485 = vmul.f32 %v4309, %v4453
    %v4486 = vmul.f32 %v4310, %v4454
    %v4487 = vmul.f32 %v4311, %v4455
    %v4488 = vmul.f32 %v4312, %v4456
    %v4489 = vmul.f32 %v4313, %v4457
    %v4490 = vmul.f32 %v4314, %v4458
    %v4491 = vmul.f32 %v4315, %v4459
    %v4492 = vmul.f32 %v4316, %v4460
    %v4493 = vmul.f32 %v4317, %v4461
    %v4494 = vmul.f32 %v4318, %v4462
    %v4495 = vmul.f32 %v4319, %v4463
    %v4496 = vmul.f32 %v4320, %v4464
    %v4497 = vadd.f32 %v4465, %v4481
    %v4498 = vadd.f32 %v4466, %v4482
    %v4499 = vadd.f32 %v4467, %v4483
    %v4500 = vadd.f32 %v4468, %v4484
    %v4501 = vadd.f32 %v4469, %v4485
    %v4502 = vadd.f32 %v4470, %v4486
    %v4503 = vadd.f32 %v4471, %v4487
    %v4504 = vadd.f32 %v4472, %v4488
    %v4505 = vadd.f32 %v4473, %v4489
    %v4506 = vadd.f32 %v4474, %v4490
    %v4507 = vadd.f32 %v4475, %v4491
    %v4508 = vadd.f32 %v4476, %v4492
    %v4509 = vadd.f32 %v4477, %v4493
    %v4510 = vadd.f32 %v4478, %v4494
    %v4511 = vadd.f32 %v4479, %v4495
    %v4512 = vadd.f32 %v4480, %v4496
    %v4513 = vtanh.pop %v4497
    %v4514 = vtanh.pop %v4498
    %v4515 = vtanh.pop %v4499
    %v4516 = vtanh.pop %v4500
    %v4517 = vtanh.pop %v4501
    %v4518 = vtanh.pop %v4502
    %v4519 = vtanh.pop %v4503
    %v4520 = vtanh.pop %v4504
    %v4521 = vtanh.pop %v4505
    %v4522 = vtanh.pop %v4506
    %v4523 = vtanh.pop %v4507
    %v4524 = vtanh.pop %v4508
    %v4525 = vtanh.pop %v4509
    %v4526 = vtanh.pop %v4510
    %v4527 = vtanh.pop %v4511
    %v4528 = vtanh.pop %v4512
    %v4529 = vmul.f32 %v4433, %v4513
    %v4530 = vmul.f32 %v4434, %v4514
    %v4531 = vmul.f32 %v4435, %v4515
    %v4532 = vmul.f32 %v4436, %v4516
    %v4533 = vmul.f32 %v4437, %v4517
    %v4534 = vmul.f32 %v4438, %v4518
    %v4535 = vmul.f32 %v4439, %v4519
    %v4536 = vmul.f32 %v4440, %v4520
    %v4537 = vmul.f32 %v4441, %v4521
    %v4538 = vmul.f32 %v4442, %v4522
    %v4539 = vmul.f32 %v4443, %v4523
    %v4540 = vmul.f32 %v4444, %v4524
    %v4541 = vmul.f32 %v4445, %v4525
    %v4542 = vmul.f32 %v4446, %v4526
    %v4543 = vmul.f32 %v4447, %v4527
    %v4544 = vmul.f32 %v4448, %v4528
    %v4545 = vadd.f32 %v4529, %v4497
    %v4546 = vadd.f32 %v4530, %v4498
    %v4547 = vadd.f32 %v4531, %v4499
    %v4548 = vadd.f32 %v4532, %v4500
    %v4549 = vadd.f32 %v4533, %v4501
    %v4550 = vadd.f32 %v4534, %v4502
    %v4551 = vadd.f32 %v4535, %v4503
    %v4552 = vadd.f32 %v4536, %v4504
    %v4553 = vadd.f32 %v4537, %v4505
    %v4554 = vadd.f32 %v4538, %v4506
    %v4555 = vadd.f32 %v4539, %v4507
    %v4556 = vadd.f32 %v4540, %v4508
    %v4557 = vadd.f32 %v4541, %v4509
    %v4558 = vadd.f32 %v4542, %v4510
    %v4559 = vadd.f32 %v4543, %v4511
    %v4560 = vadd.f32 %v4544, %v4512
    %v4561 = vtanh.pop %v4545
    %v4562 = vtanh.pop %v4546
    %v4563 = vtanh.pop %v4547
    %v4564 = vtanh.pop %v4548
    %v4565 = vtanh.pop %v4549
    %v4566 = vtanh.pop %v4550
    %v4567 = vtanh.pop %v4551
    %v4568 = vtanh.pop %v4552
    %v4569 = vtanh.pop %v4553
    %v4570 = vtanh.pop %v4554
    %v4571 = vtanh.pop %v4555
    %v4572 = vtanh.pop %v4556
    %v4573 = vtanh.pop %v4557
    %v4574 = vtanh.pop %v4558
    %v4575 = vtanh.pop %v4559
    %v4576 = vtanh.pop %v4560
    %v4577 = vpack.c.bf16 %v4565, %v4561
    %v4578 = vpack.c.bf16 %v4566, %v4562
    %v4579 = vpack.c.bf16 %v4567, %v4563
    %v4580 = vpack.c.bf16 %v4568, %v4564
    %v4581 = vpack.c.bf16 %v4573, %v4569
    %v4582 = vpack.c.bf16 %v4574, %v4570
    %v4583 = vpack.c.bf16 %v4575, %v4571
    %v4584 = vpack.c.bf16 %v4576, %v4572
    %v4585 = vld [vmem:[#allocation5] sm:$0xff]
    %v4586 = vld [vmem:[#allocation5 + $0x8] sm:$0xff]
    %v4587 = vld [vmem:[#allocation5 + $0x10] sm:$0xff]
    %v4588 = vld [vmem:[#allocation5 + $0x18] sm:$0xff]
    %v4589 = vld [vmem:[#allocation5 + $0x20] sm:$0xff]
    %v4590 = vld [vmem:[#allocation5 + $0x28] sm:$0xff]
    %v4591 = vld [vmem:[#allocation5 + $0x30] sm:$0xff]
    %v4592 = vld [vmem:[#allocation5 + $0x38] sm:$0xff]
    %v4593 = vld [vmem:[#allocation5 + $0x40] sm:$0xff]
    %v4594 = vld [vmem:[#allocation5 + $0x48] sm:$0xff]
    %v4595 = vld [vmem:[#allocation5 + $0x50] sm:$0xff]
    %v4596 = vld [vmem:[#allocation5 + $0x58] sm:$0xff]
    %v4597 = vld [vmem:[#allocation5 + $0x60] sm:$0xff]
    %v4598 = vld [vmem:[#allocation5 + $0x68] sm:$0xff]
    %v4599 = vld [vmem:[#allocation5 + $0x70] sm:$0xff]
    %v4600 = vld [vmem:[#allocation5 + $0x78] sm:$0xff]
    %v4601 = vld [vmem:[#allocation5 + $0x80] sm:$0xff]
    %v4602 = vld [vmem:[#allocation5 + $0x88] sm:$0xff]
    %v4603 = vld [vmem:[#allocation5 + $0x90] sm:$0xff]
    %v4604 = vld [vmem:[#allocation5 + $0x98] sm:$0xff]
    %v4605 = vld [vmem:[#allocation5 + $0xa0] sm:$0xff]
    %v4606 = vld [vmem:[#allocation5 + $0xa8] sm:$0xff]
    %v4607 = vld [vmem:[#allocation5 + $0xb0] sm:$0xff]
    %v4608 = vld [vmem:[#allocation5 + $0xb8] sm:$0xff]
    %v4609 = vld [vmem:[#allocation5 + $0xc0] sm:$0xff]
    %v4610 = vld [vmem:[#allocation5 + $0xc8] sm:$0xff]
    %v4611 = vld [vmem:[#allocation5 + $0xd0] sm:$0xff]
    %v4612 = vld [vmem:[#allocation5 + $0xd8] sm:$0xff]
    %v4613 = vld [vmem:[#allocation5 + $0xe0] sm:$0xff]
    %v4614 = vld [vmem:[#allocation5 + $0xe8] sm:$0xff]
    %v4615 = vld [vmem:[#allocation5 + $0xf0] sm:$0xff]
    %v4616 = vld [vmem:[#allocation5 + $0xf8] sm:$0xff]
    %v4617 = vld [vmem:[#allocation5 + $0x100] sm:$0xff]
    %v4618 = vld [vmem:[#allocation5 + $0x108] sm:$0xff]
    %v4619 = vld [vmem:[#allocation5 + $0x110] sm:$0xff]
    %v4620 = vld [vmem:[#allocation5 + $0x118] sm:$0xff]
    %v4621 = vld [vmem:[#allocation5 + $0x120] sm:$0xff]
    %v4622 = vld [vmem:[#allocation5 + $0x128] sm:$0xff]
    %v4623 = vld [vmem:[#allocation5 + $0x130] sm:$0xff]
    %v4624 = vld [vmem:[#allocation5 + $0x138] sm:$0xff]
    %v4625 = vld [vmem:[#allocation5 + $0x140] sm:$0xff]
    %v4626 = vld [vmem:[#allocation5 + $0x148] sm:$0xff]
    %v4627 = vld [vmem:[#allocation5 + $0x150] sm:$0xff]
    %v4628 = vld [vmem:[#allocation5 + $0x158] sm:$0xff]
    %v4629 = vld [vmem:[#allocation5 + $0x160] sm:$0xff]
    %v4630 = vld [vmem:[#allocation5 + $0x168] sm:$0xff]
    %v4631 = vld [vmem:[#allocation5 + $0x170] sm:$0xff]
    %v4632 = vld [vmem:[#allocation5 + $0x178] sm:$0xff]
    %v4633 = vld [vmem:[#allocation5 + $0x180] sm:$0xff]
    %v4634 = vld [vmem:[#allocation5 + $0x188] sm:$0xff]
    %v4635 = vld [vmem:[#allocation5 + $0x190] sm:$0xff]
    %v4636 = vld [vmem:[#allocation5 + $0x198] sm:$0xff]
    %v4637 = vld [vmem:[#allocation5 + $0x1a0] sm:$0xff]
    %v4638 = vld [vmem:[#allocation5 + $0x1a8] sm:$0xff]
    %v4639 = vld [vmem:[#allocation5 + $0x1b0] sm:$0xff]
    %v4640 = vld [vmem:[#allocation5 + $0x1b8] sm:$0xff]
    %v4641 = vld [vmem:[#allocation5 + $0x1c0] sm:$0xff]
    %v4642 = vld [vmem:[#allocation5 + $0x1c8] sm:$0xff]
    %v4643 = vld [vmem:[#allocation5 + $0x1d0] sm:$0xff]
    %v4644 = vld [vmem:[#allocation5 + $0x1d8] sm:$0xff]
    %v4645 = vld [vmem:[#allocation5 + $0x1e0] sm:$0xff]
    %v4646 = vld [vmem:[#allocation5 + $0x1e8] sm:$0xff]
    %v4647 = vld [vmem:[#allocation5 + $0x1f0] sm:$0xff]
    %v4648 = vld [vmem:[#allocation5 + $0x1f8] sm:$0xff]
    %v4649 = vld [vmem:[#allocation5 + $0x200] sm:$0xff]
    %v4650 = vld [vmem:[#allocation5 + $0x208] sm:$0xff]
    %v4651 = vld [vmem:[#allocation5 + $0x210] sm:$0xff]
    %v4652 = vld [vmem:[#allocation5 + $0x218] sm:$0xff]
    %v4653 = vld [vmem:[#allocation5 + $0x220] sm:$0xff]
    %v4654 = vld [vmem:[#allocation5 + $0x228] sm:$0xff]
    %v4655 = vld [vmem:[#allocation5 + $0x230] sm:$0xff]
    %v4656 = vld [vmem:[#allocation5 + $0x238] sm:$0xff]
    %v4657 = vld [vmem:[#allocation5 + $0x240] sm:$0xff]
    %v4658 = vld [vmem:[#allocation5 + $0x248] sm:$0xff]
    %v4659 = vld [vmem:[#allocation5 + $0x250] sm:$0xff]
    %v4660 = vld [vmem:[#allocation5 + $0x258] sm:$0xff]
    %v4661 = vld [vmem:[#allocation5 + $0x260] sm:$0xff]
    %v4662 = vld [vmem:[#allocation5 + $0x268] sm:$0xff]
    %v4663 = vld [vmem:[#allocation5 + $0x270] sm:$0xff]
    %v4664 = vld [vmem:[#allocation5 + $0x278] sm:$0xff]
    %v4665 = vld [vmem:[#allocation5 + $0x280] sm:$0xff]
    %v4666 = vld [vmem:[#allocation5 + $0x288] sm:$0xff]
    %v4667 = vld [vmem:[#allocation5 + $0x290] sm:$0xff]
    %v4668 = vld [vmem:[#allocation5 + $0x298] sm:$0xff]
    %v4669 = vld [vmem:[#allocation5 + $0x2a0] sm:$0xff]
    %v4670 = vld [vmem:[#allocation5 + $0x2a8] sm:$0xff]
    %v4671 = vld [vmem:[#allocation5 + $0x2b0] sm:$0xff]
    %v4672 = vld [vmem:[#allocation5 + $0x2b8] sm:$0xff]
    %v4673 = vld [vmem:[#allocation5 + $0x2c0] sm:$0xff]
    %v4674 = vld [vmem:[#allocation5 + $0x2c8] sm:$0xff]
    %v4675 = vld [vmem:[#allocation5 + $0x2d0] sm:$0xff]
    %v4676 = vld [vmem:[#allocation5 + $0x2d8] sm:$0xff]
    %v4677 = vld [vmem:[#allocation5 + $0x2e0] sm:$0xff]
    %v4678 = vld [vmem:[#allocation5 + $0x2e8] sm:$0xff]
    %v4679 = vld [vmem:[#allocation5 + $0x2f0] sm:$0xff]
    %v4680 = vld [vmem:[#allocation5 + $0x2f8] sm:$0xff]
    %v4681 = vld [vmem:[#allocation5 + $0x300] sm:$0xff]
    %v4682 = vld [vmem:[#allocation5 + $0x308] sm:$0xff]
    %v4683 = vld [vmem:[#allocation5 + $0x310] sm:$0xff]
    %v4684 = vld [vmem:[#allocation5 + $0x318] sm:$0xff]
    %v4685 = vld [vmem:[#allocation5 + $0x320] sm:$0xff]
    %v4686 = vld [vmem:[#allocation5 + $0x328] sm:$0xff]
    %v4687 = vld [vmem:[#allocation5 + $0x330] sm:$0xff]
    %v4688 = vld [vmem:[#allocation5 + $0x338] sm:$0xff]
    %v4689 = vld [vmem:[#allocation5 + $0x340] sm:$0xff]
    %v4690 = vld [vmem:[#allocation5 + $0x348] sm:$0xff]
    %v4691 = vld [vmem:[#allocation5 + $0x350] sm:$0xff]
    %v4692 = vld [vmem:[#allocation5 + $0x358] sm:$0xff]
    %v4693 = vld [vmem:[#allocation5 + $0x360] sm:$0xff]
    %v4694 = vld [vmem:[#allocation5 + $0x368] sm:$0xff]
    %v4695 = vld [vmem:[#allocation5 + $0x370] sm:$0xff]
    %v4696 = vld [vmem:[#allocation5 + $0x378] sm:$0xff]
    %v4697 = vld [vmem:[#allocation5 + $0x380] sm:$0xff]
    %v4698 = vld [vmem:[#allocation5 + $0x388] sm:$0xff]
    %v4699 = vld [vmem:[#allocation5 + $0x390] sm:$0xff]
    %v4700 = vld [vmem:[#allocation5 + $0x398] sm:$0xff]
    %v4701 = vld [vmem:[#allocation5 + $0x3a0] sm:$0xff]
    %v4702 = vld [vmem:[#allocation5 + $0x3a8] sm:$0xff]
    %v4703 = vld [vmem:[#allocation5 + $0x3b0] sm:$0xff]
    %v4704 = vld [vmem:[#allocation5 + $0x3b8] sm:$0xff]
    %v4705 = vld [vmem:[#allocation5 + $0x3c0] sm:$0xff]
    %v4706 = vld [vmem:[#allocation5 + $0x3c8] sm:$0xff]
    %v4707 = vld [vmem:[#allocation5 + $0x3d0] sm:$0xff]
    %v4708 = vld [vmem:[#allocation5 + $0x3d8] sm:$0xff]
    %v4709 = vld [vmem:[#allocation5 + $0x3e0] sm:$0xff]
    %v4710 = vld [vmem:[#allocation5 + $0x3e8] sm:$0xff]
    %v4711 = vld [vmem:[#allocation5 + $0x3f0] sm:$0xff]
    %v4712 = vld [vmem:[#allocation5 + $0x3f8] sm:$0xff]
    %v4713 = vld [vmem:[%s7] sm:$0xf]
    %v4715 = vlaneseq
    %v4716 = vshrl.u32 %v4715, 7
    %v4717 = vsub.s32 0, %v4716
    %v4718 = vrot.slane %v4713, %v4717
    %v4719 = vlaneseq
    %v4720 = vshrl.u32 %v4719, 7
    %v4721 = vsub.s32 1, %v4720
    %v4722 = vrot.slane %v4713, %v4721
    %v4723 = vlaneseq
    %v4724 = vshrl.u32 %v4723, 7
    %v4725 = vsub.s32 2, %v4724
    %v4726 = vrot.slane %v4713, %v4725
    %v4727 = vlaneseq
    %v4728 = vshrl.u32 %v4727, 7
    %v4729 = vsub.s32 3, %v4728
    %v4730 = vrot.slane %v4713, %v4729
    %v4863 = vunpack.c.l.b16 %v4585
    %v4864 = vunpack.c.h.b16 %v4585
    %v4865 = vunpack.c.l.b16 %v4586
    %v4866 = vunpack.c.h.b16 %v4586
    %v4867 = vunpack.c.l.b16 %v4587
    %v4868 = vunpack.c.h.b16 %v4587
    %v4869 = vunpack.c.l.b16 %v4588
    %v4870 = vunpack.c.h.b16 %v4588
    %v4871 = vunpack.c.l.b16 %v4589
    %v4872 = vunpack.c.h.b16 %v4589
    %v4873 = vunpack.c.l.b16 %v4590
    %v4874 = vunpack.c.h.b16 %v4590
    %v4875 = vunpack.c.l.b16 %v4591
    %v4876 = vunpack.c.h.b16 %v4591
    %v4877 = vunpack.c.l.b16 %v4592
    %v4878 = vunpack.c.h.b16 %v4592
    %v4879 = vunpack.c.l.b16 %v4593
    %v4880 = vunpack.c.h.b16 %v4593
    %v4881 = vunpack.c.l.b16 %v4594
    %v4882 = vunpack.c.h.b16 %v4594
    %v4883 = vunpack.c.l.b16 %v4595
    %v4884 = vunpack.c.h.b16 %v4595
    %v4885 = vunpack.c.l.b16 %v4596
    %v4886 = vunpack.c.h.b16 %v4596
    %v4887 = vunpack.c.l.b16 %v4597
    %v4888 = vunpack.c.h.b16 %v4597
    %v4889 = vunpack.c.l.b16 %v4598
    %v4890 = vunpack.c.h.b16 %v4598
    %v4891 = vunpack.c.l.b16 %v4599
    %v4892 = vunpack.c.h.b16 %v4599
    %v4893 = vunpack.c.l.b16 %v4600
    %v4894 = vunpack.c.h.b16 %v4600
    %v4895 = vunpack.c.l.b16 %v4601
    %v4896 = vunpack.c.h.b16 %v4601
    %v4897 = vunpack.c.l.b16 %v4602
    %v4898 = vunpack.c.h.b16 %v4602
    %v4899 = vunpack.c.l.b16 %v4603
    %v4900 = vunpack.c.h.b16 %v4603
    %v4901 = vunpack.c.l.b16 %v4604
    %v4902 = vunpack.c.h.b16 %v4604
    %v4903 = vunpack.c.l.b16 %v4605
    %v4904 = vunpack.c.h.b16 %v4605
    %v4905 = vunpack.c.l.b16 %v4606
    %v4906 = vunpack.c.h.b16 %v4606
    %v4907 = vunpack.c.l.b16 %v4607
    %v4908 = vunpack.c.h.b16 %v4607
    %v4909 = vunpack.c.l.b16 %v4608
    %v4910 = vunpack.c.h.b16 %v4608
    %v4911 = vunpack.c.l.b16 %v4609
    %v4912 = vunpack.c.h.b16 %v4609
    %v4913 = vunpack.c.l.b16 %v4610
    %v4914 = vunpack.c.h.b16 %v4610
    %v4915 = vunpack.c.l.b16 %v4611
    %v4916 = vunpack.c.h.b16 %v4611
    %v4917 = vunpack.c.l.b16 %v4612
    %v4918 = vunpack.c.h.b16 %v4612
    %v4919 = vunpack.c.l.b16 %v4613
    %v4920 = vunpack.c.h.b16 %v4613
    %v4921 = vunpack.c.l.b16 %v4614
    %v4922 = vunpack.c.h.b16 %v4614
    %v4923 = vunpack.c.l.b16 %v4615
    %v4924 = vunpack.c.h.b16 %v4615
    %v4925 = vunpack.c.l.b16 %v4616
    %v4926 = vunpack.c.h.b16 %v4616
    %v4927 = vunpack.c.l.b16 %v4617
    %v4928 = vunpack.c.h.b16 %v4617
    %v4929 = vunpack.c.l.b16 %v4618
    %v4930 = vunpack.c.h.b16 %v4618
    %v4931 = vunpack.c.l.b16 %v4619
    %v4932 = vunpack.c.h.b16 %v4619
    %v4933 = vunpack.c.l.b16 %v4620
    %v4934 = vunpack.c.h.b16 %v4620
    %v4935 = vunpack.c.l.b16 %v4621
    %v4936 = vunpack.c.h.b16 %v4621
    %v4937 = vunpack.c.l.b16 %v4622
    %v4938 = vunpack.c.h.b16 %v4622
    %v4939 = vunpack.c.l.b16 %v4623
    %v4940 = vunpack.c.h.b16 %v4623
    %v4941 = vunpack.c.l.b16 %v4624
    %v4942 = vunpack.c.h.b16 %v4624
    %v4943 = vunpack.c.l.b16 %v4625
    %v4944 = vunpack.c.h.b16 %v4625
    %v4945 = vunpack.c.l.b16 %v4626
    %v4946 = vunpack.c.h.b16 %v4626
    %v4947 = vunpack.c.l.b16 %v4627
    %v4948 = vunpack.c.h.b16 %v4627
    %v4949 = vunpack.c.l.b16 %v4628
    %v4950 = vunpack.c.h.b16 %v4628
    %v4951 = vunpack.c.l.b16 %v4629
    %v4952 = vunpack.c.h.b16 %v4629
    %v4953 = vunpack.c.l.b16 %v4630
    %v4954 = vunpack.c.h.b16 %v4630
    %v4955 = vunpack.c.l.b16 %v4631
    %v4956 = vunpack.c.h.b16 %v4631
    %v4957 = vunpack.c.l.b16 %v4632
    %v4958 = vunpack.c.h.b16 %v4632
    %v4959 = vunpack.c.l.b16 %v4633
    %v4960 = vunpack.c.h.b16 %v4633
    %v4961 = vunpack.c.l.b16 %v4634
    %v4962 = vunpack.c.h.b16 %v4634
    %v4963 = vunpack.c.l.b16 %v4635
    %v4964 = vunpack.c.h.b16 %v4635
    %v4965 = vunpack.c.l.b16 %v4636
    %v4966 = vunpack.c.h.b16 %v4636
    %v4967 = vunpack.c.l.b16 %v4637
    %v4968 = vunpack.c.h.b16 %v4637
    %v4969 = vunpack.c.l.b16 %v4638
    %v4970 = vunpack.c.h.b16 %v4638
    %v4971 = vunpack.c.l.b16 %v4639
    %v4972 = vunpack.c.h.b16 %v4639
    %v4973 = vunpack.c.l.b16 %v4640
    %v4974 = vunpack.c.h.b16 %v4640
    %v4975 = vunpack.c.l.b16 %v4641
    %v4976 = vunpack.c.h.b16 %v4641
    %v4977 = vunpack.c.l.b16 %v4642
    %v4978 = vunpack.c.h.b16 %v4642
    %v4979 = vunpack.c.l.b16 %v4643
    %v4980 = vunpack.c.h.b16 %v4643
    %v4981 = vunpack.c.l.b16 %v4644
    %v4982 = vunpack.c.h.b16 %v4644
    %v4983 = vunpack.c.l.b16 %v4645
    %v4984 = vunpack.c.h.b16 %v4645
    %v4985 = vunpack.c.l.b16 %v4646
    %v4986 = vunpack.c.h.b16 %v4646
    %v4987 = vunpack.c.l.b16 %v4647
    %v4988 = vunpack.c.h.b16 %v4647
    %v4989 = vunpack.c.l.b16 %v4648
    %v4990 = vunpack.c.h.b16 %v4648
    %v4991 = vunpack.c.l.b16 %v4649
    %v4992 = vunpack.c.h.b16 %v4649
    %v4993 = vunpack.c.l.b16 %v4650
    %v4994 = vunpack.c.h.b16 %v4650
    %v4995 = vunpack.c.l.b16 %v4651
    %v4996 = vunpack.c.h.b16 %v4651
    %v4997 = vunpack.c.l.b16 %v4652
    %v4998 = vunpack.c.h.b16 %v4652
    %v4999 = vunpack.c.l.b16 %v4653
    %v5000 = vunpack.c.h.b16 %v4653
    %v5001 = vunpack.c.l.b16 %v4654
    %v5002 = vunpack.c.h.b16 %v4654
    %v5003 = vunpack.c.l.b16 %v4655
    %v5004 = vunpack.c.h.b16 %v4655
    %v5005 = vunpack.c.l.b16 %v4656
    %v5006 = vunpack.c.h.b16 %v4656
    %v5007 = vunpack.c.l.b16 %v4657
    %v5008 = vunpack.c.h.b16 %v4657
    %v5009 = vunpack.c.l.b16 %v4658
    %v5010 = vunpack.c.h.b16 %v4658
    %v5011 = vunpack.c.l.b16 %v4659
    %v5012 = vunpack.c.h.b16 %v4659
    %v5013 = vunpack.c.l.b16 %v4660
    %v5014 = vunpack.c.h.b16 %v4660
    %v5015 = vunpack.c.l.b16 %v4661
    %v5016 = vunpack.c.h.b16 %v4661
    %v5017 = vunpack.c.l.b16 %v4662
    %v5018 = vunpack.c.h.b16 %v4662
    %v5019 = vunpack.c.l.b16 %v4663
    %v5020 = vunpack.c.h.b16 %v4663
    %v5021 = vunpack.c.l.b16 %v4664
    %v5022 = vunpack.c.h.b16 %v4664
    %v5023 = vunpack.c.l.b16 %v4665
    %v5024 = vunpack.c.h.b16 %v4665
    %v5025 = vunpack.c.l.b16 %v4666
    %v5026 = vunpack.c.h.b16 %v4666
    %v5027 = vunpack.c.l.b16 %v4667
    %v5028 = vunpack.c.h.b16 %v4667
    %v5029 = vunpack.c.l.b16 %v4668
    %v5030 = vunpack.c.h.b16 %v4668
    %v5031 = vunpack.c.l.b16 %v4669
    %v5032 = vunpack.c.h.b16 %v4669
    %v5033 = vunpack.c.l.b16 %v4670
    %v5034 = vunpack.c.h.b16 %v4670
    %v5035 = vunpack.c.l.b16 %v4671
    %v5036 = vunpack.c.h.b16 %v4671
    %v5037 = vunpack.c.l.b16 %v4672
    %v5038 = vunpack.c.h.b16 %v4672
    %v5039 = vunpack.c.l.b16 %v4673
    %v5040 = vunpack.c.h.b16 %v4673
    %v5041 = vunpack.c.l.b16 %v4674
    %v5042 = vunpack.c.h.b16 %v4674
    %v5043 = vunpack.c.l.b16 %v4675
    %v5044 = vunpack.c.h.b16 %v4675
    %v5045 = vunpack.c.l.b16 %v4676
    %v5046 = vunpack.c.h.b16 %v4676
    %v5047 = vunpack.c.l.b16 %v4677
    %v5048 = vunpack.c.h.b16 %v4677
    %v5049 = vunpack.c.l.b16 %v4678
    %v5050 = vunpack.c.h.b16 %v4678
    %v5051 = vunpack.c.l.b16 %v4679
    %v5052 = vunpack.c.h.b16 %v4679
    %v5053 = vunpack.c.l.b16 %v4680
    %v5054 = vunpack.c.h.b16 %v4680
    %v5055 = vunpack.c.l.b16 %v4681
    %v5056 = vunpack.c.h.b16 %v4681
    %v5057 = vunpack.c.l.b16 %v4682
    %v5058 = vunpack.c.h.b16 %v4682
    %v5059 = vunpack.c.l.b16 %v4683
    %v5060 = vunpack.c.h.b16 %v4683
    %v5061 = vunpack.c.l.b16 %v4684
    %v5062 = vunpack.c.h.b16 %v4684
    %v5063 = vunpack.c.l.b16 %v4685
    %v5064 = vunpack.c.h.b16 %v4685
    %v5065 = vunpack.c.l.b16 %v4686
    %v5066 = vunpack.c.h.b16 %v4686
    %v5067 = vunpack.c.l.b16 %v4687
    %v5068 = vunpack.c.h.b16 %v4687
    %v5069 = vunpack.c.l.b16 %v4688
    %v5070 = vunpack.c.h.b16 %v4688
    %v5071 = vunpack.c.l.b16 %v4689
    %v5072 = vunpack.c.h.b16 %v4689
    %v5073 = vunpack.c.l.b16 %v4690
    %v5074 = vunpack.c.h.b16 %v4690
    %v5075 = vunpack.c.l.b16 %v4691
    %v5076 = vunpack.c.h.b16 %v4691
    %v5077 = vunpack.c.l.b16 %v4692
    %v5078 = vunpack.c.h.b16 %v4692
    %v5079 = vunpack.c.l.b16 %v4693
    %v5080 = vunpack.c.h.b16 %v4693
    %v5081 = vunpack.c.l.b16 %v4694
    %v5082 = vunpack.c.h.b16 %v4694
    %v5083 = vunpack.c.l.b16 %v4695
    %v5084 = vunpack.c.h.b16 %v4695
    %v5085 = vunpack.c.l.b16 %v4696
    %v5086 = vunpack.c.h.b16 %v4696
    %v5087 = vunpack.c.l.b16 %v4697
    %v5088 = vunpack.c.h.b16 %v4697
    %v5089 = vunpack.c.l.b16 %v4698
    %v5090 = vunpack.c.h.b16 %v4698
    %v5091 = vunpack.c.l.b16 %v4699
    %v5092 = vunpack.c.h.b16 %v4699
    %v5093 = vunpack.c.l.b16 %v4700
    %v5094 = vunpack.c.h.b16 %v4700
    %v5095 = vunpack.c.l.b16 %v4701
    %v5096 = vunpack.c.h.b16 %v4701
    %v5097 = vunpack.c.l.b16 %v4702
    %v5098 = vunpack.c.h.b16 %v4702
    %v5099 = vunpack.c.l.b16 %v4703
    %v5100 = vunpack.c.h.b16 %v4703
    %v5101 = vunpack.c.l.b16 %v4704
    %v5102 = vunpack.c.h.b16 %v4704
    %v5103 = vunpack.c.l.b16 %v4705
    %v5104 = vunpack.c.h.b16 %v4705
    %v5105 = vunpack.c.l.b16 %v4706
    %v5106 = vunpack.c.h.b16 %v4706
    %v5107 = vunpack.c.l.b16 %v4707
    %v5108 = vunpack.c.h.b16 %v4707
    %v5109 = vunpack.c.l.b16 %v4708
    %v5110 = vunpack.c.h.b16 %v4708
    %v5111 = vunpack.c.l.b16 %v4709
    %v5112 = vunpack.c.h.b16 %v4709
    %v5113 = vunpack.c.l.b16 %v4710
    %v5114 = vunpack.c.h.b16 %v4710
    %v5115 = vunpack.c.l.b16 %v4711
    %v5116 = vunpack.c.h.b16 %v4711
    %v5117 = vunpack.c.l.b16 %v4712
    %v5118 = vunpack.c.h.b16 %v4712
    %v5119 = vpack.c.b16 %v4867, %v4863
    %v5120 = vpack.c.b16 %v4868, %v4864
    %v5121 = vpack.c.b16 %v4869, %v4865
    %v5122 = vpack.c.b16 %v4870, %v4866
    %v5123 = vpack.c.b16 %v4875, %v4871
    %v5124 = vpack.c.b16 %v4876, %v4872
    %v5125 = vpack.c.b16 %v4877, %v4873
    %v5126 = vpack.c.b16 %v4878, %v4874
    %v5127 = vpack.c.b16 %v4883, %v4879
    %v5128 = vpack.c.b16 %v4884, %v4880
    %v5129 = vpack.c.b16 %v4885, %v4881
    %v5130 = vpack.c.b16 %v4886, %v4882
    %v5131 = vpack.c.b16 %v4891, %v4887
    %v5132 = vpack.c.b16 %v4892, %v4888
    %v5133 = vpack.c.b16 %v4893, %v4889
    %v5134 = vpack.c.b16 %v4894, %v4890
    %v5135 = vpack.c.b16 %v4899, %v4895
    %v5136 = vpack.c.b16 %v4900, %v4896
    %v5137 = vpack.c.b16 %v4901, %v4897
    %v5138 = vpack.c.b16 %v4902, %v4898
    %v5139 = vpack.c.b16 %v4907, %v4903
    %v5140 = vpack.c.b16 %v4908, %v4904
    %v5141 = vpack.c.b16 %v4909, %v4905
    %v5142 = vpack.c.b16 %v4910, %v4906
    %v5143 = vpack.c.b16 %v4915, %v4911
    %v5144 = vpack.c.b16 %v4916, %v4912
    %v5145 = vpack.c.b16 %v4917, %v4913
    %v5146 = vpack.c.b16 %v4918, %v4914
    %v5147 = vpack.c.b16 %v4923, %v4919
    %v5148 = vpack.c.b16 %v4924, %v4920
    %v5149 = vpack.c.b16 %v4925, %v4921
    %v5150 = vpack.c.b16 %v4926, %v4922
    %v5151 = vpack.c.b16 %v4931, %v4927
    %v5152 = vpack.c.b16 %v4932, %v4928
    %v5153 = vpack.c.b16 %v4933, %v4929
    %v5154 = vpack.c.b16 %v4934, %v4930
    %v5155 = vpack.c.b16 %v4939, %v4935
    %v5156 = vpack.c.b16 %v4940, %v4936
    %v5157 = vpack.c.b16 %v4941, %v4937
    %v5158 = vpack.c.b16 %v4942, %v4938
    %v5159 = vpack.c.b16 %v4947, %v4943
    %v5160 = vpack.c.b16 %v4948, %v4944
    %v5161 = vpack.c.b16 %v4949, %v4945
    %v5162 = vpack.c.b16 %v4950, %v4946
    %v5163 = vpack.c.b16 %v4955, %v4951
    %v5164 = vpack.c.b16 %v4956, %v4952
    %v5165 = vpack.c.b16 %v4957, %v4953
    %v5166 = vpack.c.b16 %v4958, %v4954
    %v5167 = vpack.c.b16 %v4963, %v4959
    %v5168 = vpack.c.b16 %v4964, %v4960
    %v5169 = vpack.c.b16 %v4965, %v4961
    %v5170 = vpack.c.b16 %v4966, %v4962
    %v5171 = vpack.c.b16 %v4971, %v4967
    %v5172 = vpack.c.b16 %v4972, %v4968
    %v5173 = vpack.c.b16 %v4973, %v4969
    %v5174 = vpack.c.b16 %v4974, %v4970
    %v5175 = vpack.c.b16 %v4979, %v4975
    %v5176 = vpack.c.b16 %v4980, %v4976
    %v5177 = vpack.c.b16 %v4981, %v4977
    %v5178 = vpack.c.b16 %v4982, %v4978
    %v5179 = vpack.c.b16 %v4987, %v4983
    %v5180 = vpack.c.b16 %v4988, %v4984
    %v5181 = vpack.c.b16 %v4989, %v4985
    %v5182 = vpack.c.b16 %v4990, %v4986
    %v5183 = vpack.c.b16 %v4995, %v4991
    %v5184 = vpack.c.b16 %v4996, %v4992
    %v5185 = vpack.c.b16 %v4997, %v4993
    %v5186 = vpack.c.b16 %v4998, %v4994
    %v5187 = vpack.c.b16 %v5003, %v4999
    %v5188 = vpack.c.b16 %v5004, %v5000
    %v5189 = vpack.c.b16 %v5005, %v5001
    %v5190 = vpack.c.b16 %v5006, %v5002
    %v5191 = vpack.c.b16 %v5011, %v5007
    %v5192 = vpack.c.b16 %v5012, %v5008
    %v5193 = vpack.c.b16 %v5013, %v5009
    %v5194 = vpack.c.b16 %v5014, %v5010
    %v5195 = vpack.c.b16 %v5019, %v5015
    %v5196 = vpack.c.b16 %v5020, %v5016
    %v5197 = vpack.c.b16 %v5021, %v5017
    %v5198 = vpack.c.b16 %v5022, %v5018
    %v5199 = vpack.c.b16 %v5027, %v5023
    %v5200 = vpack.c.b16 %v5028, %v5024
    %v5201 = vpack.c.b16 %v5029, %v5025
    %v5202 = vpack.c.b16 %v5030, %v5026
    %v5203 = vpack.c.b16 %v5035, %v5031
    %v5204 = vpack.c.b16 %v5036, %v5032
    %v5205 = vpack.c.b16 %v5037, %v5033
    %v5206 = vpack.c.b16 %v5038, %v5034
    %v5207 = vpack.c.b16 %v5043, %v5039
    %v5208 = vpack.c.b16 %v5044, %v5040
    %v5209 = vpack.c.b16 %v5045, %v5041
    %v5210 = vpack.c.b16 %v5046, %v5042
    %v5211 = vpack.c.b16 %v5051, %v5047
    %v5212 = vpack.c.b16 %v5052, %v5048
    %v5213 = vpack.c.b16 %v5053, %v5049
    %v5214 = vpack.c.b16 %v5054, %v5050
    %v5215 = vpack.c.b16 %v5059, %v5055
    %v5216 = vpack.c.b16 %v5060, %v5056
    %v5217 = vpack.c.b16 %v5061, %v5057
    %v5218 = vpack.c.b16 %v5062, %v5058
    %v5219 = vpack.c.b16 %v5067, %v5063
    %v5220 = vpack.c.b16 %v5068, %v5064
    %v5221 = vpack.c.b16 %v5069, %v5065
    %v5222 = vpack.c.b16 %v5070, %v5066
    %v5223 = vpack.c.b16 %v5075, %v5071
    %v5224 = vpack.c.b16 %v5076, %v5072
    %v5225 = vpack.c.b16 %v5077, %v5073
    %v5226 = vpack.c.b16 %v5078, %v5074
    %v5227 = vpack.c.b16 %v5083, %v5079
    %v5228 = vpack.c.b16 %v5084, %v5080
    %v5229 = vpack.c.b16 %v5085, %v5081
    %v5230 = vpack.c.b16 %v5086, %v5082
    %v5231 = vpack.c.b16 %v5091, %v5087
    %v5232 = vpack.c.b16 %v5092, %v5088
    %v5233 = vpack.c.b16 %v5093, %v5089
    %v5234 = vpack.c.b16 %v5094, %v5090
    %v5235 = vpack.c.b16 %v5099, %v5095
    %v5236 = vpack.c.b16 %v5100, %v5096
    %v5237 = vpack.c.b16 %v5101, %v5097
    %v5238 = vpack.c.b16 %v5102, %v5098
    %v5239 = vpack.c.b16 %v5107, %v5103
    %v5240 = vpack.c.b16 %v5108, %v5104
    %v5241 = vpack.c.b16 %v5109, %v5105
    %v5242 = vpack.c.b16 %v5110, %v5106
    %v5243 = vpack.c.b16 %v5115, %v5111
    %v5244 = vpack.c.b16 %v5116, %v5112
    %v5245 = vpack.c.b16 %v5117, %v5113
    %v5246 = vpack.c.b16 %v5118, %v5114
    %5375 = vmatprep.subr.bf16.mxu0 %v5120
    %5376 = vmatpush1.bf16.msra.mxu0 %v5119
    %5377 = vmatprep.subr.bf16.mxu0 %v5124
    %5378 = vmatpush1.bf16.msra.mxu0 %v5123
    %5379 = vmatprep.subr.bf16.mxu0 %v5128
    %5380 = vmatpush1.bf16.msra.mxu0 %v5127
    %5381 = vmatprep.subr.bf16.mxu0 %v5132
    %5382 = vmatpush1.bf16.msra.mxu0 %v5131
    %5383 = vmatprep.subr.bf16.mxu0 %v5136
    %5384 = vmatpush1.bf16.msra.mxu0 %v5135
    %5385 = vmatprep.subr.bf16.mxu0 %v5140
    %5386 = vmatpush1.bf16.msra.mxu0 %v5139
    %5387 = vmatprep.subr.bf16.mxu0 %v5144
    %5388 = vmatpush1.bf16.msra.mxu0 %v5143
    %5389 = vmatprep.subr.bf16.mxu0 %v5148
    %5390 = vmatpush1.bf16.msra.mxu0 %v5147
    %5391 = vmatprep.subr.bf16.mxu0 %v5152
    %5392 = vmatpush1.bf16.msra.mxu0 %v5151
    %5393 = vmatprep.subr.bf16.mxu0 %v5156
    %5394 = vmatpush1.bf16.msra.mxu0 %v5155
    %5395 = vmatprep.subr.bf16.mxu0 %v5160
    %5396 = vmatpush1.bf16.msra.mxu0 %v5159
    %5397 = vmatprep.subr.bf16.mxu0 %v5164
    %5398 = vmatpush1.bf16.msra.mxu0 %v5163
    %5399 = vmatprep.subr.bf16.mxu0 %v5168
    %5400 = vmatpush1.bf16.msra.mxu0 %v5167
    %5401 = vmatprep.subr.bf16.mxu0 %v5172
    %5402 = vmatpush1.bf16.msra.mxu0 %v5171
    %5403 = vmatprep.subr.bf16.mxu0 %v5176
    %5404 = vmatpush1.bf16.msra.mxu0 %v5175
    %5405 = vmatprep.subr.bf16.mxu0 %v5180
    %5406 = vmatpush1.bf16.msra.mxu0 %v5179
    %5407 = vmatprep.mubr.bf16.mxu0 %v4578
    %5408 = vmatmul.mubr.bf16.gmra.mrb[0].mxu0 %v4577
    %v5409 = vpop.f32.mrb[0].mxu0
    %v5410 = vadd.f32 %v4718, %v5409
    %v5411 = vpop.f32.mrb[0].mxu0
    %v5412 = vadd.f32 %v4722, %v5411
    %v5413 = vpop.f32.mrb[0].mxu0
    %v5414 = vadd.f32 %v4718, %v5413
    %v5415 = vpop.f32.mrb[0].mxu0
    %v5416 = vadd.f32 %v4722, %v5415
    %5417 = vmatprep.mubr.bf16.mxu0 %v4582
    %5418 = vmatmul.mubr.bf16.gmra.mrb[0].mxu0 %v4581
    %v5419 = vpop.f32.mrb[0].mxu0
    %v5420 = vadd.f32 %v4718, %v5419
    %v5421 = vpop.f32.mrb[0].mxu0
    %v5422 = vadd.f32 %v4722, %v5421
    %v5423 = vpop.f32.mrb[0].mxu0
    %v5424 = vadd.f32 %v4718, %v5423
    %v5425 = vpop.f32.mrb[0].mxu0
    %v5426 = vadd.f32 %v4722, %v5425
    %5427 = vdwg.mxu0
    %5428 = vmatprep.subr.bf16.mxu0 %v5184
    %5429 = vmatpush1.bf16.msra.mxu0 %v5183
    %5430 = vmatprep.subr.bf16.mxu0 %v5188
    %5431 = vmatpush1.bf16.msra.mxu0 %v5187
    %5432 = vmatprep.subr.bf16.mxu0 %v5192
    %5433 = vmatpush1.bf16.msra.mxu0 %v5191
    %5434 = vmatprep.subr.bf16.mxu0 %v5196
    %5435 = vmatpush1.bf16.msra.mxu0 %v5195
    %5436 = vmatprep.subr.bf16.mxu0 %v5200
    %5437 = vmatpush1.bf16.msra.mxu0 %v5199
    %5438 = vmatprep.subr.bf16.mxu0 %v5204
    %5439 = vmatpush1.bf16.msra.mxu0 %v5203
    %5440 = vmatprep.subr.bf16.mxu0 %v5208
    %5441 = vmatpush1.bf16.msra.mxu0 %v5207
    %5442 = vmatprep.subr.bf16.mxu0 %v5212
    %5443 = vmatpush1.bf16.msra.mxu0 %v5211
    %5444 = vmatprep.subr.bf16.mxu0 %v5216
    %5445 = vmatpush1.bf16.msra.mxu0 %v5215
    %5446 = vmatprep.subr.bf16.mxu0 %v5220
    %5447 = vmatpush1.bf16.msra.mxu0 %v5219
    %5448 = vmatprep.subr.bf16.mxu0 %v5224
    %5449 = vmatpush1.bf16.msra.mxu0 %v5223
    %5450 = vmatprep.subr.bf16.mxu0 %v5228
    %5451 = vmatpush1.bf16.msra.mxu0 %v5227
    %5452 = vmatprep.subr.bf16.mxu0 %v5232
    %5453 = vmatpush1.bf16.msra.mxu0 %v5231
    %5454 = vmatprep.subr.bf16.mxu0 %v5236
    %5455 = vmatpush1.bf16.msra.mxu0 %v5235
    %5456 = vmatprep.subr.bf16.mxu0 %v5240
    %5457 = vmatpush1.bf16.msra.mxu0 %v5239
    %5458 = vmatprep.subr.bf16.mxu0 %v5244
    %5459 = vmatpush1.bf16.msra.mxu0 %v5243
    %5460 = vmatprep.mubr.bf16.mxu0 %v4580
    %5461 = vmatmul.mubr.bf16.gmra.mrb[0].mxu0 %v4579
    %v5462 = vpop.f32.mrb[0].mxu0
    %v5463 = vadd.f32 %v5410, %v5462
    %v5464 = vpop.f32.mrb[0].mxu0
    %v5465 = vadd.f32 %v5412, %v5464
    %v5466 = vpop.f32.mrb[0].mxu0
    %v5467 = vadd.f32 %v5414, %v5466
    %v5468 = vpop.f32.mrb[0].mxu0
    %v5469 = vadd.f32 %v5416, %v5468
    %5470 = vmatprep.mubr.bf16.mxu0 %v4584
    %5471 = vmatmul.mubr.bf16.gmra.mrb[0].mxu0 %v4583
    %v5472 = vpop.f32.mrb[0].mxu0
    %v5473 = vadd.f32 %v5420, %v5472
    %v5474 = vpop.f32.mrb[0].mxu0
    %v5475 = vadd.f32 %v5422, %v5474
    %v5476 = vpop.f32.mrb[0].mxu0
    %v5477 = vadd.f32 %v5424, %v5476
    %v5478 = vpop.f32.mrb[0].mxu0
    %v5479 = vadd.f32 %v5426, %v5478
    %5480 = vdwg.mxu0
    %5481 = vmatprep.subr.bf16.mxu0 %v5122
    %5482 = vmatpush1.bf16.msra.mxu0 %v5121
    %5483 = vmatprep.subr.bf16.mxu0 %v5126
    %5484 = vmatpush1.bf16.msra.mxu0 %v5125
    %5485 = vmatprep.subr.bf16.mxu0 %v5130
    %5486 = vmatpush1.bf16.msra.mxu0 %v5129
    %5487 = vmatprep.subr.bf16.mxu0 %v5134
    %5488 = vmatpush1.bf16.msra.mxu0 %v5133
    %5489 = vmatprep.subr.bf16.mxu0 %v5138
    %5490 = vmatpush1.bf16.msra.mxu0 %v5137
    %5491 = vmatprep.subr.bf16.mxu0 %v5142
    %5492 = vmatpush1.bf16.msra.mxu0 %v5141
    %5493 = vmatprep.subr.bf16.mxu0 %v5146
    %5494 = vmatpush1.bf16.msra.mxu0 %v5145
    %5495 = vmatprep.subr.bf16.mxu0 %v5150
    %5496 = vmatpush1.bf16.msra.mxu0 %v5149
    %5497 = vmatprep.subr.bf16.mxu0 %v5154
    %5498 = vmatpush1.bf16.msra.mxu0 %v5153
    %5499 = vmatprep.subr.bf16.mxu0 %v5158
    %5500 = vmatpush1.bf16.msra.mxu0 %v5157
    %5501 = vmatprep.subr.bf16.mxu0 %v5162
    %5502 = vmatpush1.bf16.msra.mxu0 %v5161
    %5503 = vmatprep.subr.bf16.mxu0 %v5166
    %5504 = vmatpush1.bf16.msra.mxu0 %v5165
    %5505 = vmatprep.subr.bf16.mxu0 %v5170
    %5506 = vmatpush1.bf16.msra.mxu0 %v5169
    %5507 = vmatprep.subr.bf16.mxu0 %v5174
    %5508 = vmatpush1.bf16.msra.mxu0 %v5173
    %5509 = vmatprep.subr.bf16.mxu0 %v5178
    %5510 = vmatpush1.bf16.msra.mxu0 %v5177
    %5511 = vmatprep.subr.bf16.mxu0 %v5182
    %5512 = vmatpush1.bf16.msra.mxu0 %v5181
    %5513 = vmatprep.mubr.bf16.mxu0 %v4578
    %5514 = vmatmul.mubr.bf16.gmra.mrb[0].mxu0 %v4577
    %v5515 = vpop.f32.mrb[0].mxu0
    %v5516 = vadd.f32 %v4726, %v5515
    %v5517 = vpop.f32.mrb[0].mxu0
    %v5518 = vadd.f32 %v4730, %v5517
    %v5519 = vpop.f32.mrb[0].mxu0
    %v5520 = vadd.f32 %v4726, %v5519
    %v5521 = vpop.f32.mrb[0].mxu0
    %v5522 = vadd.f32 %v4730, %v5521
    %5523 = vmatprep.mubr.bf16.mxu0 %v4582
    %5524 = vmatmul.mubr.bf16.gmra.mrb[0].mxu0 %v4581
    %v5525 = vpop.f32.mrb[0].mxu0
    %v5526 = vadd.f32 %v4726, %v5525
    %v5527 = vpop.f32.mrb[0].mxu0
    %v5528 = vadd.f32 %v4730, %v5527
    %v5529 = vpop.f32.mrb[0].mxu0
    %v5530 = vadd.f32 %v4726, %v5529
    %v5531 = vpop.f32.mrb[0].mxu0
    %v5532 = vadd.f32 %v4730, %v5531
    %5533 = vdwg.mxu0
    %5534 = vmatprep.subr.bf16.mxu0 %v5186
    %5535 = vmatpush1.bf16.msra.mxu0 %v5185
    %5536 = vmatprep.subr.bf16.mxu0 %v5190
    %5537 = vmatpush1.bf16.msra.mxu0 %v5189
    %5538 = vmatprep.subr.bf16.mxu0 %v5194
    %5539 = vmatpush1.bf16.msra.mxu0 %v5193
    %5540 = vmatprep.subr.bf16.mxu0 %v5198
    %5541 = vmatpush1.bf16.msra.mxu0 %v5197
    %5542 = vmatprep.subr.bf16.mxu0 %v5202
    %5543 = vmatpush1.bf16.msra.mxu0 %v5201
    %5544 = vmatprep.subr.bf16.mxu0 %v5206
    %5545 = vmatpush1.bf16.msra.mxu0 %v5205
    %5546 = vmatprep.subr.bf16.mxu0 %v5210
    %5547 = vmatpush1.bf16.msra.mxu0 %v5209
    %5548 = vmatprep.subr.bf16.mxu0 %v5214
    %5549 = vmatpush1.bf16.msra.mxu0 %v5213
    %5550 = vmatprep.subr.bf16.mxu0 %v5218
    %5551 = vmatpush1.bf16.msra.mxu0 %v5217
    %5552 = vmatprep.subr.bf16.mxu0 %v5222
    %5553 = vmatpush1.bf16.msra.mxu0 %v5221
    %5554 = vmatprep.subr.bf16.mxu0 %v5226
    %5555 = vmatpush1.bf16.msra.mxu0 %v5225
    %5556 = vmatprep.subr.bf16.mxu0 %v5230
    %5557 = vmatpush1.bf16.msra.mxu0 %v5229
    %5558 = vmatprep.subr.bf16.mxu0 %v5234
    %5559 = vmatpush1.bf16.msra.mxu0 %v5233
    %5560 = vmatprep.subr.bf16.mxu0 %v5238
    %5561 = vmatpush1.bf16.msra.mxu0 %v5237
    %5562 = vmatprep.subr.bf16.mxu0 %v5242
    %5563 = vmatpush1.bf16.msra.mxu0 %v5241
    %5564 = vmatprep.subr.bf16.mxu0 %v5246
    %5565 = vmatpush1.bf16.msra.mxu0 %v5245
    %5566 = vmatprep.mubr.bf16.mxu0 %v4580
    %5567 = vmatmul.mubr.bf16.gmra.mrb[0].mxu0 %v4579
    %v5568 = vpop.f32.mrb[0].mxu0
    %v5569 = vadd.f32 %v5516, %v5568
    %v5570 = vpop.f32.mrb[0].mxu0
    %v5571 = vadd.f32 %v5518, %v5570
    %v5572 = vpop.f32.mrb[0].mxu0
    %v5573 = vadd.f32 %v5520, %v5572
    %v5574 = vpop.f32.mrb[0].mxu0
    %v5575 = vadd.f32 %v5522, %v5574
    %5576 = vmatprep.mubr.bf16.mxu0 %v4584
    %5577 = vmatmul.mubr.bf16.gmra.mrb[0].mxu0 %v4583
    %v5578 = vpop.f32.mrb[0].mxu0
    %v5579 = vadd.f32 %v5526, %v5578
    %v5580 = vpop.f32.mrb[0].mxu0
    %v5581 = vadd.f32 %v5528, %v5580
    %v5582 = vpop.f32.mrb[0].mxu0
    %v5583 = vadd.f32 %v5530, %v5582
    %v5584 = vpop.f32.mrb[0].mxu0
    %v5585 = vadd.f32 %v5532, %v5584
    %5586 = vdwg.mxu0
    %v5587 = vadd.f32 %v4561, %v5463
    %v5588 = vadd.f32 %v4562, %v5465
    %v5589 = vadd.f32 %v4563, %v5569
    %v5590 = vadd.f32 %v4564, %v5571
    %v5591 = vadd.f32 %v4565, %v5467
    %v5592 = vadd.f32 %v4566, %v5469
    %v5593 = vadd.f32 %v4567, %v5573
    %v5594 = vadd.f32 %v4568, %v5575
    %v5595 = vadd.f32 %v4569, %v5473
    %v5596 = vadd.f32 %v4570, %v5475
    %v5597 = vadd.f32 %v4571, %v5579
    %v5598 = vadd.f32 %v4572, %v5581
    %v5599 = vadd.f32 %v4573, %v5477
    %v5600 = vadd.f32 %v4574, %v5479
    %v5601 = vadd.f32 %v4575, %v5583
    %v5602 = vadd.f32 %v4576, %v5585
    %v5603 = vtanh.pop %v5587
    %v5604 = vtanh.pop %v5588
    %v5605 = vtanh.pop %v5589
    %v5606 = vtanh.pop %v5590
    %v5607 = vtanh.pop %v5591
    %v5608 = vtanh.pop %v5592
    %v5609 = vtanh.pop %v5593
    %v5610 = vtanh.pop %v5594
    %v5611 = vtanh.pop %v5595
    %v5612 = vtanh.pop %v5596
    %v5613 = vtanh.pop %v5597
    %v5614 = vtanh.pop %v5598
    %v5615 = vtanh.pop %v5599
    %v5616 = vtanh.pop %v5600
    %v5617 = vtanh.pop %v5601
    %v5618 = vtanh.pop %v5602
    // Predicated region
    $region46: #{_run_kernel.3} parent=1 // pred_check
      %p5619 = pneg %p168
    $region47: #{_run_kernel.3} parent=1 // pred_check_branch
      %5621 = sbr.rel (%p5619) target = $region49
    $region48: #{_run_kernel.3} parent=1 // pred_region
      %s5622 = sld [smem:[#allocation3]]
      %v5623 = vpack.c.bf16 %v5607, %v5603
      %v5624 = vpack.c.bf16 %v5608, %v5604
      %v5625 = vpack.c.bf16 %v5609, %v5605
      %v5626 = vpack.c.bf16 %v5610, %v5606
      %v5627 = vpack.c.bf16 %v5615, %v5611
      %v5628 = vpack.c.bf16 %v5616, %v5612
      %v5629 = vpack.c.bf16 %v5617, %v5613
      %v5630 = vpack.c.bf16 %v5618, %v5614
      %s5631 = smul.u32 %s5622, 256
      %s5632 = smul.addr %s5631, 4
      %s5633 = scalar_lea.vmem [#allocation8], %s5632
      %v5634 = vld [vmem:[%s5633] sm:$0xff]
      %v5635 = vld [vmem:[%s5633 + $0x8] sm:$0xff]
      %v5636 = vld [vmem:[%s5633 + $0x10] sm:$0xff]
      %v5637 = vld [vmem:[%s5633 + $0x18] sm:$0xff]
      %v5638 = vld [vmem:[%s5633 + $0x20] sm:$0xff]
      %v5639 = vld [vmem:[%s5633 + $0x28] sm:$0xff]
      %v5640 = vld [vmem:[%s5633 + $0x30] sm:$0xff]
      %v5641 = vld [vmem:[%s5633 + $0x38] sm:$0xff]
      %v5642 = vld [vmem:[%s5633 + $0x40] sm:$0xff]
      %v5643 = vld [vmem:[%s5633 + $0x48] sm:$0xff]
      %v5644 = vld [vmem:[%s5633 + $0x50] sm:$0xff]
      %v5645 = vld [vmem:[%s5633 + $0x58] sm:$0xff]
      %v5646 = vld [vmem:[%s5633 + $0x60] sm:$0xff]
      %v5647 = vld [vmem:[%s5633 + $0x68] sm:$0xff]
      %v5648 = vld [vmem:[%s5633 + $0x70] sm:$0xff]
      %v5649 = vld [vmem:[%s5633 + $0x78] sm:$0xff]
      %v5650 = vld [vmem:[%s5633 + $0x80] sm:$0xff]
      %v5651 = vld [vmem:[%s5633 + $0x88] sm:$0xff]
      %v5652 = vld [vmem:[%s5633 + $0x90] sm:$0xff]
      %v5653 = vld [vmem:[%s5633 + $0x98] sm:$0xff]
      %v5654 = vld [vmem:[%s5633 + $0xa0] sm:$0xff]
      %v5655 = vld [vmem:[%s5633 + $0xa8] sm:$0xff]
      %v5656 = vld [vmem:[%s5633 + $0xb0] sm:$0xff]
      %v5657 = vld [vmem:[%s5633 + $0xb8] sm:$0xff]
      %v5658 = vld [vmem:[%s5633 + $0xc0] sm:$0xff]
      %v5659 = vld [vmem:[%s5633 + $0xc8] sm:$0xff]
      %v5660 = vld [vmem:[%s5633 + $0xd0] sm:$0xff]
      %v5661 = vld [vmem:[%s5633 + $0xd8] sm:$0xff]
      %v5662 = vld [vmem:[%s5633 + $0xe0] sm:$0xff]
      %v5663 = vld [vmem:[%s5633 + $0xe8] sm:$0xff]
      %v5664 = vld [vmem:[%s5633 + $0xf0] sm:$0xff]
      %v5665 = vld [vmem:[%s5633 + $0xf8] sm:$0xff]
      %v5666 = vld [vmem:[%s5633 + $0x100] sm:$0xff]
      %v5667 = vld [vmem:[%s5633 + $0x108] sm:$0xff]
      %v5668 = vld [vmem:[%s5633 + $0x110] sm:$0xff]
      %v5669 = vld [vmem:[%s5633 + $0x118] sm:$0xff]
      %v5670 = vld [vmem:[%s5633 + $0x120] sm:$0xff]
      %v5671 = vld [vmem:[%s5633 + $0x128] sm:$0xff]
      %v5672 = vld [vmem:[%s5633 + $0x130] sm:$0xff]
      %v5673 = vld [vmem:[%s5633 + $0x138] sm:$0xff]
      %v5674 = vld [vmem:[%s5633 + $0x140] sm:$0xff]
      %v5675 = vld [vmem:[%s5633 + $0x148] sm:$0xff]
      %v5676 = vld [vmem:[%s5633 + $0x150] sm:$0xff]
      %v5677 = vld [vmem:[%s5633 + $0x158] sm:$0xff]
      %v5678 = vld [vmem:[%s5633 + $0x160] sm:$0xff]
      %v5679 = vld [vmem:[%s5633 + $0x168] sm:$0xff]
      %v5680 = vld [vmem:[%s5633 + $0x170] sm:$0xff]
      %v5681 = vld [vmem:[%s5633 + $0x178] sm:$0xff]
      %v5682 = vld [vmem:[%s5633 + $0x180] sm:$0xff]
      %v5683 = vld [vmem:[%s5633 + $0x188] sm:$0xff]
      %v5684 = vld [vmem:[%s5633 + $0x190] sm:$0xff]
      %v5685 = vld [vmem:[%s5633 + $0x198] sm:$0xff]
      %v5686 = vld [vmem:[%s5633 + $0x1a0] sm:$0xff]
      %v5687 = vld [vmem:[%s5633 + $0x1a8] sm:$0xff]
      %v5688 = vld [vmem:[%s5633 + $0x1b0] sm:$0xff]
      %v5689 = vld [vmem:[%s5633 + $0x1b8] sm:$0xff]
      %v5690 = vld [vmem:[%s5633 + $0x1c0] sm:$0xff]
      %v5691 = vld [vmem:[%s5633 + $0x1c8] sm:$0xff]
      %v5692 = vld [vmem:[%s5633 + $0x1d0] sm:$0xff]
      %v5693 = vld [vmem:[%s5633 + $0x1d8] sm:$0xff]
      %v5694 = vld [vmem:[%s5633 + $0x1e0] sm:$0xff]
      %v5695 = vld [vmem:[%s5633 + $0x1e8] sm:$0xff]
      %v5696 = vld [vmem:[%s5633 + $0x1f0] sm:$0xff]
      %v5697 = vld [vmem:[%s5633 + $0x1f8] sm:$0xff]
      %v5698 = vld [vmem:[%s5633 + $0x200] sm:$0xff]
      %v5699 = vld [vmem:[%s5633 + $0x208] sm:$0xff]
      %v5700 = vld [vmem:[%s5633 + $0x210] sm:$0xff]
      %v5701 = vld [vmem:[%s5633 + $0x218] sm:$0xff]
      %v5702 = vld [vmem:[%s5633 + $0x220] sm:$0xff]
      %v5703 = vld [vmem:[%s5633 + $0x228] sm:$0xff]
      %v5704 = vld [vmem:[%s5633 + $0x230] sm:$0xff]
      %v5705 = vld [vmem:[%s5633 + $0x238] sm:$0xff]
      %v5706 = vld [vmem:[%s5633 + $0x240] sm:$0xff]
      %v5707 = vld [vmem:[%s5633 + $0x248] sm:$0xff]
      %v5708 = vld [vmem:[%s5633 + $0x250] sm:$0xff]
      %v5709 = vld [vmem:[%s5633 + $0x258] sm:$0xff]
      %v5710 = vld [vmem:[%s5633 + $0x260] sm:$0xff]
      %v5711 = vld [vmem:[%s5633 + $0x268] sm:$0xff]
      %v5712 = vld [vmem:[%s5633 + $0x270] sm:$0xff]
      %v5713 = vld [vmem:[%s5633 + $0x278] sm:$0xff]
      %v5714 = vld [vmem:[%s5633 + $0x280] sm:$0xff]
      %v5715 = vld [vmem:[%s5633 + $0x288] sm:$0xff]
      %v5716 = vld [vmem:[%s5633 + $0x290] sm:$0xff]
      %v5717 = vld [vmem:[%s5633 + $0x298] sm:$0xff]
      %v5718 = vld [vmem:[%s5633 + $0x2a0] sm:$0xff]
      %v5719 = vld [vmem:[%s5633 + $0x2a8] sm:$0xff]
      %v5720 = vld [vmem:[%s5633 + $0x2b0] sm:$0xff]
      %v5721 = vld [vmem:[%s5633 + $0x2b8] sm:$0xff]
      %v5722 = vld [vmem:[%s5633 + $0x2c0] sm:$0xff]
      %v5723 = vld [vmem:[%s5633 + $0x2c8] sm:$0xff]
      %v5724 = vld [vmem:[%s5633 + $0x2d0] sm:$0xff]
      %v5725 = vld [vmem:[%s5633 + $0x2d8] sm:$0xff]
      %v5726 = vld [vmem:[%s5633 + $0x2e0] sm:$0xff]
      %v5727 = vld [vmem:[%s5633 + $0x2e8] sm:$0xff]
      %v5728 = vld [vmem:[%s5633 + $0x2f0] sm:$0xff]
      %v5729 = vld [vmem:[%s5633 + $0x2f8] sm:$0xff]
      %v5730 = vld [vmem:[%s5633 + $0x300] sm:$0xff]
      %v5731 = vld [vmem:[%s5633 + $0x308] sm:$0xff]
      %v5732 = vld [vmem:[%s5633 + $0x310] sm:$0xff]
      %v5733 = vld [vmem:[%s5633 + $0x318] sm:$0xff]
      %v5734 = vld [vmem:[%s5633 + $0x320] sm:$0xff]
      %v5735 = vld [vmem:[%s5633 + $0x328] sm:$0xff]
      %v5736 = vld [vmem:[%s5633 + $0x330] sm:$0xff]
      %v5737 = vld [vmem:[%s5633 + $0x338] sm:$0xff]
      %v5738 = vld [vmem:[%s5633 + $0x340] sm:$0xff]
      %v5739 = vld [vmem:[%s5633 + $0x348] sm:$0xff]
      %v5740 = vld [vmem:[%s5633 + $0x350] sm:$0xff]
      %v5741 = vld [vmem:[%s5633 + $0x358] sm:$0xff]
      %v5742 = vld [vmem:[%s5633 + $0x360] sm:$0xff]
      %v5743 = vld [vmem:[%s5633 + $0x368] sm:$0xff]
      %v5744 = vld [vmem:[%s5633 + $0x370] sm:$0xff]
      %v5745 = vld [vmem:[%s5633 + $0x378] sm:$0xff]
      %v5746 = vld [vmem:[%s5633 + $0x380] sm:$0xff]
      %v5747 = vld [vmem:[%s5633 + $0x388] sm:$0xff]
      %v5748 = vld [vmem:[%s5633 + $0x390] sm:$0xff]
      %v5749 = vld [vmem:[%s5633 + $0x398] sm:$0xff]
      %v5750 = vld [vmem:[%s5633 + $0x3a0] sm:$0xff]
      %v5751 = vld [vmem:[%s5633 + $0x3a8] sm:$0xff]
      %v5752 = vld [vmem:[%s5633 + $0x3b0] sm:$0xff]
      %v5753 = vld [vmem:[%s5633 + $0x3b8] sm:$0xff]
      %v5754 = vld [vmem:[%s5633 + $0x3c0] sm:$0xff]
      %v5755 = vld [vmem:[%s5633 + $0x3c8] sm:$0xff]
      %v5756 = vld [vmem:[%s5633 + $0x3d0] sm:$0xff]
      %v5757 = vld [vmem:[%s5633 + $0x3d8] sm:$0xff]
      %v5758 = vld [vmem:[%s5633 + $0x3e0] sm:$0xff]
      %v5759 = vld [vmem:[%s5633 + $0x3e8] sm:$0xff]
      %v5760 = vld [vmem:[%s5633 + $0x3f0] sm:$0xff]
      %v5761 = vld [vmem:[%s5633 + $0x3f8] sm:$0xff]
      %s5762 = smul.u32 %s5622, 4
      %s5763 = scalar_lea.vmem %s9, %s5762
      %v5764 = vld [vmem:[%s5763] sm:$0xf]
      %v5766 = vlaneseq
      %v5767 = vshrl.u32 %v5766, 7
      %v5768 = vsub.s32 0, %v5767
      %v5769 = vrot.slane %v5764, %v5768
      %v5770 = vlaneseq
      %v5771 = vshrl.u32 %v5770, 7
      %v5772 = vsub.s32 1, %v5771
      %v5773 = vrot.slane %v5764, %v5772
      %v5774 = vlaneseq
      %v5775 = vshrl.u32 %v5774, 7
      %v5776 = vsub.s32 2, %v5775
      %v5777 = vrot.slane %v5764, %v5776
      %v5778 = vlaneseq
      %v5779 = vshrl.u32 %v5778, 7
      %v5780 = vsub.s32 3, %v5779
      %v5781 = vrot.slane %v5764, %v5780
      %v5914 = vunpack.c.l.b16 %v5634
      %v5915 = vunpack.c.h.b16 %v5634
      %v5916 = vunpack.c.l.b16 %v5635
      %v5917 = vunpack.c.h.b16 %v5635
      %v5918 = vunpack.c.l.b16 %v5636
      %v5919 = vunpack.c.h.b16 %v5636
      %v5920 = vunpack.c.l.b16 %v5637
      %v5921 = vunpack.c.h.b16 %v5637
      %v5922 = vunpack.c.l.b16 %v5638
      %v5923 = vunpack.c.h.b16 %v5638
      %v5924 = vunpack.c.l.b16 %v5639
      %v5925 = vunpack.c.h.b16 %v5639
      %v5926 = vunpack.c.l.b16 %v5640
      %v5927 = vunpack.c.h.b16 %v5640
      %v5928 = vunpack.c.l.b16 %v5641
      %v5929 = vunpack.c.h.b16 %v5641
      %v5930 = vunpack.c.l.b16 %v5642
      %v5931 = vunpack.c.h.b16 %v5642
      %v5932 = vunpack.c.l.b16 %v5643
      %v5933 = vunpack.c.h.b16 %v5643
      %v5934 = vunpack.c.l.b16 %v5644
      %v5935 = vunpack.c.h.b16 %v5644
      %v5936 = vunpack.c.l.b16 %v5645
      %v5937 = vunpack.c.h.b16 %v5645
      %v5938 = vunpack.c.l.b16 %v5646
      %v5939 = vunpack.c.h.b16 %v5646
      %v5940 = vunpack.c.l.b16 %v5647
      %v5941 = vunpack.c.h.b16 %v5647
      %v5942 = vunpack.c.l.b16 %v5648
      %v5943 = vunpack.c.h.b16 %v5648
      %v5944 = vunpack.c.l.b16 %v5649
      %v5945 = vunpack.c.h.b16 %v5649
      %v5946 = vunpack.c.l.b16 %v5650
      %v5947 = vunpack.c.h.b16 %v5650
      %v5948 = vunpack.c.l.b16 %v5651
      %v5949 = vunpack.c.h.b16 %v5651
      %v5950 = vunpack.c.l.b16 %v5652
      %v5951 = vunpack.c.h.b16 %v5652
      %v5952 = vunpack.c.l.b16 %v5653
      %v5953 = vunpack.c.h.b16 %v5653
      %v5954 = vunpack.c.l.b16 %v5654
      %v5955 = vunpack.c.h.b16 %v5654
      %v5956 = vunpack.c.l.b16 %v5655
      %v5957 = vunpack.c.h.b16 %v5655
      %v5958 = vunpack.c.l.b16 %v5656
      %v5959 = vunpack.c.h.b16 %v5656
      %v5960 = vunpack.c.l.b16 %v5657
      %v5961 = vunpack.c.h.b16 %v5657
      %v5962 = vunpack.c.l.b16 %v5658
      %v5963 = vunpack.c.h.b16 %v5658
      %v5964 = vunpack.c.l.b16 %v5659
      %v5965 = vunpack.c.h.b16 %v5659
      %v5966 = vunpack.c.l.b16 %v5660
      %v5967 = vunpack.c.h.b16 %v5660
      %v5968 = vunpack.c.l.b16 %v5661
      %v5969 = vunpack.c.h.b16 %v5661
      %v5970 = vunpack.c.l.b16 %v5662
      %v5971 = vunpack.c.h.b16 %v5662
      %v5972 = vunpack.c.l.b16 %v5663
      %v5973 = vunpack.c.h.b16 %v5663
      %v5974 = vunpack.c.l.b16 %v5664
      %v5975 = vunpack.c.h.b16 %v5664
      %v5976 = vunpack.c.l.b16 %v5665
      %v5977 = vunpack.c.h.b16 %v5665
      %v5978 = vunpack.c.l.b16 %v5666
      %v5979 = vunpack.c.h.b16 %v5666
      %v5980 = vunpack.c.l.b16 %v5667
      %v5981 = vunpack.c.h.b16 %v5667
      %v5982 = vunpack.c.l.b16 %v5668
      %v5983 = vunpack.c.h.b16 %v5668
      %v5984 = vunpack.c.l.b16 %v5669
      %v5985 = vunpack.c.h.b16 %v5669
      %v5986 = vunpack.c.l.b16 %v5670
      %v5987 = vunpack.c.h.b16 %v5670
      %v5988 = vunpack.c.l.b16 %v5671
      %v5989 = vunpack.c.h.b16 %v5671
      %v5990 = vunpack.c.l.b16 %v5672
      %v5991 = vunpack.c.h.b16 %v5672
      %v5992 = vunpack.c.l.b16 %v5673
      %v5993 = vunpack.c.h.b16 %v5673
      %v5994 = vunpack.c.l.b16 %v5674
      %v5995 = vunpack.c.h.b16 %v5674
      %v5996 = vunpack.c.l.b16 %v5675
      %v5997 = vunpack.c.h.b16 %v5675
      %v5998 = vunpack.c.l.b16 %v5676
      %v5999 = vunpack.c.h.b16 %v5676
      %v6000 = vunpack.c.l.b16 %v5677
      %v6001 = vunpack.c.h.b16 %v5677
      %v6002 = vunpack.c.l.b16 %v5678
      %v6003 = vunpack.c.h.b16 %v5678
      %v6004 = vunpack.c.l.b16 %v5679
      %v6005 = vunpack.c.h.b16 %v5679
      %v6006 = vunpack.c.l.b16 %v5680
      %v6007 = vunpack.c.h.b16 %v5680
      %v6008 = vunpack.c.l.b16 %v5681
      %v6009 = vunpack.c.h.b16 %v5681
      %v6010 = vunpack.c.l.b16 %v5682
      %v6011 = vunpack.c.h.b16 %v5682
      %v6012 = vunpack.c.l.b16 %v5683
      %v6013 = vunpack.c.h.b16 %v5683
      %v6014 = vunpack.c.l.b16 %v5684
      %v6015 = vunpack.c.h.b16 %v5684
      %v6016 = vunpack.c.l.b16 %v5685
      %v6017 = vunpack.c.h.b16 %v5685
      %v6018 = vunpack.c.l.b16 %v5686
      %v6019 = vunpack.c.h.b16 %v5686
      %v6020 = vunpack.c.l.b16 %v5687
      %v6021 = vunpack.c.h.b16 %v5687
      %v6022 = vunpack.c.l.b16 %v5688
      %v6023 = vunpack.c.h.b16 %v5688
      %v6024 = vunpack.c.l.b16 %v5689
      %v6025 = vunpack.c.h.b16 %v5689
      %v6026 = vunpack.c.l.b16 %v5690
      %v6027 = vunpack.c.h.b16 %v5690
      %v6028 = vunpack.c.l.b16 %v5691
      %v6029 = vunpack.c.h.b16 %v5691
      %v6030 = vunpack.c.l.b16 %v5692
      %v6031 = vunpack.c.h.b16 %v5692
      %v6032 = vunpack.c.l.b16 %v5693
      %v6033 = vunpack.c.h.b16 %v5693
      %v6034 = vunpack.c.l.b16 %v5694
      %v6035 = vunpack.c.h.b16 %v5694
      %v6036 = vunpack.c.l.b16 %v5695
      %v6037 = vunpack.c.h.b16 %v5695
      %v6038 = vunpack.c.l.b16 %v5696
      %v6039 = vunpack.c.h.b16 %v5696
      %v6040 = vunpack.c.l.b16 %v5697
      %v6041 = vunpack.c.h.b16 %v5697
      %v6042 = vunpack.c.l.b16 %v5698
      %v6043 = vunpack.c.h.b16 %v5698
      %v6044 = vunpack.c.l.b16 %v5699
      %v6045 = vunpack.c.h.b16 %v5699
      %v6046 = vunpack.c.l.b16 %v5700
      %v6047 = vunpack.c.h.b16 %v5700
      %v6048 = vunpack.c.l.b16 %v5701
      %v6049 = vunpack.c.h.b16 %v5701
      %v6050 = vunpack.c.l.b16 %v5702
      %v6051 = vunpack.c.h.b16 %v5702
      %v6052 = vunpack.c.l.b16 %v5703
      %v6053 = vunpack.c.h.b16 %v5703
      %v6054 = vunpack.c.l.b16 %v5704
      %v6055 = vunpack.c.h.b16 %v5704
      %v6056 = vunpack.c.l.b16 %v5705
      %v6057 = vunpack.c.h.b16 %v5705
      %v6058 = vunpack.c.l.b16 %v5706
      %v6059 = vunpack.c.h.b16 %v5706
      %v6060 = vunpack.c.l.b16 %v5707
      %v6061 = vunpack.c.h.b16 %v5707
      %v6062 = vunpack.c.l.b16 %v5708
      %v6063 = vunpack.c.h.b16 %v5708
      %v6064 = vunpack.c.l.b16 %v5709
      %v6065 = vunpack.c.h.b16 %v5709
      %v6066 = vunpack.c.l.b16 %v5710
      %v6067 = vunpack.c.h.b16 %v5710
      %v6068 = vunpack.c.l.b16 %v5711
      %v6069 = vunpack.c.h.b16 %v5711
      %v6070 = vunpack.c.l.b16 %v5712
      %v6071 = vunpack.c.h.b16 %v5712
      %v6072 = vunpack.c.l.b16 %v5713
      %v6073 = vunpack.c.h.b16 %v5713
      %v6074 = vunpack.c.l.b16 %v5714
      %v6075 = vunpack.c.h.b16 %v5714
      %v6076 = vunpack.c.l.b16 %v5715
      %v6077 = vunpack.c.h.b16 %v5715
      %v6078 = vunpack.c.l.b16 %v5716
      %v6079 = vunpack.c.h.b16 %v5716
      %v6080 = vunpack.c.l.b16 %v5717
      %v6081 = vunpack.c.h.b16 %v5717
      %v6082 = vunpack.c.l.b16 %v5718
      %v6083 = vunpack.c.h.b16 %v5718
      %v6084 = vunpack.c.l.b16 %v5719
      %v6085 = vunpack.c.h.b16 %v5719
      %v6086 = vunpack.c.l.b16 %v5720
      %v6087 = vunpack.c.h.b16 %v5720
      %v6088 = vunpack.c.l.b16 %v5721
      %v6089 = vunpack.c.h.b16 %v5721
      %v6090 = vunpack.c.l.b16 %v5722
      %v6091 = vunpack.c.h.b16 %v5722
      %v6092 = vunpack.c.l.b16 %v5723
      %v6093 = vunpack.c.h.b16 %v5723
      %v6094 = vunpack.c.l.b16 %v5724
      %v6095 = vunpack.c.h.b16 %v5724
      %v6096 = vunpack.c.l.b16 %v5725
      %v6097 = vunpack.c.h.b16 %v5725
      %v6098 = vunpack.c.l.b16 %v5726
      %v6099 = vunpack.c.h.b16 %v5726
      %v6100 = vunpack.c.l.b16 %v5727
      %v6101 = vunpack.c.h.b16 %v5727
      %v6102 = vunpack.c.l.b16 %v5728
      %v6103 = vunpack.c.h.b16 %v5728
      %v6104 = vunpack.c.l.b16 %v5729
      %v6105 = vunpack.c.h.b16 %v5729
      %v6106 = vunpack.c.l.b16 %v5730
      %v6107 = vunpack.c.h.b16 %v5730
      %v6108 = vunpack.c.l.b16 %v5731
      %v6109 = vunpack.c.h.b16 %v5731
      %v6110 = vunpack.c.l.b16 %v5732
      %v6111 = vunpack.c.h.b16 %v5732
      %v6112 = vunpack.c.l.b16 %v5733
      %v6113 = vunpack.c.h.b16 %v5733
      %v6114 = vunpack.c.l.b16 %v5734
      %v6115 = vunpack.c.h.b16 %v5734
      %v6116 = vunpack.c.l.b16 %v5735
      %v6117 = vunpack.c.h.b16 %v5735
      %v6118 = vunpack.c.l.b16 %v5736
      %v6119 = vunpack.c.h.b16 %v5736
      %v6120 = vunpack.c.l.b16 %v5737
      %v6121 = vunpack.c.h.b16 %v5737
      %v6122 = vunpack.c.l.b16 %v5738
      %v6123 = vunpack.c.h.b16 %v5738
      %v6124 = vunpack.c.l.b16 %v5739
      %v6125 = vunpack.c.h.b16 %v5739
      %v6126 = vunpack.c.l.b16 %v5740
      %v6127 = vunpack.c.h.b16 %v5740
      %v6128 = vunpack.c.l.b16 %v5741
      %v6129 = vunpack.c.h.b16 %v5741
      %v6130 = vunpack.c.l.b16 %v5742
      %v6131 = vunpack.c.h.b16 %v5742
      %v6132 = vunpack.c.l.b16 %v5743
      %v6133 = vunpack.c.h.b16 %v5743
      %v6134 = vunpack.c.l.b16 %v5744
      %v6135 = vunpack.c.h.b16 %v5744
      %v6136 = vunpack.c.l.b16 %v5745
      %v6137 = vunpack.c.h.b16 %v5745
      %v6138 = vunpack.c.l.b16 %v5746
      %v6139 = vunpack.c.h.b16 %v5746
      %v6140 = vunpack.c.l.b16 %v5747
      %v6141 = vunpack.c.h.b16 %v5747
      %v6142 = vunpack.c.l.b16 %v5748
      %v6143 = vunpack.c.h.b16 %v5748
      %v6144 = vunpack.c.l.b16 %v5749
      %v6145 = vunpack.c.h.b16 %v5749
      %v6146 = vunpack.c.l.b16 %v5750
      %v6147 = vunpack.c.h.b16 %v5750
      %v6148 = vunpack.c.l.b16 %v5751
      %v6149 = vunpack.c.h.b16 %v5751
      %v6150 = vunpack.c.l.b16 %v5752
      %v6151 = vunpack.c.h.b16 %v5752
      %v6152 = vunpack.c.l.b16 %v5753
      %v6153 = vunpack.c.h.b16 %v5753
      %v6154 = vunpack.c.l.b16 %v5754
      %v6155 = vunpack.c.h.b16 %v5754
      %v6156 = vunpack.c.l.b16 %v5755
      %v6157 = vunpack.c.h.b16 %v5755
      %v6158 = vunpack.c.l.b16 %v5756
      %v6159 = vunpack.c.h.b16 %v5756
      %v6160 = vunpack.c.l.b16 %v5757
      %v6161 = vunpack.c.h.b16 %v5757
      %v6162 = vunpack.c.l.b16 %v5758
      %v6163 = vunpack.c.h.b16 %v5758
      %v6164 = vunpack.c.l.b16 %v5759
      %v6165 = vunpack.c.h.b16 %v5759
      %v6166 = vunpack.c.l.b16 %v5760
      %v6167 = vunpack.c.h.b16 %v5760
      %v6168 = vunpack.c.l.b16 %v5761
      %v6169 = vunpack.c.h.b16 %v5761
      %v6170 = vpack.c.b16 %v5918, %v5914
      %v6171 = vpack.c.b16 %v5919, %v5915
      %v6172 = vpack.c.b16 %v5920, %v5916
      %v6173 = vpack.c.b16 %v5921, %v5917
      %v6174 = vpack.c.b16 %v5926, %v5922
      %v6175 = vpack.c.b16 %v5927, %v5923
      %v6176 = vpack.c.b16 %v5928, %v5924
      %v6177 = vpack.c.b16 %v5929, %v5925
      %v6178 = vpack.c.b16 %v5934, %v5930
      %v6179 = vpack.c.b16 %v5935, %v5931
      %v6180 = vpack.c.b16 %v5936, %v5932
      %v6181 = vpack.c.b16 %v5937, %v5933
      %v6182 = vpack.c.b16 %v5942, %v5938
      %v6183 = vpack.c.b16 %v5943, %v5939
      %v6184 = vpack.c.b16 %v5944, %v5940
      %v6185 = vpack.c.b16 %v5945, %v5941
      %v6186 = vpack.c.b16 %v5950, %v5946
      %v6187 = vpack.c.b16 %v5951, %v5947
      %v6188 = vpack.c.b16 %v5952, %v5948
      %v6189 = vpack.c.b16 %v5953, %v5949
      %v6190 = vpack.c.b16 %v5958, %v5954
      %v6191 = vpack.c.b16 %v5959, %v5955
      %v6192 = vpack.c.b16 %v5960, %v5956
      %v6193 = vpack.c.b16 %v5961, %v5957
      %v6194 = vpack.c.b16 %v5966, %v5962
      %v6195 = vpack.c.b16 %v5967, %v5963
      %v6196 = vpack.c.b16 %v5968, %v5964
      %v6197 = vpack.c.b16 %v5969, %v5965
      %v6198 = vpack.c.b16 %v5974, %v5970
      %v6199 = vpack.c.b16 %v5975, %v5971
      %v6200 = vpack.c.b16 %v5976, %v5972
      %v6201 = vpack.c.b16 %v5977, %v5973
      %v6202 = vpack.c.b16 %v5982, %v5978
      %v6203 = vpack.c.b16 %v5983, %v5979
      %v6204 = vpack.c.b16 %v5984, %v5980
      %v6205 = vpack.c.b16 %v5985, %v5981
      %v6206 = vpack.c.b16 %v5990, %v5986
      %v6207 = vpack.c.b16 %v5991, %v5987
      %v6208 = vpack.c.b16 %v5992, %v5988
      %v6209 = vpack.c.b16 %v5993, %v5989
      %v6210 = vpack.c.b16 %v5998, %v5994
      %v6211 = vpack.c.b16 %v5999, %v5995
      %v6212 = vpack.c.b16 %v6000, %v5996
      %v6213 = vpack.c.b16 %v6001, %v5997
      %v6214 = vpack.c.b16 %v6006, %v6002
      %v6215 = vpack.c.b16 %v6007, %v6003
      %v6216 = vpack.c.b16 %v6008, %v6004
      %v6217 = vpack.c.b16 %v6009, %v6005
      %v6218 = vpack.c.b16 %v6014, %v6010
      %v6219 = vpack.c.b16 %v6015, %v6011
      %v6220 = vpack.c.b16 %v6016, %v6012
      %v6221 = vpack.c.b16 %v6017, %v6013
      %v6222 = vpack.c.b16 %v6022, %v6018
      %v6223 = vpack.c.b16 %v6023, %v6019
      %v6224 = vpack.c.b16 %v6024, %v6020
      %v6225 = vpack.c.b16 %v6025, %v6021
      %v6226 = vpack.c.b16 %v6030, %v6026
      %v6227 = vpack.c.b16 %v6031, %v6027
      %v6228 = vpack.c.b16 %v6032, %v6028
      %v6229 = vpack.c.b16 %v6033, %v6029
      %v6230 = vpack.c.b16 %v6038, %v6034
      %v6231 = vpack.c.b16 %v6039, %v6035
      %v6232 = vpack.c.b16 %v6040, %v6036
      %v6233 = vpack.c.b16 %v6041, %v6037
      %v6234 = vpack.c.b16 %v6046, %v6042
      %v6235 = vpack.c.b16 %v6047, %v6043
      %v6236 = vpack.c.b16 %v6048, %v6044
      %v6237 = vpack.c.b16 %v6049, %v6045
      %v6238 = vpack.c.b16 %v6054, %v6050
      %v6239 = vpack.c.b16 %v6055, %v6051
      %v6240 = vpack.c.b16 %v6056, %v6052
      %v6241 = vpack.c.b16 %v6057, %v6053
      %v6242 = vpack.c.b16 %v6062, %v6058
      %v6243 = vpack.c.b16 %v6063, %v6059
      %v6244 = vpack.c.b16 %v6064, %v6060
      %v6245 = vpack.c.b16 %v6065, %v6061
      %v6246 = vpack.c.b16 %v6070, %v6066
      %v6247 = vpack.c.b16 %v6071, %v6067
      %v6248 = vpack.c.b16 %v6072, %v6068
      %v6249 = vpack.c.b16 %v6073, %v6069
      %v6250 = vpack.c.b16 %v6078, %v6074
      %v6251 = vpack.c.b16 %v6079, %v6075
      %v6252 = vpack.c.b16 %v6080, %v6076
      %v6253 = vpack.c.b16 %v6081, %v6077
      %v6254 = vpack.c.b16 %v6086, %v6082
      %v6255 = vpack.c.b16 %v6087, %v6083
      %v6256 = vpack.c.b16 %v6088, %v6084
      %v6257 = vpack.c.b16 %v6089, %v6085
      %v6258 = vpack.c.b16 %v6094, %v6090
      %v6259 = vpack.c.b16 %v6095, %v6091
      %v6260 = vpack.c.b16 %v6096, %v6092
      %v6261 = vpack.c.b16 %v6097, %v6093
      %v6262 = vpack.c.b16 %v6102, %v6098
      %v6263 = vpack.c.b16 %v6103, %v6099
      %v6264 = vpack.c.b16 %v6104, %v6100
      %v6265 = vpack.c.b16 %v6105, %v6101
      %v6266 = vpack.c.b16 %v6110, %v6106
      %v6267 = vpack.c.b16 %v6111, %v6107
      %v6268 = vpack.c.b16 %v6112, %v6108
      %v6269 = vpack.c.b16 %v6113, %v6109
      %v6270 = vpack.c.b16 %v6118, %v6114
      %v6271 = vpack.c.b16 %v6119, %v6115
      %v6272 = vpack.c.b16 %v6120, %v6116
      %v6273 = vpack.c.b16 %v6121, %v6117
      %v6274 = vpack.c.b16 %v6126, %v6122
      %v6275 = vpack.c.b16 %v6127, %v6123
      %v6276 = vpack.c.b16 %v6128, %v6124
      %v6277 = vpack.c.b16 %v6129, %v6125
      %v6278 = vpack.c.b16 %v6134, %v6130
      %v6279 = vpack.c.b16 %v6135, %v6131
      %v6280 = vpack.c.b16 %v6136, %v6132
      %v6281 = vpack.c.b16 %v6137, %v6133
      %v6282 = vpack.c.b16 %v6142, %v6138
      %v6283 = vpack.c.b16 %v6143, %v6139
      %v6284 = vpack.c.b16 %v6144, %v6140
      %v6285 = vpack.c.b16 %v6145, %v6141
      %v6286 = vpack.c.b16 %v6150, %v6146
      %v6287 = vpack.c.b16 %v6151, %v6147
      %v6288 = vpack.c.b16 %v6152, %v6148
      %v6289 = vpack.c.b16 %v6153, %v6149
      %v6290 = vpack.c.b16 %v6158, %v6154
      %v6291 = vpack.c.b16 %v6159, %v6155
      %v6292 = vpack.c.b16 %v6160, %v6156
      %v6293 = vpack.c.b16 %v6161, %v6157
      %v6294 = vpack.c.b16 %v6166, %v6162
      %v6295 = vpack.c.b16 %v6167, %v6163
      %v6296 = vpack.c.b16 %v6168, %v6164
      %v6297 = vpack.c.b16 %v6169, %v6165
      %6426 = vmatprep.subr.bf16.mxu0 %v6171
      %6427 = vmatpush1.bf16.msra.mxu0 %v6170
      %6428 = vmatprep.subr.bf16.mxu0 %v6175
      %6429 = vmatpush1.bf16.msra.mxu0 %v6174
      %6430 = vmatprep.subr.bf16.mxu0 %v6179
      %6431 = vmatpush1.bf16.msra.mxu0 %v6178
      %6432 = vmatprep.subr.bf16.mxu0 %v6183
      %6433 = vmatpush1.bf16.msra.mxu0 %v6182
      %6434 = vmatprep.subr.bf16.mxu0 %v6187
      %6435 = vmatpush1.bf16.msra.mxu0 %v6186
      %6436 = vmatprep.subr.bf16.mxu0 %v6191
      %6437 = vmatpush1.bf16.msra.mxu0 %v6190
      %6438 = vmatprep.subr.bf16.mxu0 %v6195
      %6439 = vmatpush1.bf16.msra.mxu0 %v6194
      %6440 = vmatprep.subr.bf16.mxu0 %v6199
      %6441 = vmatpush1.bf16.msra.mxu0 %v6198
      %6442 = vmatprep.subr.bf16.mxu0 %v6203
      %6443 = vmatpush1.bf16.msra.mxu0 %v6202
      %6444 = vmatprep.subr.bf16.mxu0 %v6207
      %6445 = vmatpush1.bf16.msra.mxu0 %v6206
      %6446 = vmatprep.subr.bf16.mxu0 %v6211
      %6447 = vmatpush1.bf16.msra.mxu0 %v6210
      %6448 = vmatprep.subr.bf16.mxu0 %v6215
      %6449 = vmatpush1.bf16.msra.mxu0 %v6214
      %6450 = vmatprep.subr.bf16.mxu0 %v6219
      %6451 = vmatpush1.bf16.msra.mxu0 %v6218
      %6452 = vmatprep.subr.bf16.mxu0 %v6223
      %6453 = vmatpush1.bf16.msra.mxu0 %v6222
      %6454 = vmatprep.subr.bf16.mxu0 %v6227
      %6455 = vmatpush1.bf16.msra.mxu0 %v6226
      %6456 = vmatprep.subr.bf16.mxu0 %v6231
      %6457 = vmatpush1.bf16.msra.mxu0 %v6230
      %6458 = vmatprep.mubr.bf16.mxu0 %v5624
      %6459 = vmatmul.mubr.bf16.gmra.mrb[0].mxu0 %v5623
      %v6460 = vpop.f32.mrb[0].mxu0
      %v6461 = vadd.f32 %v5769, %v6460
      %v6462 = vpop.f32.mrb[0].mxu0
      %v6463 = vadd.f32 %v5773, %v6462
      %v6464 = vpop.f32.mrb[0].mxu0
      %v6465 = vadd.f32 %v5769, %v6464
      %v6466 = vpop.f32.mrb[0].mxu0
      %v6467 = vadd.f32 %v5773, %v6466
      %6468 = vmatprep.mubr.bf16.mxu0 %v5628
      %6469 = vmatmul.mubr.bf16.gmra.mrb[0].mxu0 %v5627
      %v6470 = vpop.f32.mrb[0].mxu0
      %v6471 = vadd.f32 %v5769, %v6470
      %v6472 = vpop.f32.mrb[0].mxu0
      %v6473 = vadd.f32 %v5773, %v6472
      %v6474 = vpop.f32.mrb[0].mxu0
      %v6475 = vadd.f32 %v5769, %v6474
      %v6476 = vpop.f32.mrb[0].mxu0
      %v6477 = vadd.f32 %v5773, %v6476
      %6478 = vdwg.mxu0
      %6479 = vmatprep.subr.bf16.mxu0 %v6235
      %6480 = vmatpush1.bf16.msra.mxu0 %v6234
      %6481 = vmatprep.subr.bf16.mxu0 %v6239
      %6482 = vmatpush1.bf16.msra.mxu0 %v6238
      %6483 = vmatprep.subr.bf16.mxu0 %v6243
      %6484 = vmatpush1.bf16.msra.mxu0 %v6242
      %6485 = vmatprep.subr.bf16.mxu0 %v6247
      %6486 = vmatpush1.bf16.msra.mxu0 %v6246
      %6487 = vmatprep.subr.bf16.mxu0 %v6251
      %6488 = vmatpush1.bf16.msra.mxu0 %v6250
      %6489 = vmatprep.subr.bf16.mxu0 %v6255
      %6490 = vmatpush1.bf16.msra.mxu0 %v6254
      %6491 = vmatprep.subr.bf16.mxu0 %v6259
      %6492 = vmatpush1.bf16.msra.mxu0 %v6258
      %6493 = vmatprep.subr.bf16.mxu0 %v6263
      %6494 = vmatpush1.bf16.msra.mxu0 %v6262
      %6495 = vmatprep.subr.bf16.mxu0 %v6267
      %6496 = vmatpush1.bf16.msra.mxu0 %v6266
      %6497 = vmatprep.subr.bf16.mxu0 %v6271
      %6498 = vmatpush1.bf16.msra.mxu0 %v6270
      %6499 = vmatprep.subr.bf16.mxu0 %v6275
      %6500 = vmatpush1.bf16.msra.mxu0 %v6274
      %6501 = vmatprep.subr.bf16.mxu0 %v6279
      %6502 = vmatpush1.bf16.msra.mxu0 %v6278
      %6503 = vmatprep.subr.bf16.mxu0 %v6283
      %6504 = vmatpush1.bf16.msra.mxu0 %v6282
      %6505 = vmatprep.subr.bf16.mxu0 %v6287
      %6506 = vmatpush1.bf16.msra.mxu0 %v6286
      %6507 = vmatprep.subr.bf16.mxu0 %v6291
      %6508 = vmatpush1.bf16.msra.mxu0 %v6290
      %6509 = vmatprep.subr.bf16.mxu0 %v6295
      %6510 = vmatpush1.bf16.msra.mxu0 %v6294
      %6511 = vmatprep.mubr.bf16.mxu0 %v5626
      %6512 = vmatmul.mubr.bf16.gmra.mrb[0].mxu0 %v5625
      %v6513 = vpop.f32.mrb[0].mxu0
      %v6514 = vadd.f32 %v6461, %v6513
      %v6515 = vpop.f32.mrb[0].mxu0
      %v6516 = vadd.f32 %v6463, %v6515
      %v6517 = vpop.f32.mrb[0].mxu0
      %v6518 = vadd.f32 %v6465, %v6517
      %v6519 = vpop.f32.mrb[0].mxu0
      %v6520 = vadd.f32 %v6467, %v6519
      %6521 = vmatprep.mubr.bf16.mxu0 %v5630
      %6522 = vmatmul.mubr.bf16.gmra.mrb[0].mxu0 %v5629
      %v6523 = vpop.f32.mrb[0].mxu0
      %v6524 = vadd.f32 %v6471, %v6523
      %v6525 = vpop.f32.mrb[0].mxu0
      %v6526 = vadd.f32 %v6473, %v6525
      %v6527 = vpop.f32.mrb[0].mxu0
      %v6528 = vadd.f32 %v6475, %v6527
      %v6529 = vpop.f32.mrb[0].mxu0
      %v6530 = vadd.f32 %v6477, %v6529
      %6531 = vdwg.mxu0
      %6532 = vmatprep.subr.bf16.mxu0 %v6173
      %6533 = vmatpush1.bf16.msra.mxu0 %v6172
      %6534 = vmatprep.subr.bf16.mxu0 %v6177
      %6535 = vmatpush1.bf16.msra.mxu0 %v6176
      %6536 = vmatprep.subr.bf16.mxu0 %v6181
      %6537 = vmatpush1.bf16.msra.mxu0 %v6180
      %6538 = vmatprep.subr.bf16.mxu0 %v6185
      %6539 = vmatpush1.bf16.msra.mxu0 %v6184
      %6540 = vmatprep.subr.bf16.mxu0 %v6189
      %6541 = vmatpush1.bf16.msra.mxu0 %v6188
      %6542 = vmatprep.subr.bf16.mxu0 %v6193
      %6543 = vmatpush1.bf16.msra.mxu0 %v6192
      %6544 = vmatprep.subr.bf16.mxu0 %v6197
      %6545 = vmatpush1.bf16.msra.mxu0 %v6196
      %6546 = vmatprep.subr.bf16.mxu0 %v6201
      %6547 = vmatpush1.bf16.msra.mxu0 %v6200
      %6548 = vmatprep.subr.bf16.mxu0 %v6205
      %6549 = vmatpush1.bf16.msra.mxu0 %v6204
      %6550 = vmatprep.subr.bf16.mxu0 %v6209
      %6551 = vmatpush1.bf16.msra.mxu0 %v6208
      %6552 = vmatprep.subr.bf16.mxu0 %v6213
      %6553 = vmatpush1.bf16.msra.mxu0 %v6212
      %6554 = vmatprep.subr.bf16.mxu0 %v6217
      %6555 = vmatpush1.bf16.msra.mxu0 %v6216
      %6556 = vmatprep.subr.bf16.mxu0 %v6221
      %6557 = vmatpush1.bf16.msra.mxu0 %v6220
      %6558 = vmatprep.subr.bf16.mxu0 %v6225
      %6559 = vmatpush1.bf16.msra.mxu0 %v6224
      %6560 = vmatprep.subr.bf16.mxu0 %v6229
      %6561 = vmatpush1.bf16.msra.mxu0 %v6228
      %6562 = vmatprep.subr.bf16.mxu0 %v6233
      %6563 = vmatpush1.bf16.msra.mxu0 %v6232
      %6564 = vmatprep.mubr.bf16.mxu0 %v5624
      %6565 = vmatmul.mubr.bf16.gmra.mrb[0].mxu0 %v5623
      %v6566 = vpop.f32.mrb[0].mxu0
      %v6567 = vadd.f32 %v5777, %v6566
      %v6568 = vpop.f32.mrb[0].mxu0
      %v6569 = vadd.f32 %v5781, %v6568
      %v6570 = vpop.f32.mrb[0].mxu0
      %v6571 = vadd.f32 %v5777, %v6570
      %v6572 = vpop.f32.mrb[0].mxu0
      %v6573 = vadd.f32 %v5781, %v6572
      %6574 = vmatprep.mubr.bf16.mxu0 %v5628
      %6575 = vmatmul.mubr.bf16.gmra.mrb[0].mxu0 %v5627
      %v6576 = vpop.f32.mrb[0].mxu0
      %v6577 = vadd.f32 %v5777, %v6576
      %v6578 = vpop.f32.mrb[0].mxu0
      %v6579 = vadd.f32 %v5781, %v6578
      %v6580 = vpop.f32.mrb[0].mxu0
      %v6581 = vadd.f32 %v5777, %v6580
      %v6582 = vpop.f32.mrb[0].mxu0
      %v6583 = vadd.f32 %v5781, %v6582
      %6584 = vdwg.mxu0
      %6585 = vmatprep.subr.bf16.mxu0 %v6237
      %6586 = vmatpush1.bf16.msra.mxu0 %v6236
      %6587 = vmatprep.subr.bf16.mxu0 %v6241
      %6588 = vmatpush1.bf16.msra.mxu0 %v6240
      %6589 = vmatprep.subr.bf16.mxu0 %v6245
      %6590 = vmatpush1.bf16.msra.mxu0 %v6244
      %6591 = vmatprep.subr.bf16.mxu0 %v6249
      %6592 = vmatpush1.bf16.msra.mxu0 %v6248
      %6593 = vmatprep.subr.bf16.mxu0 %v6253
      %6594 = vmatpush1.bf16.msra.mxu0 %v6252
      %6595 = vmatprep.subr.bf16.mxu0 %v6257
      %6596 = vmatpush1.bf16.msra.mxu0 %v6256
      %6597 = vmatprep.subr.bf16.mxu0 %v6261
      %6598 = vmatpush1.bf16.msra.mxu0 %v6260
      %6599 = vmatprep.subr.bf16.mxu0 %v6265
      %6600 = vmatpush1.bf16.msra.mxu0 %v6264
      %6601 = vmatprep.subr.bf16.mxu0 %v6269
      %6602 = vmatpush1.bf16.msra.mxu0 %v6268
      %6603 = vmatprep.subr.bf16.mxu0 %v6273
      %6604 = vmatpush1.bf16.msra.mxu0 %v6272
      %6605 = vmatprep.subr.bf16.mxu0 %v6277
      %6606 = vmatpush1.bf16.msra.mxu0 %v6276
      %6607 = vmatprep.subr.bf16.mxu0 %v6281
      %6608 = vmatpush1.bf16.msra.mxu0 %v6280
      %6609 = vmatprep.subr.bf16.mxu0 %v6285
      %6610 = vmatpush1.bf16.msra.mxu0 %v6284
      %6611 = vmatprep.subr.bf16.mxu0 %v6289
      %6612 = vmatpush1.bf16.msra.mxu0 %v6288
      %6613 = vmatprep.subr.bf16.mxu0 %v6293
      %6614 = vmatpush1.bf16.msra.mxu0 %v6292
      %6615 = vmatprep.subr.bf16.mxu0 %v6297
      %6616 = vmatpush1.bf16.msra.mxu0 %v6296
      %6617 = vmatprep.mubr.bf16.mxu0 %v5626
      %6618 = vmatmul.mubr.bf16.gmra.mrb[0].mxu0 %v5625
      %v6619 = vpop.f32.mrb[0].mxu0
      %v6620 = vadd.f32 %v6567, %v6619
      %v6621 = vpop.f32.mrb[0].mxu0
      %v6622 = vadd.f32 %v6569, %v6621
      %v6623 = vpop.f32.mrb[0].mxu0
      %v6624 = vadd.f32 %v6571, %v6623
      %v6625 = vpop.f32.mrb[0].mxu0
      %v6626 = vadd.f32 %v6573, %v6625
      %6627 = vmatprep.mubr.bf16.mxu0 %v5630
      %6628 = vmatmul.mubr.bf16.gmra.mrb[0].mxu0 %v5629
      %v6629 = vpop.f32.mrb[0].mxu0
      %v6630 = vadd.f32 %v6577, %v6629
      %v6631 = vpop.f32.mrb[0].mxu0
      %v6632 = vadd.f32 %v6579, %v6631
      %v6633 = vpop.f32.mrb[0].mxu0
      %v6634 = vadd.f32 %v6581, %v6633
      %v6635 = vpop.f32.mrb[0].mxu0
      %v6636 = vadd.f32 %v6583, %v6635
      %6637 = vdwg.mxu0
      %6638 = vst [vmem:[#allocation10] sm:$0xff] %v6514
      %6639 = vst [vmem:[#allocation10 + $0x8] sm:$0xff] %v6516
      %6640 = vst [vmem:[#allocation10 + $0x10] sm:$0xff] %v6620
      %6641 = vst [vmem:[#allocation10 + $0x18] sm:$0xff] %v6622
      %6642 = vst [vmem:[#allocation10 + $0x20] sm:$0xff] %v6518
      %6643 = vst [vmem:[#allocation10 + $0x28] sm:$0xff] %v6520
      %6644 = vst [vmem:[#allocation10 + $0x30] sm:$0xff] %v6624
      %6645 = vst [vmem:[#allocation10 + $0x38] sm:$0xff] %v6626
      %6646 = vst [vmem:[#allocation10 + $0x40] sm:$0xff] %v6524
      %6647 = vst [vmem:[#allocation10 + $0x48] sm:$0xff] %v6526
      %6648 = vst [vmem:[#allocation10 + $0x50] sm:$0xff] %v6630
      %6649 = vst [vmem:[#allocation10 + $0x58] sm:$0xff] %v6632
      %6650 = vst [vmem:[#allocation10 + $0x60] sm:$0xff] %v6528
      %6651 = vst [vmem:[#allocation10 + $0x68] sm:$0xff] %v6530
      %6652 = vst [vmem:[#allocation10 + $0x70] sm:$0xff] %v6634
      %6653 = vst [vmem:[#allocation10 + $0x78] sm:$0xff] %v6636
    $region49: #{_run_kernel.3} parent=1 // pred_fallthru
      _
    %p6654 = scmp.le.s32.totalorder %s166, 0
    // Predicated region
    $region50: #{_run_kernel.3} parent=1 // pred_check
      %p6655 = pneg %p6654
    $region51: #{_run_kernel.3} parent=1 // pred_check_branch
      %6657 = sbr.rel (%p6655) target = $region53
    $region52: #{_run_kernel.3} parent=1 // pred_region
      %6658 = vst [vmem:[#allocation10] sm:$0xff] %v5603
      %6659 = vst [vmem:[#allocation10 + $0x8] sm:$0xff] %v5604
      %6660 = vst [vmem:[#allocation10 + $0x10] sm:$0xff] %v5605
      %6661 = vst [vmem:[#allocation10 + $0x18] sm:$0xff] %v5606
      %6662 = vst [vmem:[#allocation10 + $0x20] sm:$0xff] %v5607
      %6663 = vst [vmem:[#allocation10 + $0x28] sm:$0xff] %v5608
      %6664 = vst [vmem:[#allocation10 + $0x30] sm:$0xff] %v5609
      %6665 = vst [vmem:[#allocation10 + $0x38] sm:$0xff] %v5610
      %6666 = vst [vmem:[#allocation10 + $0x40] sm:$0xff] %v5611
      %6667 = vst [vmem:[#allocation10 + $0x48] sm:$0xff] %v5612
      %6668 = vst [vmem:[#allocation10 + $0x50] sm:$0xff] %v5613
      %6669 = vst [vmem:[#allocation10 + $0x58] sm:$0xff] %v5614
      %6670 = vst [vmem:[#allocation10 + $0x60] sm:$0xff] %v5615
      %6671 = vst [vmem:[#allocation10 + $0x68] sm:$0xff] %v5616
      %6672 = vst [vmem:[#allocation10 + $0x70] sm:$0xff] %v5617
      %6673 = vst [vmem:[#allocation10 + $0x78] sm:$0xff] %v5618
    $region53: #{_run_kernel.3} parent=1 // pred_fallthru
      _
    %s6674 = scalar_select %p167, 1, 0
    %v6675 = vstv %s6674
    %vm6676 = vcmp.eq.s32.totalorder %v6675, 1
    %v6677 = vsel %vm6676, %v4529, %v134
    %v6678 = vsel %vm6676, %v4530, %v135
    %v6679 = vsel %vm6676, %v4531, %v136
    %v6680 = vsel %vm6676, %v4532, %v137
    %v6681 = vsel %vm6676, %v4533, %v138
    %v6682 = vsel %vm6676, %v4534, %v139
    %v6683 = vsel %vm6676, %v4535, %v140
    %v6684 = vsel %vm6676, %v4536, %v141
    %v6685 = vsel %vm6676, %v4537, %v142
    %v6686 = vsel %vm6676, %v4538, %v143
    %v6687 = vsel %vm6676, %v4539, %v144
    %v6688 = vsel %vm6676, %v4540, %v145
    %v6689 = vsel %vm6676, %v4541, %v146
    %v6690 = vsel %vm6676, %v4542, %v147
    %v6691 = vsel %vm6676, %v4543, %v148
    %v6692 = vsel %vm6676, %v4544, %v149
    %v6693 = vsel %vm6676, %v4497, %v150
    %v6694 = vsel %vm6676, %v4498, %v151
    %v6695 = vsel %vm6676, %v4499, %v152
    %v6696 = vsel %vm6676, %v4500, %v153
    %v6697 = vsel %vm6676, %v4501, %v154
    %v6698 = vsel %vm6676, %v4502, %v155
    %v6699 = vsel %vm6676, %v4503, %v156
    %v6700 = vsel %vm6676, %v4504, %v157
    %v6701 = vsel %vm6676, %v4505, %v158
    %v6702 = vsel %vm6676, %v4506, %v159
    %v6703 = vsel %vm6676, %v4507, %v160
    %v6704 = vsel %vm6676, %v4508, %v161
    %v6705 = vsel %vm6676, %v4509, %v162
    %v6706 = vsel %vm6676, %v4510, %v163
    %v6707 = vsel %vm6676, %v4511, %v164
    %v6708 = vsel %vm6676, %v4512, %v165
    %6709 = vst [vmem:[#allocation11] sm:$0xff] %v6677
    %6710 = vst [vmem:[#allocation11 + $0x8] sm:$0xff] %v6678
    %6711 = vst [vmem:[#allocation11 + $0x10] sm:$0xff] %v6679
    %6712 = vst [vmem:[#allocation11 + $0x18] sm:$0xff] %v6680
    %6713 = vst [vmem:[#allocation11 + $0x20] sm:$0xff] %v6681
    %6714 = vst [vmem:[#allocation11 + $0x28] sm:$0xff] %v6682
    %6715 = vst [vmem:[#allocation11 + $0x30] sm:$0xff] %v6683
    %6716 = vst [vmem:[#allocation11 + $0x38] sm:$0xff] %v6684
    %6717 = vst [vmem:[#allocation11 + $0x40] sm:$0xff] %v6685
    %6718 = vst [vmem:[#allocation11 + $0x48] sm:$0xff] %v6686
    %6719 = vst [vmem:[#allocation11 + $0x50] sm:$0xff] %v6687
    %6720 = vst [vmem:[#allocation11 + $0x58] sm:$0xff] %v6688
    %6721 = vst [vmem:[#allocation11 + $0x60] sm:$0xff] %v6689
    %6722 = vst [vmem:[#allocation11 + $0x68] sm:$0xff] %v6690
    %6723 = vst [vmem:[#allocation11 + $0x70] sm:$0xff] %v6691
    %6724 = vst [vmem:[#allocation11 + $0x78] sm:$0xff] %v6692
    %6725 = vst [vmem:[#allocation13] sm:$0xff] %v6693
    %6726 = vst [vmem:[#allocation13 + $0x8] sm:$0xff] %v6694
    %6727 = vst [vmem:[#allocation13 + $0x10] sm:$0xff] %v6695
    %6728 = vst [vmem:[#allocation13 + $0x18] sm:$0xff] %v6696
    %6729 = vst [vmem:[#allocation13 + $0x20] sm:$0xff] %v6697
    %6730 = vst [vmem:[#allocation13 + $0x28] sm:$0xff] %v6698
    %6731 = vst [vmem:[#allocation13 + $0x30] sm:$0xff] %v6699
    %6732 = vst [vmem:[#allocation13 + $0x38] sm:$0xff] %v6700
    %6733 = vst [vmem:[#allocation13 + $0x40] sm:$0xff] %v6701
    %6734 = vst [vmem:[#allocation13 + $0x48] sm:$0xff] %v6702
    %6735 = vst [vmem:[#allocation13 + $0x50] sm:$0xff] %v6703
    %6736 = vst [vmem:[#allocation13 + $0x58] sm:$0xff] %v6704
    %6737 = vst [vmem:[#allocation13 + $0x60] sm:$0xff] %v6705
    %6738 = vst [vmem:[#allocation13 + $0x68] sm:$0xff] %v6706
    %6739 = vst [vmem:[#allocation13 + $0x70] sm:$0xff] %v6707
    %6740 = vst [vmem:[#allocation13 + $0x78] sm:$0xff] %v6708
    // Predicated region
    $region54: #{_run_kernel.3} parent=1 // pred_check
      _
    $region55: #{_run_kernel.3} parent=1 // pred_check_branch
      %6742 = sbr.rel (0) target = $region57
    $region56: #{_run_kernel.3} parent=1 // pred_region
      %s6744 = ssub.s32 2048, 2048
      %6745 = vsyncadd [#allocation7], %s6744
      %s6746 = sshll.u32 [#allocation10], 4
      %s6747 = int_to_ptr.vmem [resolvable:$true] %s6746
      %6752 = dma.vmem_to_hbm [thread:$0]  %s6747, 2048, %s10, [#allocation7], 512, 512, 32
    $region57: #{_run_kernel.3} parent=1 // pred_fallthru
      _
    // Predicated region
    $region58: #{_run_kernel.3} parent=1 // pred_check
      _
    $region59: #{_run_kernel.3} parent=1 // pred_check_branch
      %6754 = sbr.rel (0) target = $region61
    $region60: #{_run_kernel.3} parent=1 // pred_region
      %s6756 = ssub.s32 2048, 2048
      %6757 = vsyncadd [#allocation12], %s6756
      %s6758 = sshll.u32 [#allocation11], 4
      %s6759 = int_to_ptr.vmem [resolvable:$true] %s6758
      %6764 = dma.vmem_to_hbm [thread:$0]  %s6759, 2048, %s11, [#allocation12], 512, 512, 32
    $region61: #{_run_kernel.3} parent=1 // pred_fallthru
      _
    // Predicated region
    $region62: #{_run_kernel.3} parent=1 // pred_check
      _
    $region63: #{_run_kernel.3} parent=1 // pred_check_branch
      %6766 = sbr.rel (0) target = $region65
    $region64: #{_run_kernel.3} parent=1 // pred_region
      %s6768 = ssub.s32 2048, 2048
      %6769 = vsyncadd [#allocation12], %s6768
      %s6770 = sshll.u32 [#allocation13], 4
      %s6771 = int_to_ptr.vmem [resolvable:$true] %s6770
      %6776 = dma.vmem_to_hbm [thread:$0]  %s6771, 2048, %s12, [#allocation12], 512, 512, 32
    $region65: #{_run_kernel.3} parent=1 // pred_fallthru
      _
    // Predicated region
    $region66: #{_run_kernel.3} parent=1 // pred_check
      _
    $region67: #{_run_kernel.3} parent=1 // pred_check_branch
      %6778 = sbr.rel (0) target = $region69
    $region68: #{_run_kernel.3} parent=1 // pred_region
      %6779 = dma.done [#allocation7], 2048
    $region69: #{_run_kernel.3} parent=1 // pred_fallthru
      _
    // Predicated region
    $region70: #{_run_kernel.3} parent=1 // pred_check
      _
    $region71: #{_run_kernel.3} parent=1 // pred_check_branch
      %6781 = sbr.rel (0) target = $region73
    $region72: #{_run_kernel.3} parent=1 // pred_region
      %6782 = dma.done [#allocation12], 2048
    $region73: #{_run_kernel.3} parent=1 // pred_fallthru
      _
    // Predicated region
    $region74: #{_run_kernel.3} parent=1 // pred_check
      _
    $region75: #{_run_kernel.3} parent=1 // pred_check_branch
      %6784 = sbr.rel (0) target = $region77
    $region76: #{_run_kernel.3} parent=1 // pred_region
      %6785 = dma.done [#allocation12], 2048
    $region77: #{_run_kernel.3} parent=1 // pred_fallthru
      _
    %6786 = vsyncpa [#allocation6], 1
    %6787 = vsyncpa [#allocation9], 1
    %6788 = vsyncpa [#allocation7], 1
    %6789 = vsyncpa [#allocation12], 1

</llo_original>
